<compile_context>
chip_gen: v7x
topology: tpu7x:2x2x1
jax: 0.10.0
libtpu: 0.0.40
codegen_flags: <defaults>
</compile_context>

<pallas_src>
import functools
import math

import jax
import jax.numpy as jnp
from jax.experimental import pallas as pl
from jax.experimental.pallas import tpu as pltpu

EPS = 1e-5
LANE = 128           # TPU lane width: channel axis padded to a multiple of this


# ---------------------------------------------------------------------------
# Small helpers
# ---------------------------------------------------------------------------
def _round_up(v, m):
    return (v + m - 1) // m * m


def _nbytes(shape, dtype):
    return math.prod(shape) * jnp.dtype(dtype).itemsize


def _vmem_capacity_bytes():
    try:
        return int(pltpu.get_tpu_info().vmem_capacity_bytes)
    except Exception:
        return 64 << 20          # conservative: v7x has 64 MiB per TensorCore


def _compiler_params(block_bytes, scratch_bytes, temp_bytes):
    cap = _vmem_capacity_bytes()
    need = 2 * block_bytes + scratch_bytes + temp_bytes + (8 << 20)
    limit = min(max(need, 32 << 20), int(cap * 0.85))
    return pltpu.CompilerParams(dimension_semantics=("parallel",),
                                vmem_limit_bytes=int(limit))


def _fold_bn(partial_stats, gamma, beta, count):
    """Fold training-mode BN (batch stats + affine) into per-channel scale/shift."""
    s = jnp.sum(partial_stats, axis=0)            # (2, C): [sum, sum_sq]
    mean = s[0] / count
    var = jnp.maximum(s[1] / count - mean * mean, 0.0)   # biased batch variance
    scale = gamma * jax.lax.rsqrt(var + EPS)
    shift = beta - mean * scale
    return (scale.reshape(1, -1).astype(jnp.float32),
            shift.reshape(1, -1).astype(jnp.float32))


# ---------------------------------------------------------------------------
# In-kernel helpers
# ---------------------------------------------------------------------------
def _conv3x3(xpad_ref, x_bf16, w_ref, H, W, Cpi, Cpo):
    """3x3 / stride-1 / pad-1 conv of one batch tile.

    xpad_ref : VMEM scratch (TB, H+2, W+2, Cpi) bf16.
    x_bf16   : (TB, H, W, Cpi) bf16 interior.
    w_ref    : (9, Cpi, Cpo) bf16 weights (tap-major).
    returns  : (TB*H*W, Cpo) f32.
    """
    TB = x_bf16.shape[0]
    R = TB * H * W
    dt = xpad_ref.dtype

    # Zero only the 1-pixel halo; the interior is fully overwritten below.
    zrow = jnp.zeros((TB, 1, W + 2, Cpi), dt)
    zcol = jnp.zeros((TB, H + 2, 1, Cpi), dt)
    xpad_ref[:, 0:1, :, :] = zrow
    xpad_ref[:, H + 1:H + 2, :, :] = zrow
    xpad_ref[:, :, 0:1, :] = zcol
    xpad_ref[:, :, W + 1:W + 2, :] = zcol
    xpad_ref[:, 1:H + 1, 1:W + 1, :] = x_bf16

    # Nine accumulating matmuls, each with full K = Cpi (lane-dense); taps are
    # sliced straight off the scratch ref (no full-tile reload / concat).
    acc = jnp.zeros((R, Cpo), jnp.float32)
    t = 0
    for dh in range(3):
        for dw in range(3):
            if dh == 1 and dw == 1:
                tap = x_bf16                                  # reuse loaded value
            else:
                tap = xpad_ref[:, dh:dh + H, dw:dw + W, :]
            acc = acc + jnp.dot(tap.reshape(R, Cpi), w_ref[t],
                                preferred_element_type=jnp.float32)
            t += 1
    return acc


def _partial_stats(y2d):
    """Per-channel [sum, sum_of_squares] of a (rows, C) f32 tile -> (2, C)."""
    s = jnp.sum(y2d, axis=0, keepdims=True)
    ss = jnp.sum(y2d * y2d, axis=0, keepdims=True)
    return jnp.concatenate([s, ss], axis=0)


# ---------------------------------------------------------------------------
# Kernels
# ---------------------------------------------------------------------------
def _stage1_kernel(*refs, H, W, Cpi, Cpo, use_proj):
    # conv1 (+ optional 1x1 projection conv) and partial BN statistics.
    if use_proj:
        (x_ref, w1_ref, wp_ref,
         y1_ref, st1_ref, pr_ref, stp_ref, xpad_ref) = refs
    else:
        x_ref, w1_ref, y1_ref, st1_ref, xpad_ref = refs

    TB = x_ref.shape[0]
    R = TB * H * W
    x = x_ref[...]                                            # bf16 (TB,H,W,Cpi)

    y1 = _conv3x3(xpad_ref, x, w1_ref, H, W, Cpi, Cpo)        # (R, Cpo) f32
    y1_ref[...] = y1.reshape(TB, H, W, Cpo).astype(y1_ref.dtype)
    st1_ref[...] = _partial_stats(y1).reshape(1, 2, Cpo)

    if use_proj:
        pr = jnp.dot(x.reshape(R, Cpi), wp_ref[...],
                     preferred_element_type=jnp.float32)
        pr_ref[...] = pr.reshape(TB, H, W, Cpo).astype(pr_ref.dtype)
        stp_ref[...] = _partial_stats(pr).reshape(1, 2, Cpo)


def _stage2_kernel(y1_ref, sc1_ref, sh1_ref, w2_ref,
                   y2_ref, st2_ref, xpad_ref, *, H, W, Cp):
    # bn1 (folded scale/shift, f32 math) + ReLU + conv2 and partial stats.
    TB = y1_ref.shape[0]
    sc = sc1_ref[...].reshape(1, 1, 1, Cp)
    sh = sh1_ref[...].reshape(1, 1, 1, Cp)
    a1 = jnp.maximum(y1_ref[...].astype(jnp.float32) * sc + sh, 0.0)

    y2 = _conv3x3(xpad_ref, a1.astype(xpad_ref.dtype), w2_ref, H, W, Cp, Cp)
    y2_ref[...] = y2.reshape(TB, H, W, Cp).astype(y2_ref.dtype)
    st2_ref[...] = _partial_stats(y2).reshape(1, 2, Cp)


def _stage3_kernel(*refs, Cp, use_proj):
    # bn2 + skip connection (projection BN or identity) + ReLU.  f32 math.
    if use_proj:
        y2_ref, sc2_ref, sh2_ref, pr_ref, scp_ref, shp_ref, o_ref = refs
    else:
        y2_ref, sc2_ref, sh2_ref, x_ref, o_ref = refs

    sc2 = sc2_ref[...].reshape(1, 1, 1, Cp)
    sh2 = sh2_ref[...].reshape(1, 1, 1, Cp)
    out = y2_ref[...].astype(jnp.float32) * sc2 + sh2
    if use_proj:
        scp = scp_ref[...].reshape(1, 1, 1, Cp)
        shp = shp_ref[...].reshape(1, 1, 1, Cp)
        out = out + (pr_ref[...].astype(jnp.float32) * scp + shp)
    else:
        out = out + x_ref[...].astype(jnp.float32)
    o_ref[...] = jnp.maximum(out, 0.0)


# ---------------------------------------------------------------------------
# Host-side wrapper
# ---------------------------------------------------------------------------
def resblock_pallas(x_nchw, params):
    """ResBlock forward (training-mode BatchNorm). NCHW in -> NCHW out."""
    x = jnp.transpose(x_nchw, (0, 2, 3, 1)).astype(jnp.float32)   # NHWC
    N, H, W, Cin = x.shape
    Cout = params["w1"].shape[-1]
    use_proj = Cin != Cout
    Cpi, Cpo = _round_up(Cin, LANE), _round_up(Cout, LANE)
    f32, bf16 = jnp.float32, jnp.bfloat16
    r_tot = N * H * W

    # ---- lane-dense, channel-padded operands (bf16 at the HBM/MXU boundary) --
    xp = jnp.pad(x, ((0, 0), (0, 0), (0, 0), (0, Cpi - Cin))).astype(bf16)

    def pad_conv_w(w, cpi, cpo):
        kh, kw, ci, co = w.shape
        w = jnp.pad(w, ((0, 0), (0, 0), (0, cpi - ci), (0, cpo - co)))
        return w.reshape(kh * kw, cpi, cpo).astype(bf16)

    w1c = pad_conv_w(params["w1"], Cpi, Cpo)                       # (9,Cpi,Cpo)
    w2c = pad_conv_w(params["w2"], Cpo, Cpo)                       # (9,Cpo,Cpo)

    def pad_vec(v, cp):
        return jnp.pad(v.astype(f32), (0, cp - v.shape[0]))        # pad with 0

    g1, b1 = pad_vec(params["g1"], Cpo), pad_vec(params["b1"], Cpo)
    g2, b2 = pad_vec(params["g2"], Cpo), pad_vec(params["b2"], Cpo)

    # ---- batch-tile size from per-sample footprint vs per-generation VMEM ----
    vmem_cap = _vmem_capacity_bytes()
    per_sample = (H * W * (2 * Cpi + (2 + 4) * Cpo * (1 + int(use_proj)))
                  + (H + 2) * (W + 2) * 2 * max(Cpi, Cpo))
    w_bytes = _nbytes((9, Cpi, Cpo), bf16) + _nbytes((9, Cpo, Cpo), bf16)
    budget = max(int(0.30 * vmem_cap) - 2 * w_bytes, per_sample)
    TB = 1
    for d in range(1, min(N, 8) + 1):           # TB divides N -> no ragged tail
        if N % d == 0 and 2 * d * per_sample <= budget:
            TB = d
    n_tiles = N // TB

    def tile_spec(C):
        return pl.BlockSpec((TB, H, W, C), lambda i: (i, 0, 0, 0))

    def const_spec(shape):
        return pl.BlockSpec(shape, lambda i: (0,) * len(shape))

    stats_spec = pl.BlockSpec((1, 2, Cpo), lambda i: (i, 0, 0))
    act_bf16 = jax.ShapeDtypeStruct((N, H, W, Cpo), bf16)
    stats_shape = jax.ShapeDtypeStruct((n_tiles, 2, Cpo), f32)

    # ---- stage 1: conv1 (+ optional 1x1 projection conv) + partial stats ----
    s1_ins = [xp, w1c]
    s1_in_specs = [tile_spec(Cpi), const_spec((9, Cpi, Cpo))]
    s1_outs = [act_bf16, stats_shape]
    s1_out_specs = [tile_spec(Cpo), stats_spec]
    if use_proj:
        wpc = jnp.pad(params["wp"].reshape(Cin, Cout),
                      ((0, Cpi - Cin), (0, Cpo - Cout))).astype(bf16)
        s1_ins.append(wpc)
        s1_in_specs.append(const_spec((Cpi, Cpo)))
        s1_outs += [act_bf16, stats_shape]
        s1_out_specs += [tile_spec(Cpo), stats_spec]

    blk1 = (_nbytes((TB, H, W, Cpi), bf16) + _nbytes((9, Cpi, Cpo), bf16)
            + (1 + use_proj) * (_nbytes((TB, H, W, Cpo), bf16)
                                + _nbytes((1, 2, Cpo), f32))
            + use_proj * _nbytes((Cpi, Cpo), bf16))
    scr1 = _nbytes((TB, H + 2, W + 2, Cpi), bf16)
    tmp1 = 2 * (1 + use_proj) * _nbytes((TB * H * W, Cpo), f32)
    flops1 = 2 * r_tot * 9 * Cpi * Cpo + (2 * r_tot * Cpi * Cpo if use_proj else 0)

    stage1 = pl.pallas_call(
        functools.partial(_stage1_kernel, H=H, W=W, Cpi=Cpi, Cpo=Cpo,
                          use_proj=use_proj),
        grid=(n_tiles,),
        in_specs=s1_in_specs,
        out_specs=tuple(s1_out_specs),
        out_shape=tuple(s1_outs),
        scratch_shapes=[pltpu.VMEM((TB, H + 2, W + 2, Cpi), bf16)],
        compiler_params=_compiler_params(blk1, scr1, tmp1),
        cost_estimate=pl.CostEstimate(
            flops=flops1, transcendentals=0,
            bytes_accessed=_nbytes((N, H, W, Cpi), bf16)
            + (1 + use_proj) * _nbytes((N, H, W, Cpo), bf16)),
    )
    res1 = stage1(*s1_ins)
    if use_proj:
        y1_raw, st1, proj_raw, stp = res1
    else:
        y1_raw, st1 = res1

    sc1, sh1 = _fold_bn(st1, g1, b1, r_tot)

    # ---- stage 2: bn1 + ReLU + conv2 + partial stats ----
    blk2 = (2 * _nbytes((TB, H, W, Cpo), bf16) + 2 * _nbytes((1, Cpo), f32)
            + _nbytes((9, Cpo, Cpo), bf16) + _nbytes((1, 2, Cpo), f32))
    scr2 = _nbytes((TB, H + 2, W + 2, Cpo), bf16)
    tmp2 = 3 * _nbytes((TB * H * W, Cpo), f32)

    stage2 = pl.pallas_call(
        functools.partial(_stage2_kernel, H=H, W=W, Cp=Cpo),
        grid=(n_tiles,),
        in_specs=[tile_spec(Cpo), const_spec((1, Cpo)), const_spec((1, Cpo)),
                  const_spec((9, Cpo, Cpo))],
        out_specs=(tile_spec(Cpo), stats_spec),
        out_shape=(act_bf16, stats_shape),
        scratch_shapes=[pltpu.VMEM((TB, H + 2, W + 2, Cpo), bf16)],
        compiler_params=_compiler_params(blk2, scr2, tmp2),
        cost_estimate=pl.CostEstimate(
            flops=2 * r_tot * 9 * Cpo * Cpo, transcendentals=0,
            bytes_accessed=2 * _nbytes((N, H, W, Cpo), bf16)),
    )
    y2_raw, st2 = stage2(y1_raw, sc1, sh1, w2c)

    sc2, sh2 = _fold_bn(st2, g2, b2, r_tot)

    # ---- stage 3: bn2 + skip + ReLU (elementwise; lane-dense f32 output) ----
    s3_ins = [y2_raw, sc2, sh2]
    s3_in_specs = [tile_spec(Cpo), const_spec((1, Cpo)), const_spec((1, Cpo))]
    if use_proj:
        gp, bp = pad_vec(params["gp"], Cpo), pad_vec(params["bp"], Cpo)
        scp, shp = _fold_bn(stp, gp, bp, r_tot)
        s3_ins += [proj_raw, scp, shp]
        s3_in_specs += [tile_spec(Cpo), const_spec((1, Cpo)), const_spec((1, Cpo))]
    else:
        s3_ins.append(xp)
        s3_in_specs.append(tile_spec(Cpi))

    blk3 = ((2 + use_proj) * _nbytes((TB, H, W, Cpo), bf16)
            + _nbytes((TB, H, W, Cpo), f32) + 4 * _nbytes((1, Cpo), f32))
    stage3 = pl.pallas_call(
        functools.partial(_stage3_kernel, Cp=Cpo, use_proj=use_proj),
        grid=(n_tiles,),
        in_specs=s3_in_specs,
        out_specs=tile_spec(Cpo),
        out_shape=jax.ShapeDtypeStruct((N, H, W, Cpo), f32),
        compiler_params=_compiler_params(blk3, 0, 2 * _nbytes((TB, H, W, Cpo), f32)),
        cost_estimate=pl.CostEstimate(
            flops=6 * r_tot * Cpo, transcendentals=0,
            bytes_accessed=(2 + use_proj) * _nbytes((N, H, W, Cpo), bf16)
            + _nbytes((N, H, W, Cpo), f32)),
    )
    out = stage3(*s3_ins)
    out = out[..., :Cout]                            # drop channel padding
    return jnp.transpose(out, (0, 3, 1, 2))          # NHWC -> NCHW


# ---------------------------------------------------------------------------
# Parameters + pure-JAX reference
# ---------------------------------------------------------------------------
def init_params(key, cin, cout):
    ks = jax.random.split(key, 9)
    return {
        "w1": jax.random.normal(ks[0], (3, 3, cin, cout), jnp.float32) * 0.1,
        "w2": jax.random.normal(ks[1], (3, 3, cout, cout), jnp.float32) * 0.1,
        "wp": jax.random.normal(ks[2], (1, 1, cin, cout), jnp.float32) * 0.1,
        "g1": 1.0 + 0.1 * jax.random.normal(ks[3], (cout,), jnp.float32),
        "b1": 0.1 * jax.random.normal(ks[4], (cout,), jnp.float32),
        "g2": 1.0 + 0.1 * jax.random.normal(ks[5], (cout,), jnp.float32),
        "b2": 0.1 * jax.random.normal(ks[6], (cout,), jnp.float32),
        "gp": 1.0 + 0.1 * jax.random.normal(ks[7], (cout,), jnp.float32),
        "bp": 0.1 * jax.random.normal(ks[8], (cout,), jnp.float32),
    }


def resblock_ref(x_nchw, params):
    """Pure-JAX reference (lax conv, f32) of the same training-mode forward."""
    x = jnp.transpose(x_nchw, (0, 2, 3, 1)).astype(jnp.float32)
    cin = x.shape[-1]
    cout = params["w1"].shape[-1]
    dn = ("NHWC", "HWIO", "NHWC")

    def conv(v, w, pad):
        return jax.lax.conv_general_dilated(v, w, (1, 1), ((pad, pad), (pad, pad)),
                                            dimension_numbers=dn)

    def bn(v, g, b):
        mean = jnp.mean(v, axis=(0, 1, 2), keepdims=True)
        var = jnp.mean((v - mean) ** 2, axis=(0, 1, 2), keepdims=True)
        return (v - mean) * jax.lax.rsqrt(var + EPS) * g + b

    out = jax.nn.relu(bn(conv(x, params["w1"], 1), params["g1"], params["b1"]))
    out = bn(conv(out, params["w2"], 1), params["g2"], params["b2"])
    if cin != cout:
        ident = bn(conv(x, params["wp"], 0), params["gp"], params["bp"])
    else:
        ident = x
    return jnp.transpose(jax.nn.relu(out + ident), (0, 3, 1, 2))


if __name__ == "__main__":
    key = jax.random.PRNGKey(0)
    kx, kp, kx2, kp2 = jax.random.split(key, 4)

    # Projection-skip path (Cin != Cout).
    N, Cin, Cout, H, W = 2, 4, 8, 16, 16
    x = jax.random.normal(kx, (N, Cin, H, W), jnp.float32)
    params = init_params(kp, Cin, Cout)
    out = jax.block_until_ready(resblock_pallas(x, params))
    ref = resblock_ref(x, params)
    assert out.shape == (N, Cout, H, W)
    err = float(jnp.max(jnp.abs(out - ref)))
    # bf16 MXU operands and bf16 inter-stage activations (f32 accumulation and
    # f32 BN math) -> relaxed tolerance vs the f32 reference.
    assert jnp.allclose(out, ref, atol=8e-2, rtol=8e-2), f"proj path max abs err {err}"

    # Identity-skip path (Cin == Cout).
    x2 = jax.random.normal(kx2, (N, Cout, H, W), jnp.float32)
    params2 = init_params(kp2, Cout, Cout)
    out2 = jax.block_until_ready(resblock_pallas(x2, params2))
    ref2 = resblock_ref(x2, params2)
    err2 = float(jnp.max(jnp.abs(out2 - ref2)))
    assert jnp.allclose(out2, ref2, atol=8e-2, rtol=8e-2), f"identity path max abs err {err2}"

    print("KERNEL_OK")
</pallas_src>

<mosaic_0001>
module attributes {stable_mosaic.version = 11 : i64} {
  func.func @_stage1_kernel(%arg0: i32, %arg1: memref<2x16x16x128xbf16, #tpu.memory_space<vmem>>, %arg2: memref<9x128x128xbf16, #tpu.memory_space<vmem>>, %arg3: memref<128x128xbf16, #tpu.memory_space<vmem>>, %arg4: memref<2x16x16x128xbf16, #tpu.memory_space<vmem>>, %arg5: memref<1x2x128xf32, #tpu.memory_space<vmem>>, %arg6: memref<2x16x16x128xbf16, #tpu.memory_space<vmem>>, %arg7: memref<1x2x128xf32, #tpu.memory_space<vmem>>, %arg8: memref<2x18x18x128xbf16, #tpu.memory_space<vmem>>) attributes {dimension_semantics = [#tpu.dimension_semantics<parallel>], iteration_bounds = array<i64: 1>, scalar_prefetch = 0 : i64, scratch_operands = 1 : i64, tpu.core_type = #tpu.core_type<tc>, window_params = [{transform_indices = @transform_0, window_bounds = array<i64: 2, 16, 16, 128>}, {pipeline_mode = #tpu.pipeline_mode<synchronous>, transform_indices = @transform_1, window_bounds = array<i64: 9, 128, 128>}, {pipeline_mode = #tpu.pipeline_mode<synchronous>, transform_indices = @transform_2, window_bounds = array<i64: 128, 128>}, {transform_indices = @transform_3, window_bounds = array<i64: 2, 16, 16, 128>}, {transform_indices = @transform_4, window_bounds = array<i64: 1, 2, 128>}, {transform_indices = @transform_5, window_bounds = array<i64: 2, 16, 16, 128>}, {transform_indices = @transform_6, window_bounds = array<i64: 1, 2, 128>}]} {
    %c0 = arith.constant 0 : index
    %c0_0 = arith.constant 0 : index
    %c0_1 = arith.constant 0 : index
    %c0_2 = arith.constant 0 : index
    %0 = vector.load %arg1[%c0, %c0_0, %c0_1, %c0_2] : memref<2x16x16x128xbf16, #tpu.memory_space<vmem>>, vector<2x16x16x128xbf16>
    %cst = arith.constant 0.000000e+00 : bf16
    %1 = vector.broadcast %cst : bf16 to vector<2x1x18x128xbf16>
    %cst_3 = arith.constant 0.000000e+00 : bf16
    %2 = vector.broadcast %cst_3 : bf16 to vector<2x18x1x128xbf16>
    %c0_4 = arith.constant 0 : index
    %c0_5 = arith.constant 0 : index
    %c0_6 = arith.constant 0 : index
    %c0_7 = arith.constant 0 : index
    %3 = vector.load %arg8[%c0_4, %c0_5, %c0_6, %c0_7] : memref<2x18x18x128xbf16, #tpu.memory_space<vmem>>, vector<2x1x18x128xbf16>
    tpu.vector_store %arg8[%c0_4, %c0_5, %c0_6, %c0_7], %1 {strides = array<i32>} : memref<2x18x18x128xbf16, #tpu.memory_space<vmem>>, vector<2x1x18x128xbf16>,
    %c0_8 = arith.constant 0 : index
    %c17 = arith.constant 17 : index
    %c0_9 = arith.constant 0 : index
    %c0_10 = arith.constant 0 : index
    %4 = vector.load %arg8[%c0_8, %c17, %c0_9, %c0_10] : memref<2x18x18x128xbf16, #tpu.memory_space<vmem>>, vector<2x1x18x128xbf16>
    tpu.vector_store %arg8[%c0_8, %c17, %c0_9, %c0_10], %1 {strides = array<i32>} : memref<2x18x18x128xbf16, #tpu.memory_space<vmem>>, vector<2x1x18x128xbf16>,
    %c0_11 = arith.constant 0 : index
    %c0_12 = arith.constant 0 : index
    %c0_13 = arith.constant 0 : index
    %c0_14 = arith.constant 0 : index
    %5 = vector.load %arg8[%c0_11, %c0_12, %c0_13, %c0_14] : memref<2x18x18x128xbf16, #tpu.memory_space<vmem>>, vector<2x18x1x128xbf16>
    tpu.vector_store %arg8[%c0_11, %c0_12, %c0_13, %c0_14], %2 {strides = array<i32>} : memref<2x18x18x128xbf16, #tpu.memory_space<vmem>>, vector<2x18x1x128xbf16>,
    %c0_15 = arith.constant 0 : index
    %c0_16 = arith.constant 0 : index
    %c17_17 = arith.constant 17 : index
    %c0_18 = arith.constant 0 : index
    %6 = vector.load %arg8[%c0_15, %c0_16, %c17_17, %c0_18] : memref<2x18x18x128xbf16, #tpu.memory_space<vmem>>, vector<2x18x1x128xbf16>
    tpu.vector_store %arg8[%c0_15, %c0_16, %c17_17, %c0_18], %2 {strides = array<i32>} : memref<2x18x18x128xbf16, #tpu.memory_space<vmem>>, vector<2x18x1x128xbf16>,
    %c0_19 = arith.constant 0 : index
    %c1 = arith.constant 1 : index
    %c1_20 = arith.constant 1 : index
    %c0_21 = arith.constant 0 : index
    %7 = vector.load %arg8[%c0_19, %c1, %c1_20, %c0_21] : memref<2x18x18x128xbf16, #tpu.memory_space<vmem>>, vector<2x16x16x128xbf16>
    tpu.vector_store %arg8[%c0_19, %c1, %c1_20, %c0_21], %0 {strides = array<i32>} : memref<2x18x18x128xbf16, #tpu.memory_space<vmem>>, vector<2x16x16x128xbf16>,
    %cst_22 = arith.constant 0.000000e+00 : f32
    %8 = vector.broadcast %cst_22 : f32 to vector<512x128xf32>
    %c0_23 = arith.constant 0 : index
    %c0_24 = arith.constant 0 : index
    %c0_25 = arith.constant 0 : index
    %c0_26 = arith.constant 0 : index
    %9 = vector.load %arg8[%c0_23, %c0_24, %c0_25, %c0_26] : memref<2x18x18x128xbf16, #tpu.memory_space<vmem>>, vector<2x16x16x128xbf16>
    %10 = vector.shape_cast %9 : vector<2x16x16x128xbf16> to vector<512x128xbf16>
    %c0_27 = arith.constant 0 : index
    %c0_28 = arith.constant 0 : index
    %c0_29 = arith.constant 0 : index
    %11 = vector.load %arg2[%c0_27, %c0_28, %c0_29] : memref<9x128x128xbf16, #tpu.memory_space<vmem>>, vector<1x128x128xbf16>
    %12 = vector.shape_cast %11 : vector<1x128x128xbf16> to vector<128x128xbf16>
    %cst_30 = arith.constant dense<0.000000e+00> : vector<512x128xf32>
    %13 = tpu.matmul %10, %12, %cst_30 {dimension_numbers = #tpu.dot_dimension_numbers<[1], [0], [0], [1], [0, 0, 1, 1], [], []>} : vector<512x128xbf16>, vector<128x128xbf16>, vector<512x128xf32> -> vector<512x128xf32>
    %14 = arith.addf %8, %13 : vector<512x128xf32>
    %c0_31 = arith.constant 0 : index
    %c0_32 = arith.constant 0 : index
    %c1_33 = arith.constant 1 : index
    %c0_34 = arith.constant 0 : index
    %15 = vector.load %arg8[%c0_31, %c0_32, %c1_33, %c0_34] : memref<2x18x18x128xbf16, #tpu.memory_space<vmem>>, vector<2x16x16x128xbf16>
    %16 = vector.shape_cast %15 : vector<2x16x16x128xbf16> to vector<512x128xbf16>
    %c1_35 = arith.constant 1 : index
    %c0_36 = arith.constant 0 : index
    %c0_37 = arith.constant 0 : index
    %17 = vector.load %arg2[%c1_35, %c0_36, %c0_37] : memref<9x128x128xbf16, #tpu.memory_space<vmem>>, vector<1x128x128xbf16>
    %18 = vector.shape_cast %17 : vector<1x128x128xbf16> to vector<128x128xbf16>
    %cst_38 = arith.constant dense<0.000000e+00> : vector<512x128xf32>
    %19 = tpu.matmul %16, %18, %cst_38 {dimension_numbers = #tpu.dot_dimension_numbers<[1], [0], [0], [1], [0, 0, 1, 1], [], []>} : vector<512x128xbf16>, vector<128x128xbf16>, vector<512x128xf32> -> vector<512x128xf32>
    %20 = arith.addf %14, %19 : vector<512x128xf32>
    %c0_39 = arith.constant 0 : index
    %c0_40 = arith.constant 0 : index
    %c2 = arith.constant 2 : index
    %c0_41 = arith.constant 0 : index
    %21 = vector.load %arg8[%c0_39, %c0_40, %c2, %c0_41] : memref<2x18x18x128xbf16, #tpu.memory_space<vmem>>, vector<2x16x16x128xbf16>
    %22 = vector.shape_cast %21 : vector<2x16x16x128xbf16> to vector<512x128xbf16>
    %c2_42 = arith.constant 2 : index
    %c0_43 = arith.constant 0 : index
    %c0_44 = arith.constant 0 : index
    %23 = vector.load %arg2[%c2_42, %c0_43, %c0_44] : memref<9x128x128xbf16, #tpu.memory_space<vmem>>, vector<1x128x128xbf16>
    %24 = vector.shape_cast %23 : vector<1x128x128xbf16> to vector<128x128xbf16>
    %cst_45 = arith.constant dense<0.000000e+00> : vector<512x128xf32>
    %25 = tpu.matmul %22, %24, %cst_45 {dimension_numbers = #tpu.dot_dimension_numbers<[1], [0], [0], [1], [0, 0, 1, 1], [], []>} : vector<512x128xbf16>, vector<128x128xbf16>, vector<512x128xf32> -> vector<512x128xf32>
    %26 = arith.addf %20, %25 : vector<512x128xf32>
    %c0_46 = arith.constant 0 : index
    %c1_47 = arith.constant 1 : index
    %c0_48 = arith.constant 0 : index
    %c0_49 = arith.constant 0 : index
    %27 = vector.load %arg8[%c0_46, %c1_47, %c0_48, %c0_49] : memref<2x18x18x128xbf16, #tpu.memory_space<vmem>>, vector<2x16x16x128xbf16>
    %28 = vector.shape_cast %27 : vector<2x16x16x128xbf16> to vector<512x128xbf16>
    %c3 = arith.constant 3 : index
    %c0_50 = arith.constant 0 : index
    %c0_51 = arith.constant 0 : index
    %29 = vector.load %arg2[%c3, %c0_50, %c0_51] : memref<9x128x128xbf16, #tpu.memory_space<vmem>>, vector<1x128x128xbf16>
    %30 = vector.shape_cast %29 : vector<1x128x128xbf16> to vector<128x128xbf16>
    %cst_52 = arith.constant dense<0.000000e+00> : vector<512x128xf32>
    %31 = tpu.matmul %28, %30, %cst_52 {dimension_numbers = #tpu.dot_dimension_numbers<[1], [0], [0], [1], [0, 0, 1, 1], [], []>} : vector<512x128xbf16>, vector<128x128xbf16>, vector<512x128xf32> -> vector<512x128xf32>
    %32 = arith.addf %26, %31 : vector<512x128xf32>
    %33 = vector.shape_cast %0 : vector<2x16x16x128xbf16> to vector<512x128xbf16>
    %c4 = arith.constant 4 : index
    %c0_53 = arith.constant 0 : index
    %c0_54 = arith.constant 0 : index
    %34 = vector.load %arg2[%c4, %c0_53, %c0_54] : memref<9x128x128xbf16, #tpu.memory_space<vmem>>, vector<1x128x128xbf16>
    %35 = vector.shape_cast %34 : vector<1x128x128xbf16> to vector<128x128xbf16>
    %cst_55 = arith.constant dense<0.000000e+00> : vector<512x128xf32>
    %36 = tpu.matmul %33, %35, %cst_55 {dimension_numbers = #tpu.dot_dimension_numbers<[1], [0], [0], [1], [0, 0, 1, 1], [], []>} : vector<512x128xbf16>, vector<128x128xbf16>, vector<512x128xf32> -> vector<512x128xf32>
    %37 = arith.addf %32, %36 : vector<512x128xf32>
    %c0_56 = arith.constant 0 : index
    %c1_57 = arith.constant 1 : index
    %c2_58 = arith.constant 2 : index
    %c0_59 = arith.constant 0 : index
    %38 = vector.load %arg8[%c0_56, %c1_57, %c2_58, %c0_59] : memref<2x18x18x128xbf16, #tpu.memory_space<vmem>>, vector<2x16x16x128xbf16>
    %39 = vector.shape_cast %38 : vector<2x16x16x128xbf16> to vector<512x128xbf16>
    %c5 = arith.constant 5 : index
    %c0_60 = arith.constant 0 : index
    %c0_61 = arith.constant 0 : index
    %40 = vector.load %arg2[%c5, %c0_60, %c0_61] : memref<9x128x128xbf16, #tpu.memory_space<vmem>>, vector<1x128x128xbf16>
    %41 = vector.shape_cast %40 : vector<1x128x128xbf16> to vector<128x128xbf16>
    %cst_62 = arith.constant dense<0.000000e+00> : vector<512x128xf32>
    %42 = tpu.matmul %39, %41, %cst_62 {dimension_numbers = #tpu.dot_dimension_numbers<[1], [0], [0], [1], [0, 0, 1, 1], [], []>} : vector<512x128xbf16>, vector<128x128xbf16>, vector<512x128xf32> -> vector<512x128xf32>
    %43 = arith.addf %37, %42 : vector<512x128xf32>
    %c0_63 = arith.constant 0 : index
    %c2_64 = arith.constant 2 : index
    %c0_65 = arith.constant 0 : index
    %c0_66 = arith.constant 0 : index
    %44 = vector.load %arg8[%c0_63, %c2_64, %c0_65, %c0_66] : memref<2x18x18x128xbf16, #tpu.memory_space<vmem>>, vector<2x16x16x128xbf16>
    %45 = vector.shape_cast %44 : vector<2x16x16x128xbf16> to vector<512x128xbf16>
    %c6 = arith.constant 6 : index
    %c0_67 = arith.constant 0 : index
    %c0_68 = arith.constant 0 : index
    %46 = vector.load %arg2[%c6, %c0_67, %c0_68] : memref<9x128x128xbf16, #tpu.memory_space<vmem>>, vector<1x128x128xbf16>
    %47 = vector.shape_cast %46 : vector<1x128x128xbf16> to vector<128x128xbf16>
    %cst_69 = arith.constant dense<0.000000e+00> : vector<512x128xf32>
    %48 = tpu.matmul %45, %47, %cst_69 {dimension_numbers = #tpu.dot_dimension_numbers<[1], [0], [0], [1], [0, 0, 1, 1], [], []>} : vector<512x128xbf16>, vector<128x128xbf16>, vector<512x128xf32> -> vector<512x128xf32>
    %49 = arith.addf %43, %48 : vector<512x128xf32>
    %c0_70 = arith.constant 0 : index
    %c2_71 = arith.constant 2 : index
    %c1_72 = arith.constant 1 : index
    %c0_73 = arith.constant 0 : index
    %50 = vector.load %arg8[%c0_70, %c2_71, %c1_72, %c0_73] : memref<2x18x18x128xbf16, #tpu.memory_space<vmem>>, vector<2x16x16x128xbf16>
    %51 = vector.shape_cast %50 : vector<2x16x16x128xbf16> to vector<512x128xbf16>
    %c7 = arith.constant 7 : index
    %c0_74 = arith.constant 0 : index
    %c0_75 = arith.constant 0 : index
    %52 = vector.load %arg2[%c7, %c0_74, %c0_75] : memref<9x128x128xbf16, #tpu.memory_space<vmem>>, vector<1x128x128xbf16>
    %53 = vector.shape_cast %52 : vector<1x128x128xbf16> to vector<128x128xbf16>
    %cst_76 = arith.constant dense<0.000000e+00> : vector<512x128xf32>
    %54 = tpu.matmul %51, %53, %cst_76 {dimension_numbers = #tpu.dot_dimension_numbers<[1], [0], [0], [1], [0, 0, 1, 1], [], []>} : vector<512x128xbf16>, vector<128x128xbf16>, vector<512x128xf32> -> vector<512x128xf32>
    %55 = arith.addf %49, %54 : vector<512x128xf32>
    %c0_77 = arith.constant 0 : index
    %c2_78 = arith.constant 2 : index
    %c2_79 = arith.constant 2 : index
    %c0_80 = arith.constant 0 : index
    %56 = vector.load %arg8[%c0_77, %c2_78, %c2_79, %c0_80] : memref<2x18x18x128xbf16, #tpu.memory_space<vmem>>, vector<2x16x16x128xbf16>
    %57 = vector.shape_cast %56 : vector<2x16x16x128xbf16> to vector<512x128xbf16>
    %c8 = arith.constant 8 : index
    %c0_81 = arith.constant 0 : index
    %c0_82 = arith.constant 0 : index
    %58 = vector.load %arg2[%c8, %c0_81, %c0_82] : memref<9x128x128xbf16, #tpu.memory_space<vmem>>, vector<1x128x128xbf16>
    %59 = vector.shape_cast %58 : vector<1x128x128xbf16> to vector<128x128xbf16>
    %cst_83 = arith.constant dense<0.000000e+00> : vector<512x128xf32>
    %60 = tpu.matmul %57, %59, %cst_83 {dimension_numbers = #tpu.dot_dimension_numbers<[1], [0], [0], [1], [0, 0, 1, 1], [], []>} : vector<512x128xbf16>, vector<128x128xbf16>, vector<512x128xf32> -> vector<512x128xf32>
    %61 = arith.addf %55, %60 : vector<512x128xf32>
    %62 = vector.shape_cast %61 : vector<512x128xf32> to vector<2x16x16x128xf32>
    %63 = arith.truncf %62 : vector<2x16x16x128xf32> to vector<2x16x16x128xbf16>
    %c0_84 = arith.constant 0 : index
    %c0_85 = arith.constant 0 : index
    %c0_86 = arith.constant 0 : index
    %c0_87 = arith.constant 0 : index
    %64 = vector.load %arg4[%c0_84, %c0_85, %c0_86, %c0_87] : memref<2x16x16x128xbf16, #tpu.memory_space<vmem>>, vector<2x16x16x128xbf16>
    tpu.vector_store %arg4[%c0_84, %c0_85, %c0_86, %c0_87], %63 {strides = array<i32>} : memref<2x16x16x128xbf16, #tpu.memory_space<vmem>>, vector<2x16x16x128xbf16>,
    %cst_88 = arith.constant dense<0.000000e+00> : vector<128xf32>
    %65 = vector.multi_reduction <add>, %61, %cst_88 [0] : vector<512x128xf32> to vector<128xf32>
    %66 = vector.shape_cast %65 : vector<128xf32> to vector<1x128xf32>
    %67 = arith.mulf %61, %61 : vector<512x128xf32>
    %cst_89 = arith.constant dense<0.000000e+00> : vector<128xf32>
    %68 = vector.multi_reduction <add>, %67, %cst_89 [0] : vector<512x128xf32> to vector<128xf32>
    %69 = vector.shape_cast %68 : vector<128xf32> to vector<1x128xf32>
    %70 = tpu.concatenate %66, %69 in 0 : vector<1x128xf32>, vector<1x128xf32> -> vector<2x128xf32>
    %71 = vector.shape_cast %70 : vector<2x128xf32> to vector<1x2x128xf32>
    %c0_90 = arith.constant 0 : index
    %c0_91 = arith.constant 0 : index
    %c0_92 = arith.constant 0 : index
    %72 = vector.load %arg5[%c0_90, %c0_91, %c0_92] : memref<1x2x128xf32, #tpu.memory_space<vmem>>, vector<1x2x128xf32>
    tpu.vector_store %arg5[%c0_90, %c0_91, %c0_92], %71 {strides = array<i32>} : memref<1x2x128xf32, #tpu.memory_space<vmem>>, vector<1x2x128xf32>,
    %73 = vector.shape_cast %0 : vector<2x16x16x128xbf16> to vector<512x128xbf16>
    %c0_93 = arith.constant 0 : index
    %c0_94 = arith.constant 0 : index
    %74 = vector.load %arg3[%c0_93, %c0_94] : memref<128x128xbf16, #tpu.memory_space<vmem>>, vector<128x128xbf16>
    %cst_95 = arith.constant dense<0.000000e+00> : vector<512x128xf32>
    %75 = tpu.matmul %73, %74, %cst_95 {dimension_numbers = #tpu.dot_dimension_numbers<[1], [0], [0], [1], [0, 0, 1, 1], [], []>} : vector<512x128xbf16>, vector<128x128xbf16>, vector<512x128xf32> -> vector<512x128xf32>
    %76 = vector.shape_cast %75 : vector<512x128xf32> to vector<2x16x16x128xf32>
    %77 = arith.truncf %76 : vector<2x16x16x128xf32> to vector<2x16x16x128xbf16>
    %c0_96 = arith.constant 0 : index
    %c0_97 = arith.constant 0 : index
    %c0_98 = arith.constant 0 : index
    %c0_99 = arith.constant 0 : index
    %78 = vector.load %arg6[%c0_96, %c0_97, %c0_98, %c0_99] : memref<2x16x16x128xbf16, #tpu.memory_space<vmem>>, vector<2x16x16x128xbf16>
    tpu.vector_store %arg6[%c0_96, %c0_97, %c0_98, %c0_99], %77 {strides = array<i32>} : memref<2x16x16x128xbf16, #tpu.memory_space<vmem>>, vector<2x16x16x128xbf16>,
    %cst_100 = arith.constant dense<0.000000e+00> : vector<128xf32>
    %79 = vector.multi_reduction <add>, %75, %cst_100 [0] : vector<512x128xf32> to vector<128xf32>
    %80 = vector.shape_cast %79 : vector<128xf32> to vector<1x128xf32>
    %81 = arith.mulf %75, %75 : vector<512x128xf32>
    %cst_101 = arith.constant dense<0.000000e+00> : vector<128xf32>
    %82 = vector.multi_reduction <add>, %81, %cst_101 [0] : vector<512x128xf32> to vector<128xf32>
    %83 = vector.shape_cast %82 : vector<128xf32> to vector<1x128xf32>
    %84 = tpu.concatenate %80, %83 in 0 : vector<1x128xf32>, vector<1x128xf32> -> vector<2x128xf32>
    %85 = vector.shape_cast %84 : vector<2x128xf32> to vector<1x2x128xf32>
    %c0_102 = arith.constant 0 : index
    %c0_103 = arith.constant 0 : index
    %c0_104 = arith.constant 0 : index
    %86 = vector.load %arg7[%c0_102, %c0_103, %c0_104] : memref<1x2x128xf32, #tpu.memory_space<vmem>>, vector<1x2x128xf32>
    tpu.vector_store %arg7[%c0_102, %c0_103, %c0_104], %85 {strides = array<i32>} : memref<1x2x128xf32, #tpu.memory_space<vmem>>, vector<1x2x128xf32>,
    return
  }
  func.func @transform_0(%arg0: i32) -> (i32, i32, i32, i32) {
    %c0_i32 = arith.constant 0 : i32
    %c0_i32_0 = arith.constant 0 : i32
    %c0_i32_1 = arith.constant 0 : i32
    %c0_i32_2 = arith.constant 0 : i32
    return %arg0, %c0_i32, %c0_i32_0, %c0_i32_1 : i32, i32, i32, i32
  }
  func.func @transform_1(%arg0: i32) -> (i32, i32, i32) {
    %c0_i32 = arith.constant 0 : i32
    %c0_i32_0 = arith.constant 0 : i32
    %c0_i32_1 = arith.constant 0 : i32
    %c0_i32_2 = arith.constant 0 : i32
    return %c0_i32, %c0_i32_0, %c0_i32_1 : i32, i32, i32
  }
  func.func @transform_2(%arg0: i32) -> (i32, i32) {
    %c0_i32 = arith.constant 0 : i32
    %c0_i32_0 = arith.constant 0 : i32
    %c0_i32_1 = arith.constant 0 : i32
    return %c0_i32, %c0_i32_0 : i32, i32
  }
  func.func @transform_3(%arg0: i32) -> (i32, i32, i32, i32) {
    %c0_i32 = arith.constant 0 : i32
    %c0_i32_0 = arith.constant 0 : i32
    %c0_i32_1 = arith.constant 0 : i32
    %c0_i32_2 = arith.constant 0 : i32
    return %arg0, %c0_i32, %c0_i32_0, %c0_i32_1 : i32, i32, i32, i32
  }
  func.func @transform_4(%arg0: i32) -> (i32, i32, i32) {
    %c0_i32 = arith.constant 0 : i32
    %c0_i32_0 = arith.constant 0 : i32
    %c0_i32_1 = arith.constant 0 : i32
    return %arg0, %c0_i32, %c0_i32_0 : i32, i32, i32
  }
  func.func @transform_5(%arg0: i32) -> (i32, i32, i32, i32) {
    %c0_i32 = arith.constant 0 : i32
    %c0_i32_0 = arith.constant 0 : i32
    %c0_i32_1 = arith.constant 0 : i32
    %c0_i32_2 = arith.constant 0 : i32
    return %arg0, %c0_i32, %c0_i32_0, %c0_i32_1 : i32, i32, i32, i32
  }
  func.func @transform_6(%arg0: i32) -> (i32, i32, i32) {
    %c0_i32 = arith.constant 0 : i32
    %c0_i32_0 = arith.constant 0 : i32
    %c0_i32_1 = arith.constant 0 : i32
    return %arg0, %c0_i32, %c0_i32_0 : i32, i32, i32
  }
}

</mosaic_0001>

<llo_original>
// kernel: tpu_custom_call.1
$region0: #{tpu_custom_call.1}
  #allocation0 [shape = 'u32[]', space=smem, size = 0x4, offset = 0x4, fixed_abs, tag = 'smem constant byte address 0x4 - core index']
  #allocation1 [shape = 'u32[144,128]{1,0:T(1,128)}', space=vmem, size = 0x12000, scoped, tag = 'internal scratch']
  #allocation2 [shape = 'bf16[2,18,18,128]{3,2,1,0:T(8,128)(2,1)}', space=vmem, size = 0x36000, scoped, tag = 'scratch operand']
  %s0 = inlined_call_operand.hbm [shape: bf16[2,16,16,128], index: 0, kind: input, shape index: {}]
  %s1 = inlined_call_operand.hbm [shape: bf16[9,128,128], index: 1, kind: input, shape index: {}]
  %s2 = inlined_call_operand.hbm [shape: bf16[128,128], index: 2, kind: input, shape index: {}]
  %s3 = inlined_call_operand.hbm [shape: bf16[2,16,16,128], index: 3, kind: output, shape index: {0}]
  %s4 = inlined_call_operand.hbm [shape: f32[1,2,128], index: 4, kind: output, shape index: {1}]
  %s5 = inlined_call_operand.hbm [shape: bf16[2,16,16,128], index: 5, kind: output, shape index: {2}]
  %s6 = inlined_call_operand.hbm [shape: f32[1,2,128], index: 6, kind: output, shape index: {3}]
  %7 = xla_tuple %s3, %s4, %s5, %s6
  %s8 = sld [smem:[#allocation0]]
  $region58: #{tpu_custom_call.1} parent=0
    _
  %s10 = ssub.s32 1, %s8
  %s11 = scalar_select 0, %s10, %s8
  $region1: #{tpu_custom_call.1} parent=0
    #allocation3 [shape = 'u8[131072]{0}', space=vmem, size = 0x20000, scoped, tag = 'input window, operand 0, single buffered']
    #allocation4 [shape = 's32[1]{0}', space=sflag, size = 0x4, scoped, tag = 'scoped memory for tpu_custom_call.1']
    #allocation5 [shape = 's32[1]{0}', space=sflag, size = 0x4, scoped, tag = 'scoped memory for tpu_custom_call.1']
    #allocation6 [shape = 'u8[294912]{0}', space=vmem, size = 0x48000, scoped, tag = 'input window, operand 1, single buffered']
    #allocation7 [shape = 's32[1]{0}', space=sflag, size = 0x4, scoped, tag = 'scoped memory for tpu_custom_call.1']
    #allocation8 [shape = 'u8[32768]{0}', space=vmem, size = 0x8000, scoped, tag = 'input window, operand 2, single buffered']
    #allocation9 [shape = 'u8[131072]{0}', space=vmem, size = 0x20000, scoped, tag = 'output window, operand 0, single buffered']
    #allocation10 [shape = 'u8[1024]{0}', space=vmem, size = 0x400, scoped, tag = 'output window, operand 1, single buffered']
    #allocation11 [shape = 's32[1]{0}', space=sflag, size = 0x4, scoped, tag = 'scoped memory for tpu_custom_call.1']
    #allocation12 [shape = 'u8[131072]{0}', space=vmem, size = 0x20000, scoped, tag = 'output window, operand 2, single buffered']
    #allocation13 [shape = 'u8[1024]{0}', space=vmem, size = 0x400, scoped, tag = 'output window, operand 3, single buffered']
    #allocation14 [shape = 's32[1]{0}', space=sflag, size = 0x4, scoped, tag = 'scoped memory for tpu_custom_call.1']
    %12 = vsyncpa [#allocation4], 0
    %13 = vsyncpa [#allocation7], 0
    %14 = vsyncpa [#allocation5], 0
    %15 = vsyncpa [#allocation11], 0
    %16 = vsyncpa [#allocation14], 0
    // Predicated region
    $region2: #{tpu_custom_call.1} parent=1 // pred_check
      _
    $region3: #{tpu_custom_call.1} parent=1 // pred_check_branch
      %18 = sbr.rel (0) target = $region5
    $region4: #{tpu_custom_call.1} parent=1 // pred_region
      %s20 = ssub.s32 4096, 4096
      %21 = vsyncadd [#allocation4], %s20
      %s22 = sshll.u32 [#allocation3], 4
      %s23 = int_to_ptr.vmem [resolvable:$true] %s22
      %28 = dma.hbm_to_vmem [thread:$0]  %s0, 4096, %s23, [#allocation4], 64, 64, 4
    $region5: #{tpu_custom_call.1} parent=1 // pred_fallthru
      _
    // Predicated region
    $region6: #{tpu_custom_call.1} parent=1 // pred_check
      _
    $region7: #{tpu_custom_call.1} parent=1 // pred_check_branch
      %30 = sbr.rel (0) target = $region9
    $region8: #{tpu_custom_call.1} parent=1 // pred_region
      %s32 = ssub.s32 9216, 9216
      %33 = vsyncadd [#allocation7], %s32
      %s34 = sshll.u32 [#allocation6], 4
      %s35 = int_to_ptr.vmem [resolvable:$true] %s34
      %40 = dma.hbm_to_vmem [thread:$0]  %s1, 9216, %s35, [#allocation7], 64, 64, 4
    $region9: #{tpu_custom_call.1} parent=1 // pred_fallthru
      _
    // Predicated region
    $region10: #{tpu_custom_call.1} parent=1 // pred_check
      _
    $region11: #{tpu_custom_call.1} parent=1 // pred_check_branch
      %42 = sbr.rel (0) target = $region13
    $region12: #{tpu_custom_call.1} parent=1 // pred_region
      %s44 = ssub.s32 1024, 1024
      %45 = vsyncadd [#allocation7], %s44
      %s46 = sshll.u32 [#allocation8], 4
      %s47 = int_to_ptr.vmem [resolvable:$true] %s46
      %52 = dma.hbm_to_vmem [thread:$0]  %s2, 1024, %s47, [#allocation7], 64, 64, 4
    $region13: #{tpu_custom_call.1} parent=1 // pred_fallthru
      _
    // Predicated region
    $region14: #{tpu_custom_call.1} parent=1 // pred_check
      _
    $region15: #{tpu_custom_call.1} parent=1 // pred_check_branch
      %54 = sbr.rel (0) target = $region17
    $region16: #{tpu_custom_call.1} parent=1 // pred_region
      %55 = dma.done [#allocation4], 4096
    $region17: #{tpu_custom_call.1} parent=1 // pred_fallthru
      _
    // Predicated region
    $region18: #{tpu_custom_call.1} parent=1 // pred_check
      _
    $region19: #{tpu_custom_call.1} parent=1 // pred_check_branch
      %57 = sbr.rel (0) target = $region21
    $region20: #{tpu_custom_call.1} parent=1 // pred_region
      %58 = dma.done [#allocation7], 9216
    $region21: #{tpu_custom_call.1} parent=1 // pred_fallthru
      _
    // Predicated region
    $region22: #{tpu_custom_call.1} parent=1 // pred_check
      _
    $region23: #{tpu_custom_call.1} parent=1 // pred_check_branch
      %60 = sbr.rel (0) target = $region25
    $region24: #{tpu_custom_call.1} parent=1 // pred_region
      %61 = dma.done [#allocation7], 1024
    $region25: #{tpu_custom_call.1} parent=1 // pred_fallthru
      _
    %v63 = vld [vmem:[#allocation3] sm:$0xf]
    %v64 = vld [vmem:[#allocation3 + $0x4] sm:$0xf]
    %v65 = vld [vmem:[#allocation3 + $0x8] sm:$0xf]
    %v66 = vld [vmem:[#allocation3 + $0xc] sm:$0xf]
    %v67 = vld [vmem:[#allocation3 + $0x10] sm:$0xf]
    %v68 = vld [vmem:[#allocation3 + $0x14] sm:$0xf]
    %v69 = vld [vmem:[#allocation3 + $0x18] sm:$0xf]
    %v70 = vld [vmem:[#allocation3 + $0x1c] sm:$0xf]
    %v71 = vld [vmem:[#allocation3 + $0x20] sm:$0xf]
    %v72 = vld [vmem:[#allocation3 + $0x24] sm:$0xf]
    %v73 = vld [vmem:[#allocation3 + $0x28] sm:$0xf]
    %v74 = vld [vmem:[#allocation3 + $0x2c] sm:$0xf]
    %v75 = vld [vmem:[#allocation3 + $0x30] sm:$0xf]
    %v76 = vld [vmem:[#allocation3 + $0x34] sm:$0xf]
    %v77 = vld [vmem:[#allocation3 + $0x38] sm:$0xf]
    %v78 = vld [vmem:[#allocation3 + $0x3c] sm:$0xf]
    %v79 = vld [vmem:[#allocation3 + $0x40] sm:$0xf]
    %v80 = vld [vmem:[#allocation3 + $0x44] sm:$0xf]
    %v81 = vld [vmem:[#allocation3 + $0x48] sm:$0xf]
    %v82 = vld [vmem:[#allocation3 + $0x4c] sm:$0xf]
    %v83 = vld [vmem:[#allocation3 + $0x50] sm:$0xf]
    %v84 = vld [vmem:[#allocation3 + $0x54] sm:$0xf]
    %v85 = vld [vmem:[#allocation3 + $0x58] sm:$0xf]
    %v86 = vld [vmem:[#allocation3 + $0x5c] sm:$0xf]
    %v87 = vld [vmem:[#allocation3 + $0x60] sm:$0xf]
    %v88 = vld [vmem:[#allocation3 + $0x64] sm:$0xf]
    %v89 = vld [vmem:[#allocation3 + $0x68] sm:$0xf]
    %v90 = vld [vmem:[#allocation3 + $0x6c] sm:$0xf]
    %v91 = vld [vmem:[#allocation3 + $0x70] sm:$0xf]
    %v92 = vld [vmem:[#allocation3 + $0x74] sm:$0xf]
    %v93 = vld [vmem:[#allocation3 + $0x78] sm:$0xf]
    %v94 = vld [vmem:[#allocation3 + $0x7c] sm:$0xf]
    %v95 = vld [vmem:[#allocation3 + $0x80] sm:$0xf]
    %v96 = vld [vmem:[#allocation3 + $0x84] sm:$0xf]
    %v97 = vld [vmem:[#allocation3 + $0x88] sm:$0xf]
    %v98 = vld [vmem:[#allocation3 + $0x8c] sm:$0xf]
    %v99 = vld [vmem:[#allocation3 + $0x90] sm:$0xf]
    %v100 = vld [vmem:[#allocation3 + $0x94] sm:$0xf]
    %v101 = vld [vmem:[#allocation3 + $0x98] sm:$0xf]
    %v102 = vld [vmem:[#allocation3 + $0x9c] sm:$0xf]
    %v103 = vld [vmem:[#allocation3 + $0xa0] sm:$0xf]
    %v104 = vld [vmem:[#allocation3 + $0xa4] sm:$0xf]
    %v105 = vld [vmem:[#allocation3 + $0xa8] sm:$0xf]
    %v106 = vld [vmem:[#allocation3 + $0xac] sm:$0xf]
    %v107 = vld [vmem:[#allocation3 + $0xb0] sm:$0xf]
    %v108 = vld [vmem:[#allocation3 + $0xb4] sm:$0xf]
    %v109 = vld [vmem:[#allocation3 + $0xb8] sm:$0xf]
    %v110 = vld [vmem:[#allocation3 + $0xbc] sm:$0xf]
    %v111 = vld [vmem:[#allocation3 + $0xc0] sm:$0xf]
    %v112 = vld [vmem:[#allocation3 + $0xc4] sm:$0xf]
    %v113 = vld [vmem:[#allocation3 + $0xc8] sm:$0xf]
    %v114 = vld [vmem:[#allocation3 + $0xcc] sm:$0xf]
    %v115 = vld [vmem:[#allocation3 + $0xd0] sm:$0xf]
    %v116 = vld [vmem:[#allocation3 + $0xd4] sm:$0xf]
    %v117 = vld [vmem:[#allocation3 + $0xd8] sm:$0xf]
    %v118 = vld [vmem:[#allocation3 + $0xdc] sm:$0xf]
    %v119 = vld [vmem:[#allocation3 + $0xe0] sm:$0xf]
    %v120 = vld [vmem:[#allocation3 + $0xe4] sm:$0xf]
    %v121 = vld [vmem:[#allocation3 + $0xe8] sm:$0xf]
    %v122 = vld [vmem:[#allocation3 + $0xec] sm:$0xf]
    %v123 = vld [vmem:[#allocation3 + $0xf0] sm:$0xf]
    %v124 = vld [vmem:[#allocation3 + $0xf4] sm:$0xf]
    %v125 = vld [vmem:[#allocation3 + $0xf8] sm:$0xf]
    %v126 = vld [vmem:[#allocation3 + $0xfc] sm:$0xf]
    %127 = vst [vmem:[#allocation2] sm:$0xf] 0
    %128 = vst [vmem:[#allocation2 + $0x4] sm:$0xf] 0
    %129 = vst [vmem:[#allocation2 + $0x8] sm:$0x1] 0
    %130 = vst [vmem:[#allocation2 + $0xd8] sm:$0xf] 0
    %131 = vst [vmem:[#allocation2 + $0xdc] sm:$0xf] 0
    %132 = vst [vmem:[#allocation2 + $0xe0] sm:$0x1] 0
    %s133 = scalar_lea.vmem [#allocation2], 204
    %134 = vst [vmem:[%s133] sm:$0xf] 0
    %135 = vst [vmem:[%s133 + $0x4] sm:$0xf] 0
    %136 = vst [vmem:[%s133 + $0x8] sm:$0x1] 0
    %137 = vst [vmem:[%s133 + $0xd8] sm:$0xf] 0
    %138 = vst [vmem:[%s133 + $0xdc] sm:$0xf] 0
    %139 = vst [vmem:[%s133 + $0xe0] sm:$0x1] 0
    %vm140 = vcmask 1040384
    %vm141 = vsmask.f32 256
    %vm142 = vmand %vm140, %vm141
    %v143 = vld [vmem:[#allocation2] sm:$0x1]
    %v144 = vsel %vm142, 0, %v143
    %145 = vst [vmem:[#allocation2] sm:$0x1] %v144
    %v146 = vld [vmem:[#allocation2 + $0xc] sm:$0x1]
    %v147 = vsel %vm142, 0, %v146
    %148 = vst [vmem:[#allocation2 + $0xc] sm:$0x1] %v147
    %v149 = vld [vmem:[#allocation2 + $0x18] sm:$0x1]
    %v150 = vsel %vm142, 0, %v149
    %151 = vst [vmem:[#allocation2 + $0x18] sm:$0x1] %v150
    %v152 = vld [vmem:[#allocation2 + $0x24] sm:$0x1]
    %v153 = vsel %vm142, 0, %v152
    %154 = vst [vmem:[#allocation2 + $0x24] sm:$0x1] %v153
    %v155 = vld [vmem:[#allocation2 + $0x30] sm:$0x1]
    %v156 = vsel %vm142, 0, %v155
    %157 = vst [vmem:[#allocation2 + $0x30] sm:$0x1] %v156
    %v158 = vld [vmem:[#allocation2 + $0x3c] sm:$0x1]
    %v159 = vsel %vm142, 0, %v158
    %160 = vst [vmem:[#allocation2 + $0x3c] sm:$0x1] %v159
    %v161 = vld [vmem:[#allocation2 + $0x48] sm:$0x1]
    %v162 = vsel %vm142, 0, %v161
    %163 = vst [vmem:[#allocation2 + $0x48] sm:$0x1] %v162
    %v164 = vld [vmem:[#allocation2 + $0x54] sm:$0x1]
    %v165 = vsel %vm142, 0, %v164
    %166 = vst [vmem:[#allocation2 + $0x54] sm:$0x1] %v165
    %v167 = vld [vmem:[#allocation2 + $0x60] sm:$0x1]
    %v168 = vsel %vm142, 0, %v167
    %169 = vst [vmem:[#allocation2 + $0x60] sm:$0x1] %v168
    %v170 = vld [vmem:[#allocation2 + $0x6c] sm:$0x1]
    %v171 = vsel %vm142, 0, %v170
    %172 = vst [vmem:[#allocation2 + $0x6c] sm:$0x1] %v171
    %v173 = vld [vmem:[#allocation2 + $0x78] sm:$0x1]
    %v174 = vsel %vm142, 0, %v173
    %175 = vst [vmem:[#allocation2 + $0x78] sm:$0x1] %v174
    %v176 = vld [vmem:[#allocation2 + $0x84] sm:$0x1]
    %v177 = vsel %vm142, 0, %v176
    %178 = vst [vmem:[#allocation2 + $0x84] sm:$0x1] %v177
    %v179 = vld [vmem:[#allocation2 + $0x90] sm:$0x1]
    %v180 = vsel %vm142, 0, %v179
    %181 = vst [vmem:[#allocation2 + $0x90] sm:$0x1] %v180
    %v182 = vld [vmem:[#allocation2 + $0x9c] sm:$0x1]
    %v183 = vsel %vm142, 0, %v182
    %184 = vst [vmem:[#allocation2 + $0x9c] sm:$0x1] %v183
    %v185 = vld [vmem:[#allocation2 + $0xa8] sm:$0x1]
    %v186 = vsel %vm142, 0, %v185
    %187 = vst [vmem:[#allocation2 + $0xa8] sm:$0x1] %v186
    %v188 = vld [vmem:[#allocation2 + $0xb4] sm:$0x1]
    %v189 = vsel %vm142, 0, %v188
    %190 = vst [vmem:[#allocation2 + $0xb4] sm:$0x1] %v189
    %v191 = vld [vmem:[#allocation2 + $0xc0] sm:$0x1]
    %v192 = vsel %vm142, 0, %v191
    %193 = vst [vmem:[#allocation2 + $0xc0] sm:$0x1] %v192
    %v194 = vld [vmem:[#allocation2 + $0xcc] sm:$0x1]
    %v195 = vsel %vm142, 0, %v194
    %196 = vst [vmem:[#allocation2 + $0xcc] sm:$0x1] %v195
    %v197 = vld [vmem:[#allocation2 + $0xd8] sm:$0x1]
    %v198 = vsel %vm142, 0, %v197
    %199 = vst [vmem:[#allocation2 + $0xd8] sm:$0x1] %v198
    %v200 = vld [vmem:[#allocation2 + $0xe4] sm:$0x1]
    %v201 = vsel %vm142, 0, %v200
    %202 = vst [vmem:[#allocation2 + $0xe4] sm:$0x1] %v201
    %v203 = vld [vmem:[#allocation2 + $0xf0] sm:$0x1]
    %v204 = vsel %vm142, 0, %v203
    %205 = vst [vmem:[#allocation2 + $0xf0] sm:$0x1] %v204
    %v206 = vld [vmem:[#allocation2 + $0xfc] sm:$0x1]
    %v207 = vsel %vm142, 0, %v206
    %208 = vst [vmem:[#allocation2 + $0xfc] sm:$0x1] %v207
    %v209 = vld [vmem:[#allocation2 + $0x108] sm:$0x1]
    %v210 = vsel %vm142, 0, %v209
    %211 = vst [vmem:[#allocation2 + $0x108] sm:$0x1] %v210
    %v212 = vld [vmem:[#allocation2 + $0x114] sm:$0x1]
    %v213 = vsel %vm142, 0, %v212
    %214 = vst [vmem:[#allocation2 + $0x114] sm:$0x1] %v213
    %v215 = vld [vmem:[#allocation2 + $0x120] sm:$0x1]
    %v216 = vsel %vm142, 0, %v215
    %217 = vst [vmem:[#allocation2 + $0x120] sm:$0x1] %v216
    %v218 = vld [vmem:[#allocation2 + $0x12c] sm:$0x1]
    %v219 = vsel %vm142, 0, %v218
    %220 = vst [vmem:[#allocation2 + $0x12c] sm:$0x1] %v219
    %v221 = vld [vmem:[#allocation2 + $0x138] sm:$0x1]
    %v222 = vsel %vm142, 0, %v221
    %223 = vst [vmem:[#allocation2 + $0x138] sm:$0x1] %v222
    %v224 = vld [vmem:[#allocation2 + $0x144] sm:$0x1]
    %v225 = vsel %vm142, 0, %v224
    %226 = vst [vmem:[#allocation2 + $0x144] sm:$0x1] %v225
    %v227 = vld [vmem:[#allocation2 + $0x150] sm:$0x1]
    %v228 = vsel %vm142, 0, %v227
    %229 = vst [vmem:[#allocation2 + $0x150] sm:$0x1] %v228
    %v230 = vld [vmem:[#allocation2 + $0x15c] sm:$0x1]
    %v231 = vsel %vm142, 0, %v230
    %232 = vst [vmem:[#allocation2 + $0x15c] sm:$0x1] %v231
    %v233 = vld [vmem:[#allocation2 + $0x168] sm:$0x1]
    %v234 = vsel %vm142, 0, %v233
    %235 = vst [vmem:[#allocation2 + $0x168] sm:$0x1] %v234
    %v236 = vld [vmem:[#allocation2 + $0x174] sm:$0x1]
    %v237 = vsel %vm142, 0, %v236
    %238 = vst [vmem:[#allocation2 + $0x174] sm:$0x1] %v237
    %v239 = vld [vmem:[#allocation2 + $0x180] sm:$0x1]
    %v240 = vsel %vm142, 0, %v239
    %241 = vst [vmem:[#allocation2 + $0x180] sm:$0x1] %v240
    %v242 = vld [vmem:[#allocation2 + $0x18c] sm:$0x1]
    %v243 = vsel %vm142, 0, %v242
    %244 = vst [vmem:[#allocation2 + $0x18c] sm:$0x1] %v243
    %v245 = vld [vmem:[#allocation2 + $0x198] sm:$0x1]
    %v246 = vsel %vm142, 0, %v245
    %247 = vst [vmem:[#allocation2 + $0x198] sm:$0x1] %v246
    %v248 = vld [vmem:[#allocation2 + $0x1a4] sm:$0x1]
    %v249 = vsel %vm142, 0, %v248
    %250 = vst [vmem:[#allocation2 + $0x1a4] sm:$0x1] %v249
    %vm251 = vsmask.f32 7938
    %vm252 = vmand %vm140, %vm251
    %v253 = vld [vmem:[#allocation2 + $0x8] sm:$0x1]
    %v254 = vsel %vm252, 0, %v253
    %255 = vst [vmem:[#allocation2 + $0x8] sm:$0x1] %v254
    %v256 = vld [vmem:[#allocation2 + $0x14] sm:$0x1]
    %v257 = vsel %vm252, 0, %v256
    %258 = vst [vmem:[#allocation2 + $0x14] sm:$0x1] %v257
    %v259 = vld [vmem:[#allocation2 + $0x20] sm:$0x1]
    %v260 = vsel %vm252, 0, %v259
    %261 = vst [vmem:[#allocation2 + $0x20] sm:$0x1] %v260
    %v262 = vld [vmem:[#allocation2 + $0x2c] sm:$0x1]
    %v263 = vsel %vm252, 0, %v262
    %264 = vst [vmem:[#allocation2 + $0x2c] sm:$0x1] %v263
    %v265 = vld [vmem:[#allocation2 + $0x38] sm:$0x1]
    %v266 = vsel %vm252, 0, %v265
    %267 = vst [vmem:[#allocation2 + $0x38] sm:$0x1] %v266
    %v268 = vld [vmem:[#allocation2 + $0x44] sm:$0x1]
    %v269 = vsel %vm252, 0, %v268
    %270 = vst [vmem:[#allocation2 + $0x44] sm:$0x1] %v269
    %v271 = vld [vmem:[#allocation2 + $0x50] sm:$0x1]
    %v272 = vsel %vm252, 0, %v271
    %273 = vst [vmem:[#allocation2 + $0x50] sm:$0x1] %v272
    %v274 = vld [vmem:[#allocation2 + $0x5c] sm:$0x1]
    %v275 = vsel %vm252, 0, %v274
    %276 = vst [vmem:[#allocation2 + $0x5c] sm:$0x1] %v275
    %v277 = vld [vmem:[#allocation2 + $0x68] sm:$0x1]
    %v278 = vsel %vm252, 0, %v277
    %279 = vst [vmem:[#allocation2 + $0x68] sm:$0x1] %v278
    %v280 = vld [vmem:[#allocation2 + $0x74] sm:$0x1]
    %v281 = vsel %vm252, 0, %v280
    %282 = vst [vmem:[#allocation2 + $0x74] sm:$0x1] %v281
    %v283 = vld [vmem:[#allocation2 + $0x80] sm:$0x1]
    %v284 = vsel %vm252, 0, %v283
    %285 = vst [vmem:[#allocation2 + $0x80] sm:$0x1] %v284
    %v286 = vld [vmem:[#allocation2 + $0x8c] sm:$0x1]
    %v287 = vsel %vm252, 0, %v286
    %288 = vst [vmem:[#allocation2 + $0x8c] sm:$0x1] %v287
    %v289 = vld [vmem:[#allocation2 + $0x98] sm:$0x1]
    %v290 = vsel %vm252, 0, %v289
    %291 = vst [vmem:[#allocation2 + $0x98] sm:$0x1] %v290
    %v292 = vld [vmem:[#allocation2 + $0xa4] sm:$0x1]
    %v293 = vsel %vm252, 0, %v292
    %294 = vst [vmem:[#allocation2 + $0xa4] sm:$0x1] %v293
    %v295 = vld [vmem:[#allocation2 + $0xb0] sm:$0x1]
    %v296 = vsel %vm252, 0, %v295
    %297 = vst [vmem:[#allocation2 + $0xb0] sm:$0x1] %v296
    %v298 = vld [vmem:[#allocation2 + $0xbc] sm:$0x1]
    %v299 = vsel %vm252, 0, %v298
    %300 = vst [vmem:[#allocation2 + $0xbc] sm:$0x1] %v299
    %v301 = vld [vmem:[#allocation2 + $0xc8] sm:$0x1]
    %v302 = vsel %vm252, 0, %v301
    %303 = vst [vmem:[#allocation2 + $0xc8] sm:$0x1] %v302
    %v304 = vld [vmem:[#allocation2 + $0xd4] sm:$0x1]
    %v305 = vsel %vm252, 0, %v304
    %306 = vst [vmem:[#allocation2 + $0xd4] sm:$0x1] %v305
    %v307 = vld [vmem:[#allocation2 + $0xe0] sm:$0x1]
    %v308 = vsel %vm252, 0, %v307
    %309 = vst [vmem:[#allocation2 + $0xe0] sm:$0x1] %v308
    %v310 = vld [vmem:[#allocation2 + $0xec] sm:$0x1]
    %v311 = vsel %vm252, 0, %v310
    %312 = vst [vmem:[#allocation2 + $0xec] sm:$0x1] %v311
    %v313 = vld [vmem:[#allocation2 + $0xf8] sm:$0x1]
    %v314 = vsel %vm252, 0, %v313
    %315 = vst [vmem:[#allocation2 + $0xf8] sm:$0x1] %v314
    %v316 = vld [vmem:[#allocation2 + $0x104] sm:$0x1]
    %v317 = vsel %vm252, 0, %v316
    %318 = vst [vmem:[#allocation2 + $0x104] sm:$0x1] %v317
    %v319 = vld [vmem:[#allocation2 + $0x110] sm:$0x1]
    %v320 = vsel %vm252, 0, %v319
    %321 = vst [vmem:[#allocation2 + $0x110] sm:$0x1] %v320
    %v322 = vld [vmem:[#allocation2 + $0x11c] sm:$0x1]
    %v323 = vsel %vm252, 0, %v322
    %324 = vst [vmem:[#allocation2 + $0x11c] sm:$0x1] %v323
    %v325 = vld [vmem:[#allocation2 + $0x128] sm:$0x1]
    %v326 = vsel %vm252, 0, %v325
    %327 = vst [vmem:[#allocation2 + $0x128] sm:$0x1] %v326
    %v328 = vld [vmem:[#allocation2 + $0x134] sm:$0x1]
    %v329 = vsel %vm252, 0, %v328
    %330 = vst [vmem:[#allocation2 + $0x134] sm:$0x1] %v329
    %v331 = vld [vmem:[#allocation2 + $0x140] sm:$0x1]
    %v332 = vsel %vm252, 0, %v331
    %333 = vst [vmem:[#allocation2 + $0x140] sm:$0x1] %v332
    %v334 = vld [vmem:[#allocation2 + $0x14c] sm:$0x1]
    %v335 = vsel %vm252, 0, %v334
    %336 = vst [vmem:[#allocation2 + $0x14c] sm:$0x1] %v335
    %v337 = vld [vmem:[#allocation2 + $0x158] sm:$0x1]
    %v338 = vsel %vm252, 0, %v337
    %339 = vst [vmem:[#allocation2 + $0x158] sm:$0x1] %v338
    %v340 = vld [vmem:[#allocation2 + $0x164] sm:$0x1]
    %v341 = vsel %vm252, 0, %v340
    %342 = vst [vmem:[#allocation2 + $0x164] sm:$0x1] %v341
    %v343 = vld [vmem:[#allocation2 + $0x170] sm:$0x1]
    %v344 = vsel %vm252, 0, %v343
    %345 = vst [vmem:[#allocation2 + $0x170] sm:$0x1] %v344
    %v346 = vld [vmem:[#allocation2 + $0x17c] sm:$0x1]
    %v347 = vsel %vm252, 0, %v346
    %348 = vst [vmem:[#allocation2 + $0x17c] sm:$0x1] %v347
    %v349 = vld [vmem:[#allocation2 + $0x188] sm:$0x1]
    %v350 = vsel %vm252, 0, %v349
    %351 = vst [vmem:[#allocation2 + $0x188] sm:$0x1] %v350
    %v352 = vld [vmem:[#allocation2 + $0x194] sm:$0x1]
    %v353 = vsel %vm252, 0, %v352
    %354 = vst [vmem:[#allocation2 + $0x194] sm:$0x1] %v353
    %v355 = vld [vmem:[#allocation2 + $0x1a0] sm:$0x1]
    %v356 = vsel %vm252, 0, %v355
    %357 = vst [vmem:[#allocation2 + $0x1a0] sm:$0x1] %v356
    %v358 = vld [vmem:[#allocation2 + $0x1ac] sm:$0x1]
    %v359 = vsel %vm252, 0, %v358
    %360 = vst [vmem:[#allocation2 + $0x1ac] sm:$0x1] %v359
    %vm361 = vsmask.f32 4368
    %vm362 = vmor %vm141, %vm361
    %v364 = vshrl.u32 %v63, 16
    %v366 = vrot.slane %v364, 7
    %v367 = vshll.u32 %v63, 16
    %v369 = vor.u32 %v366, %v367
    %v370 = vrot.slane %v366, 4
    %v372 = vshrl.u32 %v64, 16
    %v374 = vrot.slane %v372, 7
    %v375 = vshll.u32 %v64, 16
    %v377 = vor.u32 %v374, %v375
    %v378 = vsel %vm362, %v370, %v377
    %v379 = vrot.slane %v374, 4
    %v381 = vshrl.u32 %v65, 16
    %v383 = vrot.slane %v381, 7
    %v384 = vshll.u32 %v65, 16
    %v386 = vor.u32 %v383, %v384
    %v387 = vrot.slane %v383, 4
    %v389 = vshrl.u32 %v66, 16
    %v391 = vrot.slane %v389, 7
    %v392 = vshll.u32 %v66, 16
    %v394 = vor.u32 %v391, %v392
    %v395 = vsel %vm362, %v387, %v394
    %v396 = vrot.slane %v391, 4
    %v398 = vshrl.u32 %v67, 16
    %v400 = vrot.slane %v398, 7
    %v401 = vshll.u32 %v67, 16
    %v403 = vor.u32 %v400, %v401
    %v404 = vrot.slane %v400, 4
    %v406 = vshrl.u32 %v68, 16
    %v408 = vrot.slane %v406, 7
    %v409 = vshll.u32 %v68, 16
    %v411 = vor.u32 %v408, %v409
    %v412 = vsel %vm362, %v404, %v411
    %v413 = vrot.slane %v408, 4
    %v415 = vshrl.u32 %v69, 16
    %v417 = vrot.slane %v415, 7
    %v418 = vshll.u32 %v69, 16
    %v420 = vor.u32 %v417, %v418
    %v421 = vrot.slane %v417, 4
    %v423 = vshrl.u32 %v70, 16
    %v425 = vrot.slane %v423, 7
    %v426 = vshll.u32 %v70, 16
    %v428 = vor.u32 %v425, %v426
    %v429 = vsel %vm362, %v421, %v428
    %v430 = vrot.slane %v425, 4
    %v432 = vshrl.u32 %v71, 16
    %v434 = vrot.slane %v432, 7
    %v435 = vshll.u32 %v71, 16
    %v437 = vor.u32 %v434, %v435
    %v438 = vrot.slane %v434, 4
    %v440 = vshrl.u32 %v72, 16
    %v442 = vrot.slane %v440, 7
    %v443 = vshll.u32 %v72, 16
    %v445 = vor.u32 %v442, %v443
    %v446 = vsel %vm362, %v438, %v445
    %v447 = vrot.slane %v442, 4
    %v449 = vshrl.u32 %v73, 16
    %v451 = vrot.slane %v449, 7
    %v452 = vshll.u32 %v73, 16
    %v454 = vor.u32 %v451, %v452
    %v455 = vrot.slane %v451, 4
    %v457 = vshrl.u32 %v74, 16
    %v459 = vrot.slane %v457, 7
    %v460 = vshll.u32 %v74, 16
    %v462 = vor.u32 %v459, %v460
    %v463 = vsel %vm362, %v455, %v462
    %v464 = vrot.slane %v459, 4
    %v466 = vshrl.u32 %v75, 16
    %v468 = vrot.slane %v466, 7
    %v469 = vshll.u32 %v75, 16
    %v471 = vor.u32 %v468, %v469
    %v472 = vrot.slane %v468, 4
    %v474 = vshrl.u32 %v76, 16
    %v476 = vrot.slane %v474, 7
    %v477 = vshll.u32 %v76, 16
    %v479 = vor.u32 %v476, %v477
    %v480 = vsel %vm362, %v472, %v479
    %v481 = vrot.slane %v476, 4
    %v483 = vshrl.u32 %v77, 16
    %v485 = vrot.slane %v483, 7
    %v486 = vshll.u32 %v77, 16
    %v488 = vor.u32 %v485, %v486
    %v489 = vrot.slane %v485, 4
    %v491 = vshrl.u32 %v78, 16
    %v493 = vrot.slane %v491, 7
    %v494 = vshll.u32 %v78, 16
    %v496 = vor.u32 %v493, %v494
    %v497 = vsel %vm362, %v489, %v496
    %v498 = vrot.slane %v493, 4
    %v500 = vshrl.u32 %v79, 16
    %v502 = vrot.slane %v500, 7
    %v503 = vshll.u32 %v79, 16
    %v505 = vor.u32 %v502, %v503
    %v506 = vrot.slane %v502, 4
    %v508 = vshrl.u32 %v80, 16
    %v510 = vrot.slane %v508, 7
    %v511 = vshll.u32 %v80, 16
    %v513 = vor.u32 %v510, %v511
    %v514 = vsel %vm362, %v506, %v513
    %v515 = vrot.slane %v510, 4
    %v517 = vshrl.u32 %v81, 16
    %v519 = vrot.slane %v517, 7
    %v520 = vshll.u32 %v81, 16
    %v522 = vor.u32 %v519, %v520
    %v523 = vrot.slane %v519, 4
    %v525 = vshrl.u32 %v82, 16
    %v527 = vrot.slane %v525, 7
    %v528 = vshll.u32 %v82, 16
    %v530 = vor.u32 %v527, %v528
    %v531 = vsel %vm362, %v523, %v530
    %v532 = vrot.slane %v527, 4
    %v534 = vshrl.u32 %v83, 16
    %v536 = vrot.slane %v534, 7
    %v537 = vshll.u32 %v83, 16
    %v539 = vor.u32 %v536, %v537
    %v540 = vrot.slane %v536, 4
    %v542 = vshrl.u32 %v84, 16
    %v544 = vrot.slane %v542, 7
    %v545 = vshll.u32 %v84, 16
    %v547 = vor.u32 %v544, %v545
    %v548 = vsel %vm362, %v540, %v547
    %v549 = vrot.slane %v544, 4
    %v551 = vshrl.u32 %v85, 16
    %v553 = vrot.slane %v551, 7
    %v554 = vshll.u32 %v85, 16
    %v556 = vor.u32 %v553, %v554
    %v557 = vrot.slane %v553, 4
    %v559 = vshrl.u32 %v86, 16
    %v561 = vrot.slane %v559, 7
    %v562 = vshll.u32 %v86, 16
    %v564 = vor.u32 %v561, %v562
    %v565 = vsel %vm362, %v557, %v564
    %v566 = vrot.slane %v561, 4
    %v568 = vshrl.u32 %v87, 16
    %v570 = vrot.slane %v568, 7
    %v571 = vshll.u32 %v87, 16
    %v573 = vor.u32 %v570, %v571
    %v574 = vrot.slane %v570, 4
    %v576 = vshrl.u32 %v88, 16
    %v578 = vrot.slane %v576, 7
    %v579 = vshll.u32 %v88, 16
    %v581 = vor.u32 %v578, %v579
    %v582 = vsel %vm362, %v574, %v581
    %v583 = vrot.slane %v578, 4
    %v585 = vshrl.u32 %v89, 16
    %v587 = vrot.slane %v585, 7
    %v588 = vshll.u32 %v89, 16
    %v590 = vor.u32 %v587, %v588
    %v591 = vrot.slane %v587, 4
    %v593 = vshrl.u32 %v90, 16
    %v595 = vrot.slane %v593, 7
    %v596 = vshll.u32 %v90, 16
    %v598 = vor.u32 %v595, %v596
    %v599 = vsel %vm362, %v591, %v598
    %v600 = vrot.slane %v595, 4
    %v602 = vshrl.u32 %v91, 16
    %v604 = vrot.slane %v602, 7
    %v605 = vshll.u32 %v91, 16
    %v607 = vor.u32 %v604, %v605
    %v608 = vrot.slane %v604, 4
    %v610 = vshrl.u32 %v92, 16
    %v612 = vrot.slane %v610, 7
    %v613 = vshll.u32 %v92, 16
    %v615 = vor.u32 %v612, %v613
    %v616 = vsel %vm362, %v608, %v615
    %v617 = vrot.slane %v612, 4
    %v619 = vshrl.u32 %v93, 16
    %v621 = vrot.slane %v619, 7
    %v622 = vshll.u32 %v93, 16
    %v624 = vor.u32 %v621, %v622
    %v625 = vrot.slane %v621, 4
    %v627 = vshrl.u32 %v94, 16
    %v629 = vrot.slane %v627, 7
    %v630 = vshll.u32 %v94, 16
    %v632 = vor.u32 %v629, %v630
    %v633 = vsel %vm362, %v625, %v632
    %v634 = vrot.slane %v629, 4
    %v636 = vshrl.u32 %v95, 16
    %v638 = vrot.slane %v636, 7
    %v639 = vshll.u32 %v95, 16
    %v641 = vor.u32 %v638, %v639
    %v642 = vrot.slane %v638, 4
    %v644 = vshrl.u32 %v96, 16
    %v646 = vrot.slane %v644, 7
    %v647 = vshll.u32 %v96, 16
    %v649 = vor.u32 %v646, %v647
    %v650 = vsel %vm362, %v642, %v649
    %v651 = vrot.slane %v646, 4
    %v653 = vshrl.u32 %v97, 16
    %v655 = vrot.slane %v653, 7
    %v656 = vshll.u32 %v97, 16
    %v658 = vor.u32 %v655, %v656
    %v659 = vrot.slane %v655, 4
    %v661 = vshrl.u32 %v98, 16
    %v663 = vrot.slane %v661, 7
    %v664 = vshll.u32 %v98, 16
    %v666 = vor.u32 %v663, %v664
    %v667 = vsel %vm362, %v659, %v666
    %v668 = vrot.slane %v663, 4
    %v670 = vshrl.u32 %v99, 16
    %v672 = vrot.slane %v670, 7
    %v673 = vshll.u32 %v99, 16
    %v675 = vor.u32 %v672, %v673
    %v676 = vrot.slane %v672, 4
    %v678 = vshrl.u32 %v100, 16
    %v680 = vrot.slane %v678, 7
    %v681 = vshll.u32 %v100, 16
    %v683 = vor.u32 %v680, %v681
    %v684 = vsel %vm362, %v676, %v683
    %v685 = vrot.slane %v680, 4
    %v687 = vshrl.u32 %v101, 16
    %v689 = vrot.slane %v687, 7
    %v690 = vshll.u32 %v101, 16
    %v692 = vor.u32 %v689, %v690
    %v693 = vrot.slane %v689, 4
    %v695 = vshrl.u32 %v102, 16
    %v697 = vrot.slane %v695, 7
    %v698 = vshll.u32 %v102, 16
    %v700 = vor.u32 %v697, %v698
    %v701 = vsel %vm362, %v693, %v700
    %v702 = vrot.slane %v697, 4
    %v704 = vshrl.u32 %v103, 16
    %v706 = vrot.slane %v704, 7
    %v707 = vshll.u32 %v103, 16
    %v709 = vor.u32 %v706, %v707
    %v710 = vrot.slane %v706, 4
    %v712 = vshrl.u32 %v104, 16
    %v714 = vrot.slane %v712, 7
    %v715 = vshll.u32 %v104, 16
    %v717 = vor.u32 %v714, %v715
    %v718 = vsel %vm362, %v710, %v717
    %v719 = vrot.slane %v714, 4
    %v721 = vshrl.u32 %v105, 16
    %v723 = vrot.slane %v721, 7
    %v724 = vshll.u32 %v105, 16
    %v726 = vor.u32 %v723, %v724
    %v727 = vrot.slane %v723, 4
    %v729 = vshrl.u32 %v106, 16
    %v731 = vrot.slane %v729, 7
    %v732 = vshll.u32 %v106, 16
    %v734 = vor.u32 %v731, %v732
    %v735 = vsel %vm362, %v727, %v734
    %v736 = vrot.slane %v731, 4
    %v738 = vshrl.u32 %v107, 16
    %v740 = vrot.slane %v738, 7
    %v741 = vshll.u32 %v107, 16
    %v743 = vor.u32 %v740, %v741
    %v744 = vrot.slane %v740, 4
    %v746 = vshrl.u32 %v108, 16
    %v748 = vrot.slane %v746, 7
    %v749 = vshll.u32 %v108, 16
    %v751 = vor.u32 %v748, %v749
    %v752 = vsel %vm362, %v744, %v751
    %v753 = vrot.slane %v748, 4
    %v755 = vshrl.u32 %v109, 16
    %v757 = vrot.slane %v755, 7
    %v758 = vshll.u32 %v109, 16
    %v760 = vor.u32 %v757, %v758
    %v761 = vrot.slane %v757, 4
    %v763 = vshrl.u32 %v110, 16
    %v765 = vrot.slane %v763, 7
    %v766 = vshll.u32 %v110, 16
    %v768 = vor.u32 %v765, %v766
    %v769 = vsel %vm362, %v761, %v768
    %v770 = vrot.slane %v765, 4
    %v772 = vshrl.u32 %v111, 16
    %v774 = vrot.slane %v772, 7
    %v775 = vshll.u32 %v111, 16
    %v777 = vor.u32 %v774, %v775
    %v778 = vrot.slane %v774, 4
    %v780 = vshrl.u32 %v112, 16
    %v782 = vrot.slane %v780, 7
    %v783 = vshll.u32 %v112, 16
    %v785 = vor.u32 %v782, %v783
    %v786 = vsel %vm362, %v778, %v785
    %v787 = vrot.slane %v782, 4
    %v789 = vshrl.u32 %v113, 16
    %v791 = vrot.slane %v789, 7
    %v792 = vshll.u32 %v113, 16
    %v794 = vor.u32 %v791, %v792
    %v795 = vrot.slane %v791, 4
    %v797 = vshrl.u32 %v114, 16
    %v799 = vrot.slane %v797, 7
    %v800 = vshll.u32 %v114, 16
    %v802 = vor.u32 %v799, %v800
    %v803 = vsel %vm362, %v795, %v802
    %v804 = vrot.slane %v799, 4
    %v806 = vshrl.u32 %v115, 16
    %v808 = vrot.slane %v806, 7
    %v809 = vshll.u32 %v115, 16
    %v811 = vor.u32 %v808, %v809
    %v812 = vrot.slane %v808, 4
    %v814 = vshrl.u32 %v116, 16
    %v816 = vrot.slane %v814, 7
    %v817 = vshll.u32 %v116, 16
    %v819 = vor.u32 %v816, %v817
    %v820 = vsel %vm362, %v812, %v819
    %v821 = vrot.slane %v816, 4
    %v823 = vshrl.u32 %v117, 16
    %v825 = vrot.slane %v823, 7
    %v826 = vshll.u32 %v117, 16
    %v828 = vor.u32 %v825, %v826
    %v829 = vrot.slane %v825, 4
    %v831 = vshrl.u32 %v118, 16
    %v833 = vrot.slane %v831, 7
    %v834 = vshll.u32 %v118, 16
    %v836 = vor.u32 %v833, %v834
    %v837 = vsel %vm362, %v829, %v836
    %v838 = vrot.slane %v833, 4
    %v840 = vshrl.u32 %v119, 16
    %v842 = vrot.slane %v840, 7
    %v843 = vshll.u32 %v119, 16
    %v845 = vor.u32 %v842, %v843
    %v846 = vrot.slane %v842, 4
    %v848 = vshrl.u32 %v120, 16
    %v850 = vrot.slane %v848, 7
    %v851 = vshll.u32 %v120, 16
    %v853 = vor.u32 %v850, %v851
    %v854 = vsel %vm362, %v846, %v853
    %v855 = vrot.slane %v850, 4
    %v857 = vshrl.u32 %v121, 16
    %v859 = vrot.slane %v857, 7
    %v860 = vshll.u32 %v121, 16
    %v862 = vor.u32 %v859, %v860
    %v863 = vrot.slane %v859, 4
    %v865 = vshrl.u32 %v122, 16
    %v867 = vrot.slane %v865, 7
    %v868 = vshll.u32 %v122, 16
    %v870 = vor.u32 %v867, %v868
    %v871 = vsel %vm362, %v863, %v870
    %v872 = vrot.slane %v867, 4
    %v874 = vshrl.u32 %v123, 16
    %v876 = vrot.slane %v874, 7
    %v877 = vshll.u32 %v123, 16
    %v879 = vor.u32 %v876, %v877
    %v880 = vrot.slane %v876, 4
    %v882 = vshrl.u32 %v124, 16
    %v884 = vrot.slane %v882, 7
    %v885 = vshll.u32 %v124, 16
    %v887 = vor.u32 %v884, %v885
    %v888 = vsel %vm362, %v880, %v887
    %v889 = vrot.slane %v884, 4
    %v891 = vshrl.u32 %v125, 16
    %v893 = vrot.slane %v891, 7
    %v894 = vshll.u32 %v125, 16
    %v896 = vor.u32 %v893, %v894
    %v897 = vrot.slane %v893, 4
    %v899 = vshrl.u32 %v126, 16
    %v901 = vrot.slane %v899, 7
    %v902 = vshll.u32 %v126, 16
    %v904 = vor.u32 %v901, %v902
    %v905 = vsel %vm362, %v897, %v904
    %v906 = vrot.slane %v901, 4
    %s1003 = scalar_lea.vmem [#allocation2], 12
    %vm1004 = vcmask 1043456
    %vm1005 = vmand %vm1004, %vm251
    %v1006 = vld [vmem:[%s1003] sm:$0xf]
    %v1007 = vsel %vm1005, %v369, %v1006
    %1008 = vst [vmem:[%s1003] sm:$0xf] %v1007
    %1009 = vst [vmem:[%s1003 + $0x4] sm:$0xf] %v378
    %v1010 = vld [vmem:[%s1003 + $0x8] sm:$0x1]
    %v1011 = vsel %vm142, %v379, %v1010
    %1012 = vst [vmem:[%s1003 + $0x8] sm:$0x1] %v1011
    %v1013 = vld [vmem:[%s1003 + $0xc] sm:$0xf]
    %v1014 = vsel %vm1005, %v386, %v1013
    %1015 = vst [vmem:[%s1003 + $0xc] sm:$0xf] %v1014
    %1016 = vst [vmem:[%s1003 + $0x10] sm:$0xf] %v395
    %v1017 = vld [vmem:[%s1003 + $0x14] sm:$0x1]
    %v1018 = vsel %vm142, %v396, %v1017
    %1019 = vst [vmem:[%s1003 + $0x14] sm:$0x1] %v1018
    %v1020 = vld [vmem:[%s1003 + $0x18] sm:$0xf]
    %v1021 = vsel %vm1005, %v403, %v1020
    %1022 = vst [vmem:[%s1003 + $0x18] sm:$0xf] %v1021
    %1023 = vst [vmem:[%s1003 + $0x1c] sm:$0xf] %v412
    %v1024 = vld [vmem:[%s1003 + $0x20] sm:$0x1]
    %v1025 = vsel %vm142, %v413, %v1024
    %1026 = vst [vmem:[%s1003 + $0x20] sm:$0x1] %v1025
    %v1027 = vld [vmem:[%s1003 + $0x24] sm:$0xf]
    %v1028 = vsel %vm1005, %v420, %v1027
    %1029 = vst [vmem:[%s1003 + $0x24] sm:$0xf] %v1028
    %1030 = vst [vmem:[%s1003 + $0x28] sm:$0xf] %v429
    %v1031 = vld [vmem:[%s1003 + $0x2c] sm:$0x1]
    %v1032 = vsel %vm142, %v430, %v1031
    %1033 = vst [vmem:[%s1003 + $0x2c] sm:$0x1] %v1032
    %v1034 = vld [vmem:[%s1003 + $0x30] sm:$0xf]
    %v1035 = vsel %vm1005, %v437, %v1034
    %1036 = vst [vmem:[%s1003 + $0x30] sm:$0xf] %v1035
    %1037 = vst [vmem:[%s1003 + $0x34] sm:$0xf] %v446
    %v1038 = vld [vmem:[%s1003 + $0x38] sm:$0x1]
    %v1039 = vsel %vm142, %v447, %v1038
    %1040 = vst [vmem:[%s1003 + $0x38] sm:$0x1] %v1039
    %v1041 = vld [vmem:[%s1003 + $0x3c] sm:$0xf]
    %v1042 = vsel %vm1005, %v454, %v1041
    %1043 = vst [vmem:[%s1003 + $0x3c] sm:$0xf] %v1042
    %1044 = vst [vmem:[%s1003 + $0x40] sm:$0xf] %v463
    %v1045 = vld [vmem:[%s1003 + $0x44] sm:$0x1]
    %v1046 = vsel %vm142, %v464, %v1045
    %1047 = vst [vmem:[%s1003 + $0x44] sm:$0x1] %v1046
    %v1048 = vld [vmem:[%s1003 + $0x48] sm:$0xf]
    %v1049 = vsel %vm1005, %v471, %v1048
    %1050 = vst [vmem:[%s1003 + $0x48] sm:$0xf] %v1049
    %1051 = vst [vmem:[%s1003 + $0x4c] sm:$0xf] %v480
    %v1052 = vld [vmem:[%s1003 + $0x50] sm:$0x1]
    %v1053 = vsel %vm142, %v481, %v1052
    %1054 = vst [vmem:[%s1003 + $0x50] sm:$0x1] %v1053
    %v1055 = vld [vmem:[%s1003 + $0x54] sm:$0xf]
    %v1056 = vsel %vm1005, %v488, %v1055
    %1057 = vst [vmem:[%s1003 + $0x54] sm:$0xf] %v1056
    %1058 = vst [vmem:[%s1003 + $0x58] sm:$0xf] %v497
    %v1059 = vld [vmem:[%s1003 + $0x5c] sm:$0x1]
    %v1060 = vsel %vm142, %v498, %v1059
    %1061 = vst [vmem:[%s1003 + $0x5c] sm:$0x1] %v1060
    %v1062 = vld [vmem:[%s1003 + $0x60] sm:$0xf]
    %v1063 = vsel %vm1005, %v505, %v1062
    %1064 = vst [vmem:[%s1003 + $0x60] sm:$0xf] %v1063
    %1065 = vst [vmem:[%s1003 + $0x64] sm:$0xf] %v514
    %v1066 = vld [vmem:[%s1003 + $0x68] sm:$0x1]
    %v1067 = vsel %vm142, %v515, %v1066
    %1068 = vst [vmem:[%s1003 + $0x68] sm:$0x1] %v1067
    %v1069 = vld [vmem:[%s1003 + $0x6c] sm:$0xf]
    %v1070 = vsel %vm1005, %v522, %v1069
    %1071 = vst [vmem:[%s1003 + $0x6c] sm:$0xf] %v1070
    %1072 = vst [vmem:[%s1003 + $0x70] sm:$0xf] %v531
    %v1073 = vld [vmem:[%s1003 + $0x74] sm:$0x1]
    %v1074 = vsel %vm142, %v532, %v1073
    %1075 = vst [vmem:[%s1003 + $0x74] sm:$0x1] %v1074
    %v1076 = vld [vmem:[%s1003 + $0x78] sm:$0xf]
    %v1077 = vsel %vm1005, %v539, %v1076
    %1078 = vst [vmem:[%s1003 + $0x78] sm:$0xf] %v1077
    %1079 = vst [vmem:[%s1003 + $0x7c] sm:$0xf] %v548
    %v1080 = vld [vmem:[%s1003 + $0x80] sm:$0x1]
    %v1081 = vsel %vm142, %v549, %v1080
    %1082 = vst [vmem:[%s1003 + $0x80] sm:$0x1] %v1081
    %v1083 = vld [vmem:[%s1003 + $0x84] sm:$0xf]
    %v1084 = vsel %vm1005, %v556, %v1083
    %1085 = vst [vmem:[%s1003 + $0x84] sm:$0xf] %v1084
    %1086 = vst [vmem:[%s1003 + $0x88] sm:$0xf] %v565
    %v1087 = vld [vmem:[%s1003 + $0x8c] sm:$0x1]
    %v1088 = vsel %vm142, %v566, %v1087
    %1089 = vst [vmem:[%s1003 + $0x8c] sm:$0x1] %v1088
    %v1090 = vld [vmem:[%s1003 + $0x90] sm:$0xf]
    %v1091 = vsel %vm1005, %v573, %v1090
    %1092 = vst [vmem:[%s1003 + $0x90] sm:$0xf] %v1091
    %1093 = vst [vmem:[%s1003 + $0x94] sm:$0xf] %v582
    %v1094 = vld [vmem:[%s1003 + $0x98] sm:$0x1]
    %v1095 = vsel %vm142, %v583, %v1094
    %1096 = vst [vmem:[%s1003 + $0x98] sm:$0x1] %v1095
    %v1097 = vld [vmem:[%s1003 + $0x9c] sm:$0xf]
    %v1098 = vsel %vm1005, %v590, %v1097
    %1099 = vst [vmem:[%s1003 + $0x9c] sm:$0xf] %v1098
    %1100 = vst [vmem:[%s1003 + $0xa0] sm:$0xf] %v599
    %v1101 = vld [vmem:[%s1003 + $0xa4] sm:$0x1]
    %v1102 = vsel %vm142, %v600, %v1101
    %1103 = vst [vmem:[%s1003 + $0xa4] sm:$0x1] %v1102
    %v1104 = vld [vmem:[%s1003 + $0xa8] sm:$0xf]
    %v1105 = vsel %vm1005, %v607, %v1104
    %1106 = vst [vmem:[%s1003 + $0xa8] sm:$0xf] %v1105
    %1107 = vst [vmem:[%s1003 + $0xac] sm:$0xf] %v616
    %v1108 = vld [vmem:[%s1003 + $0xb0] sm:$0x1]
    %v1109 = vsel %vm142, %v617, %v1108
    %1110 = vst [vmem:[%s1003 + $0xb0] sm:$0x1] %v1109
    %v1111 = vld [vmem:[%s1003 + $0xb4] sm:$0xf]
    %v1112 = vsel %vm1005, %v624, %v1111
    %1113 = vst [vmem:[%s1003 + $0xb4] sm:$0xf] %v1112
    %1114 = vst [vmem:[%s1003 + $0xb8] sm:$0xf] %v633
    %v1115 = vld [vmem:[%s1003 + $0xbc] sm:$0x1]
    %v1116 = vsel %vm142, %v634, %v1115
    %1117 = vst [vmem:[%s1003 + $0xbc] sm:$0x1] %v1116
    %v1118 = vld [vmem:[%s1003 + $0xd8] sm:$0xf]
    %v1119 = vsel %vm1005, %v641, %v1118
    %1120 = vst [vmem:[%s1003 + $0xd8] sm:$0xf] %v1119
    %1121 = vst [vmem:[%s1003 + $0xdc] sm:$0xf] %v650
    %v1122 = vld [vmem:[%s1003 + $0xe0] sm:$0x1]
    %v1123 = vsel %vm142, %v651, %v1122
    %1124 = vst [vmem:[%s1003 + $0xe0] sm:$0x1] %v1123
    %v1125 = vld [vmem:[%s1003 + $0xe4] sm:$0xf]
    %v1126 = vsel %vm1005, %v658, %v1125
    %1127 = vst [vmem:[%s1003 + $0xe4] sm:$0xf] %v1126
    %1128 = vst [vmem:[%s1003 + $0xe8] sm:$0xf] %v667
    %v1129 = vld [vmem:[%s1003 + $0xec] sm:$0x1]
    %v1130 = vsel %vm142, %v668, %v1129
    %1131 = vst [vmem:[%s1003 + $0xec] sm:$0x1] %v1130
    %v1132 = vld [vmem:[%s1003 + $0xf0] sm:$0xf]
    %v1133 = vsel %vm1005, %v675, %v1132
    %1134 = vst [vmem:[%s1003 + $0xf0] sm:$0xf] %v1133
    %1135 = vst [vmem:[%s1003 + $0xf4] sm:$0xf] %v684
    %v1136 = vld [vmem:[%s1003 + $0xf8] sm:$0x1]
    %v1137 = vsel %vm142, %v685, %v1136
    %1138 = vst [vmem:[%s1003 + $0xf8] sm:$0x1] %v1137
    %v1139 = vld [vmem:[%s1003 + $0xfc] sm:$0xf]
    %v1140 = vsel %vm1005, %v692, %v1139
    %1141 = vst [vmem:[%s1003 + $0xfc] sm:$0xf] %v1140
    %1142 = vst [vmem:[%s1003 + $0x100] sm:$0xf] %v701
    %v1143 = vld [vmem:[%s1003 + $0x104] sm:$0x1]
    %v1144 = vsel %vm142, %v702, %v1143
    %1145 = vst [vmem:[%s1003 + $0x104] sm:$0x1] %v1144
    %v1146 = vld [vmem:[%s1003 + $0x108] sm:$0xf]
    %v1147 = vsel %vm1005, %v709, %v1146
    %1148 = vst [vmem:[%s1003 + $0x108] sm:$0xf] %v1147
    %1149 = vst [vmem:[%s1003 + $0x10c] sm:$0xf] %v718
    %v1150 = vld [vmem:[%s1003 + $0x110] sm:$0x1]
    %v1151 = vsel %vm142, %v719, %v1150
    %1152 = vst [vmem:[%s1003 + $0x110] sm:$0x1] %v1151
    %v1153 = vld [vmem:[%s1003 + $0x114] sm:$0xf]
    %v1154 = vsel %vm1005, %v726, %v1153
    %1155 = vst [vmem:[%s1003 + $0x114] sm:$0xf] %v1154
    %1156 = vst [vmem:[%s1003 + $0x118] sm:$0xf] %v735
    %v1157 = vld [vmem:[%s1003 + $0x11c] sm:$0x1]
    %v1158 = vsel %vm142, %v736, %v1157
    %1159 = vst [vmem:[%s1003 + $0x11c] sm:$0x1] %v1158
    %v1160 = vld [vmem:[%s1003 + $0x120] sm:$0xf]
    %v1161 = vsel %vm1005, %v743, %v1160
    %1162 = vst [vmem:[%s1003 + $0x120] sm:$0xf] %v1161
    %1163 = vst [vmem:[%s1003 + $0x124] sm:$0xf] %v752
    %v1164 = vld [vmem:[%s1003 + $0x128] sm:$0x1]
    %v1165 = vsel %vm142, %v753, %v1164
    %1166 = vst [vmem:[%s1003 + $0x128] sm:$0x1] %v1165
    %v1167 = vld [vmem:[%s1003 + $0x12c] sm:$0xf]
    %v1168 = vsel %vm1005, %v760, %v1167
    %1169 = vst [vmem:[%s1003 + $0x12c] sm:$0xf] %v1168
    %1170 = vst [vmem:[%s1003 + $0x130] sm:$0xf] %v769
    %v1171 = vld [vmem:[%s1003 + $0x134] sm:$0x1]
    %v1172 = vsel %vm142, %v770, %v1171
    %1173 = vst [vmem:[%s1003 + $0x134] sm:$0x1] %v1172
    %v1174 = vld [vmem:[%s1003 + $0x138] sm:$0xf]
    %v1175 = vsel %vm1005, %v777, %v1174
    %1176 = vst [vmem:[%s1003 + $0x138] sm:$0xf] %v1175
    %1177 = vst [vmem:[%s1003 + $0x13c] sm:$0xf] %v786
    %v1178 = vld [vmem:[%s1003 + $0x140] sm:$0x1]
    %v1179 = vsel %vm142, %v787, %v1178
    %1180 = vst [vmem:[%s1003 + $0x140] sm:$0x1] %v1179
    %v1181 = vld [vmem:[%s1003 + $0x144] sm:$0xf]
    %v1182 = vsel %vm1005, %v794, %v1181
    %1183 = vst [vmem:[%s1003 + $0x144] sm:$0xf] %v1182
    %1184 = vst [vmem:[%s1003 + $0x148] sm:$0xf] %v803
    %v1185 = vld [vmem:[%s1003 + $0x14c] sm:$0x1]
    %v1186 = vsel %vm142, %v804, %v1185
    %1187 = vst [vmem:[%s1003 + $0x14c] sm:$0x1] %v1186
    %v1188 = vld [vmem:[%s1003 + $0x150] sm:$0xf]
    %v1189 = vsel %vm1005, %v811, %v1188
    %1190 = vst [vmem:[%s1003 + $0x150] sm:$0xf] %v1189
    %1191 = vst [vmem:[%s1003 + $0x154] sm:$0xf] %v820
    %v1192 = vld [vmem:[%s1003 + $0x158] sm:$0x1]
    %v1193 = vsel %vm142, %v821, %v1192
    %1194 = vst [vmem:[%s1003 + $0x158] sm:$0x1] %v1193
    %v1195 = vld [vmem:[%s1003 + $0x15c] sm:$0xf]
    %v1196 = vsel %vm1005, %v828, %v1195
    %1197 = vst [vmem:[%s1003 + $0x15c] sm:$0xf] %v1196
    %1198 = vst [vmem:[%s1003 + $0x160] sm:$0xf] %v837
    %v1199 = vld [vmem:[%s1003 + $0x164] sm:$0x1]
    %v1200 = vsel %vm142, %v838, %v1199
    %1201 = vst [vmem:[%s1003 + $0x164] sm:$0x1] %v1200
    %v1202 = vld [vmem:[%s1003 + $0x168] sm:$0xf]
    %v1203 = vsel %vm1005, %v845, %v1202
    %1204 = vst [vmem:[%s1003 + $0x168] sm:$0xf] %v1203
    %1205 = vst [vmem:[%s1003 + $0x16c] sm:$0xf] %v854
    %v1206 = vld [vmem:[%s1003 + $0x170] sm:$0x1]
    %v1207 = vsel %vm142, %v855, %v1206
    %1208 = vst [vmem:[%s1003 + $0x170] sm:$0x1] %v1207
    %v1209 = vld [vmem:[%s1003 + $0x174] sm:$0xf]
    %v1210 = vsel %vm1005, %v862, %v1209
    %1211 = vst [vmem:[%s1003 + $0x174] sm:$0xf] %v1210
    %1212 = vst [vmem:[%s1003 + $0x178] sm:$0xf] %v871
    %v1213 = vld [vmem:[%s1003 + $0x17c] sm:$0x1]
    %v1214 = vsel %vm142, %v872, %v1213
    %1215 = vst [vmem:[%s1003 + $0x17c] sm:$0x1] %v1214
    %v1216 = vld [vmem:[%s1003 + $0x180] sm:$0xf]
    %v1217 = vsel %vm1005, %v879, %v1216
    %1218 = vst [vmem:[%s1003 + $0x180] sm:$0xf] %v1217
    %1219 = vst [vmem:[%s1003 + $0x184] sm:$0xf] %v888
    %v1220 = vld [vmem:[%s1003 + $0x188] sm:$0x1]
    %v1221 = vsel %vm142, %v889, %v1220
    %1222 = vst [vmem:[%s1003 + $0x188] sm:$0x1] %v1221
    %v1223 = vld [vmem:[%s1003 + $0x18c] sm:$0xf]
    %v1224 = vsel %vm1005, %v896, %v1223
    %1225 = vst [vmem:[%s1003 + $0x18c] sm:$0xf] %v1224
    %1226 = vst [vmem:[%s1003 + $0x190] sm:$0xf] %v905
    %v1227 = vld [vmem:[%s1003 + $0x194] sm:$0x1]
    %v1228 = vsel %vm142, %v906, %v1227
    %1229 = vst [vmem:[%s1003 + $0x194] sm:$0x1] %v1228
    %v1230 = vld [vmem:[#allocation2] sm:$0xf]
    %v1231 = vld [vmem:[#allocation2 + $0x4] sm:$0xf]
    %v1232 = vld [vmem:[#allocation2 + $0xc] sm:$0xf]
    %v1233 = vld [vmem:[#allocation2 + $0x10] sm:$0xf]
    %v1234 = vld [vmem:[#allocation2 + $0x18] sm:$0xf]
    %v1235 = vld [vmem:[#allocation2 + $0x1c] sm:$0xf]
    %v1236 = vld [vmem:[#allocation2 + $0x24] sm:$0xf]
    %v1237 = vld [vmem:[#allocation2 + $0x28] sm:$0xf]
    %v1238 = vld [vmem:[#allocation2 + $0x30] sm:$0xf]
    %v1239 = vld [vmem:[#allocation2 + $0x34] sm:$0xf]
    %v1240 = vld [vmem:[#allocation2 + $0x3c] sm:$0xf]
    %v1241 = vld [vmem:[#allocation2 + $0x40] sm:$0xf]
    %v1242 = vld [vmem:[#allocation2 + $0x48] sm:$0xf]
    %v1243 = vld [vmem:[#allocation2 + $0x4c] sm:$0xf]
    %v1244 = vld [vmem:[#allocation2 + $0x54] sm:$0xf]
    %v1245 = vld [vmem:[#allocation2 + $0x58] sm:$0xf]
    %v1246 = vld [vmem:[#allocation2 + $0x60] sm:$0xf]
    %v1247 = vld [vmem:[#allocation2 + $0x64] sm:$0xf]
    %v1248 = vld [vmem:[#allocation2 + $0x6c] sm:$0xf]
    %v1249 = vld [vmem:[#allocation2 + $0x70] sm:$0xf]
    %v1250 = vld [vmem:[#allocation2 + $0x78] sm:$0xf]
    %v1251 = vld [vmem:[#allocation2 + $0x7c] sm:$0xf]
    %v1252 = vld [vmem:[#allocation2 + $0x84] sm:$0xf]
    %v1253 = vld [vmem:[#allocation2 + $0x88] sm:$0xf]
    %v1254 = vld [vmem:[#allocation2 + $0x90] sm:$0xf]
    %v1255 = vld [vmem:[#allocation2 + $0x94] sm:$0xf]
    %v1256 = vld [vmem:[#allocation2 + $0x9c] sm:$0xf]
    %v1257 = vld [vmem:[#allocation2 + $0xa0] sm:$0xf]
    %v1258 = vld [vmem:[#allocation2 + $0xa8] sm:$0xf]
    %v1259 = vld [vmem:[#allocation2 + $0xac] sm:$0xf]
    %v1260 = vld [vmem:[#allocation2 + $0xb4] sm:$0xf]
    %v1261 = vld [vmem:[#allocation2 + $0xb8] sm:$0xf]
    %v1262 = vld [vmem:[#allocation2 + $0xd8] sm:$0xf]
    %v1263 = vld [vmem:[#allocation2 + $0xdc] sm:$0xf]
    %v1264 = vld [vmem:[#allocation2 + $0xe4] sm:$0xf]
    %v1265 = vld [vmem:[#allocation2 + $0xe8] sm:$0xf]
    %v1266 = vld [vmem:[#allocation2 + $0xf0] sm:$0xf]
    %v1267 = vld [vmem:[#allocation2 + $0xf4] sm:$0xf]
    %v1268 = vld [vmem:[#allocation2 + $0xfc] sm:$0xf]
    %v1269 = vld [vmem:[#allocation2 + $0x100] sm:$0xf]
    %v1270 = vld [vmem:[#allocation2 + $0x108] sm:$0xf]
    %v1271 = vld [vmem:[#allocation2 + $0x10c] sm:$0xf]
    %v1272 = vld [vmem:[#allocation2 + $0x114] sm:$0xf]
    %v1273 = vld [vmem:[#allocation2 + $0x118] sm:$0xf]
    %v1274 = vld [vmem:[#allocation2 + $0x120] sm:$0xf]
    %v1275 = vld [vmem:[#allocation2 + $0x124] sm:$0xf]
    %v1276 = vld [vmem:[#allocation2 + $0x12c] sm:$0xf]
    %v1277 = vld [vmem:[#allocation2 + $0x130] sm:$0xf]
    %v1278 = vld [vmem:[#allocation2 + $0x138] sm:$0xf]
    %v1279 = vld [vmem:[#allocation2 + $0x13c] sm:$0xf]
    %v1280 = vld [vmem:[#allocation2 + $0x144] sm:$0xf]
    %v1281 = vld [vmem:[#allocation2 + $0x148] sm:$0xf]
    %v1282 = vld [vmem:[#allocation2 + $0x150] sm:$0xf]
    %v1283 = vld [vmem:[#allocation2 + $0x154] sm:$0xf]
    %v1284 = vld [vmem:[#allocation2 + $0x15c] sm:$0xf]
    %v1285 = vld [vmem:[#allocation2 + $0x160] sm:$0xf]
    %v1286 = vld [vmem:[#allocation2 + $0x168] sm:$0xf]
    %v1287 = vld [vmem:[#allocation2 + $0x16c] sm:$0xf]
    %v1288 = vld [vmem:[#allocation2 + $0x174] sm:$0xf]
    %v1289 = vld [vmem:[#allocation2 + $0x178] sm:$0xf]
    %v1290 = vld [vmem:[#allocation2 + $0x180] sm:$0xf]
    %v1291 = vld [vmem:[#allocation2 + $0x184] sm:$0xf]
    %v1292 = vld [vmem:[#allocation2 + $0x18c] sm:$0xf]
    %v1293 = vld [vmem:[#allocation2 + $0x190] sm:$0xf]
    %v1294 = vld [vmem:[#allocation6] sm:$0xf]
    %v1295 = vld [vmem:[#allocation6 + $0x4] sm:$0xf]
    %v1296 = vld [vmem:[#allocation6 + $0x8] sm:$0xf]
    %v1297 = vld [vmem:[#allocation6 + $0xc] sm:$0xf]
    %v1298 = vld [vmem:[#allocation6 + $0x10] sm:$0xf]
    %v1299 = vld [vmem:[#allocation6 + $0x14] sm:$0xf]
    %v1300 = vld [vmem:[#allocation6 + $0x18] sm:$0xf]
    %v1301 = vld [vmem:[#allocation6 + $0x1c] sm:$0xf]
    %v1302 = vld [vmem:[#allocation6 + $0x20] sm:$0xf]
    %v1303 = vld [vmem:[#allocation6 + $0x24] sm:$0xf]
    %v1304 = vld [vmem:[#allocation6 + $0x28] sm:$0xf]
    %v1305 = vld [vmem:[#allocation6 + $0x2c] sm:$0xf]
    %v1306 = vld [vmem:[#allocation6 + $0x30] sm:$0xf]
    %v1307 = vld [vmem:[#allocation6 + $0x34] sm:$0xf]
    %v1308 = vld [vmem:[#allocation6 + $0x38] sm:$0xf]
    %v1309 = vld [vmem:[#allocation6 + $0x3c] sm:$0xf]
    %v1310 = vld [vmem:[#allocation2 + $0x8] sm:$0x1]
    %v1311 = vld [vmem:[#allocation2 + $0x14] sm:$0x1]
    %v1312 = vld [vmem:[#allocation2 + $0x20] sm:$0x1]
    %v1313 = vld [vmem:[#allocation2 + $0x2c] sm:$0x1]
    %v1314 = vld [vmem:[#allocation2 + $0x38] sm:$0x1]
    %v1315 = vld [vmem:[#allocation2 + $0x44] sm:$0x1]
    %v1316 = vld [vmem:[#allocation2 + $0x50] sm:$0x1]
    %v1317 = vld [vmem:[#allocation2 + $0x5c] sm:$0x1]
    %v1318 = vld [vmem:[#allocation2 + $0x68] sm:$0x1]
    %v1319 = vld [vmem:[#allocation2 + $0x74] sm:$0x1]
    %v1320 = vld [vmem:[#allocation2 + $0x80] sm:$0x1]
    %v1321 = vld [vmem:[#allocation2 + $0x8c] sm:$0x1]
    %v1322 = vld [vmem:[#allocation2 + $0x98] sm:$0x1]
    %v1323 = vld [vmem:[#allocation2 + $0xa4] sm:$0x1]
    %v1324 = vld [vmem:[#allocation2 + $0xb0] sm:$0x1]
    %v1325 = vld [vmem:[#allocation2 + $0xbc] sm:$0x1]
    %v1326 = vld [vmem:[#allocation2 + $0xe0] sm:$0x1]
    %v1327 = vld [vmem:[#allocation2 + $0xec] sm:$0x1]
    %v1328 = vld [vmem:[#allocation2 + $0xf8] sm:$0x1]
    %v1329 = vld [vmem:[#allocation2 + $0x104] sm:$0x1]
    %v1330 = vld [vmem:[#allocation2 + $0x110] sm:$0x1]
    %v1331 = vld [vmem:[#allocation2 + $0x11c] sm:$0x1]
    %v1332 = vld [vmem:[#allocation2 + $0x128] sm:$0x1]
    %v1333 = vld [vmem:[#allocation2 + $0x134] sm:$0x1]
    %v1334 = vld [vmem:[#allocation2 + $0x140] sm:$0x1]
    %v1335 = vld [vmem:[#allocation2 + $0x14c] sm:$0x1]
    %v1336 = vld [vmem:[#allocation2 + $0x158] sm:$0x1]
    %v1337 = vld [vmem:[#allocation2 + $0x164] sm:$0x1]
    %v1338 = vld [vmem:[#allocation2 + $0x170] sm:$0x1]
    %v1339 = vld [vmem:[#allocation2 + $0x17c] sm:$0x1]
    %v1340 = vld [vmem:[#allocation2 + $0x188] sm:$0x1]
    %v1341 = vld [vmem:[#allocation2 + $0x194] sm:$0x1]
    %vm1342 = vsmask.f32 3328
    %vm1343 = vsmask.f32 7440
    %vm1344 = vmor %vm1342, %vm1343
    %v1346 = vshrl.u32 %v1230, 16
    %v1348 = vrot.slane %v1346, 4
    %v1349 = vshll.u32 %v1230, 16
    %v1351 = vrot.slane %v1349, 5
    %v1352 = vor.u32 %v1348, %v1351
    %v1353 = vrot.slane %v1352, 4
    %v1355 = vshll.u32 %v1231, 16
    %v1357 = vrot.slane %v1355, 5
    %v1358 = vsel %vm1344, %v1353, %v1357
    %v1359 = vshrl.u32 %v1231, 16
    %v1361 = vrot.slane %v1359, 4
    %v1362 = vor.u32 %v1361, %v1357
    %v1363 = vrot.slane %v1362, 4
    %v1365 = vshll.u32 %v1310, 16
    %v1367 = vrot.slane %v1365, 5
    %v1368 = vsel %vm1344, %v1363, %v1367
    %v1370 = vshrl.u32 %v1232, 16
    %v1372 = vrot.slane %v1370, 4
    %v1373 = vshll.u32 %v1232, 16
    %v1375 = vrot.slane %v1373, 5
    %v1376 = vor.u32 %v1372, %v1375
    %v1377 = vrot.slane %v1376, 4
    %v1379 = vshll.u32 %v1233, 16
    %v1381 = vrot.slane %v1379, 5
    %v1382 = vsel %vm1344, %v1377, %v1381
    %v1383 = vshrl.u32 %v1233, 16
    %v1385 = vrot.slane %v1383, 4
    %v1386 = vor.u32 %v1385, %v1381
    %v1387 = vrot.slane %v1386, 4
    %v1389 = vshll.u32 %v1311, 16
    %v1391 = vrot.slane %v1389, 5
    %v1392 = vsel %vm1344, %v1387, %v1391
    %v1394 = vshrl.u32 %v1234, 16
    %v1396 = vrot.slane %v1394, 4
    %v1397 = vshll.u32 %v1234, 16
    %v1399 = vrot.slane %v1397, 5
    %v1400 = vor.u32 %v1396, %v1399
    %v1401 = vrot.slane %v1400, 4
    %v1403 = vshll.u32 %v1235, 16
    %v1405 = vrot.slane %v1403, 5
    %v1406 = vsel %vm1344, %v1401, %v1405
    %v1407 = vshrl.u32 %v1235, 16
    %v1409 = vrot.slane %v1407, 4
    %v1410 = vor.u32 %v1409, %v1405
    %v1411 = vrot.slane %v1410, 4
    %v1413 = vshll.u32 %v1312, 16
    %v1415 = vrot.slane %v1413, 5
    %v1416 = vsel %vm1344, %v1411, %v1415
    %v1418 = vshrl.u32 %v1236, 16
    %v1420 = vrot.slane %v1418, 4
    %v1421 = vshll.u32 %v1236, 16
    %v1423 = vrot.slane %v1421, 5
    %v1424 = vor.u32 %v1420, %v1423
    %v1425 = vrot.slane %v1424, 4
    %v1427 = vshll.u32 %v1237, 16
    %v1429 = vrot.slane %v1427, 5
    %v1430 = vsel %vm1344, %v1425, %v1429
    %v1431 = vshrl.u32 %v1237, 16
    %v1433 = vrot.slane %v1431, 4
    %v1434 = vor.u32 %v1433, %v1429
    %v1435 = vrot.slane %v1434, 4
    %v1437 = vshll.u32 %v1313, 16
    %v1439 = vrot.slane %v1437, 5
    %v1440 = vsel %vm1344, %v1435, %v1439
    %v1442 = vshrl.u32 %v1238, 16
    %v1444 = vrot.slane %v1442, 4
    %v1445 = vshll.u32 %v1238, 16
    %v1447 = vrot.slane %v1445, 5
    %v1448 = vor.u32 %v1444, %v1447
    %v1449 = vrot.slane %v1448, 4
    %v1451 = vshll.u32 %v1239, 16
    %v1453 = vrot.slane %v1451, 5
    %v1454 = vsel %vm1344, %v1449, %v1453
    %v1455 = vshrl.u32 %v1239, 16
    %v1457 = vrot.slane %v1455, 4
    %v1458 = vor.u32 %v1457, %v1453
    %v1459 = vrot.slane %v1458, 4
    %v1461 = vshll.u32 %v1314, 16
    %v1463 = vrot.slane %v1461, 5
    %v1464 = vsel %vm1344, %v1459, %v1463
    %v1466 = vshrl.u32 %v1240, 16
    %v1468 = vrot.slane %v1466, 4
    %v1469 = vshll.u32 %v1240, 16
    %v1471 = vrot.slane %v1469, 5
    %v1472 = vor.u32 %v1468, %v1471
    %v1473 = vrot.slane %v1472, 4
    %v1475 = vshll.u32 %v1241, 16
    %v1477 = vrot.slane %v1475, 5
    %v1478 = vsel %vm1344, %v1473, %v1477
    %v1479 = vshrl.u32 %v1241, 16
    %v1481 = vrot.slane %v1479, 4
    %v1482 = vor.u32 %v1481, %v1477
    %v1483 = vrot.slane %v1482, 4
    %v1485 = vshll.u32 %v1315, 16
    %v1487 = vrot.slane %v1485, 5
    %v1488 = vsel %vm1344, %v1483, %v1487
    %v1490 = vshrl.u32 %v1242, 16
    %v1492 = vrot.slane %v1490, 4
    %v1493 = vshll.u32 %v1242, 16
    %v1495 = vrot.slane %v1493, 5
    %v1496 = vor.u32 %v1492, %v1495
    %v1497 = vrot.slane %v1496, 4
    %v1499 = vshll.u32 %v1243, 16
    %v1501 = vrot.slane %v1499, 5
    %v1502 = vsel %vm1344, %v1497, %v1501
    %v1503 = vshrl.u32 %v1243, 16
    %v1505 = vrot.slane %v1503, 4
    %v1506 = vor.u32 %v1505, %v1501
    %v1507 = vrot.slane %v1506, 4
    %v1509 = vshll.u32 %v1316, 16
    %v1511 = vrot.slane %v1509, 5
    %v1512 = vsel %vm1344, %v1507, %v1511
    %v1514 = vshrl.u32 %v1244, 16
    %v1516 = vrot.slane %v1514, 4
    %v1517 = vshll.u32 %v1244, 16
    %v1519 = vrot.slane %v1517, 5
    %v1520 = vor.u32 %v1516, %v1519
    %v1521 = vrot.slane %v1520, 4
    %v1523 = vshll.u32 %v1245, 16
    %v1525 = vrot.slane %v1523, 5
    %v1526 = vsel %vm1344, %v1521, %v1525
    %v1527 = vshrl.u32 %v1245, 16
    %v1529 = vrot.slane %v1527, 4
    %v1530 = vor.u32 %v1529, %v1525
    %v1531 = vrot.slane %v1530, 4
    %v1533 = vshll.u32 %v1317, 16
    %v1535 = vrot.slane %v1533, 5
    %v1536 = vsel %vm1344, %v1531, %v1535
    %v1538 = vshrl.u32 %v1246, 16
    %v1540 = vrot.slane %v1538, 4
    %v1541 = vshll.u32 %v1246, 16
    %v1543 = vrot.slane %v1541, 5
    %v1544 = vor.u32 %v1540, %v1543
    %v1545 = vrot.slane %v1544, 4
    %v1547 = vshll.u32 %v1247, 16
    %v1549 = vrot.slane %v1547, 5
    %v1550 = vsel %vm1344, %v1545, %v1549
    %v1551 = vshrl.u32 %v1247, 16
    %v1553 = vrot.slane %v1551, 4
    %v1554 = vor.u32 %v1553, %v1549
    %v1555 = vrot.slane %v1554, 4
    %v1557 = vshll.u32 %v1318, 16
    %v1559 = vrot.slane %v1557, 5
    %v1560 = vsel %vm1344, %v1555, %v1559
    %v1562 = vshrl.u32 %v1248, 16
    %v1564 = vrot.slane %v1562, 4
    %v1565 = vshll.u32 %v1248, 16
    %v1567 = vrot.slane %v1565, 5
    %v1568 = vor.u32 %v1564, %v1567
    %v1569 = vrot.slane %v1568, 4
    %v1571 = vshll.u32 %v1249, 16
    %v1573 = vrot.slane %v1571, 5
    %v1574 = vsel %vm1344, %v1569, %v1573
    %v1575 = vshrl.u32 %v1249, 16
    %v1577 = vrot.slane %v1575, 4
    %v1578 = vor.u32 %v1577, %v1573
    %v1579 = vrot.slane %v1578, 4
    %v1581 = vshll.u32 %v1319, 16
    %v1583 = vrot.slane %v1581, 5
    %v1584 = vsel %vm1344, %v1579, %v1583
    %v1586 = vshrl.u32 %v1250, 16
    %v1588 = vrot.slane %v1586, 4
    %v1589 = vshll.u32 %v1250, 16
    %v1591 = vrot.slane %v1589, 5
    %v1592 = vor.u32 %v1588, %v1591
    %v1593 = vrot.slane %v1592, 4
    %v1595 = vshll.u32 %v1251, 16
    %v1597 = vrot.slane %v1595, 5
    %v1598 = vsel %vm1344, %v1593, %v1597
    %v1599 = vshrl.u32 %v1251, 16
    %v1601 = vrot.slane %v1599, 4
    %v1602 = vor.u32 %v1601, %v1597
    %v1603 = vrot.slane %v1602, 4
    %v1605 = vshll.u32 %v1320, 16
    %v1607 = vrot.slane %v1605, 5
    %v1608 = vsel %vm1344, %v1603, %v1607
    %v1610 = vshrl.u32 %v1252, 16
    %v1612 = vrot.slane %v1610, 4
    %v1613 = vshll.u32 %v1252, 16
    %v1615 = vrot.slane %v1613, 5
    %v1616 = vor.u32 %v1612, %v1615
    %v1617 = vrot.slane %v1616, 4
    %v1619 = vshll.u32 %v1253, 16
    %v1621 = vrot.slane %v1619, 5
    %v1622 = vsel %vm1344, %v1617, %v1621
    %v1623 = vshrl.u32 %v1253, 16
    %v1625 = vrot.slane %v1623, 4
    %v1626 = vor.u32 %v1625, %v1621
    %v1627 = vrot.slane %v1626, 4
    %v1629 = vshll.u32 %v1321, 16
    %v1631 = vrot.slane %v1629, 5
    %v1632 = vsel %vm1344, %v1627, %v1631
    %v1634 = vshrl.u32 %v1254, 16
    %v1636 = vrot.slane %v1634, 4
    %v1637 = vshll.u32 %v1254, 16
    %v1639 = vrot.slane %v1637, 5
    %v1640 = vor.u32 %v1636, %v1639
    %v1641 = vrot.slane %v1640, 4
    %v1643 = vshll.u32 %v1255, 16
    %v1645 = vrot.slane %v1643, 5
    %v1646 = vsel %vm1344, %v1641, %v1645
    %v1647 = vshrl.u32 %v1255, 16
    %v1649 = vrot.slane %v1647, 4
    %v1650 = vor.u32 %v1649, %v1645
    %v1651 = vrot.slane %v1650, 4
    %v1653 = vshll.u32 %v1322, 16
    %v1655 = vrot.slane %v1653, 5
    %v1656 = vsel %vm1344, %v1651, %v1655
    %v1658 = vshrl.u32 %v1256, 16
    %v1660 = vrot.slane %v1658, 4
    %v1661 = vshll.u32 %v1256, 16
    %v1663 = vrot.slane %v1661, 5
    %v1664 = vor.u32 %v1660, %v1663
    %v1665 = vrot.slane %v1664, 4
    %v1667 = vshll.u32 %v1257, 16
    %v1669 = vrot.slane %v1667, 5
    %v1670 = vsel %vm1344, %v1665, %v1669
    %v1671 = vshrl.u32 %v1257, 16
    %v1673 = vrot.slane %v1671, 4
    %v1674 = vor.u32 %v1673, %v1669
    %v1675 = vrot.slane %v1674, 4
    %v1677 = vshll.u32 %v1323, 16
    %v1679 = vrot.slane %v1677, 5
    %v1680 = vsel %vm1344, %v1675, %v1679
    %v1682 = vshrl.u32 %v1258, 16
    %v1684 = vrot.slane %v1682, 4
    %v1685 = vshll.u32 %v1258, 16
    %v1687 = vrot.slane %v1685, 5
    %v1688 = vor.u32 %v1684, %v1687
    %v1689 = vrot.slane %v1688, 4
    %v1691 = vshll.u32 %v1259, 16
    %v1693 = vrot.slane %v1691, 5
    %v1694 = vsel %vm1344, %v1689, %v1693
    %v1695 = vshrl.u32 %v1259, 16
    %v1697 = vrot.slane %v1695, 4
    %v1698 = vor.u32 %v1697, %v1693
    %v1699 = vrot.slane %v1698, 4
    %v1701 = vshll.u32 %v1324, 16
    %v1703 = vrot.slane %v1701, 5
    %v1704 = vsel %vm1344, %v1699, %v1703
    %v1706 = vshrl.u32 %v1260, 16
    %v1708 = vrot.slane %v1706, 4
    %v1709 = vshll.u32 %v1260, 16
    %v1711 = vrot.slane %v1709, 5
    %v1712 = vor.u32 %v1708, %v1711
    %v1713 = vrot.slane %v1712, 4
    %v1715 = vshll.u32 %v1261, 16
    %v1717 = vrot.slane %v1715, 5
    %v1718 = vsel %vm1344, %v1713, %v1717
    %v1719 = vshrl.u32 %v1261, 16
    %v1721 = vrot.slane %v1719, 4
    %v1722 = vor.u32 %v1721, %v1717
    %v1723 = vrot.slane %v1722, 4
    %v1725 = vshll.u32 %v1325, 16
    %v1727 = vrot.slane %v1725, 5
    %v1728 = vsel %vm1344, %v1723, %v1727
    %v1730 = vshrl.u32 %v1262, 16
    %v1732 = vrot.slane %v1730, 4
    %v1733 = vshll.u32 %v1262, 16
    %v1735 = vrot.slane %v1733, 5
    %v1736 = vor.u32 %v1732, %v1735
    %v1737 = vrot.slane %v1736, 4
    %v1739 = vshll.u32 %v1263, 16
    %v1741 = vrot.slane %v1739, 5
    %v1742 = vsel %vm1344, %v1737, %v1741
    %v1743 = vshrl.u32 %v1263, 16
    %v1745 = vrot.slane %v1743, 4
    %v1746 = vor.u32 %v1745, %v1741
    %v1747 = vrot.slane %v1746, 4
    %v1749 = vshll.u32 %v1326, 16
    %v1751 = vrot.slane %v1749, 5
    %v1752 = vsel %vm1344, %v1747, %v1751
    %v1754 = vshrl.u32 %v1264, 16
    %v1756 = vrot.slane %v1754, 4
    %v1757 = vshll.u32 %v1264, 16
    %v1759 = vrot.slane %v1757, 5
    %v1760 = vor.u32 %v1756, %v1759
    %v1761 = vrot.slane %v1760, 4
    %v1763 = vshll.u32 %v1265, 16
    %v1765 = vrot.slane %v1763, 5
    %v1766 = vsel %vm1344, %v1761, %v1765
    %v1767 = vshrl.u32 %v1265, 16
    %v1769 = vrot.slane %v1767, 4
    %v1770 = vor.u32 %v1769, %v1765
    %v1771 = vrot.slane %v1770, 4
    %v1773 = vshll.u32 %v1327, 16
    %v1775 = vrot.slane %v1773, 5
    %v1776 = vsel %vm1344, %v1771, %v1775
    %v1778 = vshrl.u32 %v1266, 16
    %v1780 = vrot.slane %v1778, 4
    %v1781 = vshll.u32 %v1266, 16
    %v1783 = vrot.slane %v1781, 5
    %v1784 = vor.u32 %v1780, %v1783
    %v1785 = vrot.slane %v1784, 4
    %v1787 = vshll.u32 %v1267, 16
    %v1789 = vrot.slane %v1787, 5
    %v1790 = vsel %vm1344, %v1785, %v1789
    %v1791 = vshrl.u32 %v1267, 16
    %v1793 = vrot.slane %v1791, 4
    %v1794 = vor.u32 %v1793, %v1789
    %v1795 = vrot.slane %v1794, 4
    %v1797 = vshll.u32 %v1328, 16
    %v1799 = vrot.slane %v1797, 5
    %v1800 = vsel %vm1344, %v1795, %v1799
    %v1802 = vshrl.u32 %v1268, 16
    %v1804 = vrot.slane %v1802, 4
    %v1805 = vshll.u32 %v1268, 16
    %v1807 = vrot.slane %v1805, 5
    %v1808 = vor.u32 %v1804, %v1807
    %v1809 = vrot.slane %v1808, 4
    %v1811 = vshll.u32 %v1269, 16
    %v1813 = vrot.slane %v1811, 5
    %v1814 = vsel %vm1344, %v1809, %v1813
    %v1815 = vshrl.u32 %v1269, 16
    %v1817 = vrot.slane %v1815, 4
    %v1818 = vor.u32 %v1817, %v1813
    %v1819 = vrot.slane %v1818, 4
    %v1821 = vshll.u32 %v1329, 16
    %v1823 = vrot.slane %v1821, 5
    %v1824 = vsel %vm1344, %v1819, %v1823
    %v1826 = vshrl.u32 %v1270, 16
    %v1828 = vrot.slane %v1826, 4
    %v1829 = vshll.u32 %v1270, 16
    %v1831 = vrot.slane %v1829, 5
    %v1832 = vor.u32 %v1828, %v1831
    %v1833 = vrot.slane %v1832, 4
    %v1835 = vshll.u32 %v1271, 16
    %v1837 = vrot.slane %v1835, 5
    %v1838 = vsel %vm1344, %v1833, %v1837
    %v1839 = vshrl.u32 %v1271, 16
    %v1841 = vrot.slane %v1839, 4
    %v1842 = vor.u32 %v1841, %v1837
    %v1843 = vrot.slane %v1842, 4
    %v1845 = vshll.u32 %v1330, 16
    %v1847 = vrot.slane %v1845, 5
    %v1848 = vsel %vm1344, %v1843, %v1847
    %v1850 = vshrl.u32 %v1272, 16
    %v1852 = vrot.slane %v1850, 4
    %v1853 = vshll.u32 %v1272, 16
    %v1855 = vrot.slane %v1853, 5
    %v1856 = vor.u32 %v1852, %v1855
    %v1857 = vrot.slane %v1856, 4
    %v1859 = vshll.u32 %v1273, 16
    %v1861 = vrot.slane %v1859, 5
    %v1862 = vsel %vm1344, %v1857, %v1861
    %v1863 = vshrl.u32 %v1273, 16
    %v1865 = vrot.slane %v1863, 4
    %v1866 = vor.u32 %v1865, %v1861
    %v1867 = vrot.slane %v1866, 4
    %v1869 = vshll.u32 %v1331, 16
    %v1871 = vrot.slane %v1869, 5
    %v1872 = vsel %vm1344, %v1867, %v1871
    %v1874 = vshrl.u32 %v1274, 16
    %v1876 = vrot.slane %v1874, 4
    %v1877 = vshll.u32 %v1274, 16
    %v1879 = vrot.slane %v1877, 5
    %v1880 = vor.u32 %v1876, %v1879
    %v1881 = vrot.slane %v1880, 4
    %v1883 = vshll.u32 %v1275, 16
    %v1885 = vrot.slane %v1883, 5
    %v1886 = vsel %vm1344, %v1881, %v1885
    %v1887 = vshrl.u32 %v1275, 16
    %v1889 = vrot.slane %v1887, 4
    %v1890 = vor.u32 %v1889, %v1885
    %v1891 = vrot.slane %v1890, 4
    %v1893 = vshll.u32 %v1332, 16
    %v1895 = vrot.slane %v1893, 5
    %v1896 = vsel %vm1344, %v1891, %v1895
    %v1898 = vshrl.u32 %v1276, 16
    %v1900 = vrot.slane %v1898, 4
    %v1901 = vshll.u32 %v1276, 16
    %v1903 = vrot.slane %v1901, 5
    %v1904 = vor.u32 %v1900, %v1903
    %v1905 = vrot.slane %v1904, 4
    %v1907 = vshll.u32 %v1277, 16
    %v1909 = vrot.slane %v1907, 5
    %v1910 = vsel %vm1344, %v1905, %v1909
    %v1911 = vshrl.u32 %v1277, 16
    %v1913 = vrot.slane %v1911, 4
    %v1914 = vor.u32 %v1913, %v1909
    %v1915 = vrot.slane %v1914, 4
    %v1917 = vshll.u32 %v1333, 16
    %v1919 = vrot.slane %v1917, 5
    %v1920 = vsel %vm1344, %v1915, %v1919
    %v1922 = vshrl.u32 %v1278, 16
    %v1924 = vrot.slane %v1922, 4
    %v1925 = vshll.u32 %v1278, 16
    %v1927 = vrot.slane %v1925, 5
    %v1928 = vor.u32 %v1924, %v1927
    %v1929 = vrot.slane %v1928, 4
    %v1931 = vshll.u32 %v1279, 16
    %v1933 = vrot.slane %v1931, 5
    %v1934 = vsel %vm1344, %v1929, %v1933
    %v1935 = vshrl.u32 %v1279, 16
    %v1937 = vrot.slane %v1935, 4
    %v1938 = vor.u32 %v1937, %v1933
    %v1939 = vrot.slane %v1938, 4
    %v1941 = vshll.u32 %v1334, 16
    %v1943 = vrot.slane %v1941, 5
    %v1944 = vsel %vm1344, %v1939, %v1943
    %v1946 = vshrl.u32 %v1280, 16
    %v1948 = vrot.slane %v1946, 4
    %v1949 = vshll.u32 %v1280, 16
    %v1951 = vrot.slane %v1949, 5
    %v1952 = vor.u32 %v1948, %v1951
    %v1953 = vrot.slane %v1952, 4
    %v1955 = vshll.u32 %v1281, 16
    %v1957 = vrot.slane %v1955, 5
    %v1958 = vsel %vm1344, %v1953, %v1957
    %v1959 = vshrl.u32 %v1281, 16
    %v1961 = vrot.slane %v1959, 4
    %v1962 = vor.u32 %v1961, %v1957
    %v1963 = vrot.slane %v1962, 4
    %v1965 = vshll.u32 %v1335, 16
    %v1967 = vrot.slane %v1965, 5
    %v1968 = vsel %vm1344, %v1963, %v1967
    %v1970 = vshrl.u32 %v1282, 16
    %v1972 = vrot.slane %v1970, 4
    %v1973 = vshll.u32 %v1282, 16
    %v1975 = vrot.slane %v1973, 5
    %v1976 = vor.u32 %v1972, %v1975
    %v1977 = vrot.slane %v1976, 4
    %v1979 = vshll.u32 %v1283, 16
    %v1981 = vrot.slane %v1979, 5
    %v1982 = vsel %vm1344, %v1977, %v1981
    %v1983 = vshrl.u32 %v1283, 16
    %v1985 = vrot.slane %v1983, 4
    %v1986 = vor.u32 %v1985, %v1981
    %v1987 = vrot.slane %v1986, 4
    %v1989 = vshll.u32 %v1336, 16
    %v1991 = vrot.slane %v1989, 5
    %v1992 = vsel %vm1344, %v1987, %v1991
    %v1994 = vshrl.u32 %v1284, 16
    %v1996 = vrot.slane %v1994, 4
    %v1997 = vshll.u32 %v1284, 16
    %v1999 = vrot.slane %v1997, 5
    %v2000 = vor.u32 %v1996, %v1999
    %v2001 = vrot.slane %v2000, 4
    %v2003 = vshll.u32 %v1285, 16
    %v2005 = vrot.slane %v2003, 5
    %v2006 = vsel %vm1344, %v2001, %v2005
    %v2007 = vshrl.u32 %v1285, 16
    %v2009 = vrot.slane %v2007, 4
    %v2010 = vor.u32 %v2009, %v2005
    %v2011 = vrot.slane %v2010, 4
    %v2013 = vshll.u32 %v1337, 16
    %v2015 = vrot.slane %v2013, 5
    %v2016 = vsel %vm1344, %v2011, %v2015
    %v2018 = vshrl.u32 %v1286, 16
    %v2020 = vrot.slane %v2018, 4
    %v2021 = vshll.u32 %v1286, 16
    %v2023 = vrot.slane %v2021, 5
    %v2024 = vor.u32 %v2020, %v2023
    %v2025 = vrot.slane %v2024, 4
    %v2027 = vshll.u32 %v1287, 16
    %v2029 = vrot.slane %v2027, 5
    %v2030 = vsel %vm1344, %v2025, %v2029
    %v2031 = vshrl.u32 %v1287, 16
    %v2033 = vrot.slane %v2031, 4
    %v2034 = vor.u32 %v2033, %v2029
    %v2035 = vrot.slane %v2034, 4
    %v2037 = vshll.u32 %v1338, 16
    %v2039 = vrot.slane %v2037, 5
    %v2040 = vsel %vm1344, %v2035, %v2039
    %v2042 = vshrl.u32 %v1288, 16
    %v2044 = vrot.slane %v2042, 4
    %v2045 = vshll.u32 %v1288, 16
    %v2047 = vrot.slane %v2045, 5
    %v2048 = vor.u32 %v2044, %v2047
    %v2049 = vrot.slane %v2048, 4
    %v2051 = vshll.u32 %v1289, 16
    %v2053 = vrot.slane %v2051, 5
    %v2054 = vsel %vm1344, %v2049, %v2053
    %v2055 = vshrl.u32 %v1289, 16
    %v2057 = vrot.slane %v2055, 4
    %v2058 = vor.u32 %v2057, %v2053
    %v2059 = vrot.slane %v2058, 4
    %v2061 = vshll.u32 %v1339, 16
    %v2063 = vrot.slane %v2061, 5
    %v2064 = vsel %vm1344, %v2059, %v2063
    %v2066 = vshrl.u32 %v1290, 16
    %v2068 = vrot.slane %v2066, 4
    %v2069 = vshll.u32 %v1290, 16
    %v2071 = vrot.slane %v2069, 5
    %v2072 = vor.u32 %v2068, %v2071
    %v2073 = vrot.slane %v2072, 4
    %v2075 = vshll.u32 %v1291, 16
    %v2077 = vrot.slane %v2075, 5
    %v2078 = vsel %vm1344, %v2073, %v2077
    %v2079 = vshrl.u32 %v1291, 16
    %v2081 = vrot.slane %v2079, 4
    %v2082 = vor.u32 %v2081, %v2077
    %v2083 = vrot.slane %v2082, 4
    %v2085 = vshll.u32 %v1340, 16
    %v2087 = vrot.slane %v2085, 5
    %v2088 = vsel %vm1344, %v2083, %v2087
    %v2090 = vshrl.u32 %v1292, 16
    %v2092 = vrot.slane %v2090, 4
    %v2093 = vshll.u32 %v1292, 16
    %v2095 = vrot.slane %v2093, 5
    %v2096 = vor.u32 %v2092, %v2095
    %v2097 = vrot.slane %v2096, 4
    %v2099 = vshll.u32 %v1293, 16
    %v2101 = vrot.slane %v2099, 5
    %v2102 = vsel %vm1344, %v2097, %v2101
    %v2103 = vshrl.u32 %v1293, 16
    %v2105 = vrot.slane %v2103, 4
    %v2106 = vor.u32 %v2105, %v2101
    %v2107 = vrot.slane %v2106, 4
    %v2109 = vshll.u32 %v1341, 16
    %v2111 = vrot.slane %v2109, 5
    %v2112 = vsel %vm1344, %v2107, %v2111
    %s2113 = scalar_lea.vmem [#allocation6], 64
    %v2114 = vld [vmem:[%s2113] sm:$0xf]
    %v2115 = vld [vmem:[%s2113 + $0x4] sm:$0xf]
    %v2116 = vld [vmem:[%s2113 + $0x8] sm:$0xf]
    %v2117 = vld [vmem:[%s2113 + $0xc] sm:$0xf]
    %v2118 = vld [vmem:[%s2113 + $0x10] sm:$0xf]
    %v2119 = vld [vmem:[%s2113 + $0x14] sm:$0xf]
    %v2120 = vld [vmem:[%s2113 + $0x18] sm:$0xf]
    %v2121 = vld [vmem:[%s2113 + $0x1c] sm:$0xf]
    %v2122 = vld [vmem:[%s2113 + $0x20] sm:$0xf]
    %v2123 = vld [vmem:[%s2113 + $0x24] sm:$0xf]
    %v2124 = vld [vmem:[%s2113 + $0x28] sm:$0xf]
    %v2125 = vld [vmem:[%s2113 + $0x2c] sm:$0xf]
    %v2126 = vld [vmem:[%s2113 + $0x30] sm:$0xf]
    %v2127 = vld [vmem:[%s2113 + $0x34] sm:$0xf]
    %v2128 = vld [vmem:[%s2113 + $0x38] sm:$0xf]
    %v2129 = vld [vmem:[%s2113 + $0x3c] sm:$0xf]
    %v2130 = vunpack.c.l.b16 %v1358
    %v2131 = vunpack.c.l.b16 %v1368
    %v2132 = vunpack.c.l.b16 %v1382
    %v2133 = vunpack.c.l.b16 %v1392
    %v2134 = vunpack.c.l.b16 %v1406
    %v2135 = vunpack.c.l.b16 %v1416
    %v2136 = vunpack.c.l.b16 %v1430
    %v2137 = vunpack.c.l.b16 %v1440
    %v2138 = vunpack.c.l.b16 %v1454
    %v2139 = vunpack.c.l.b16 %v1464
    %v2140 = vunpack.c.l.b16 %v1478
    %v2141 = vunpack.c.l.b16 %v1488
    %v2142 = vunpack.c.l.b16 %v1502
    %v2143 = vunpack.c.l.b16 %v1512
    %v2144 = vunpack.c.l.b16 %v1526
    %v2145 = vunpack.c.l.b16 %v1536
    %v2146 = vunpack.c.l.b16 %v1550
    %v2147 = vunpack.c.l.b16 %v1560
    %v2148 = vunpack.c.l.b16 %v1574
    %v2149 = vunpack.c.l.b16 %v1584
    %v2150 = vunpack.c.l.b16 %v1598
    %v2151 = vunpack.c.l.b16 %v1608
    %v2152 = vunpack.c.l.b16 %v1622
    %v2153 = vunpack.c.l.b16 %v1632
    %v2154 = vunpack.c.l.b16 %v1646
    %v2155 = vunpack.c.l.b16 %v1656
    %v2156 = vunpack.c.l.b16 %v1670
    %v2157 = vunpack.c.l.b16 %v1680
    %v2158 = vunpack.c.l.b16 %v1694
    %v2159 = vunpack.c.l.b16 %v1704
    %v2160 = vunpack.c.l.b16 %v1718
    %v2161 = vunpack.c.l.b16 %v1728
    %v2162 = vunpack.c.l.b16 %v1742
    %v2163 = vunpack.c.l.b16 %v1752
    %v2164 = vunpack.c.l.b16 %v1766
    %v2165 = vunpack.c.l.b16 %v1776
    %v2166 = vunpack.c.l.b16 %v1790
    %v2167 = vunpack.c.l.b16 %v1800
    %v2168 = vunpack.c.l.b16 %v1814
    %v2169 = vunpack.c.l.b16 %v1824
    %v2170 = vunpack.c.l.b16 %v1838
    %v2171 = vunpack.c.l.b16 %v1848
    %v2172 = vunpack.c.l.b16 %v1862
    %v2173 = vunpack.c.l.b16 %v1872
    %v2174 = vunpack.c.l.b16 %v1886
    %v2175 = vunpack.c.l.b16 %v1896
    %v2176 = vunpack.c.l.b16 %v1910
    %v2177 = vunpack.c.l.b16 %v1920
    %v2178 = vunpack.c.l.b16 %v1934
    %v2179 = vunpack.c.l.b16 %v1944
    %v2180 = vunpack.c.l.b16 %v1958
    %v2181 = vunpack.c.l.b16 %v1968
    %v2182 = vunpack.c.l.b16 %v1982
    %v2183 = vunpack.c.l.b16 %v1992
    %v2184 = vunpack.c.l.b16 %v2006
    %v2185 = vunpack.c.l.b16 %v2016
    %v2186 = vunpack.c.l.b16 %v2030
    %v2187 = vunpack.c.l.b16 %v2040
    %v2188 = vunpack.c.l.b16 %v2054
    %v2189 = vunpack.c.l.b16 %v2064
    %v2190 = vunpack.c.l.b16 %v2078
    %v2191 = vunpack.c.l.b16 %v2088
    %v2192 = vunpack.c.l.b16 %v2102
    %v2193 = vunpack.c.l.b16 %v2112
    %v2194 = vpack.c.b16 %v2131, %v2130
    %v2195 = vpack.c.b16 %v2133, %v2132
    %v2196 = vpack.c.b16 %v2135, %v2134
    %v2197 = vpack.c.b16 %v2137, %v2136
    %v2198 = vpack.c.b16 %v2139, %v2138
    %v2199 = vpack.c.b16 %v2141, %v2140
    %v2200 = vpack.c.b16 %v2143, %v2142
    %v2201 = vpack.c.b16 %v2145, %v2144
    %v2202 = vpack.c.b16 %v2147, %v2146
    %v2203 = vpack.c.b16 %v2149, %v2148
    %v2204 = vpack.c.b16 %v2151, %v2150
    %v2205 = vpack.c.b16 %v2153, %v2152
    %v2206 = vpack.c.b16 %v2155, %v2154
    %v2207 = vpack.c.b16 %v2157, %v2156
    %v2208 = vpack.c.b16 %v2159, %v2158
    %v2209 = vpack.c.b16 %v2161, %v2160
    %v2210 = vpack.c.b16 %v2163, %v2162
    %v2211 = vpack.c.b16 %v2165, %v2164
    %v2212 = vpack.c.b16 %v2167, %v2166
    %v2213 = vpack.c.b16 %v2169, %v2168
    %v2214 = vpack.c.b16 %v2171, %v2170
    %v2215 = vpack.c.b16 %v2173, %v2172
    %v2216 = vpack.c.b16 %v2175, %v2174
    %v2217 = vpack.c.b16 %v2177, %v2176
    %v2218 = vpack.c.b16 %v2179, %v2178
    %v2219 = vpack.c.b16 %v2181, %v2180
    %v2220 = vpack.c.b16 %v2183, %v2182
    %v2221 = vpack.c.b16 %v2185, %v2184
    %v2222 = vpack.c.b16 %v2187, %v2186
    %v2223 = vpack.c.b16 %v2189, %v2188
    %v2224 = vpack.c.b16 %v2191, %v2190
    %v2225 = vpack.c.b16 %v2193, %v2192
    %v2274 = vunpack.c.l.b16 %v2114
    %v2275 = vunpack.c.l.b16 %v2115
    %v2276 = vunpack.c.l.b16 %v2116
    %v2277 = vunpack.c.l.b16 %v2117
    %v2278 = vunpack.c.l.b16 %v2118
    %v2279 = vunpack.c.l.b16 %v2119
    %v2280 = vunpack.c.l.b16 %v2120
    %v2281 = vunpack.c.l.b16 %v2121
    %v2282 = vunpack.c.l.b16 %v2122
    %v2283 = vunpack.c.l.b16 %v2123
    %v2284 = vunpack.c.l.b16 %v2124
    %v2285 = vunpack.c.l.b16 %v2125
    %v2286 = vunpack.c.l.b16 %v2126
    %v2287 = vunpack.c.l.b16 %v2127
    %v2288 = vunpack.c.l.b16 %v2128
    %v2289 = vunpack.c.l.b16 %v2129
    %v2290 = vpack.c.b16 %v2275, %v2274
    %v2291 = vpack.c.b16 %v2277, %v2276
    %v2292 = vpack.c.b16 %v2279, %v2278
    %v2293 = vpack.c.b16 %v2281, %v2280
    %v2294 = vpack.c.b16 %v2283, %v2282
    %v2295 = vpack.c.b16 %v2285, %v2284
    %v2296 = vpack.c.b16 %v2287, %v2286
    %v2297 = vpack.c.b16 %v2289, %v2288
    %2306 = vmatprep.subr.bf16.mxu0 0
    %2307 = vmatpush1.bf16.msra.mxu0 %v2290
    %2308 = vmatprep.subr.bf16.mxu0 0
    %2309 = vmatpush1.bf16.msra.mxu0 %v2291
    %2310 = vmatprep.subr.bf16.mxu0 0
    %2311 = vmatpush1.bf16.msra.mxu0 %v2292
    %2312 = vmatprep.subr.bf16.mxu0 0
    %2313 = vmatpush1.bf16.msra.mxu0 %v2293
    %2314 = vmatprep.subr.bf16.mxu0 0
    %2315 = vmatpush1.bf16.msra.mxu0 %v2294
    %2316 = vmatprep.subr.bf16.mxu0 0
    %2317 = vmatpush1.bf16.msra.mxu0 %v2295
    %2318 = vmatprep.subr.bf16.mxu0 0
    %2319 = vmatpush1.bf16.msra.mxu0 %v2296
    %2320 = vmatprep.subr.bf16.mxu0 0
    %2321 = vmatpush1.bf16.msra.mxu0 %v2297
    %2322 = vmatprep.subr.bf16.mxu0 0
    %2323 = vmatpush1.bf16.msra.mxu0 0
    %2324 = vmatprep.subr.bf16.mxu0 0
    %2325 = vmatpush1.bf16.msra.mxu0 0
    %2326 = vmatprep.subr.bf16.mxu0 0
    %2327 = vmatpush1.bf16.msra.mxu0 0
    %2328 = vmatprep.subr.bf16.mxu0 0
    %2329 = vmatpush1.bf16.msra.mxu0 0
    %2330 = vmatprep.subr.bf16.mxu0 0
    %2331 = vmatpush1.bf16.msra.mxu0 0
    %2332 = vmatprep.subr.bf16.mxu0 0
    %2333 = vmatpush1.bf16.msra.mxu0 0
    %2334 = vmatprep.subr.bf16.mxu0 0
    %2335 = vmatpush1.bf16.msra.mxu0 0
    %2336 = vmatprep.subr.bf16.mxu0 0
    %2337 = vmatpush1.bf16.msra.mxu0 0
    %2338 = vmatprep.mubr.bf16.mxu0 0
    %2339 = vmatmul.mubr.bf16.gmra.mrb[0].mxu0 %v2194
    %v2340 = vpop.f32.mrb[0].mxu0
    %v2341 = vadd.f32 0.0, %v2340
    %v2342 = vpop.f32.mrb[0].mxu0
    %v2343 = vpop.f32.mrb[0].mxu0
    %v2344 = vadd.f32 0.0, %v2343
    %v2345 = vpop.f32.mrb[0].mxu0
    %2346 = vmatprep.mubr.bf16.mxu0 0
    %2347 = vmatmul.mubr.bf16.gmra.mrb[0].mxu0 %v2195
    %v2348 = vpop.f32.mrb[0].mxu0
    %v2349 = vadd.f32 0.0, %v2348
    %v2350 = vpop.f32.mrb[0].mxu0
    %v2351 = vpop.f32.mrb[0].mxu0
    %v2352 = vadd.f32 0.0, %v2351
    %v2353 = vpop.f32.mrb[0].mxu0
    %2354 = vmatprep.mubr.bf16.mxu0 0
    %2355 = vmatmul.mubr.bf16.gmra.mrb[0].mxu0 %v2196
    %v2356 = vpop.f32.mrb[0].mxu0
    %v2357 = vadd.f32 0.0, %v2356
    %v2358 = vpop.f32.mrb[0].mxu0
    %v2359 = vpop.f32.mrb[0].mxu0
    %v2360 = vadd.f32 0.0, %v2359
    %v2361 = vpop.f32.mrb[0].mxu0
    %2362 = vmatprep.mubr.bf16.mxu0 0
    %2363 = vmatmul.mubr.bf16.gmra.mrb[0].mxu0 %v2197
    %v2364 = vpop.f32.mrb[0].mxu0
    %v2365 = vadd.f32 0.0, %v2364
    %v2366 = vpop.f32.mrb[0].mxu0
    %v2367 = vpop.f32.mrb[0].mxu0
    %v2368 = vadd.f32 0.0, %v2367
    %v2369 = vpop.f32.mrb[0].mxu0
    %2370 = vmatprep.mubr.bf16.mxu0 0
    %2371 = vmatmul.mubr.bf16.gmra.mrb[0].mxu0 %v2198
    %v2372 = vpop.f32.mrb[0].mxu0
    %v2373 = vadd.f32 0.0, %v2372
    %v2374 = vpop.f32.mrb[0].mxu0
    %v2375 = vpop.f32.mrb[0].mxu0
    %v2376 = vadd.f32 0.0, %v2375
    %v2377 = vpop.f32.mrb[0].mxu0
    %2378 = vmatprep.mubr.bf16.mxu0 0
    %2379 = vmatmul.mubr.bf16.gmra.mrb[0].mxu0 %v2199
    %v2380 = vpop.f32.mrb[0].mxu0
    %v2381 = vadd.f32 0.0, %v2380
    %v2382 = vpop.f32.mrb[0].mxu0
    %v2383 = vpop.f32.mrb[0].mxu0
    %v2384 = vadd.f32 0.0, %v2383
    %v2385 = vpop.f32.mrb[0].mxu0
    %2386 = vmatprep.mubr.bf16.mxu0 0
    %2387 = vmatmul.mubr.bf16.gmra.mrb[0].mxu0 %v2200
    %v2388 = vpop.f32.mrb[0].mxu0
    %v2389 = vadd.f32 0.0, %v2388
    %v2390 = vpop.f32.mrb[0].mxu0
    %v2391 = vpop.f32.mrb[0].mxu0
    %v2392 = vadd.f32 0.0, %v2391
    %v2393 = vpop.f32.mrb[0].mxu0
    %2394 = vmatprep.mubr.bf16.mxu0 0
    %2395 = vmatmul.mubr.bf16.gmra.mrb[0].mxu0 %v2201
    %v2396 = vpop.f32.mrb[0].mxu0
    %v2397 = vadd.f32 0.0, %v2396
    %v2398 = vpop.f32.mrb[0].mxu0
    %v2399 = vpop.f32.mrb[0].mxu0
    %v2400 = vadd.f32 0.0, %v2399
    %v2401 = vpop.f32.mrb[0].mxu0
    %2402 = vmatprep.mubr.bf16.mxu0 0
    %2403 = vmatmul.mubr.bf16.gmra.mrb[0].mxu0 %v2202
    %v2404 = vpop.f32.mrb[0].mxu0
    %v2405 = vadd.f32 0.0, %v2404
    %v2406 = vpop.f32.mrb[0].mxu0
    %v2407 = vpop.f32.mrb[0].mxu0
    %v2408 = vadd.f32 0.0, %v2407
    %v2409 = vpop.f32.mrb[0].mxu0
    %2410 = vmatprep.mubr.bf16.mxu0 0
    %2411 = vmatmul.mubr.bf16.gmra.mrb[0].mxu0 %v2203
    %v2412 = vpop.f32.mrb[0].mxu0
    %v2413 = vadd.f32 0.0, %v2412
    %v2414 = vpop.f32.mrb[0].mxu0
    %v2415 = vpop.f32.mrb[0].mxu0
    %v2416 = vadd.f32 0.0, %v2415
    %v2417 = vpop.f32.mrb[0].mxu0
    %2418 = vmatprep.mubr.bf16.mxu0 0
    %2419 = vmatmul.mubr.bf16.gmra.mrb[0].mxu0 %v2204
    %v2420 = vpop.f32.mrb[0].mxu0
    %v2421 = vadd.f32 0.0, %v2420
    %v2422 = vpop.f32.mrb[0].mxu0
    %v2423 = vpop.f32.mrb[0].mxu0
    %v2424 = vadd.f32 0.0, %v2423
    %v2425 = vpop.f32.mrb[0].mxu0
    %2426 = vmatprep.mubr.bf16.mxu0 0
    %2427 = vmatmul.mubr.bf16.gmra.mrb[0].mxu0 %v2205
    %v2428 = vpop.f32.mrb[0].mxu0
    %v2429 = vadd.f32 0.0, %v2428
    %v2430 = vpop.f32.mrb[0].mxu0
    %v2431 = vpop.f32.mrb[0].mxu0
    %v2432 = vadd.f32 0.0, %v2431
    %v2433 = vpop.f32.mrb[0].mxu0
    %2434 = vmatprep.mubr.bf16.mxu0 0
    %2435 = vmatmul.mubr.bf16.gmra.mrb[0].mxu0 %v2206
    %v2436 = vpop.f32.mrb[0].mxu0
    %v2437 = vadd.f32 0.0, %v2436
    %v2438 = vpop.f32.mrb[0].mxu0
    %v2439 = vpop.f32.mrb[0].mxu0
    %v2440 = vadd.f32 0.0, %v2439
    %v2441 = vpop.f32.mrb[0].mxu0
    %2442 = vmatprep.mubr.bf16.mxu0 0
    %2443 = vmatmul.mubr.bf16.gmra.mrb[0].mxu0 %v2207
    %v2444 = vpop.f32.mrb[0].mxu0
    %v2445 = vadd.f32 0.0, %v2444
    %v2446 = vpop.f32.mrb[0].mxu0
    %v2447 = vpop.f32.mrb[0].mxu0
    %v2448 = vadd.f32 0.0, %v2447
    %v2449 = vpop.f32.mrb[0].mxu0
    %2450 = vmatprep.mubr.bf16.mxu0 0
    %2451 = vmatmul.mubr.bf16.gmra.mrb[0].mxu0 %v2208
    %v2452 = vpop.f32.mrb[0].mxu0
    %v2453 = vadd.f32 0.0, %v2452
    %v2454 = vpop.f32.mrb[0].mxu0
    %v2455 = vpop.f32.mrb[0].mxu0
    %v2456 = vadd.f32 0.0, %v2455
    %v2457 = vpop.f32.mrb[0].mxu0
    %2458 = vmatprep.mubr.bf16.mxu0 0
    %2459 = vmatmul.mubr.bf16.gmra.mrb[0].mxu0 %v2209
    %v2460 = vpop.f32.mrb[0].mxu0
    %v2461 = vadd.f32 0.0, %v2460
    %v2462 = vpop.f32.mrb[0].mxu0
    %v2463 = vpop.f32.mrb[0].mxu0
    %v2464 = vadd.f32 0.0, %v2463
    %v2465 = vpop.f32.mrb[0].mxu0
    %2466 = vmatprep.mubr.bf16.mxu0 0
    %2467 = vmatmul.mubr.bf16.gmra.mrb[0].mxu0 %v2210
    %v2468 = vpop.f32.mrb[0].mxu0
    %v2469 = vadd.f32 0.0, %v2468
    %v2470 = vpop.f32.mrb[0].mxu0
    %v2471 = vpop.f32.mrb[0].mxu0
    %v2472 = vadd.f32 0.0, %v2471
    %v2473 = vpop.f32.mrb[0].mxu0
    %2474 = vmatprep.mubr.bf16.mxu0 0
    %2475 = vmatmul.mubr.bf16.gmra.mrb[0].mxu0 %v2211
    %v2476 = vpop.f32.mrb[0].mxu0
    %v2477 = vadd.f32 0.0, %v2476
    %v2478 = vpop.f32.mrb[0].mxu0
    %v2479 = vpop.f32.mrb[0].mxu0
    %v2480 = vadd.f32 0.0, %v2479
    %v2481 = vpop.f32.mrb[0].mxu0
    %2482 = vmatprep.mubr.bf16.mxu0 0
    %2483 = vmatmul.mubr.bf16.gmra.mrb[0].mxu0 %v2212
    %v2484 = vpop.f32.mrb[0].mxu0
    %v2485 = vadd.f32 0.0, %v2484
    %v2486 = vpop.f32.mrb[0].mxu0
    %v2487 = vpop.f32.mrb[0].mxu0
    %v2488 = vadd.f32 0.0, %v2487
    %v2489 = vpop.f32.mrb[0].mxu0
    %2490 = vmatprep.mubr.bf16.mxu0 0
    %2491 = vmatmul.mubr.bf16.gmra.mrb[0].mxu0 %v2213
    %v2492 = vpop.f32.mrb[0].mxu0
    %v2493 = vadd.f32 0.0, %v2492
    %v2494 = vpop.f32.mrb[0].mxu0
    %v2495 = vpop.f32.mrb[0].mxu0
    %v2496 = vadd.f32 0.0, %v2495
    %v2497 = vpop.f32.mrb[0].mxu0
    %2498 = vmatprep.mubr.bf16.mxu0 0
    %2499 = vmatmul.mubr.bf16.gmra.mrb[0].mxu0 %v2214
    %v2500 = vpop.f32.mrb[0].mxu0
    %v2501 = vadd.f32 0.0, %v2500
    %v2502 = vpop.f32.mrb[0].mxu0
    %v2503 = vpop.f32.mrb[0].mxu0
    %v2504 = vadd.f32 0.0, %v2503
    %v2505 = vpop.f32.mrb[0].mxu0
    %2506 = vmatprep.mubr.bf16.mxu0 0
    %2507 = vmatmul.mubr.bf16.gmra.mrb[0].mxu0 %v2215
    %v2508 = vpop.f32.mrb[0].mxu0
    %v2509 = vadd.f32 0.0, %v2508
    %v2510 = vpop.f32.mrb[0].mxu0
    %v2511 = vpop.f32.mrb[0].mxu0
    %v2512 = vadd.f32 0.0, %v2511
    %v2513 = vpop.f32.mrb[0].mxu0
    %2514 = vmatprep.mubr.bf16.mxu0 0
    %2515 = vmatmul.mubr.bf16.gmra.mrb[0].mxu0 %v2216
    %v2516 = vpop.f32.mrb[0].mxu0
    %v2517 = vadd.f32 0.0, %v2516
    %v2518 = vpop.f32.mrb[0].mxu0
    %v2519 = vpop.f32.mrb[0].mxu0
    %v2520 = vadd.f32 0.0, %v2519
    %v2521 = vpop.f32.mrb[0].mxu0
    %2522 = vmatprep.mubr.bf16.mxu0 0
    %2523 = vmatmul.mubr.bf16.gmra.mrb[0].mxu0 %v2217
    %v2524 = vpop.f32.mrb[0].mxu0
    %v2525 = vadd.f32 0.0, %v2524
    %v2526 = vpop.f32.mrb[0].mxu0
    %v2527 = vpop.f32.mrb[0].mxu0
    %v2528 = vadd.f32 0.0, %v2527
    %v2529 = vpop.f32.mrb[0].mxu0
    %2530 = vmatprep.mubr.bf16.mxu0 0
    %2531 = vmatmul.mubr.bf16.gmra.mrb[0].mxu0 %v2218
    %v2532 = vpop.f32.mrb[0].mxu0
    %v2533 = vadd.f32 0.0, %v2532
    %v2534 = vpop.f32.mrb[0].mxu0
    %v2535 = vpop.f32.mrb[0].mxu0
    %v2536 = vadd.f32 0.0, %v2535
    %v2537 = vpop.f32.mrb[0].mxu0
    %2538 = vmatprep.mubr.bf16.mxu0 0
    %2539 = vmatmul.mubr.bf16.gmra.mrb[0].mxu0 %v2219
    %v2540 = vpop.f32.mrb[0].mxu0
    %v2541 = vadd.f32 0.0, %v2540
    %v2542 = vpop.f32.mrb[0].mxu0
    %v2543 = vpop.f32.mrb[0].mxu0
    %v2544 = vadd.f32 0.0, %v2543
    %v2545 = vpop.f32.mrb[0].mxu0
    %2546 = vmatprep.mubr.bf16.mxu0 0
    %2547 = vmatmul.mubr.bf16.gmra.mrb[0].mxu0 %v2220
    %v2548 = vpop.f32.mrb[0].mxu0
    %v2549 = vadd.f32 0.0, %v2548
    %v2550 = vpop.f32.mrb[0].mxu0
    %v2551 = vpop.f32.mrb[0].mxu0
    %v2552 = vadd.f32 0.0, %v2551
    %v2553 = vpop.f32.mrb[0].mxu0
    %2554 = vmatprep.mubr.bf16.mxu0 0
    %2555 = vmatmul.mubr.bf16.gmra.mrb[0].mxu0 %v2221
    %v2556 = vpop.f32.mrb[0].mxu0
    %v2557 = vadd.f32 0.0, %v2556
    %v2558 = vpop.f32.mrb[0].mxu0
    %v2559 = vpop.f32.mrb[0].mxu0
    %v2560 = vadd.f32 0.0, %v2559
    %v2561 = vpop.f32.mrb[0].mxu0
    %2562 = vmatprep.mubr.bf16.mxu0 0
    %2563 = vmatmul.mubr.bf16.gmra.mrb[0].mxu0 %v2222
    %v2564 = vpop.f32.mrb[0].mxu0
    %v2565 = vadd.f32 0.0, %v2564
    %v2566 = vpop.f32.mrb[0].mxu0
    %v2567 = vpop.f32.mrb[0].mxu0
    %v2568 = vadd.f32 0.0, %v2567
    %v2569 = vpop.f32.mrb[0].mxu0
    %2570 = vmatprep.mubr.bf16.mxu0 0
    %2571 = vmatmul.mubr.bf16.gmra.mrb[0].mxu0 %v2223
    %v2572 = vpop.f32.mrb[0].mxu0
    %v2573 = vadd.f32 0.0, %v2572
    %v2574 = vpop.f32.mrb[0].mxu0
    %v2575 = vpop.f32.mrb[0].mxu0
    %v2576 = vadd.f32 0.0, %v2575
    %v2577 = vpop.f32.mrb[0].mxu0
    %2578 = vmatprep.mubr.bf16.mxu0 0
    %2579 = vmatmul.mubr.bf16.gmra.mrb[0].mxu0 %v2224
    %v2580 = vpop.f32.mrb[0].mxu0
    %v2581 = vadd.f32 0.0, %v2580
    %v2582 = vpop.f32.mrb[0].mxu0
    %v2583 = vpop.f32.mrb[0].mxu0
    %v2584 = vadd.f32 0.0, %v2583
    %v2585 = vpop.f32.mrb[0].mxu0
    %2586 = vmatprep.mubr.bf16.mxu0 0
    %2587 = vmatmul.mubr.bf16.gmra.mrb[0].mxu0 %v2225
    %v2588 = vpop.f32.mrb[0].mxu0
    %v2589 = vadd.f32 0.0, %v2588
    %v2590 = vpop.f32.mrb[0].mxu0
    %v2591 = vpop.f32.mrb[0].mxu0
    %v2592 = vadd.f32 0.0, %v2591
    %v2593 = vpop.f32.mrb[0].mxu0
    %2594 = vdwg.mxu0
    %v2659 = vunpack.c.l.b16 %v1230
    %v2660 = vunpack.c.l.b16 %v1231
    %v2661 = vunpack.c.l.b16 %v1232
    %v2662 = vunpack.c.l.b16 %v1233
    %v2663 = vunpack.c.l.b16 %v1234
    %v2664 = vunpack.c.l.b16 %v1235
    %v2665 = vunpack.c.l.b16 %v1236
    %v2666 = vunpack.c.l.b16 %v1237
    %v2667 = vunpack.c.l.b16 %v1238
    %v2668 = vunpack.c.l.b16 %v1239
    %v2669 = vunpack.c.l.b16 %v1240
    %v2670 = vunpack.c.l.b16 %v1241
    %v2671 = vunpack.c.l.b16 %v1242
    %v2672 = vunpack.c.l.b16 %v1243
    %v2673 = vunpack.c.l.b16 %v1244
    %v2674 = vunpack.c.l.b16 %v1245
    %v2675 = vunpack.c.l.b16 %v1246
    %v2676 = vunpack.c.l.b16 %v1247
    %v2677 = vunpack.c.l.b16 %v1248
    %v2678 = vunpack.c.l.b16 %v1249
    %v2679 = vunpack.c.l.b16 %v1250
    %v2680 = vunpack.c.l.b16 %v1251
    %v2681 = vunpack.c.l.b16 %v1252
    %v2682 = vunpack.c.l.b16 %v1253
    %v2683 = vunpack.c.l.b16 %v1254
    %v2684 = vunpack.c.l.b16 %v1255
    %v2685 = vunpack.c.l.b16 %v1256
    %v2686 = vunpack.c.l.b16 %v1257
    %v2687 = vunpack.c.l.b16 %v1258
    %v2688 = vunpack.c.l.b16 %v1259
    %v2689 = vunpack.c.l.b16 %v1260
    %v2690 = vunpack.c.l.b16 %v1261
    %v2691 = vunpack.c.l.b16 %v1262
    %v2692 = vunpack.c.l.b16 %v1263
    %v2693 = vunpack.c.l.b16 %v1264
    %v2694 = vunpack.c.l.b16 %v1265
    %v2695 = vunpack.c.l.b16 %v1266
    %v2696 = vunpack.c.l.b16 %v1267
    %v2697 = vunpack.c.l.b16 %v1268
    %v2698 = vunpack.c.l.b16 %v1269
    %v2699 = vunpack.c.l.b16 %v1270
    %v2700 = vunpack.c.l.b16 %v1271
    %v2701 = vunpack.c.l.b16 %v1272
    %v2702 = vunpack.c.l.b16 %v1273
    %v2703 = vunpack.c.l.b16 %v1274
    %v2704 = vunpack.c.l.b16 %v1275
    %v2705 = vunpack.c.l.b16 %v1276
    %v2706 = vunpack.c.l.b16 %v1277
    %v2707 = vunpack.c.l.b16 %v1278
    %v2708 = vunpack.c.l.b16 %v1279
    %v2709 = vunpack.c.l.b16 %v1280
    %v2710 = vunpack.c.l.b16 %v1281
    %v2711 = vunpack.c.l.b16 %v1282
    %v2712 = vunpack.c.l.b16 %v1283
    %v2713 = vunpack.c.l.b16 %v1284
    %v2714 = vunpack.c.l.b16 %v1285
    %v2715 = vunpack.c.l.b16 %v1286
    %v2716 = vunpack.c.l.b16 %v1287
    %v2717 = vunpack.c.l.b16 %v1288
    %v2718 = vunpack.c.l.b16 %v1289
    %v2719 = vunpack.c.l.b16 %v1290
    %v2720 = vunpack.c.l.b16 %v1291
    %v2721 = vunpack.c.l.b16 %v1292
    %v2722 = vunpack.c.l.b16 %v1293
    %v2723 = vpack.c.b16 %v2660, %v2659
    %v2724 = vpack.c.b16 %v2662, %v2661
    %v2725 = vpack.c.b16 %v2664, %v2663
    %v2726 = vpack.c.b16 %v2666, %v2665
    %v2727 = vpack.c.b16 %v2668, %v2667
    %v2728 = vpack.c.b16 %v2670, %v2669
    %v2729 = vpack.c.b16 %v2672, %v2671
    %v2730 = vpack.c.b16 %v2674, %v2673
    %v2731 = vpack.c.b16 %v2676, %v2675
    %v2732 = vpack.c.b16 %v2678, %v2677
    %v2733 = vpack.c.b16 %v2680, %v2679
    %v2734 = vpack.c.b16 %v2682, %v2681
    %v2735 = vpack.c.b16 %v2684, %v2683
    %v2736 = vpack.c.b16 %v2686, %v2685
    %v2737 = vpack.c.b16 %v2688, %v2687
    %v2738 = vpack.c.b16 %v2690, %v2689
    %v2739 = vpack.c.b16 %v2692, %v2691
    %v2740 = vpack.c.b16 %v2694, %v2693
    %v2741 = vpack.c.b16 %v2696, %v2695
    %v2742 = vpack.c.b16 %v2698, %v2697
    %v2743 = vpack.c.b16 %v2700, %v2699
    %v2744 = vpack.c.b16 %v2702, %v2701
    %v2745 = vpack.c.b16 %v2704, %v2703
    %v2746 = vpack.c.b16 %v2706, %v2705
    %v2747 = vpack.c.b16 %v2708, %v2707
    %v2748 = vpack.c.b16 %v2710, %v2709
    %v2749 = vpack.c.b16 %v2712, %v2711
    %v2750 = vpack.c.b16 %v2714, %v2713
    %v2751 = vpack.c.b16 %v2716, %v2715
    %v2752 = vpack.c.b16 %v2718, %v2717
    %v2753 = vpack.c.b16 %v2720, %v2719
    %v2754 = vpack.c.b16 %v2722, %v2721
    %v2803 = vunpack.c.l.b16 %v1294
    %v2804 = vunpack.c.l.b16 %v1295
    %v2805 = vunpack.c.l.b16 %v1296
    %v2806 = vunpack.c.l.b16 %v1297
    %v2807 = vunpack.c.l.b16 %v1298
    %v2808 = vunpack.c.l.b16 %v1299
    %v2809 = vunpack.c.l.b16 %v1300
    %v2810 = vunpack.c.l.b16 %v1301
    %v2811 = vunpack.c.l.b16 %v1302
    %v2812 = vunpack.c.l.b16 %v1303
    %v2813 = vunpack.c.l.b16 %v1304
    %v2814 = vunpack.c.l.b16 %v1305
    %v2815 = vunpack.c.l.b16 %v1306
    %v2816 = vunpack.c.l.b16 %v1307
    %v2817 = vunpack.c.l.b16 %v1308
    %v2818 = vunpack.c.l.b16 %v1309
    %v2819 = vpack.c.b16 %v2804, %v2803
    %v2820 = vpack.c.b16 %v2806, %v2805
    %v2821 = vpack.c.b16 %v2808, %v2807
    %v2822 = vpack.c.b16 %v2810, %v2809
    %v2823 = vpack.c.b16 %v2812, %v2811
    %v2824 = vpack.c.b16 %v2814, %v2813
    %v2825 = vpack.c.b16 %v2816, %v2815
    %v2826 = vpack.c.b16 %v2818, %v2817
    %2835 = vmatprep.subr.bf16.mxu0 0
    %2836 = vmatpush1.bf16.msra.mxu0 %v2819
    %2837 = vmatprep.subr.bf16.mxu0 0
    %2838 = vmatpush1.bf16.msra.mxu0 %v2820
    %2839 = vmatprep.subr.bf16.mxu0 0
    %2840 = vmatpush1.bf16.msra.mxu0 %v2821
    %2841 = vmatprep.subr.bf16.mxu0 0
    %2842 = vmatpush1.bf16.msra.mxu0 %v2822
    %2843 = vmatprep.subr.bf16.mxu0 0
    %2844 = vmatpush1.bf16.msra.mxu0 %v2823
    %2845 = vmatprep.subr.bf16.mxu0 0
    %2846 = vmatpush1.bf16.msra.mxu0 %v2824
    %2847 = vmatprep.subr.bf16.mxu0 0
    %2848 = vmatpush1.bf16.msra.mxu0 %v2825
    %2849 = vmatprep.subr.bf16.mxu0 0
    %2850 = vmatpush1.bf16.msra.mxu0 %v2826
    %2851 = vmatprep.subr.bf16.mxu0 0
    %2852 = vmatpush1.bf16.msra.mxu0 0
    %2853 = vmatprep.subr.bf16.mxu0 0
    %2854 = vmatpush1.bf16.msra.mxu0 0
    %2855 = vmatprep.subr.bf16.mxu0 0
    %2856 = vmatpush1.bf16.msra.mxu0 0
    %2857 = vmatprep.subr.bf16.mxu0 0
    %2858 = vmatpush1.bf16.msra.mxu0 0
    %2859 = vmatprep.subr.bf16.mxu0 0
    %2860 = vmatpush1.bf16.msra.mxu0 0
    %2861 = vmatprep.subr.bf16.mxu0 0
    %2862 = vmatpush1.bf16.msra.mxu0 0
    %2863 = vmatprep.subr.bf16.mxu0 0
    %2864 = vmatpush1.bf16.msra.mxu0 0
    %2865 = vmatprep.subr.bf16.mxu0 0
    %2866 = vmatpush1.bf16.msra.mxu0 0
    %2867 = vmatprep.mubr.bf16.mxu0 0
    %2868 = vmatmul.mubr.bf16.gmra.mrb[0].mxu0 %v2723
    %v2869 = vpop.f32.mrb[0].mxu0
    %v2870 = vadd.f32 %v2341, %v2869
    %v2871 = vpop.f32.mrb[0].mxu0
    %v2872 = vpop.f32.mrb[0].mxu0
    %v2873 = vadd.f32 %v2344, %v2872
    %v2874 = vpop.f32.mrb[0].mxu0
    %2875 = vmatprep.mubr.bf16.mxu0 0
    %2876 = vmatmul.mubr.bf16.gmra.mrb[0].mxu0 %v2724
    %v2877 = vpop.f32.mrb[0].mxu0
    %v2878 = vadd.f32 %v2349, %v2877
    %v2879 = vpop.f32.mrb[0].mxu0
    %v2880 = vpop.f32.mrb[0].mxu0
    %v2881 = vadd.f32 %v2352, %v2880
    %v2882 = vpop.f32.mrb[0].mxu0
    %2883 = vmatprep.mubr.bf16.mxu0 0
    %2884 = vmatmul.mubr.bf16.gmra.mrb[0].mxu0 %v2725
    %v2885 = vpop.f32.mrb[0].mxu0
    %v2886 = vadd.f32 %v2357, %v2885
    %v2887 = vpop.f32.mrb[0].mxu0
    %v2888 = vpop.f32.mrb[0].mxu0
    %v2889 = vadd.f32 %v2360, %v2888
    %v2890 = vpop.f32.mrb[0].mxu0
    %2891 = vmatprep.mubr.bf16.mxu0 0
    %2892 = vmatmul.mubr.bf16.gmra.mrb[0].mxu0 %v2726
    %v2893 = vpop.f32.mrb[0].mxu0
    %v2894 = vadd.f32 %v2365, %v2893
    %v2895 = vpop.f32.mrb[0].mxu0
    %v2896 = vpop.f32.mrb[0].mxu0
    %v2897 = vadd.f32 %v2368, %v2896
    %v2898 = vpop.f32.mrb[0].mxu0
    %2899 = vmatprep.mubr.bf16.mxu0 0
    %2900 = vmatmul.mubr.bf16.gmra.mrb[0].mxu0 %v2727
    %v2901 = vpop.f32.mrb[0].mxu0
    %v2902 = vadd.f32 %v2373, %v2901
    %v2903 = vpop.f32.mrb[0].mxu0
    %v2904 = vpop.f32.mrb[0].mxu0
    %v2905 = vadd.f32 %v2376, %v2904
    %v2906 = vpop.f32.mrb[0].mxu0
    %2907 = vmatprep.mubr.bf16.mxu0 0
    %2908 = vmatmul.mubr.bf16.gmra.mrb[0].mxu0 %v2728
    %v2909 = vpop.f32.mrb[0].mxu0
    %v2910 = vadd.f32 %v2381, %v2909
    %v2911 = vpop.f32.mrb[0].mxu0
    %v2912 = vpop.f32.mrb[0].mxu0
    %v2913 = vadd.f32 %v2384, %v2912
    %v2914 = vpop.f32.mrb[0].mxu0
    %2915 = vmatprep.mubr.bf16.mxu0 0
    %2916 = vmatmul.mubr.bf16.gmra.mrb[0].mxu0 %v2729
    %v2917 = vpop.f32.mrb[0].mxu0
    %v2918 = vadd.f32 %v2389, %v2917
    %v2919 = vpop.f32.mrb[0].mxu0
    %v2920 = vpop.f32.mrb[0].mxu0
    %v2921 = vadd.f32 %v2392, %v2920
    %v2922 = vpop.f32.mrb[0].mxu0
    %2923 = vmatprep.mubr.bf16.mxu0 0
    %2924 = vmatmul.mubr.bf16.gmra.mrb[0].mxu0 %v2730
    %v2925 = vpop.f32.mrb[0].mxu0
    %v2926 = vadd.f32 %v2397, %v2925
    %v2927 = vpop.f32.mrb[0].mxu0
    %v2928 = vpop.f32.mrb[0].mxu0
    %v2929 = vadd.f32 %v2400, %v2928
    %v2930 = vpop.f32.mrb[0].mxu0
    %2931 = vmatprep.mubr.bf16.mxu0 0
    %2932 = vmatmul.mubr.bf16.gmra.mrb[0].mxu0 %v2731
    %v2933 = vpop.f32.mrb[0].mxu0
    %v2934 = vadd.f32 %v2405, %v2933
    %v2935 = vpop.f32.mrb[0].mxu0
    %v2936 = vpop.f32.mrb[0].mxu0
    %v2937 = vadd.f32 %v2408, %v2936
    %v2938 = vpop.f32.mrb[0].mxu0
    %2939 = vmatprep.mubr.bf16.mxu0 0
    %2940 = vmatmul.mubr.bf16.gmra.mrb[0].mxu0 %v2732
    %v2941 = vpop.f32.mrb[0].mxu0
    %v2942 = vadd.f32 %v2413, %v2941
    %v2943 = vpop.f32.mrb[0].mxu0
    %v2944 = vpop.f32.mrb[0].mxu0
    %v2945 = vadd.f32 %v2416, %v2944
    %v2946 = vpop.f32.mrb[0].mxu0
    %2947 = vmatprep.mubr.bf16.mxu0 0
    %2948 = vmatmul.mubr.bf16.gmra.mrb[0].mxu0 %v2733
    %v2949 = vpop.f32.mrb[0].mxu0
    %v2950 = vadd.f32 %v2421, %v2949
    %v2951 = vpop.f32.mrb[0].mxu0
    %v2952 = vpop.f32.mrb[0].mxu0
    %v2953 = vadd.f32 %v2424, %v2952
    %v2954 = vpop.f32.mrb[0].mxu0
    %2955 = vmatprep.mubr.bf16.mxu0 0
    %2956 = vmatmul.mubr.bf16.gmra.mrb[0].mxu0 %v2734
    %v2957 = vpop.f32.mrb[0].mxu0
    %v2958 = vadd.f32 %v2429, %v2957
    %v2959 = vpop.f32.mrb[0].mxu0
    %v2960 = vpop.f32.mrb[0].mxu0
    %v2961 = vadd.f32 %v2432, %v2960
    %v2962 = vpop.f32.mrb[0].mxu0
    %2963 = vmatprep.mubr.bf16.mxu0 0
    %2964 = vmatmul.mubr.bf16.gmra.mrb[0].mxu0 %v2735
    %v2965 = vpop.f32.mrb[0].mxu0
    %v2966 = vadd.f32 %v2437, %v2965
    %v2967 = vpop.f32.mrb[0].mxu0
    %v2968 = vpop.f32.mrb[0].mxu0
    %v2969 = vadd.f32 %v2440, %v2968
    %v2970 = vpop.f32.mrb[0].mxu0
    %2971 = vmatprep.mubr.bf16.mxu0 0
    %2972 = vmatmul.mubr.bf16.gmra.mrb[0].mxu0 %v2736
    %v2973 = vpop.f32.mrb[0].mxu0
    %v2974 = vadd.f32 %v2445, %v2973
    %v2975 = vpop.f32.mrb[0].mxu0
    %v2976 = vpop.f32.mrb[0].mxu0
    %v2977 = vadd.f32 %v2448, %v2976
    %v2978 = vpop.f32.mrb[0].mxu0
    %2979 = vmatprep.mubr.bf16.mxu0 0
    %2980 = vmatmul.mubr.bf16.gmra.mrb[0].mxu0 %v2737
    %v2981 = vpop.f32.mrb[0].mxu0
    %v2982 = vadd.f32 %v2453, %v2981
    %v2983 = vpop.f32.mrb[0].mxu0
    %v2984 = vpop.f32.mrb[0].mxu0
    %v2985 = vadd.f32 %v2456, %v2984
    %v2986 = vpop.f32.mrb[0].mxu0
    %2987 = vmatprep.mubr.bf16.mxu0 0
    %2988 = vmatmul.mubr.bf16.gmra.mrb[0].mxu0 %v2738
    %v2989 = vpop.f32.mrb[0].mxu0
    %v2990 = vadd.f32 %v2461, %v2989
    %v2991 = vpop.f32.mrb[0].mxu0
    %v2992 = vpop.f32.mrb[0].mxu0
    %v2993 = vadd.f32 %v2464, %v2992
    %v2994 = vpop.f32.mrb[0].mxu0
    %2995 = vmatprep.mubr.bf16.mxu0 0
    %2996 = vmatmul.mubr.bf16.gmra.mrb[0].mxu0 %v2739
    %v2997 = vpop.f32.mrb[0].mxu0
    %v2998 = vadd.f32 %v2469, %v2997
    %v2999 = vpop.f32.mrb[0].mxu0
    %v3000 = vpop.f32.mrb[0].mxu0
    %v3001 = vadd.f32 %v2472, %v3000
    %v3002 = vpop.f32.mrb[0].mxu0
    %3003 = vmatprep.mubr.bf16.mxu0 0
    %3004 = vmatmul.mubr.bf16.gmra.mrb[0].mxu0 %v2740
    %v3005 = vpop.f32.mrb[0].mxu0
    %v3006 = vadd.f32 %v2477, %v3005
    %v3007 = vpop.f32.mrb[0].mxu0
    %v3008 = vpop.f32.mrb[0].mxu0
    %v3009 = vadd.f32 %v2480, %v3008
    %v3010 = vpop.f32.mrb[0].mxu0
    %3011 = vmatprep.mubr.bf16.mxu0 0
    %3012 = vmatmul.mubr.bf16.gmra.mrb[0].mxu0 %v2741
    %v3013 = vpop.f32.mrb[0].mxu0
    %v3014 = vadd.f32 %v2485, %v3013
    %v3015 = vpop.f32.mrb[0].mxu0
    %v3016 = vpop.f32.mrb[0].mxu0
    %v3017 = vadd.f32 %v2488, %v3016
    %v3018 = vpop.f32.mrb[0].mxu0
    %3019 = vmatprep.mubr.bf16.mxu0 0
    %3020 = vmatmul.mubr.bf16.gmra.mrb[0].mxu0 %v2742
    %v3021 = vpop.f32.mrb[0].mxu0
    %v3022 = vadd.f32 %v2493, %v3021
    %v3023 = vpop.f32.mrb[0].mxu0
    %v3024 = vpop.f32.mrb[0].mxu0
    %v3025 = vadd.f32 %v2496, %v3024
    %v3026 = vpop.f32.mrb[0].mxu0
    %3027 = vmatprep.mubr.bf16.mxu0 0
    %3028 = vmatmul.mubr.bf16.gmra.mrb[0].mxu0 %v2743
    %v3029 = vpop.f32.mrb[0].mxu0
    %v3030 = vadd.f32 %v2501, %v3029
    %v3031 = vpop.f32.mrb[0].mxu0
    %v3032 = vpop.f32.mrb[0].mxu0
    %v3033 = vadd.f32 %v2504, %v3032
    %v3034 = vpop.f32.mrb[0].mxu0
    %3035 = vmatprep.mubr.bf16.mxu0 0
    %3036 = vmatmul.mubr.bf16.gmra.mrb[0].mxu0 %v2744
    %v3037 = vpop.f32.mrb[0].mxu0
    %v3038 = vadd.f32 %v2509, %v3037
    %v3039 = vpop.f32.mrb[0].mxu0
    %v3040 = vpop.f32.mrb[0].mxu0
    %v3041 = vadd.f32 %v2512, %v3040
    %v3042 = vpop.f32.mrb[0].mxu0
    %3043 = vmatprep.mubr.bf16.mxu0 0
    %3044 = vmatmul.mubr.bf16.gmra.mrb[0].mxu0 %v2745
    %v3045 = vpop.f32.mrb[0].mxu0
    %v3046 = vadd.f32 %v2517, %v3045
    %v3047 = vpop.f32.mrb[0].mxu0
    %v3048 = vpop.f32.mrb[0].mxu0
    %v3049 = vadd.f32 %v2520, %v3048
    %v3050 = vpop.f32.mrb[0].mxu0
    %3051 = vmatprep.mubr.bf16.mxu0 0
    %3052 = vmatmul.mubr.bf16.gmra.mrb[0].mxu0 %v2746
    %v3053 = vpop.f32.mrb[0].mxu0
    %v3054 = vadd.f32 %v2525, %v3053
    %v3055 = vpop.f32.mrb[0].mxu0
    %v3056 = vpop.f32.mrb[0].mxu0
    %v3057 = vadd.f32 %v2528, %v3056
    %v3058 = vpop.f32.mrb[0].mxu0
    %3059 = vmatprep.mubr.bf16.mxu0 0
    %3060 = vmatmul.mubr.bf16.gmra.mrb[0].mxu0 %v2747
    %v3061 = vpop.f32.mrb[0].mxu0
    %v3062 = vadd.f32 %v2533, %v3061
    %v3063 = vpop.f32.mrb[0].mxu0
    %v3064 = vpop.f32.mrb[0].mxu0
    %v3065 = vadd.f32 %v2536, %v3064
    %v3066 = vpop.f32.mrb[0].mxu0
    %3067 = vmatprep.mubr.bf16.mxu0 0
    %3068 = vmatmul.mubr.bf16.gmra.mrb[0].mxu0 %v2748
    %v3069 = vpop.f32.mrb[0].mxu0
    %v3070 = vadd.f32 %v2541, %v3069
    %v3071 = vpop.f32.mrb[0].mxu0
    %v3072 = vpop.f32.mrb[0].mxu0
    %v3073 = vadd.f32 %v2544, %v3072
    %v3074 = vpop.f32.mrb[0].mxu0
    %3075 = vmatprep.mubr.bf16.mxu0 0
    %3076 = vmatmul.mubr.bf16.gmra.mrb[0].mxu0 %v2749
    %v3077 = vpop.f32.mrb[0].mxu0
    %v3078 = vadd.f32 %v2549, %v3077
    %v3079 = vpop.f32.mrb[0].mxu0
    %v3080 = vpop.f32.mrb[0].mxu0
    %v3081 = vadd.f32 %v2552, %v3080
    %v3082 = vpop.f32.mrb[0].mxu0
    %3083 = vmatprep.mubr.bf16.mxu0 0
    %3084 = vmatmul.mubr.bf16.gmra.mrb[0].mxu0 %v2750
    %v3085 = vpop.f32.mrb[0].mxu0
    %v3086 = vadd.f32 %v2557, %v3085
    %v3087 = vpop.f32.mrb[0].mxu0
    %v3088 = vpop.f32.mrb[0].mxu0
    %v3089 = vadd.f32 %v2560, %v3088
    %v3090 = vpop.f32.mrb[0].mxu0
    %3091 = vmatprep.mubr.bf16.mxu0 0
    %3092 = vmatmul.mubr.bf16.gmra.mrb[0].mxu0 %v2751
    %v3093 = vpop.f32.mrb[0].mxu0
    %v3094 = vadd.f32 %v2565, %v3093
    %v3095 = vpop.f32.mrb[0].mxu0
    %v3096 = vpop.f32.mrb[0].mxu0
    %v3097 = vadd.f32 %v2568, %v3096
    %v3098 = vpop.f32.mrb[0].mxu0
    %3099 = vmatprep.mubr.bf16.mxu0 0
    %3100 = vmatmul.mubr.bf16.gmra.mrb[0].mxu0 %v2752
    %v3101 = vpop.f32.mrb[0].mxu0
    %v3102 = vadd.f32 %v2573, %v3101
    %v3103 = vpop.f32.mrb[0].mxu0
    %v3104 = vpop.f32.mrb[0].mxu0
    %v3105 = vadd.f32 %v2576, %v3104
    %v3106 = vpop.f32.mrb[0].mxu0
    %3107 = vmatprep.mubr.bf16.mxu0 0
    %3108 = vmatmul.mubr.bf16.gmra.mrb[0].mxu0 %v2753
    %v3109 = vpop.f32.mrb[0].mxu0
    %v3110 = vadd.f32 %v2581, %v3109
    %v3111 = vpop.f32.mrb[0].mxu0
    %v3112 = vpop.f32.mrb[0].mxu0
    %v3113 = vadd.f32 %v2584, %v3112
    %v3114 = vpop.f32.mrb[0].mxu0
    %3115 = vmatprep.mubr.bf16.mxu0 0
    %3116 = vmatmul.mubr.bf16.gmra.mrb[0].mxu0 %v2754
    %v3117 = vpop.f32.mrb[0].mxu0
    %v3118 = vadd.f32 %v2589, %v3117
    %v3119 = vpop.f32.mrb[0].mxu0
    %v3120 = vpop.f32.mrb[0].mxu0
    %v3121 = vadd.f32 %v2592, %v3120
    %v3122 = vpop.f32.mrb[0].mxu0
    %3123 = vdwg.mxu0
    %v3124 = vld [vmem:[#allocation2] sm:$0xe]
    %v3125 = vld [vmem:[#allocation2 + $0xc] sm:$0xe]
    %v3126 = vld [vmem:[#allocation2 + $0x18] sm:$0xe]
    %v3127 = vld [vmem:[#allocation2 + $0x24] sm:$0xe]
    %v3128 = vld [vmem:[#allocation2 + $0x30] sm:$0xe]
    %v3129 = vld [vmem:[#allocation2 + $0x3c] sm:$0xe]
    %v3130 = vld [vmem:[#allocation2 + $0x48] sm:$0xe]
    %v3131 = vld [vmem:[#allocation2 + $0x54] sm:$0xe]
    %v3132 = vld [vmem:[#allocation2 + $0x60] sm:$0xe]
    %v3133 = vld [vmem:[#allocation2 + $0x6c] sm:$0xe]
    %v3134 = vld [vmem:[#allocation2 + $0x78] sm:$0xe]
    %v3135 = vld [vmem:[#allocation2 + $0x84] sm:$0xe]
    %v3136 = vld [vmem:[#allocation2 + $0x90] sm:$0xe]
    %v3137 = vld [vmem:[#allocation2 + $0x9c] sm:$0xe]
    %v3138 = vld [vmem:[#allocation2 + $0xa8] sm:$0xe]
    %v3139 = vld [vmem:[#allocation2 + $0xb4] sm:$0xe]
    %v3140 = vld [vmem:[#allocation2 + $0xd8] sm:$0xe]
    %v3141 = vld [vmem:[#allocation2 + $0xe4] sm:$0xe]
    %v3142 = vld [vmem:[#allocation2 + $0xf0] sm:$0xe]
    %v3143 = vld [vmem:[#allocation2 + $0xfc] sm:$0xe]
    %v3144 = vld [vmem:[#allocation2 + $0x108] sm:$0xe]
    %v3145 = vld [vmem:[#allocation2 + $0x114] sm:$0xe]
    %v3146 = vld [vmem:[#allocation2 + $0x120] sm:$0xe]
    %v3147 = vld [vmem:[#allocation2 + $0x12c] sm:$0xe]
    %v3148 = vld [vmem:[#allocation2 + $0x138] sm:$0xe]
    %v3149 = vld [vmem:[#allocation2 + $0x144] sm:$0xe]
    %v3150 = vld [vmem:[#allocation2 + $0x150] sm:$0xe]
    %v3151 = vld [vmem:[#allocation2 + $0x15c] sm:$0xe]
    %v3152 = vld [vmem:[#allocation2 + $0x168] sm:$0xe]
    %v3153 = vld [vmem:[#allocation2 + $0x174] sm:$0xe]
    %v3154 = vld [vmem:[#allocation2 + $0x180] sm:$0xe]
    %v3155 = vld [vmem:[#allocation2 + $0x18c] sm:$0xe]
    %vm3220 = vcmask 1042432
    %vm3221 = vcmask 1046532
    %vm3222 = vmor %vm3220, %vm3221
    %v3223 = vrot.slane %v3124, 5
    %v3224 = vrot.slane %v3223, 4
    %v3225 = vrot.slane %v1231, 5
    %v3226 = vsel %vm3222, %v3224, %v3225
    %v3227 = vrot.slane %v3225, 4
    %v3228 = vrot.slane %v1310, 5
    %v3229 = vsel %vm3222, %v3227, %v3228
    %v3230 = vrot.slane %v3125, 5
    %v3231 = vrot.slane %v3230, 4
    %v3232 = vrot.slane %v1233, 5
    %v3233 = vsel %vm3222, %v3231, %v3232
    %v3234 = vrot.slane %v3232, 4
    %v3235 = vrot.slane %v1311, 5
    %v3236 = vsel %vm3222, %v3234, %v3235
    %v3237 = vrot.slane %v3126, 5
    %v3238 = vrot.slane %v3237, 4
    %v3239 = vrot.slane %v1235, 5
    %v3240 = vsel %vm3222, %v3238, %v3239
    %v3241 = vrot.slane %v3239, 4
    %v3242 = vrot.slane %v1312, 5
    %v3243 = vsel %vm3222, %v3241, %v3242
    %v3244 = vrot.slane %v3127, 5
    %v3245 = vrot.slane %v3244, 4
    %v3246 = vrot.slane %v1237, 5
    %v3247 = vsel %vm3222, %v3245, %v3246
    %v3248 = vrot.slane %v3246, 4
    %v3249 = vrot.slane %v1313, 5
    %v3250 = vsel %vm3222, %v3248, %v3249
    %v3251 = vrot.slane %v3128, 5
    %v3252 = vrot.slane %v3251, 4
    %v3253 = vrot.slane %v1239, 5
    %v3254 = vsel %vm3222, %v3252, %v3253
    %v3255 = vrot.slane %v3253, 4
    %v3256 = vrot.slane %v1314, 5
    %v3257 = vsel %vm3222, %v3255, %v3256
    %v3258 = vrot.slane %v3129, 5
    %v3259 = vrot.slane %v3258, 4
    %v3260 = vrot.slane %v1241, 5
    %v3261 = vsel %vm3222, %v3259, %v3260
    %v3262 = vrot.slane %v3260, 4
    %v3263 = vrot.slane %v1315, 5
    %v3264 = vsel %vm3222, %v3262, %v3263
    %v3265 = vrot.slane %v3130, 5
    %v3266 = vrot.slane %v3265, 4
    %v3267 = vrot.slane %v1243, 5
    %v3268 = vsel %vm3222, %v3266, %v3267
    %v3269 = vrot.slane %v3267, 4
    %v3270 = vrot.slane %v1316, 5
    %v3271 = vsel %vm3222, %v3269, %v3270
    %v3272 = vrot.slane %v3131, 5
    %v3273 = vrot.slane %v3272, 4
    %v3274 = vrot.slane %v1245, 5
    %v3275 = vsel %vm3222, %v3273, %v3274
    %v3276 = vrot.slane %v3274, 4
    %v3277 = vrot.slane %v1317, 5
    %v3278 = vsel %vm3222, %v3276, %v3277
    %v3279 = vrot.slane %v3132, 5
    %v3280 = vrot.slane %v3279, 4
    %v3281 = vrot.slane %v1247, 5
    %v3282 = vsel %vm3222, %v3280, %v3281
    %v3283 = vrot.slane %v3281, 4
    %v3284 = vrot.slane %v1318, 5
    %v3285 = vsel %vm3222, %v3283, %v3284
    %v3286 = vrot.slane %v3133, 5
    %v3287 = vrot.slane %v3286, 4
    %v3288 = vrot.slane %v1249, 5
    %v3289 = vsel %vm3222, %v3287, %v3288
    %v3290 = vrot.slane %v3288, 4
    %v3291 = vrot.slane %v1319, 5
    %v3292 = vsel %vm3222, %v3290, %v3291
    %v3293 = vrot.slane %v3134, 5
    %v3294 = vrot.slane %v3293, 4
    %v3295 = vrot.slane %v1251, 5
    %v3296 = vsel %vm3222, %v3294, %v3295
    %v3297 = vrot.slane %v3295, 4
    %v3298 = vrot.slane %v1320, 5
    %v3299 = vsel %vm3222, %v3297, %v3298
    %v3300 = vrot.slane %v3135, 5
    %v3301 = vrot.slane %v3300, 4
    %v3302 = vrot.slane %v1253, 5
    %v3303 = vsel %vm3222, %v3301, %v3302
    %v3304 = vrot.slane %v3302, 4
    %v3305 = vrot.slane %v1321, 5
    %v3306 = vsel %vm3222, %v3304, %v3305
    %v3307 = vrot.slane %v3136, 5
    %v3308 = vrot.slane %v3307, 4
    %v3309 = vrot.slane %v1255, 5
    %v3310 = vsel %vm3222, %v3308, %v3309
    %v3311 = vrot.slane %v3309, 4
    %v3312 = vrot.slane %v1322, 5
    %v3313 = vsel %vm3222, %v3311, %v3312
    %v3314 = vrot.slane %v3137, 5
    %v3315 = vrot.slane %v3314, 4
    %v3316 = vrot.slane %v1257, 5
    %v3317 = vsel %vm3222, %v3315, %v3316
    %v3318 = vrot.slane %v3316, 4
    %v3319 = vrot.slane %v1323, 5
    %v3320 = vsel %vm3222, %v3318, %v3319
    %v3321 = vrot.slane %v3138, 5
    %v3322 = vrot.slane %v3321, 4
    %v3323 = vrot.slane %v1259, 5
    %v3324 = vsel %vm3222, %v3322, %v3323
    %v3325 = vrot.slane %v3323, 4
    %v3326 = vrot.slane %v1324, 5
    %v3327 = vsel %vm3222, %v3325, %v3326
    %v3328 = vrot.slane %v3139, 5
    %v3329 = vrot.slane %v3328, 4
    %v3330 = vrot.slane %v1261, 5
    %v3331 = vsel %vm3222, %v3329, %v3330
    %v3332 = vrot.slane %v3330, 4
    %v3333 = vrot.slane %v1325, 5
    %v3334 = vsel %vm3222, %v3332, %v3333
    %v3335 = vrot.slane %v3140, 5
    %v3336 = vrot.slane %v3335, 4
    %v3337 = vrot.slane %v1263, 5
    %v3338 = vsel %vm3222, %v3336, %v3337
    %v3339 = vrot.slane %v3337, 4
    %v3340 = vrot.slane %v1326, 5
    %v3341 = vsel %vm3222, %v3339, %v3340
    %v3342 = vrot.slane %v3141, 5
    %v3343 = vrot.slane %v3342, 4
    %v3344 = vrot.slane %v1265, 5
    %v3345 = vsel %vm3222, %v3343, %v3344
    %v3346 = vrot.slane %v3344, 4
    %v3347 = vrot.slane %v1327, 5
    %v3348 = vsel %vm3222, %v3346, %v3347
    %v3349 = vrot.slane %v3142, 5
    %v3350 = vrot.slane %v3349, 4
    %v3351 = vrot.slane %v1267, 5
    %v3352 = vsel %vm3222, %v3350, %v3351
    %v3353 = vrot.slane %v3351, 4
    %v3354 = vrot.slane %v1328, 5
    %v3355 = vsel %vm3222, %v3353, %v3354
    %v3356 = vrot.slane %v3143, 5
    %v3357 = vrot.slane %v3356, 4
    %v3358 = vrot.slane %v1269, 5
    %v3359 = vsel %vm3222, %v3357, %v3358
    %v3360 = vrot.slane %v3358, 4
    %v3361 = vrot.slane %v1329, 5
    %v3362 = vsel %vm3222, %v3360, %v3361
    %v3363 = vrot.slane %v3144, 5
    %v3364 = vrot.slane %v3363, 4
    %v3365 = vrot.slane %v1271, 5
    %v3366 = vsel %vm3222, %v3364, %v3365
    %v3367 = vrot.slane %v3365, 4
    %v3368 = vrot.slane %v1330, 5
    %v3369 = vsel %vm3222, %v3367, %v3368
    %v3370 = vrot.slane %v3145, 5
    %v3371 = vrot.slane %v3370, 4
    %v3372 = vrot.slane %v1273, 5
    %v3373 = vsel %vm3222, %v3371, %v3372
    %v3374 = vrot.slane %v3372, 4
    %v3375 = vrot.slane %v1331, 5
    %v3376 = vsel %vm3222, %v3374, %v3375
    %v3377 = vrot.slane %v3146, 5
    %v3378 = vrot.slane %v3377, 4
    %v3379 = vrot.slane %v1275, 5
    %v3380 = vsel %vm3222, %v3378, %v3379
    %v3381 = vrot.slane %v3379, 4
    %v3382 = vrot.slane %v1332, 5
    %v3383 = vsel %vm3222, %v3381, %v3382
    %v3384 = vrot.slane %v3147, 5
    %v3385 = vrot.slane %v3384, 4
    %v3386 = vrot.slane %v1277, 5
    %v3387 = vsel %vm3222, %v3385, %v3386
    %v3388 = vrot.slane %v3386, 4
    %v3389 = vrot.slane %v1333, 5
    %v3390 = vsel %vm3222, %v3388, %v3389
    %v3391 = vrot.slane %v3148, 5
    %v3392 = vrot.slane %v3391, 4
    %v3393 = vrot.slane %v1279, 5
    %v3394 = vsel %vm3222, %v3392, %v3393
    %v3395 = vrot.slane %v3393, 4
    %v3396 = vrot.slane %v1334, 5
    %v3397 = vsel %vm3222, %v3395, %v3396
    %v3398 = vrot.slane %v3149, 5
    %v3399 = vrot.slane %v3398, 4
    %v3400 = vrot.slane %v1281, 5
    %v3401 = vsel %vm3222, %v3399, %v3400
    %v3402 = vrot.slane %v3400, 4
    %v3403 = vrot.slane %v1335, 5
    %v3404 = vsel %vm3222, %v3402, %v3403
    %v3405 = vrot.slane %v3150, 5
    %v3406 = vrot.slane %v3405, 4
    %v3407 = vrot.slane %v1283, 5
    %v3408 = vsel %vm3222, %v3406, %v3407
    %v3409 = vrot.slane %v3407, 4
    %v3410 = vrot.slane %v1336, 5
    %v3411 = vsel %vm3222, %v3409, %v3410
    %v3412 = vrot.slane %v3151, 5
    %v3413 = vrot.slane %v3412, 4
    %v3414 = vrot.slane %v1285, 5
    %v3415 = vsel %vm3222, %v3413, %v3414
    %v3416 = vrot.slane %v3414, 4
    %v3417 = vrot.slane %v1337, 5
    %v3418 = vsel %vm3222, %v3416, %v3417
    %v3419 = vrot.slane %v3152, 5
    %v3420 = vrot.slane %v3419, 4
    %v3421 = vrot.slane %v1287, 5
    %v3422 = vsel %vm3222, %v3420, %v3421
    %v3423 = vrot.slane %v3421, 4
    %v3424 = vrot.slane %v1338, 5
    %v3425 = vsel %vm3222, %v3423, %v3424
    %v3426 = vrot.slane %v3153, 5
    %v3427 = vrot.slane %v3426, 4
    %v3428 = vrot.slane %v1289, 5
    %v3429 = vsel %vm3222, %v3427, %v3428
    %v3430 = vrot.slane %v3428, 4
    %v3431 = vrot.slane %v1339, 5
    %v3432 = vsel %vm3222, %v3430, %v3431
    %v3433 = vrot.slane %v3154, 5
    %v3434 = vrot.slane %v3433, 4
    %v3435 = vrot.slane %v1291, 5
    %v3436 = vsel %vm3222, %v3434, %v3435
    %v3437 = vrot.slane %v3435, 4
    %v3438 = vrot.slane %v1340, 5
    %v3439 = vsel %vm3222, %v3437, %v3438
    %v3440 = vrot.slane %v3155, 5
    %v3441 = vrot.slane %v3440, 4
    %v3442 = vrot.slane %v1293, 5
    %v3443 = vsel %vm3222, %v3441, %v3442
    %v3444 = vrot.slane %v3442, 4
    %v3445 = vrot.slane %v1341, 5
    %v3446 = vsel %vm3222, %v3444, %v3445
    %s3447 = scalar_lea.vmem [#allocation6], 128
    %v3448 = vld [vmem:[%s3447] sm:$0xf]
    %v3449 = vld [vmem:[%s3447 + $0x4] sm:$0xf]
    %v3450 = vld [vmem:[%s3447 + $0x8] sm:$0xf]
    %v3451 = vld [vmem:[%s3447 + $0xc] sm:$0xf]
    %v3452 = vld [vmem:[%s3447 + $0x10] sm:$0xf]
    %v3453 = vld [vmem:[%s3447 + $0x14] sm:$0xf]
    %v3454 = vld [vmem:[%s3447 + $0x18] sm:$0xf]
    %v3455 = vld [vmem:[%s3447 + $0x1c] sm:$0xf]
    %v3456 = vld [vmem:[%s3447 + $0x20] sm:$0xf]
    %v3457 = vld [vmem:[%s3447 + $0x24] sm:$0xf]
    %v3458 = vld [vmem:[%s3447 + $0x28] sm:$0xf]
    %v3459 = vld [vmem:[%s3447 + $0x2c] sm:$0xf]
    %v3460 = vld [vmem:[%s3447 + $0x30] sm:$0xf]
    %v3461 = vld [vmem:[%s3447 + $0x34] sm:$0xf]
    %v3462 = vld [vmem:[%s3447 + $0x38] sm:$0xf]
    %v3463 = vld [vmem:[%s3447 + $0x3c] sm:$0xf]
    %v3464 = vunpack.c.l.b16 %v3226
    %v3465 = vunpack.c.l.b16 %v3229
    %v3466 = vunpack.c.l.b16 %v3233
    %v3467 = vunpack.c.l.b16 %v3236
    %v3468 = vunpack.c.l.b16 %v3240
    %v3469 = vunpack.c.l.b16 %v3243
    %v3470 = vunpack.c.l.b16 %v3247
    %v3471 = vunpack.c.l.b16 %v3250
    %v3472 = vunpack.c.l.b16 %v3254
    %v3473 = vunpack.c.l.b16 %v3257
    %v3474 = vunpack.c.l.b16 %v3261
    %v3475 = vunpack.c.l.b16 %v3264
    %v3476 = vunpack.c.l.b16 %v3268
    %v3477 = vunpack.c.l.b16 %v3271
    %v3478 = vunpack.c.l.b16 %v3275
    %v3479 = vunpack.c.l.b16 %v3278
    %v3480 = vunpack.c.l.b16 %v3282
    %v3481 = vunpack.c.l.b16 %v3285
    %v3482 = vunpack.c.l.b16 %v3289
    %v3483 = vunpack.c.l.b16 %v3292
    %v3484 = vunpack.c.l.b16 %v3296
    %v3485 = vunpack.c.l.b16 %v3299
    %v3486 = vunpack.c.l.b16 %v3303
    %v3487 = vunpack.c.l.b16 %v3306
    %v3488 = vunpack.c.l.b16 %v3310
    %v3489 = vunpack.c.l.b16 %v3313
    %v3490 = vunpack.c.l.b16 %v3317
    %v3491 = vunpack.c.l.b16 %v3320
    %v3492 = vunpack.c.l.b16 %v3324
    %v3493 = vunpack.c.l.b16 %v3327
    %v3494 = vunpack.c.l.b16 %v3331
    %v3495 = vunpack.c.l.b16 %v3334
    %v3496 = vunpack.c.l.b16 %v3338
    %v3497 = vunpack.c.l.b16 %v3341
    %v3498 = vunpack.c.l.b16 %v3345
    %v3499 = vunpack.c.l.b16 %v3348
    %v3500 = vunpack.c.l.b16 %v3352
    %v3501 = vunpack.c.l.b16 %v3355
    %v3502 = vunpack.c.l.b16 %v3359
    %v3503 = vunpack.c.l.b16 %v3362
    %v3504 = vunpack.c.l.b16 %v3366
    %v3505 = vunpack.c.l.b16 %v3369
    %v3506 = vunpack.c.l.b16 %v3373
    %v3507 = vunpack.c.l.b16 %v3376
    %v3508 = vunpack.c.l.b16 %v3380
    %v3509 = vunpack.c.l.b16 %v3383
    %v3510 = vunpack.c.l.b16 %v3387
    %v3511 = vunpack.c.l.b16 %v3390
    %v3512 = vunpack.c.l.b16 %v3394
    %v3513 = vunpack.c.l.b16 %v3397
    %v3514 = vunpack.c.l.b16 %v3401
    %v3515 = vunpack.c.l.b16 %v3404
    %v3516 = vunpack.c.l.b16 %v3408
    %v3517 = vunpack.c.l.b16 %v3411
    %v3518 = vunpack.c.l.b16 %v3415
    %v3519 = vunpack.c.l.b16 %v3418
    %v3520 = vunpack.c.l.b16 %v3422
    %v3521 = vunpack.c.l.b16 %v3425
    %v3522 = vunpack.c.l.b16 %v3429
    %v3523 = vunpack.c.l.b16 %v3432
    %v3524 = vunpack.c.l.b16 %v3436
    %v3525 = vunpack.c.l.b16 %v3439
    %v3526 = vunpack.c.l.b16 %v3443
    %v3527 = vunpack.c.l.b16 %v3446
    %v3528 = vpack.c.b16 %v3465, %v3464
    %v3529 = vpack.c.b16 %v3467, %v3466
    %v3530 = vpack.c.b16 %v3469, %v3468
    %v3531 = vpack.c.b16 %v3471, %v3470
    %v3532 = vpack.c.b16 %v3473, %v3472
    %v3533 = vpack.c.b16 %v3475, %v3474
    %v3534 = vpack.c.b16 %v3477, %v3476
    %v3535 = vpack.c.b16 %v3479, %v3478
    %v3536 = vpack.c.b16 %v3481, %v3480
    %v3537 = vpack.c.b16 %v3483, %v3482
    %v3538 = vpack.c.b16 %v3485, %v3484
    %v3539 = vpack.c.b16 %v3487, %v3486
    %v3540 = vpack.c.b16 %v3489, %v3488
    %v3541 = vpack.c.b16 %v3491, %v3490
    %v3542 = vpack.c.b16 %v3493, %v3492
    %v3543 = vpack.c.b16 %v3495, %v3494
    %v3544 = vpack.c.b16 %v3497, %v3496
    %v3545 = vpack.c.b16 %v3499, %v3498
    %v3546 = vpack.c.b16 %v3501, %v3500
    %v3547 = vpack.c.b16 %v3503, %v3502
    %v3548 = vpack.c.b16 %v3505, %v3504
    %v3549 = vpack.c.b16 %v3507, %v3506
    %v3550 = vpack.c.b16 %v3509, %v3508
    %v3551 = vpack.c.b16 %v3511, %v3510
    %v3552 = vpack.c.b16 %v3513, %v3512
    %v3553 = vpack.c.b16 %v3515, %v3514
    %v3554 = vpack.c.b16 %v3517, %v3516
    %v3555 = vpack.c.b16 %v3519, %v3518
    %v3556 = vpack.c.b16 %v3521, %v3520
    %v3557 = vpack.c.b16 %v3523, %v3522
    %v3558 = vpack.c.b16 %v3525, %v3524
    %v3559 = vpack.c.b16 %v3527, %v3526
    %v3608 = vunpack.c.l.b16 %v3448
    %v3609 = vunpack.c.l.b16 %v3449
    %v3610 = vunpack.c.l.b16 %v3450
    %v3611 = vunpack.c.l.b16 %v3451
    %v3612 = vunpack.c.l.b16 %v3452
    %v3613 = vunpack.c.l.b16 %v3453
    %v3614 = vunpack.c.l.b16 %v3454
    %v3615 = vunpack.c.l.b16 %v3455
    %v3616 = vunpack.c.l.b16 %v3456
    %v3617 = vunpack.c.l.b16 %v3457
    %v3618 = vunpack.c.l.b16 %v3458
    %v3619 = vunpack.c.l.b16 %v3459
    %v3620 = vunpack.c.l.b16 %v3460
    %v3621 = vunpack.c.l.b16 %v3461
    %v3622 = vunpack.c.l.b16 %v3462
    %v3623 = vunpack.c.l.b16 %v3463
    %v3624 = vpack.c.b16 %v3609, %v3608
    %v3625 = vpack.c.b16 %v3611, %v3610
    %v3626 = vpack.c.b16 %v3613, %v3612
    %v3627 = vpack.c.b16 %v3615, %v3614
    %v3628 = vpack.c.b16 %v3617, %v3616
    %v3629 = vpack.c.b16 %v3619, %v3618
    %v3630 = vpack.c.b16 %v3621, %v3620
    %v3631 = vpack.c.b16 %v3623, %v3622
    %3640 = vmatprep.subr.bf16.mxu0 0
    %3641 = vmatpush1.bf16.msra.mxu0 %v3624
    %3642 = vmatprep.subr.bf16.mxu0 0
    %3643 = vmatpush1.bf16.msra.mxu0 %v3625
    %3644 = vmatprep.subr.bf16.mxu0 0
    %3645 = vmatpush1.bf16.msra.mxu0 %v3626
    %3646 = vmatprep.subr.bf16.mxu0 0
    %3647 = vmatpush1.bf16.msra.mxu0 %v3627
    %3648 = vmatprep.subr.bf16.mxu0 0
    %3649 = vmatpush1.bf16.msra.mxu0 %v3628
    %3650 = vmatprep.subr.bf16.mxu0 0
    %3651 = vmatpush1.bf16.msra.mxu0 %v3629
    %3652 = vmatprep.subr.bf16.mxu0 0
    %3653 = vmatpush1.bf16.msra.mxu0 %v3630
    %3654 = vmatprep.subr.bf16.mxu0 0
    %3655 = vmatpush1.bf16.msra.mxu0 %v3631
    %3656 = vmatprep.subr.bf16.mxu0 0
    %3657 = vmatpush1.bf16.msra.mxu0 0
    %3658 = vmatprep.subr.bf16.mxu0 0
    %3659 = vmatpush1.bf16.msra.mxu0 0
    %3660 = vmatprep.subr.bf16.mxu0 0
    %3661 = vmatpush1.bf16.msra.mxu0 0
    %3662 = vmatprep.subr.bf16.mxu0 0
    %3663 = vmatpush1.bf16.msra.mxu0 0
    %3664 = vmatprep.subr.bf16.mxu0 0
    %3665 = vmatpush1.bf16.msra.mxu0 0
    %3666 = vmatprep.subr.bf16.mxu0 0
    %3667 = vmatpush1.bf16.msra.mxu0 0
    %3668 = vmatprep.subr.bf16.mxu0 0
    %3669 = vmatpush1.bf16.msra.mxu0 0
    %3670 = vmatprep.subr.bf16.mxu0 0
    %3671 = vmatpush1.bf16.msra.mxu0 0
    %3672 = vmatprep.mubr.bf16.mxu0 0
    %3673 = vmatmul.mubr.bf16.gmra.mrb[0].mxu0 %v3528
    %v3674 = vpop.f32.mrb[0].mxu0
    %v3675 = vadd.f32 0.0, %v3674
    %v3676 = vpop.f32.mrb[0].mxu0
    %v3677 = vpop.f32.mrb[0].mxu0
    %v3678 = vadd.f32 0.0, %v3677
    %v3679 = vpop.f32.mrb[0].mxu0
    %3680 = vmatprep.mubr.bf16.mxu0 0
    %3681 = vmatmul.mubr.bf16.gmra.mrb[0].mxu0 %v3529
    %v3682 = vpop.f32.mrb[0].mxu0
    %v3683 = vadd.f32 0.0, %v3682
    %v3684 = vpop.f32.mrb[0].mxu0
    %v3685 = vpop.f32.mrb[0].mxu0
    %v3686 = vadd.f32 0.0, %v3685
    %v3687 = vpop.f32.mrb[0].mxu0
    %3688 = vmatprep.mubr.bf16.mxu0 0
    %3689 = vmatmul.mubr.bf16.gmra.mrb[0].mxu0 %v3530
    %v3690 = vpop.f32.mrb[0].mxu0
    %v3691 = vadd.f32 0.0, %v3690
    %v3692 = vpop.f32.mrb[0].mxu0
    %v3693 = vpop.f32.mrb[0].mxu0
    %v3694 = vadd.f32 0.0, %v3693
    %v3695 = vpop.f32.mrb[0].mxu0
    %3696 = vmatprep.mubr.bf16.mxu0 0
    %3697 = vmatmul.mubr.bf16.gmra.mrb[0].mxu0 %v3531
    %v3698 = vpop.f32.mrb[0].mxu0
    %v3699 = vadd.f32 0.0, %v3698
    %v3700 = vpop.f32.mrb[0].mxu0
    %v3701 = vpop.f32.mrb[0].mxu0
    %v3702 = vadd.f32 0.0, %v3701
    %v3703 = vpop.f32.mrb[0].mxu0
    %3704 = vmatprep.mubr.bf16.mxu0 0
    %3705 = vmatmul.mubr.bf16.gmra.mrb[0].mxu0 %v3532
    %v3706 = vpop.f32.mrb[0].mxu0
    %v3707 = vadd.f32 0.0, %v3706
    %v3708 = vpop.f32.mrb[0].mxu0
    %v3709 = vpop.f32.mrb[0].mxu0
    %v3710 = vadd.f32 0.0, %v3709
    %v3711 = vpop.f32.mrb[0].mxu0
    %3712 = vmatprep.mubr.bf16.mxu0 0
    %3713 = vmatmul.mubr.bf16.gmra.mrb[0].mxu0 %v3533
    %v3714 = vpop.f32.mrb[0].mxu0
    %v3715 = vadd.f32 0.0, %v3714
    %v3716 = vpop.f32.mrb[0].mxu0
    %v3717 = vpop.f32.mrb[0].mxu0
    %v3718 = vadd.f32 0.0, %v3717
    %v3719 = vpop.f32.mrb[0].mxu0
    %3720 = vmatprep.mubr.bf16.mxu0 0
    %3721 = vmatmul.mubr.bf16.gmra.mrb[0].mxu0 %v3534
    %v3722 = vpop.f32.mrb[0].mxu0
    %v3723 = vadd.f32 0.0, %v3722
    %v3724 = vpop.f32.mrb[0].mxu0
    %v3725 = vpop.f32.mrb[0].mxu0
    %v3726 = vadd.f32 0.0, %v3725
    %v3727 = vpop.f32.mrb[0].mxu0
    %3728 = vmatprep.mubr.bf16.mxu0 0
    %3729 = vmatmul.mubr.bf16.gmra.mrb[0].mxu0 %v3535
    %v3730 = vpop.f32.mrb[0].mxu0
    %v3731 = vadd.f32 0.0, %v3730
    %v3732 = vpop.f32.mrb[0].mxu0
    %v3733 = vpop.f32.mrb[0].mxu0
    %v3734 = vadd.f32 0.0, %v3733
    %v3735 = vpop.f32.mrb[0].mxu0
    %3736 = vmatprep.mubr.bf16.mxu0 0
    %3737 = vmatmul.mubr.bf16.gmra.mrb[0].mxu0 %v3536
    %v3738 = vpop.f32.mrb[0].mxu0
    %v3739 = vadd.f32 0.0, %v3738
    %v3740 = vpop.f32.mrb[0].mxu0
    %v3741 = vpop.f32.mrb[0].mxu0
    %v3742 = vadd.f32 0.0, %v3741
    %v3743 = vpop.f32.mrb[0].mxu0
    %3744 = vmatprep.mubr.bf16.mxu0 0
    %3745 = vmatmul.mubr.bf16.gmra.mrb[0].mxu0 %v3537
    %v3746 = vpop.f32.mrb[0].mxu0
    %v3747 = vadd.f32 0.0, %v3746
    %v3748 = vpop.f32.mrb[0].mxu0
    %v3749 = vpop.f32.mrb[0].mxu0
    %v3750 = vadd.f32 0.0, %v3749
    %v3751 = vpop.f32.mrb[0].mxu0
    %3752 = vmatprep.mubr.bf16.mxu0 0
    %3753 = vmatmul.mubr.bf16.gmra.mrb[0].mxu0 %v3538
    %v3754 = vpop.f32.mrb[0].mxu0
    %v3755 = vadd.f32 0.0, %v3754
    %v3756 = vpop.f32.mrb[0].mxu0
    %v3757 = vpop.f32.mrb[0].mxu0
    %v3758 = vadd.f32 0.0, %v3757
    %v3759 = vpop.f32.mrb[0].mxu0
    %3760 = vmatprep.mubr.bf16.mxu0 0
    %3761 = vmatmul.mubr.bf16.gmra.mrb[0].mxu0 %v3539
    %v3762 = vpop.f32.mrb[0].mxu0
    %v3763 = vadd.f32 0.0, %v3762
    %v3764 = vpop.f32.mrb[0].mxu0
    %v3765 = vpop.f32.mrb[0].mxu0
    %v3766 = vadd.f32 0.0, %v3765
    %v3767 = vpop.f32.mrb[0].mxu0
    %3768 = vmatprep.mubr.bf16.mxu0 0
    %3769 = vmatmul.mubr.bf16.gmra.mrb[0].mxu0 %v3540
    %v3770 = vpop.f32.mrb[0].mxu0
    %v3771 = vadd.f32 0.0, %v3770
    %v3772 = vpop.f32.mrb[0].mxu0
    %v3773 = vpop.f32.mrb[0].mxu0
    %v3774 = vadd.f32 0.0, %v3773
    %v3775 = vpop.f32.mrb[0].mxu0
    %3776 = vmatprep.mubr.bf16.mxu0 0
    %3777 = vmatmul.mubr.bf16.gmra.mrb[0].mxu0 %v3541
    %v3778 = vpop.f32.mrb[0].mxu0
    %v3779 = vadd.f32 0.0, %v3778
    %v3780 = vpop.f32.mrb[0].mxu0
    %v3781 = vpop.f32.mrb[0].mxu0
    %v3782 = vadd.f32 0.0, %v3781
    %v3783 = vpop.f32.mrb[0].mxu0
    %3784 = vmatprep.mubr.bf16.mxu0 0
    %3785 = vmatmul.mubr.bf16.gmra.mrb[0].mxu0 %v3542
    %v3786 = vpop.f32.mrb[0].mxu0
    %v3787 = vadd.f32 0.0, %v3786
    %v3788 = vpop.f32.mrb[0].mxu0
    %v3789 = vpop.f32.mrb[0].mxu0
    %v3790 = vadd.f32 0.0, %v3789
    %v3791 = vpop.f32.mrb[0].mxu0
    %3792 = vmatprep.mubr.bf16.mxu0 0
    %3793 = vmatmul.mubr.bf16.gmra.mrb[0].mxu0 %v3543
    %v3794 = vpop.f32.mrb[0].mxu0
    %v3795 = vadd.f32 0.0, %v3794
    %v3796 = vpop.f32.mrb[0].mxu0
    %v3797 = vpop.f32.mrb[0].mxu0
    %v3798 = vadd.f32 0.0, %v3797
    %v3799 = vpop.f32.mrb[0].mxu0
    %3800 = vmatprep.mubr.bf16.mxu0 0
    %3801 = vmatmul.mubr.bf16.gmra.mrb[0].mxu0 %v3544
    %v3802 = vpop.f32.mrb[0].mxu0
    %v3803 = vadd.f32 0.0, %v3802
    %v3804 = vpop.f32.mrb[0].mxu0
    %v3805 = vpop.f32.mrb[0].mxu0
    %v3806 = vadd.f32 0.0, %v3805
    %v3807 = vpop.f32.mrb[0].mxu0
    %3808 = vmatprep.mubr.bf16.mxu0 0
    %3809 = vmatmul.mubr.bf16.gmra.mrb[0].mxu0 %v3545
    %v3810 = vpop.f32.mrb[0].mxu0
    %v3811 = vadd.f32 0.0, %v3810
    %v3812 = vpop.f32.mrb[0].mxu0
    %v3813 = vpop.f32.mrb[0].mxu0
    %v3814 = vadd.f32 0.0, %v3813
    %v3815 = vpop.f32.mrb[0].mxu0
    %3816 = vmatprep.mubr.bf16.mxu0 0
    %3817 = vmatmul.mubr.bf16.gmra.mrb[0].mxu0 %v3546
    %v3818 = vpop.f32.mrb[0].mxu0
    %v3819 = vadd.f32 0.0, %v3818
    %v3820 = vpop.f32.mrb[0].mxu0
    %v3821 = vpop.f32.mrb[0].mxu0
    %v3822 = vadd.f32 0.0, %v3821
    %v3823 = vpop.f32.mrb[0].mxu0
    %3824 = vmatprep.mubr.bf16.mxu0 0
    %3825 = vmatmul.mubr.bf16.gmra.mrb[0].mxu0 %v3547
    %v3826 = vpop.f32.mrb[0].mxu0
    %v3827 = vadd.f32 0.0, %v3826
    %v3828 = vpop.f32.mrb[0].mxu0
    %v3829 = vpop.f32.mrb[0].mxu0
    %v3830 = vadd.f32 0.0, %v3829
    %v3831 = vpop.f32.mrb[0].mxu0
    %3832 = vmatprep.mubr.bf16.mxu0 0
    %3833 = vmatmul.mubr.bf16.gmra.mrb[0].mxu0 %v3548
    %v3834 = vpop.f32.mrb[0].mxu0
    %v3835 = vadd.f32 0.0, %v3834
    %v3836 = vpop.f32.mrb[0].mxu0
    %v3837 = vpop.f32.mrb[0].mxu0
    %v3838 = vadd.f32 0.0, %v3837
    %v3839 = vpop.f32.mrb[0].mxu0
    %3840 = vmatprep.mubr.bf16.mxu0 0
    %3841 = vmatmul.mubr.bf16.gmra.mrb[0].mxu0 %v3549
    %v3842 = vpop.f32.mrb[0].mxu0
    %v3843 = vadd.f32 0.0, %v3842
    %v3844 = vpop.f32.mrb[0].mxu0
    %v3845 = vpop.f32.mrb[0].mxu0
    %v3846 = vadd.f32 0.0, %v3845
    %v3847 = vpop.f32.mrb[0].mxu0
    %3848 = vmatprep.mubr.bf16.mxu0 0
    %3849 = vmatmul.mubr.bf16.gmra.mrb[0].mxu0 %v3550
    %v3850 = vpop.f32.mrb[0].mxu0
    %v3851 = vadd.f32 0.0, %v3850
    %v3852 = vpop.f32.mrb[0].mxu0
    %v3853 = vpop.f32.mrb[0].mxu0
    %v3854 = vadd.f32 0.0, %v3853
    %v3855 = vpop.f32.mrb[0].mxu0
    %3856 = vmatprep.mubr.bf16.mxu0 0
    %3857 = vmatmul.mubr.bf16.gmra.mrb[0].mxu0 %v3551
    %v3858 = vpop.f32.mrb[0].mxu0
    %v3859 = vadd.f32 0.0, %v3858
    %v3860 = vpop.f32.mrb[0].mxu0
    %v3861 = vpop.f32.mrb[0].mxu0
    %v3862 = vadd.f32 0.0, %v3861
    %v3863 = vpop.f32.mrb[0].mxu0
    %3864 = vmatprep.mubr.bf16.mxu0 0
    %3865 = vmatmul.mubr.bf16.gmra.mrb[0].mxu0 %v3552
    %v3866 = vpop.f32.mrb[0].mxu0
    %v3867 = vadd.f32 0.0, %v3866
    %v3868 = vpop.f32.mrb[0].mxu0
    %v3869 = vpop.f32.mrb[0].mxu0
    %v3870 = vadd.f32 0.0, %v3869
    %v3871 = vpop.f32.mrb[0].mxu0
    %3872 = vmatprep.mubr.bf16.mxu0 0
    %3873 = vmatmul.mubr.bf16.gmra.mrb[0].mxu0 %v3553
    %v3874 = vpop.f32.mrb[0].mxu0
    %v3875 = vadd.f32 0.0, %v3874
    %v3876 = vpop.f32.mrb[0].mxu0
    %v3877 = vpop.f32.mrb[0].mxu0
    %v3878 = vadd.f32 0.0, %v3877
    %v3879 = vpop.f32.mrb[0].mxu0
    %3880 = vmatprep.mubr.bf16.mxu0 0
    %3881 = vmatmul.mubr.bf16.gmra.mrb[0].mxu0 %v3554
    %v3882 = vpop.f32.mrb[0].mxu0
    %v3883 = vadd.f32 0.0, %v3882
    %v3884 = vpop.f32.mrb[0].mxu0
    %v3885 = vpop.f32.mrb[0].mxu0
    %v3886 = vadd.f32 0.0, %v3885
    %v3887 = vpop.f32.mrb[0].mxu0
    %3888 = vmatprep.mubr.bf16.mxu0 0
    %3889 = vmatmul.mubr.bf16.gmra.mrb[0].mxu0 %v3555
    %v3890 = vpop.f32.mrb[0].mxu0
    %v3891 = vadd.f32 0.0, %v3890
    %v3892 = vpop.f32.mrb[0].mxu0
    %v3893 = vpop.f32.mrb[0].mxu0
    %v3894 = vadd.f32 0.0, %v3893
    %v3895 = vpop.f32.mrb[0].mxu0
    %3896 = vmatprep.mubr.bf16.mxu0 0
    %3897 = vmatmul.mubr.bf16.gmra.mrb[0].mxu0 %v3556
    %v3898 = vpop.f32.mrb[0].mxu0
    %v3899 = vadd.f32 0.0, %v3898
    %v3900 = vpop.f32.mrb[0].mxu0
    %v3901 = vpop.f32.mrb[0].mxu0
    %v3902 = vadd.f32 0.0, %v3901
    %v3903 = vpop.f32.mrb[0].mxu0
    %3904 = vmatprep.mubr.bf16.mxu0 0
    %3905 = vmatmul.mubr.bf16.gmra.mrb[0].mxu0 %v3557
    %v3906 = vpop.f32.mrb[0].mxu0
    %v3907 = vadd.f32 0.0, %v3906
    %v3908 = vpop.f32.mrb[0].mxu0
    %v3909 = vpop.f32.mrb[0].mxu0
    %v3910 = vadd.f32 0.0, %v3909
    %v3911 = vpop.f32.mrb[0].mxu0
    %3912 = vmatprep.mubr.bf16.mxu0 0
    %3913 = vmatmul.mubr.bf16.gmra.mrb[0].mxu0 %v3558
    %v3914 = vpop.f32.mrb[0].mxu0
    %v3915 = vadd.f32 0.0, %v3914
    %v3916 = vpop.f32.mrb[0].mxu0
    %v3917 = vpop.f32.mrb[0].mxu0
    %v3918 = vadd.f32 0.0, %v3917
    %v3919 = vpop.f32.mrb[0].mxu0
    %3920 = vmatprep.mubr.bf16.mxu0 0
    %3921 = vmatmul.mubr.bf16.gmra.mrb[0].mxu0 %v3559
    %v3922 = vpop.f32.mrb[0].mxu0
    %v3923 = vadd.f32 0.0, %v3922
    %v3924 = vpop.f32.mrb[0].mxu0
    %v3925 = vpop.f32.mrb[0].mxu0
    %v3926 = vadd.f32 0.0, %v3925
    %v3927 = vpop.f32.mrb[0].mxu0
    %3928 = vdwg.mxu0
    %v3929 = vadd.f32 %v2870, %v3675
    %v3930 = vadd.f32 %v2873, %v3678
    %v3931 = vadd.f32 %v2878, %v3683
    %v3932 = vadd.f32 %v2881, %v3686
    %v3933 = vadd.f32 %v2886, %v3691
    %v3934 = vadd.f32 %v2889, %v3694
    %v3935 = vadd.f32 %v2894, %v3699
    %v3936 = vadd.f32 %v2897, %v3702
    %v3937 = vadd.f32 %v2902, %v3707
    %v3938 = vadd.f32 %v2905, %v3710
    %v3939 = vadd.f32 %v2910, %v3715
    %v3940 = vadd.f32 %v2913, %v3718
    %v3941 = vadd.f32 %v2918, %v3723
    %v3942 = vadd.f32 %v2921, %v3726
    %v3943 = vadd.f32 %v2926, %v3731
    %v3944 = vadd.f32 %v2929, %v3734
    %v3945 = vadd.f32 %v2934, %v3739
    %v3946 = vadd.f32 %v2937, %v3742
    %v3947 = vadd.f32 %v2942, %v3747
    %v3948 = vadd.f32 %v2945, %v3750
    %v3949 = vadd.f32 %v2950, %v3755
    %v3950 = vadd.f32 %v2953, %v3758
    %v3951 = vadd.f32 %v2958, %v3763
    %v3952 = vadd.f32 %v2961, %v3766
    %v3953 = vadd.f32 %v2966, %v3771
    %v3954 = vadd.f32 %v2969, %v3774
    %v3955 = vadd.f32 %v2974, %v3779
    %v3956 = vadd.f32 %v2977, %v3782
    %v3957 = vadd.f32 %v2982, %v3787
    %v3958 = vadd.f32 %v2985, %v3790
    %v3959 = vadd.f32 %v2990, %v3795
    %v3960 = vadd.f32 %v2993, %v3798
    %v3961 = vadd.f32 %v2998, %v3803
    %v3962 = vadd.f32 %v3001, %v3806
    %v3963 = vadd.f32 %v3006, %v3811
    %v3964 = vadd.f32 %v3009, %v3814
    %v3965 = vadd.f32 %v3014, %v3819
    %v3966 = vadd.f32 %v3017, %v3822
    %v3967 = vadd.f32 %v3022, %v3827
    %v3968 = vadd.f32 %v3025, %v3830
    %v3969 = vadd.f32 %v3030, %v3835
    %v3970 = vadd.f32 %v3033, %v3838
    %v3971 = vadd.f32 %v3038, %v3843
    %v3972 = vadd.f32 %v3041, %v3846
    %v3973 = vadd.f32 %v3046, %v3851
    %v3974 = vadd.f32 %v3049, %v3854
    %v3975 = vadd.f32 %v3054, %v3859
    %v3976 = vadd.f32 %v3057, %v3862
    %v3977 = vadd.f32 %v3062, %v3867
    %v3978 = vadd.f32 %v3065, %v3870
    %v3979 = vadd.f32 %v3070, %v3875
    %v3980 = vadd.f32 %v3073, %v3878
    %v3981 = vadd.f32 %v3078, %v3883
    %v3982 = vadd.f32 %v3081, %v3886
    %v3983 = vadd.f32 %v3086, %v3891
    %v3984 = vadd.f32 %v3089, %v3894
    %v3985 = vadd.f32 %v3094, %v3899
    %v3986 = vadd.f32 %v3097, %v3902
    %v3987 = vadd.f32 %v3102, %v3907
    %v3988 = vadd.f32 %v3105, %v3910
    %v3989 = vadd.f32 %v3110, %v3915
    %v3990 = vadd.f32 %v3113, %v3918
    %v3991 = vadd.f32 %v3118, %v3923
    %v3992 = vadd.f32 %v3121, %v3926
    %v3993 = vld [vmem:[%s1003] sm:$0xf]
    %v3994 = vld [vmem:[%s1003 + $0x4] sm:$0xf]
    %v3995 = vld [vmem:[%s1003 + $0xc] sm:$0xf]
    %v3996 = vld [vmem:[%s1003 + $0x10] sm:$0xf]
    %v3997 = vld [vmem:[%s1003 + $0x18] sm:$0xf]
    %v3998 = vld [vmem:[%s1003 + $0x1c] sm:$0xf]
    %v3999 = vld [vmem:[%s1003 + $0x24] sm:$0xf]
    %v4000 = vld [vmem:[%s1003 + $0x28] sm:$0xf]
    %v4001 = vld [vmem:[%s1003 + $0x30] sm:$0xf]
    %v4002 = vld [vmem:[%s1003 + $0x34] sm:$0xf]
    %v4003 = vld [vmem:[%s1003 + $0x3c] sm:$0xf]
    %v4004 = vld [vmem:[%s1003 + $0x40] sm:$0xf]
    %v4005 = vld [vmem:[%s1003 + $0x48] sm:$0xf]
    %v4006 = vld [vmem:[%s1003 + $0x4c] sm:$0xf]
    %v4007 = vld [vmem:[%s1003 + $0x54] sm:$0xf]
    %v4008 = vld [vmem:[%s1003 + $0x58] sm:$0xf]
    %v4009 = vld [vmem:[%s1003 + $0x60] sm:$0xf]
    %v4010 = vld [vmem:[%s1003 + $0x64] sm:$0xf]
    %v4011 = vld [vmem:[%s1003 + $0x6c] sm:$0xf]
    %v4012 = vld [vmem:[%s1003 + $0x70] sm:$0xf]
    %v4013 = vld [vmem:[%s1003 + $0x78] sm:$0xf]
    %v4014 = vld [vmem:[%s1003 + $0x7c] sm:$0xf]
    %v4015 = vld [vmem:[%s1003 + $0x84] sm:$0xf]
    %v4016 = vld [vmem:[%s1003 + $0x88] sm:$0xf]
    %v4017 = vld [vmem:[%s1003 + $0x90] sm:$0xf]
    %v4018 = vld [vmem:[%s1003 + $0x94] sm:$0xf]
    %v4019 = vld [vmem:[%s1003 + $0x9c] sm:$0xf]
    %v4020 = vld [vmem:[%s1003 + $0xa0] sm:$0xf]
    %v4021 = vld [vmem:[%s1003 + $0xa8] sm:$0xf]
    %v4022 = vld [vmem:[%s1003 + $0xac] sm:$0xf]
    %v4023 = vld [vmem:[%s1003 + $0xb4] sm:$0xf]
    %v4024 = vld [vmem:[%s1003 + $0xb8] sm:$0xf]
    %v4025 = vld [vmem:[%s1003 + $0xd8] sm:$0xf]
    %v4026 = vld [vmem:[%s1003 + $0xdc] sm:$0xf]
    %v4027 = vld [vmem:[%s1003 + $0xe4] sm:$0xf]
    %v4028 = vld [vmem:[%s1003 + $0xe8] sm:$0xf]
    %v4029 = vld [vmem:[%s1003 + $0xf0] sm:$0xf]
    %v4030 = vld [vmem:[%s1003 + $0xf4] sm:$0xf]
    %v4031 = vld [vmem:[%s1003 + $0xfc] sm:$0xf]
    %v4032 = vld [vmem:[%s1003 + $0x100] sm:$0xf]
    %v4033 = vld [vmem:[%s1003 + $0x108] sm:$0xf]
    %v4034 = vld [vmem:[%s1003 + $0x10c] sm:$0xf]
    %v4035 = vld [vmem:[%s1003 + $0x114] sm:$0xf]
    %v4036 = vld [vmem:[%s1003 + $0x118] sm:$0xf]
    %v4037 = vld [vmem:[%s1003 + $0x120] sm:$0xf]
    %v4038 = vld [vmem:[%s1003 + $0x124] sm:$0xf]
    %v4039 = vld [vmem:[%s1003 + $0x12c] sm:$0xf]
    %v4040 = vld [vmem:[%s1003 + $0x130] sm:$0xf]
    %v4041 = vld [vmem:[%s1003 + $0x138] sm:$0xf]
    %v4042 = vld [vmem:[%s1003 + $0x13c] sm:$0xf]
    %v4043 = vld [vmem:[%s1003 + $0x144] sm:$0xf]
    %v4044 = vld [vmem:[%s1003 + $0x148] sm:$0xf]
    %v4045 = vld [vmem:[%s1003 + $0x150] sm:$0xf]
    %v4046 = vld [vmem:[%s1003 + $0x154] sm:$0xf]
    %v4047 = vld [vmem:[%s1003 + $0x15c] sm:$0xf]
    %v4048 = vld [vmem:[%s1003 + $0x160] sm:$0xf]
    %v4049 = vld [vmem:[%s1003 + $0x168] sm:$0xf]
    %v4050 = vld [vmem:[%s1003 + $0x16c] sm:$0xf]
    %v4051 = vld [vmem:[%s1003 + $0x174] sm:$0xf]
    %v4052 = vld [vmem:[%s1003 + $0x178] sm:$0xf]
    %v4053 = vld [vmem:[%s1003 + $0x180] sm:$0xf]
    %v4054 = vld [vmem:[%s1003 + $0x184] sm:$0xf]
    %v4055 = vld [vmem:[%s1003 + $0x18c] sm:$0xf]
    %v4056 = vld [vmem:[%s1003 + $0x190] sm:$0xf]
    %s4057 = scalar_lea.vmem [#allocation6], 192
    %v4058 = vld [vmem:[%s4057] sm:$0xf]
    %v4059 = vld [vmem:[%s4057 + $0x4] sm:$0xf]
    %v4060 = vld [vmem:[%s4057 + $0x8] sm:$0xf]
    %v4061 = vld [vmem:[%s4057 + $0xc] sm:$0xf]
    %v4062 = vld [vmem:[%s4057 + $0x10] sm:$0xf]
    %v4063 = vld [vmem:[%s4057 + $0x14] sm:$0xf]
    %v4064 = vld [vmem:[%s4057 + $0x18] sm:$0xf]
    %v4065 = vld [vmem:[%s4057 + $0x1c] sm:$0xf]
    %v4066 = vld [vmem:[%s4057 + $0x20] sm:$0xf]
    %v4067 = vld [vmem:[%s4057 + $0x24] sm:$0xf]
    %v4068 = vld [vmem:[%s4057 + $0x28] sm:$0xf]
    %v4069 = vld [vmem:[%s4057 + $0x2c] sm:$0xf]
    %v4070 = vld [vmem:[%s4057 + $0x30] sm:$0xf]
    %v4071 = vld [vmem:[%s4057 + $0x34] sm:$0xf]
    %v4072 = vld [vmem:[%s4057 + $0x38] sm:$0xf]
    %v4073 = vld [vmem:[%s4057 + $0x3c] sm:$0xf]
    %v4138 = vunpack.c.l.b16 %v3993
    %v4139 = vunpack.c.l.b16 %v3994
    %v4140 = vunpack.c.l.b16 %v3995
    %v4141 = vunpack.c.l.b16 %v3996
    %v4142 = vunpack.c.l.b16 %v3997
    %v4143 = vunpack.c.l.b16 %v3998
    %v4144 = vunpack.c.l.b16 %v3999
    %v4145 = vunpack.c.l.b16 %v4000
    %v4146 = vunpack.c.l.b16 %v4001
    %v4147 = vunpack.c.l.b16 %v4002
    %v4148 = vunpack.c.l.b16 %v4003
    %v4149 = vunpack.c.l.b16 %v4004
    %v4150 = vunpack.c.l.b16 %v4005
    %v4151 = vunpack.c.l.b16 %v4006
    %v4152 = vunpack.c.l.b16 %v4007
    %v4153 = vunpack.c.l.b16 %v4008
    %v4154 = vunpack.c.l.b16 %v4009
    %v4155 = vunpack.c.l.b16 %v4010
    %v4156 = vunpack.c.l.b16 %v4011
    %v4157 = vunpack.c.l.b16 %v4012
    %v4158 = vunpack.c.l.b16 %v4013
    %v4159 = vunpack.c.l.b16 %v4014
    %v4160 = vunpack.c.l.b16 %v4015
    %v4161 = vunpack.c.l.b16 %v4016
    %v4162 = vunpack.c.l.b16 %v4017
    %v4163 = vunpack.c.l.b16 %v4018
    %v4164 = vunpack.c.l.b16 %v4019
    %v4165 = vunpack.c.l.b16 %v4020
    %v4166 = vunpack.c.l.b16 %v4021
    %v4167 = vunpack.c.l.b16 %v4022
    %v4168 = vunpack.c.l.b16 %v4023
    %v4169 = vunpack.c.l.b16 %v4024
    %v4170 = vunpack.c.l.b16 %v4025
    %v4171 = vunpack.c.l.b16 %v4026
    %v4172 = vunpack.c.l.b16 %v4027
    %v4173 = vunpack.c.l.b16 %v4028
    %v4174 = vunpack.c.l.b16 %v4029
    %v4175 = vunpack.c.l.b16 %v4030
    %v4176 = vunpack.c.l.b16 %v4031
    %v4177 = vunpack.c.l.b16 %v4032
    %v4178 = vunpack.c.l.b16 %v4033
    %v4179 = vunpack.c.l.b16 %v4034
    %v4180 = vunpack.c.l.b16 %v4035
    %v4181 = vunpack.c.l.b16 %v4036
    %v4182 = vunpack.c.l.b16 %v4037
    %v4183 = vunpack.c.l.b16 %v4038
    %v4184 = vunpack.c.l.b16 %v4039
    %v4185 = vunpack.c.l.b16 %v4040
    %v4186 = vunpack.c.l.b16 %v4041
    %v4187 = vunpack.c.l.b16 %v4042
    %v4188 = vunpack.c.l.b16 %v4043
    %v4189 = vunpack.c.l.b16 %v4044
    %v4190 = vunpack.c.l.b16 %v4045
    %v4191 = vunpack.c.l.b16 %v4046
    %v4192 = vunpack.c.l.b16 %v4047
    %v4193 = vunpack.c.l.b16 %v4048
    %v4194 = vunpack.c.l.b16 %v4049
    %v4195 = vunpack.c.l.b16 %v4050
    %v4196 = vunpack.c.l.b16 %v4051
    %v4197 = vunpack.c.l.b16 %v4052
    %v4198 = vunpack.c.l.b16 %v4053
    %v4199 = vunpack.c.l.b16 %v4054
    %v4200 = vunpack.c.l.b16 %v4055
    %v4201 = vunpack.c.l.b16 %v4056
    %v4202 = vpack.c.b16 %v4139, %v4138
    %v4203 = vpack.c.b16 %v4141, %v4140
    %v4204 = vpack.c.b16 %v4143, %v4142
    %v4205 = vpack.c.b16 %v4145, %v4144
    %v4206 = vpack.c.b16 %v4147, %v4146
    %v4207 = vpack.c.b16 %v4149, %v4148
    %v4208 = vpack.c.b16 %v4151, %v4150
    %v4209 = vpack.c.b16 %v4153, %v4152
    %v4210 = vpack.c.b16 %v4155, %v4154
    %v4211 = vpack.c.b16 %v4157, %v4156
    %v4212 = vpack.c.b16 %v4159, %v4158
    %v4213 = vpack.c.b16 %v4161, %v4160
    %v4214 = vpack.c.b16 %v4163, %v4162
    %v4215 = vpack.c.b16 %v4165, %v4164
    %v4216 = vpack.c.b16 %v4167, %v4166
    %v4217 = vpack.c.b16 %v4169, %v4168
    %v4218 = vpack.c.b16 %v4171, %v4170
    %v4219 = vpack.c.b16 %v4173, %v4172
    %v4220 = vpack.c.b16 %v4175, %v4174
    %v4221 = vpack.c.b16 %v4177, %v4176
    %v4222 = vpack.c.b16 %v4179, %v4178
    %v4223 = vpack.c.b16 %v4181, %v4180
    %v4224 = vpack.c.b16 %v4183, %v4182
    %v4225 = vpack.c.b16 %v4185, %v4184
    %v4226 = vpack.c.b16 %v4187, %v4186
    %v4227 = vpack.c.b16 %v4189, %v4188
    %v4228 = vpack.c.b16 %v4191, %v4190
    %v4229 = vpack.c.b16 %v4193, %v4192
    %v4230 = vpack.c.b16 %v4195, %v4194
    %v4231 = vpack.c.b16 %v4197, %v4196
    %v4232 = vpack.c.b16 %v4199, %v4198
    %v4233 = vpack.c.b16 %v4201, %v4200
    %v4282 = vunpack.c.l.b16 %v4058
    %v4283 = vunpack.c.l.b16 %v4059
    %v4284 = vunpack.c.l.b16 %v4060
    %v4285 = vunpack.c.l.b16 %v4061
    %v4286 = vunpack.c.l.b16 %v4062
    %v4287 = vunpack.c.l.b16 %v4063
    %v4288 = vunpack.c.l.b16 %v4064
    %v4289 = vunpack.c.l.b16 %v4065
    %v4290 = vunpack.c.l.b16 %v4066
    %v4291 = vunpack.c.l.b16 %v4067
    %v4292 = vunpack.c.l.b16 %v4068
    %v4293 = vunpack.c.l.b16 %v4069
    %v4294 = vunpack.c.l.b16 %v4070
    %v4295 = vunpack.c.l.b16 %v4071
    %v4296 = vunpack.c.l.b16 %v4072
    %v4297 = vunpack.c.l.b16 %v4073
    %v4298 = vpack.c.b16 %v4283, %v4282
    %v4299 = vpack.c.b16 %v4285, %v4284
    %v4300 = vpack.c.b16 %v4287, %v4286
    %v4301 = vpack.c.b16 %v4289, %v4288
    %v4302 = vpack.c.b16 %v4291, %v4290
    %v4303 = vpack.c.b16 %v4293, %v4292
    %v4304 = vpack.c.b16 %v4295, %v4294
    %v4305 = vpack.c.b16 %v4297, %v4296
    %4314 = vmatprep.subr.bf16.mxu0 0
    %4315 = vmatpush1.bf16.msra.mxu0 %v4298
    %4316 = vmatprep.subr.bf16.mxu0 0
    %4317 = vmatpush1.bf16.msra.mxu0 %v4299
    %4318 = vmatprep.subr.bf16.mxu0 0
    %4319 = vmatpush1.bf16.msra.mxu0 %v4300
    %4320 = vmatprep.subr.bf16.mxu0 0
    %4321 = vmatpush1.bf16.msra.mxu0 %v4301
    %4322 = vmatprep.subr.bf16.mxu0 0
    %4323 = vmatpush1.bf16.msra.mxu0 %v4302
    %4324 = vmatprep.subr.bf16.mxu0 0
    %4325 = vmatpush1.bf16.msra.mxu0 %v4303
    %4326 = vmatprep.subr.bf16.mxu0 0
    %4327 = vmatpush1.bf16.msra.mxu0 %v4304
    %4328 = vmatprep.subr.bf16.mxu0 0
    %4329 = vmatpush1.bf16.msra.mxu0 %v4305
    %4330 = vmatprep.subr.bf16.mxu0 0
    %4331 = vmatpush1.bf16.msra.mxu0 0
    %4332 = vmatprep.subr.bf16.mxu0 0
    %4333 = vmatpush1.bf16.msra.mxu0 0
    %4334 = vmatprep.subr.bf16.mxu0 0
    %4335 = vmatpush1.bf16.msra.mxu0 0
    %4336 = vmatprep.subr.bf16.mxu0 0
    %4337 = vmatpush1.bf16.msra.mxu0 0
    %4338 = vmatprep.subr.bf16.mxu0 0
    %4339 = vmatpush1.bf16.msra.mxu0 0
    %4340 = vmatprep.subr.bf16.mxu0 0
    %4341 = vmatpush1.bf16.msra.mxu0 0
    %4342 = vmatprep.subr.bf16.mxu0 0
    %4343 = vmatpush1.bf16.msra.mxu0 0
    %4344 = vmatprep.subr.bf16.mxu0 0
    %4345 = vmatpush1.bf16.msra.mxu0 0
    %4346 = vmatprep.mubr.bf16.mxu0 0
    %4347 = vmatmul.mubr.bf16.gmra.mrb[0].mxu0 %v4202
    %v4348 = vpop.f32.mrb[0].mxu0
    %v4349 = vadd.f32 0.0, %v4348
    %v4350 = vpop.f32.mrb[0].mxu0
    %v4351 = vpop.f32.mrb[0].mxu0
    %v4352 = vadd.f32 0.0, %v4351
    %v4353 = vpop.f32.mrb[0].mxu0
    %4354 = vmatprep.mubr.bf16.mxu0 0
    %4355 = vmatmul.mubr.bf16.gmra.mrb[0].mxu0 %v4203
    %v4356 = vpop.f32.mrb[0].mxu0
    %v4357 = vadd.f32 0.0, %v4356
    %v4358 = vpop.f32.mrb[0].mxu0
    %v4359 = vpop.f32.mrb[0].mxu0
    %v4360 = vadd.f32 0.0, %v4359
    %v4361 = vpop.f32.mrb[0].mxu0
    %4362 = vmatprep.mubr.bf16.mxu0 0
    %4363 = vmatmul.mubr.bf16.gmra.mrb[0].mxu0 %v4204
    %v4364 = vpop.f32.mrb[0].mxu0
    %v4365 = vadd.f32 0.0, %v4364
    %v4366 = vpop.f32.mrb[0].mxu0
    %v4367 = vpop.f32.mrb[0].mxu0
    %v4368 = vadd.f32 0.0, %v4367
    %v4369 = vpop.f32.mrb[0].mxu0
    %4370 = vmatprep.mubr.bf16.mxu0 0
    %4371 = vmatmul.mubr.bf16.gmra.mrb[0].mxu0 %v4205
    %v4372 = vpop.f32.mrb[0].mxu0
    %v4373 = vadd.f32 0.0, %v4372
    %v4374 = vpop.f32.mrb[0].mxu0
    %v4375 = vpop.f32.mrb[0].mxu0
    %v4376 = vadd.f32 0.0, %v4375
    %v4377 = vpop.f32.mrb[0].mxu0
    %4378 = vmatprep.mubr.bf16.mxu0 0
    %4379 = vmatmul.mubr.bf16.gmra.mrb[0].mxu0 %v4206
    %v4380 = vpop.f32.mrb[0].mxu0
    %v4381 = vadd.f32 0.0, %v4380
    %v4382 = vpop.f32.mrb[0].mxu0
    %v4383 = vpop.f32.mrb[0].mxu0
    %v4384 = vadd.f32 0.0, %v4383
    %v4385 = vpop.f32.mrb[0].mxu0
    %4386 = vmatprep.mubr.bf16.mxu0 0
    %4387 = vmatmul.mubr.bf16.gmra.mrb[0].mxu0 %v4207
    %v4388 = vpop.f32.mrb[0].mxu0
    %v4389 = vadd.f32 0.0, %v4388
    %v4390 = vpop.f32.mrb[0].mxu0
    %v4391 = vpop.f32.mrb[0].mxu0
    %v4392 = vadd.f32 0.0, %v4391
    %v4393 = vpop.f32.mrb[0].mxu0
    %4394 = vmatprep.mubr.bf16.mxu0 0
    %4395 = vmatmul.mubr.bf16.gmra.mrb[0].mxu0 %v4208
    %v4396 = vpop.f32.mrb[0].mxu0
    %v4397 = vadd.f32 0.0, %v4396
    %v4398 = vpop.f32.mrb[0].mxu0
    %v4399 = vpop.f32.mrb[0].mxu0
    %v4400 = vadd.f32 0.0, %v4399
    %v4401 = vpop.f32.mrb[0].mxu0
    %4402 = vmatprep.mubr.bf16.mxu0 0
    %4403 = vmatmul.mubr.bf16.gmra.mrb[0].mxu0 %v4209
    %v4404 = vpop.f32.mrb[0].mxu0
    %v4405 = vadd.f32 0.0, %v4404
    %v4406 = vpop.f32.mrb[0].mxu0
    %v4407 = vpop.f32.mrb[0].mxu0
    %v4408 = vadd.f32 0.0, %v4407
    %v4409 = vpop.f32.mrb[0].mxu0
    %4410 = vmatprep.mubr.bf16.mxu0 0
    %4411 = vmatmul.mubr.bf16.gmra.mrb[0].mxu0 %v4210
    %v4412 = vpop.f32.mrb[0].mxu0
    %v4413 = vadd.f32 0.0, %v4412
    %v4414 = vpop.f32.mrb[0].mxu0
    %v4415 = vpop.f32.mrb[0].mxu0
    %v4416 = vadd.f32 0.0, %v4415
    %v4417 = vpop.f32.mrb[0].mxu0
    %4418 = vmatprep.mubr.bf16.mxu0 0
    %4419 = vmatmul.mubr.bf16.gmra.mrb[0].mxu0 %v4211
    %v4420 = vpop.f32.mrb[0].mxu0
    %v4421 = vadd.f32 0.0, %v4420
    %v4422 = vpop.f32.mrb[0].mxu0
    %v4423 = vpop.f32.mrb[0].mxu0
    %v4424 = vadd.f32 0.0, %v4423
    %v4425 = vpop.f32.mrb[0].mxu0
    %4426 = vmatprep.mubr.bf16.mxu0 0
    %4427 = vmatmul.mubr.bf16.gmra.mrb[0].mxu0 %v4212
    %v4428 = vpop.f32.mrb[0].mxu0
    %v4429 = vadd.f32 0.0, %v4428
    %v4430 = vpop.f32.mrb[0].mxu0
    %v4431 = vpop.f32.mrb[0].mxu0
    %v4432 = vadd.f32 0.0, %v4431
    %v4433 = vpop.f32.mrb[0].mxu0
    %4434 = vmatprep.mubr.bf16.mxu0 0
    %4435 = vmatmul.mubr.bf16.gmra.mrb[0].mxu0 %v4213
    %v4436 = vpop.f32.mrb[0].mxu0
    %v4437 = vadd.f32 0.0, %v4436
    %v4438 = vpop.f32.mrb[0].mxu0
    %v4439 = vpop.f32.mrb[0].mxu0
    %v4440 = vadd.f32 0.0, %v4439
    %v4441 = vpop.f32.mrb[0].mxu0
    %4442 = vmatprep.mubr.bf16.mxu0 0
    %4443 = vmatmul.mubr.bf16.gmra.mrb[0].mxu0 %v4214
    %v4444 = vpop.f32.mrb[0].mxu0
    %v4445 = vadd.f32 0.0, %v4444
    %v4446 = vpop.f32.mrb[0].mxu0
    %v4447 = vpop.f32.mrb[0].mxu0
    %v4448 = vadd.f32 0.0, %v4447
    %v4449 = vpop.f32.mrb[0].mxu0
    %4450 = vmatprep.mubr.bf16.mxu0 0
    %4451 = vmatmul.mubr.bf16.gmra.mrb[0].mxu0 %v4215
    %v4452 = vpop.f32.mrb[0].mxu0
    %v4453 = vadd.f32 0.0, %v4452
    %v4454 = vpop.f32.mrb[0].mxu0
    %v4455 = vpop.f32.mrb[0].mxu0
    %v4456 = vadd.f32 0.0, %v4455
    %v4457 = vpop.f32.mrb[0].mxu0
    %4458 = vmatprep.mubr.bf16.mxu0 0
    %4459 = vmatmul.mubr.bf16.gmra.mrb[0].mxu0 %v4216
    %v4460 = vpop.f32.mrb[0].mxu0
    %v4461 = vadd.f32 0.0, %v4460
    %v4462 = vpop.f32.mrb[0].mxu0
    %v4463 = vpop.f32.mrb[0].mxu0
    %v4464 = vadd.f32 0.0, %v4463
    %v4465 = vpop.f32.mrb[0].mxu0
    %4466 = vmatprep.mubr.bf16.mxu0 0
    %4467 = vmatmul.mubr.bf16.gmra.mrb[0].mxu0 %v4217
    %v4468 = vpop.f32.mrb[0].mxu0
    %v4469 = vadd.f32 0.0, %v4468
    %v4470 = vpop.f32.mrb[0].mxu0
    %v4471 = vpop.f32.mrb[0].mxu0
    %v4472 = vadd.f32 0.0, %v4471
    %v4473 = vpop.f32.mrb[0].mxu0
    %4474 = vmatprep.mubr.bf16.mxu0 0
    %4475 = vmatmul.mubr.bf16.gmra.mrb[0].mxu0 %v4218
    %v4476 = vpop.f32.mrb[0].mxu0
    %v4477 = vadd.f32 0.0, %v4476
    %v4478 = vpop.f32.mrb[0].mxu0
    %v4479 = vpop.f32.mrb[0].mxu0
    %v4480 = vadd.f32 0.0, %v4479
    %v4481 = vpop.f32.mrb[0].mxu0
    %4482 = vmatprep.mubr.bf16.mxu0 0
    %4483 = vmatmul.mubr.bf16.gmra.mrb[0].mxu0 %v4219
    %v4484 = vpop.f32.mrb[0].mxu0
    %v4485 = vadd.f32 0.0, %v4484
    %v4486 = vpop.f32.mrb[0].mxu0
    %v4487 = vpop.f32.mrb[0].mxu0
    %v4488 = vadd.f32 0.0, %v4487
    %v4489 = vpop.f32.mrb[0].mxu0
    %4490 = vmatprep.mubr.bf16.mxu0 0
    %4491 = vmatmul.mubr.bf16.gmra.mrb[0].mxu0 %v4220
    %v4492 = vpop.f32.mrb[0].mxu0
    %v4493 = vadd.f32 0.0, %v4492
    %v4494 = vpop.f32.mrb[0].mxu0
    %v4495 = vpop.f32.mrb[0].mxu0
    %v4496 = vadd.f32 0.0, %v4495
    %v4497 = vpop.f32.mrb[0].mxu0
    %4498 = vmatprep.mubr.bf16.mxu0 0
    %4499 = vmatmul.mubr.bf16.gmra.mrb[0].mxu0 %v4221
    %v4500 = vpop.f32.mrb[0].mxu0
    %v4501 = vadd.f32 0.0, %v4500
    %v4502 = vpop.f32.mrb[0].mxu0
    %v4503 = vpop.f32.mrb[0].mxu0
    %v4504 = vadd.f32 0.0, %v4503
    %v4505 = vpop.f32.mrb[0].mxu0
    %4506 = vmatprep.mubr.bf16.mxu0 0
    %4507 = vmatmul.mubr.bf16.gmra.mrb[0].mxu0 %v4222
    %v4508 = vpop.f32.mrb[0].mxu0
    %v4509 = vadd.f32 0.0, %v4508
    %v4510 = vpop.f32.mrb[0].mxu0
    %v4511 = vpop.f32.mrb[0].mxu0
    %v4512 = vadd.f32 0.0, %v4511
    %v4513 = vpop.f32.mrb[0].mxu0
    %4514 = vmatprep.mubr.bf16.mxu0 0
    %4515 = vmatmul.mubr.bf16.gmra.mrb[0].mxu0 %v4223
    %v4516 = vpop.f32.mrb[0].mxu0
    %v4517 = vadd.f32 0.0, %v4516
    %v4518 = vpop.f32.mrb[0].mxu0
    %v4519 = vpop.f32.mrb[0].mxu0
    %v4520 = vadd.f32 0.0, %v4519
    %v4521 = vpop.f32.mrb[0].mxu0
    %4522 = vmatprep.mubr.bf16.mxu0 0
    %4523 = vmatmul.mubr.bf16.gmra.mrb[0].mxu0 %v4224
    %v4524 = vpop.f32.mrb[0].mxu0
    %v4525 = vadd.f32 0.0, %v4524
    %v4526 = vpop.f32.mrb[0].mxu0
    %v4527 = vpop.f32.mrb[0].mxu0
    %v4528 = vadd.f32 0.0, %v4527
    %v4529 = vpop.f32.mrb[0].mxu0
    %4530 = vmatprep.mubr.bf16.mxu0 0
    %4531 = vmatmul.mubr.bf16.gmra.mrb[0].mxu0 %v4225
    %v4532 = vpop.f32.mrb[0].mxu0
    %v4533 = vadd.f32 0.0, %v4532
    %v4534 = vpop.f32.mrb[0].mxu0
    %v4535 = vpop.f32.mrb[0].mxu0
    %v4536 = vadd.f32 0.0, %v4535
    %v4537 = vpop.f32.mrb[0].mxu0
    %4538 = vmatprep.mubr.bf16.mxu0 0
    %4539 = vmatmul.mubr.bf16.gmra.mrb[0].mxu0 %v4226
    %v4540 = vpop.f32.mrb[0].mxu0
    %v4541 = vadd.f32 0.0, %v4540
    %v4542 = vpop.f32.mrb[0].mxu0
    %v4543 = vpop.f32.mrb[0].mxu0
    %v4544 = vadd.f32 0.0, %v4543
    %v4545 = vpop.f32.mrb[0].mxu0
    %4546 = vmatprep.mubr.bf16.mxu0 0
    %4547 = vmatmul.mubr.bf16.gmra.mrb[0].mxu0 %v4227
    %v4548 = vpop.f32.mrb[0].mxu0
    %v4549 = vadd.f32 0.0, %v4548
    %v4550 = vpop.f32.mrb[0].mxu0
    %v4551 = vpop.f32.mrb[0].mxu0
    %v4552 = vadd.f32 0.0, %v4551
    %v4553 = vpop.f32.mrb[0].mxu0
    %4554 = vmatprep.mubr.bf16.mxu0 0
    %4555 = vmatmul.mubr.bf16.gmra.mrb[0].mxu0 %v4228
    %v4556 = vpop.f32.mrb[0].mxu0
    %v4557 = vadd.f32 0.0, %v4556
    %v4558 = vpop.f32.mrb[0].mxu0
    %v4559 = vpop.f32.mrb[0].mxu0
    %v4560 = vadd.f32 0.0, %v4559
    %v4561 = vpop.f32.mrb[0].mxu0
    %4562 = vmatprep.mubr.bf16.mxu0 0
    %4563 = vmatmul.mubr.bf16.gmra.mrb[0].mxu0 %v4229
    %v4564 = vpop.f32.mrb[0].mxu0
    %v4565 = vadd.f32 0.0, %v4564
    %v4566 = vpop.f32.mrb[0].mxu0
    %v4567 = vpop.f32.mrb[0].mxu0
    %v4568 = vadd.f32 0.0, %v4567
    %v4569 = vpop.f32.mrb[0].mxu0
    %4570 = vmatprep.mubr.bf16.mxu0 0
    %4571 = vmatmul.mubr.bf16.gmra.mrb[0].mxu0 %v4230
    %v4572 = vpop.f32.mrb[0].mxu0
    %v4573 = vadd.f32 0.0, %v4572
    %v4574 = vpop.f32.mrb[0].mxu0
    %v4575 = vpop.f32.mrb[0].mxu0
    %v4576 = vadd.f32 0.0, %v4575
    %v4577 = vpop.f32.mrb[0].mxu0
    %4578 = vmatprep.mubr.bf16.mxu0 0
    %4579 = vmatmul.mubr.bf16.gmra.mrb[0].mxu0 %v4231
    %v4580 = vpop.f32.mrb[0].mxu0
    %v4581 = vadd.f32 0.0, %v4580
    %v4582 = vpop.f32.mrb[0].mxu0
    %v4583 = vpop.f32.mrb[0].mxu0
    %v4584 = vadd.f32 0.0, %v4583
    %v4585 = vpop.f32.mrb[0].mxu0
    %4586 = vmatprep.mubr.bf16.mxu0 0
    %4587 = vmatmul.mubr.bf16.gmra.mrb[0].mxu0 %v4232
    %v4588 = vpop.f32.mrb[0].mxu0
    %v4589 = vadd.f32 0.0, %v4588
    %v4590 = vpop.f32.mrb[0].mxu0
    %v4591 = vpop.f32.mrb[0].mxu0
    %v4592 = vadd.f32 0.0, %v4591
    %v4593 = vpop.f32.mrb[0].mxu0
    %4594 = vmatprep.mubr.bf16.mxu0 0
    %4595 = vmatmul.mubr.bf16.gmra.mrb[0].mxu0 %v4233
    %v4596 = vpop.f32.mrb[0].mxu0
    %v4597 = vadd.f32 0.0, %v4596
    %v4598 = vpop.f32.mrb[0].mxu0
    %v4599 = vpop.f32.mrb[0].mxu0
    %v4600 = vadd.f32 0.0, %v4599
    %v4601 = vpop.f32.mrb[0].mxu0
    %4602 = vdwg.mxu0
    %v4603 = vadd.f32 %v3929, %v4349
    %v4604 = vadd.f32 %v3930, %v4352
    %v4605 = vadd.f32 %v3931, %v4357
    %v4606 = vadd.f32 %v3932, %v4360
    %v4607 = vadd.f32 %v3933, %v4365
    %v4608 = vadd.f32 %v3934, %v4368
    %v4609 = vadd.f32 %v3935, %v4373
    %v4610 = vadd.f32 %v3936, %v4376
    %v4611 = vadd.f32 %v3937, %v4381
    %v4612 = vadd.f32 %v3938, %v4384
    %v4613 = vadd.f32 %v3939, %v4389
    %v4614 = vadd.f32 %v3940, %v4392
    %v4615 = vadd.f32 %v3941, %v4397
    %v4616 = vadd.f32 %v3942, %v4400
    %v4617 = vadd.f32 %v3943, %v4405
    %v4618 = vadd.f32 %v3944, %v4408
    %v4619 = vadd.f32 %v3945, %v4413
    %v4620 = vadd.f32 %v3946, %v4416
    %v4621 = vadd.f32 %v3947, %v4421
    %v4622 = vadd.f32 %v3948, %v4424
    %v4623 = vadd.f32 %v3949, %v4429
    %v4624 = vadd.f32 %v3950, %v4432
    %v4625 = vadd.f32 %v3951, %v4437
    %v4626 = vadd.f32 %v3952, %v4440
    %v4627 = vadd.f32 %v3953, %v4445
    %v4628 = vadd.f32 %v3954, %v4448
    %v4629 = vadd.f32 %v3955, %v4453
    %v4630 = vadd.f32 %v3956, %v4456
    %v4631 = vadd.f32 %v3957, %v4461
    %v4632 = vadd.f32 %v3958, %v4464
    %v4633 = vadd.f32 %v3959, %v4469
    %v4634 = vadd.f32 %v3960, %v4472
    %v4635 = vadd.f32 %v3961, %v4477
    %v4636 = vadd.f32 %v3962, %v4480
    %v4637 = vadd.f32 %v3963, %v4485
    %v4638 = vadd.f32 %v3964, %v4488
    %v4639 = vadd.f32 %v3965, %v4493
    %v4640 = vadd.f32 %v3966, %v4496
    %v4641 = vadd.f32 %v3967, %v4501
    %v4642 = vadd.f32 %v3968, %v4504
    %v4643 = vadd.f32 %v3969, %v4509
    %v4644 = vadd.f32 %v3970, %v4512
    %v4645 = vadd.f32 %v3971, %v4517
    %v4646 = vadd.f32 %v3972, %v4520
    %v4647 = vadd.f32 %v3973, %v4525
    %v4648 = vadd.f32 %v3974, %v4528
    %v4649 = vadd.f32 %v3975, %v4533
    %v4650 = vadd.f32 %v3976, %v4536
    %v4651 = vadd.f32 %v3977, %v4541
    %v4652 = vadd.f32 %v3978, %v4544
    %v4653 = vadd.f32 %v3979, %v4549
    %v4654 = vadd.f32 %v3980, %v4552
    %v4655 = vadd.f32 %v3981, %v4557
    %v4656 = vadd.f32 %v3982, %v4560
    %v4657 = vadd.f32 %v3983, %v4565
    %v4658 = vadd.f32 %v3984, %v4568
    %v4659 = vadd.f32 %v3985, %v4573
    %v4660 = vadd.f32 %v3986, %v4576
    %v4661 = vadd.f32 %v3987, %v4581
    %v4662 = vadd.f32 %v3988, %v4584
    %v4663 = vadd.f32 %v3989, %v4589
    %v4664 = vadd.f32 %v3990, %v4592
    %v4665 = vadd.f32 %v3991, %v4597
    %v4666 = vadd.f32 %v3992, %v4600
    %s4667 = scalar_lea.vmem [#allocation6], 256
    %v4668 = vld [vmem:[%s4667] sm:$0xf]
    %v4669 = vld [vmem:[%s4667 + $0x4] sm:$0xf]
    %v4670 = vld [vmem:[%s4667 + $0x8] sm:$0xf]
    %v4671 = vld [vmem:[%s4667 + $0xc] sm:$0xf]
    %v4672 = vld [vmem:[%s4667 + $0x10] sm:$0xf]
    %v4673 = vld [vmem:[%s4667 + $0x14] sm:$0xf]
    %v4674 = vld [vmem:[%s4667 + $0x18] sm:$0xf]
    %v4675 = vld [vmem:[%s4667 + $0x1c] sm:$0xf]
    %v4676 = vld [vmem:[%s4667 + $0x20] sm:$0xf]
    %v4677 = vld [vmem:[%s4667 + $0x24] sm:$0xf]
    %v4678 = vld [vmem:[%s4667 + $0x28] sm:$0xf]
    %v4679 = vld [vmem:[%s4667 + $0x2c] sm:$0xf]
    %v4680 = vld [vmem:[%s4667 + $0x30] sm:$0xf]
    %v4681 = vld [vmem:[%s4667 + $0x34] sm:$0xf]
    %v4682 = vld [vmem:[%s4667 + $0x38] sm:$0xf]
    %v4683 = vld [vmem:[%s4667 + $0x3c] sm:$0xf]
    %v4748 = vunpack.c.l.b16 %v63
    %v4749 = vunpack.c.l.b16 %v64
    %v4750 = vunpack.c.l.b16 %v65
    %v4751 = vunpack.c.l.b16 %v66
    %v4752 = vunpack.c.l.b16 %v67
    %v4753 = vunpack.c.l.b16 %v68
    %v4754 = vunpack.c.l.b16 %v69
    %v4755 = vunpack.c.l.b16 %v70
    %v4756 = vunpack.c.l.b16 %v71
    %v4757 = vunpack.c.l.b16 %v72
    %v4758 = vunpack.c.l.b16 %v73
    %v4759 = vunpack.c.l.b16 %v74
    %v4760 = vunpack.c.l.b16 %v75
    %v4761 = vunpack.c.l.b16 %v76
    %v4762 = vunpack.c.l.b16 %v77
    %v4763 = vunpack.c.l.b16 %v78
    %v4764 = vunpack.c.l.b16 %v79
    %v4765 = vunpack.c.l.b16 %v80
    %v4766 = vunpack.c.l.b16 %v81
    %v4767 = vunpack.c.l.b16 %v82
    %v4768 = vunpack.c.l.b16 %v83
    %v4769 = vunpack.c.l.b16 %v84
    %v4770 = vunpack.c.l.b16 %v85
    %v4771 = vunpack.c.l.b16 %v86
    %v4772 = vunpack.c.l.b16 %v87
    %v4773 = vunpack.c.l.b16 %v88
    %v4774 = vunpack.c.l.b16 %v89
    %v4775 = vunpack.c.l.b16 %v90
    %v4776 = vunpack.c.l.b16 %v91
    %v4777 = vunpack.c.l.b16 %v92
    %v4778 = vunpack.c.l.b16 %v93
    %v4779 = vunpack.c.l.b16 %v94
    %v4780 = vunpack.c.l.b16 %v95
    %v4781 = vunpack.c.l.b16 %v96
    %v4782 = vunpack.c.l.b16 %v97
    %v4783 = vunpack.c.l.b16 %v98
    %v4784 = vunpack.c.l.b16 %v99
    %v4785 = vunpack.c.l.b16 %v100
    %v4786 = vunpack.c.l.b16 %v101
    %v4787 = vunpack.c.l.b16 %v102
    %v4788 = vunpack.c.l.b16 %v103
    %v4789 = vunpack.c.l.b16 %v104
    %v4790 = vunpack.c.l.b16 %v105
    %v4791 = vunpack.c.l.b16 %v106
    %v4792 = vunpack.c.l.b16 %v107
    %v4793 = vunpack.c.l.b16 %v108
    %v4794 = vunpack.c.l.b16 %v109
    %v4795 = vunpack.c.l.b16 %v110
    %v4796 = vunpack.c.l.b16 %v111
    %v4797 = vunpack.c.l.b16 %v112
    %v4798 = vunpack.c.l.b16 %v113
    %v4799 = vunpack.c.l.b16 %v114
    %v4800 = vunpack.c.l.b16 %v115
    %v4801 = vunpack.c.l.b16 %v116
    %v4802 = vunpack.c.l.b16 %v117
    %v4803 = vunpack.c.l.b16 %v118
    %v4804 = vunpack.c.l.b16 %v119
    %v4805 = vunpack.c.l.b16 %v120
    %v4806 = vunpack.c.l.b16 %v121
    %v4807 = vunpack.c.l.b16 %v122
    %v4808 = vunpack.c.l.b16 %v123
    %v4809 = vunpack.c.l.b16 %v124
    %v4810 = vunpack.c.l.b16 %v125
    %v4811 = vunpack.c.l.b16 %v126
    %v4812 = vpack.c.b16 %v4749, %v4748
    %v4813 = vpack.c.b16 %v4751, %v4750
    %v4814 = vpack.c.b16 %v4753, %v4752
    %v4815 = vpack.c.b16 %v4755, %v4754
    %v4816 = vpack.c.b16 %v4757, %v4756
    %v4817 = vpack.c.b16 %v4759, %v4758
    %v4818 = vpack.c.b16 %v4761, %v4760
    %v4819 = vpack.c.b16 %v4763, %v4762
    %v4820 = vpack.c.b16 %v4765, %v4764
    %v4821 = vpack.c.b16 %v4767, %v4766
    %v4822 = vpack.c.b16 %v4769, %v4768
    %v4823 = vpack.c.b16 %v4771, %v4770
    %v4824 = vpack.c.b16 %v4773, %v4772
    %v4825 = vpack.c.b16 %v4775, %v4774
    %v4826 = vpack.c.b16 %v4777, %v4776
    %v4827 = vpack.c.b16 %v4779, %v4778
    %v4828 = vpack.c.b16 %v4781, %v4780
    %v4829 = vpack.c.b16 %v4783, %v4782
    %v4830 = vpack.c.b16 %v4785, %v4784
    %v4831 = vpack.c.b16 %v4787, %v4786
    %v4832 = vpack.c.b16 %v4789, %v4788
    %v4833 = vpack.c.b16 %v4791, %v4790
    %v4834 = vpack.c.b16 %v4793, %v4792
    %v4835 = vpack.c.b16 %v4795, %v4794
    %v4836 = vpack.c.b16 %v4797, %v4796
    %v4837 = vpack.c.b16 %v4799, %v4798
    %v4838 = vpack.c.b16 %v4801, %v4800
    %v4839 = vpack.c.b16 %v4803, %v4802
    %v4840 = vpack.c.b16 %v4805, %v4804
    %v4841 = vpack.c.b16 %v4807, %v4806
    %v4842 = vpack.c.b16 %v4809, %v4808
    %v4843 = vpack.c.b16 %v4811, %v4810
    %v4892 = vunpack.c.l.b16 %v4668
    %v4893 = vunpack.c.l.b16 %v4669
    %v4894 = vunpack.c.l.b16 %v4670
    %v4895 = vunpack.c.l.b16 %v4671
    %v4896 = vunpack.c.l.b16 %v4672
    %v4897 = vunpack.c.l.b16 %v4673
    %v4898 = vunpack.c.l.b16 %v4674
    %v4899 = vunpack.c.l.b16 %v4675
    %v4900 = vunpack.c.l.b16 %v4676
    %v4901 = vunpack.c.l.b16 %v4677
    %v4902 = vunpack.c.l.b16 %v4678
    %v4903 = vunpack.c.l.b16 %v4679
    %v4904 = vunpack.c.l.b16 %v4680
    %v4905 = vunpack.c.l.b16 %v4681
    %v4906 = vunpack.c.l.b16 %v4682
    %v4907 = vunpack.c.l.b16 %v4683
    %v4908 = vpack.c.b16 %v4893, %v4892
    %v4909 = vpack.c.b16 %v4895, %v4894
    %v4910 = vpack.c.b16 %v4897, %v4896
    %v4911 = vpack.c.b16 %v4899, %v4898
    %v4912 = vpack.c.b16 %v4901, %v4900
    %v4913 = vpack.c.b16 %v4903, %v4902
    %v4914 = vpack.c.b16 %v4905, %v4904
    %v4915 = vpack.c.b16 %v4907, %v4906
    %4924 = vmatprep.subr.bf16.mxu0 0
    %4925 = vmatpush1.bf16.msra.mxu0 %v4908
    %4926 = vmatprep.subr.bf16.mxu0 0
    %4927 = vmatpush1.bf16.msra.mxu0 %v4909
    %4928 = vmatprep.subr.bf16.mxu0 0
    %4929 = vmatpush1.bf16.msra.mxu0 %v4910
    %4930 = vmatprep.subr.bf16.mxu0 0
    %4931 = vmatpush1.bf16.msra.mxu0 %v4911
    %4932 = vmatprep.subr.bf16.mxu0 0
    %4933 = vmatpush1.bf16.msra.mxu0 %v4912
    %4934 = vmatprep.subr.bf16.mxu0 0
    %4935 = vmatpush1.bf16.msra.mxu0 %v4913
    %4936 = vmatprep.subr.bf16.mxu0 0
    %4937 = vmatpush1.bf16.msra.mxu0 %v4914
    %4938 = vmatprep.subr.bf16.mxu0 0
    %4939 = vmatpush1.bf16.msra.mxu0 %v4915
    %4940 = vmatprep.subr.bf16.mxu0 0
    %4941 = vmatpush1.bf16.msra.mxu0 0
    %4942 = vmatprep.subr.bf16.mxu0 0
    %4943 = vmatpush1.bf16.msra.mxu0 0
    %4944 = vmatprep.subr.bf16.mxu0 0
    %4945 = vmatpush1.bf16.msra.mxu0 0
    %4946 = vmatprep.subr.bf16.mxu0 0
    %4947 = vmatpush1.bf16.msra.mxu0 0
    %4948 = vmatprep.subr.bf16.mxu0 0
    %4949 = vmatpush1.bf16.msra.mxu0 0
    %4950 = vmatprep.subr.bf16.mxu0 0
    %4951 = vmatpush1.bf16.msra.mxu0 0
    %4952 = vmatprep.subr.bf16.mxu0 0
    %4953 = vmatpush1.bf16.msra.mxu0 0
    %4954 = vmatprep.subr.bf16.mxu0 0
    %4955 = vmatpush1.bf16.msra.mxu0 0
    %4956 = vmatprep.mubr.bf16.mxu0 0
    %4957 = vmatmul.mubr.bf16.gmra.mrb[0].mxu0 %v4812
    %v4958 = vpop.f32.mrb[0].mxu0
    %v4959 = vadd.f32 0.0, %v4958
    %v4960 = vpop.f32.mrb[0].mxu0
    %v4961 = vpop.f32.mrb[0].mxu0
    %v4962 = vadd.f32 0.0, %v4961
    %v4963 = vpop.f32.mrb[0].mxu0
    %4964 = vmatprep.mubr.bf16.mxu0 0
    %4965 = vmatmul.mubr.bf16.gmra.mrb[0].mxu0 %v4813
    %v4966 = vpop.f32.mrb[0].mxu0
    %v4967 = vadd.f32 0.0, %v4966
    %v4968 = vpop.f32.mrb[0].mxu0
    %v4969 = vpop.f32.mrb[0].mxu0
    %v4970 = vadd.f32 0.0, %v4969
    %v4971 = vpop.f32.mrb[0].mxu0
    %4972 = vmatprep.mubr.bf16.mxu0 0
    %4973 = vmatmul.mubr.bf16.gmra.mrb[0].mxu0 %v4814
    %v4974 = vpop.f32.mrb[0].mxu0
    %v4975 = vadd.f32 0.0, %v4974
    %v4976 = vpop.f32.mrb[0].mxu0
    %v4977 = vpop.f32.mrb[0].mxu0
    %v4978 = vadd.f32 0.0, %v4977
    %v4979 = vpop.f32.mrb[0].mxu0
    %4980 = vmatprep.mubr.bf16.mxu0 0
    %4981 = vmatmul.mubr.bf16.gmra.mrb[0].mxu0 %v4815
    %v4982 = vpop.f32.mrb[0].mxu0
    %v4983 = vadd.f32 0.0, %v4982
    %v4984 = vpop.f32.mrb[0].mxu0
    %v4985 = vpop.f32.mrb[0].mxu0
    %v4986 = vadd.f32 0.0, %v4985
    %v4987 = vpop.f32.mrb[0].mxu0
    %4988 = vmatprep.mubr.bf16.mxu0 0
    %4989 = vmatmul.mubr.bf16.gmra.mrb[0].mxu0 %v4816
    %v4990 = vpop.f32.mrb[0].mxu0
    %v4991 = vadd.f32 0.0, %v4990
    %v4992 = vpop.f32.mrb[0].mxu0
    %v4993 = vpop.f32.mrb[0].mxu0
    %v4994 = vadd.f32 0.0, %v4993
    %v4995 = vpop.f32.mrb[0].mxu0
    %4996 = vmatprep.mubr.bf16.mxu0 0
    %4997 = vmatmul.mubr.bf16.gmra.mrb[0].mxu0 %v4817
    %v4998 = vpop.f32.mrb[0].mxu0
    %v4999 = vadd.f32 0.0, %v4998
    %v5000 = vpop.f32.mrb[0].mxu0
    %v5001 = vpop.f32.mrb[0].mxu0
    %v5002 = vadd.f32 0.0, %v5001
    %v5003 = vpop.f32.mrb[0].mxu0
    %5004 = vmatprep.mubr.bf16.mxu0 0
    %5005 = vmatmul.mubr.bf16.gmra.mrb[0].mxu0 %v4818
    %v5006 = vpop.f32.mrb[0].mxu0
    %v5007 = vadd.f32 0.0, %v5006
    %v5008 = vpop.f32.mrb[0].mxu0
    %v5009 = vpop.f32.mrb[0].mxu0
    %v5010 = vadd.f32 0.0, %v5009
    %v5011 = vpop.f32.mrb[0].mxu0
    %5012 = vmatprep.mubr.bf16.mxu0 0
    %5013 = vmatmul.mubr.bf16.gmra.mrb[0].mxu0 %v4819
    %v5014 = vpop.f32.mrb[0].mxu0
    %v5015 = vadd.f32 0.0, %v5014
    %v5016 = vpop.f32.mrb[0].mxu0
    %v5017 = vpop.f32.mrb[0].mxu0
    %v5018 = vadd.f32 0.0, %v5017
    %v5019 = vpop.f32.mrb[0].mxu0
    %5020 = vmatprep.mubr.bf16.mxu0 0
    %5021 = vmatmul.mubr.bf16.gmra.mrb[0].mxu0 %v4820
    %v5022 = vpop.f32.mrb[0].mxu0
    %v5023 = vadd.f32 0.0, %v5022
    %v5024 = vpop.f32.mrb[0].mxu0
    %v5025 = vpop.f32.mrb[0].mxu0
    %v5026 = vadd.f32 0.0, %v5025
    %v5027 = vpop.f32.mrb[0].mxu0
    %5028 = vmatprep.mubr.bf16.mxu0 0
    %5029 = vmatmul.mubr.bf16.gmra.mrb[0].mxu0 %v4821
    %v5030 = vpop.f32.mrb[0].mxu0
    %v5031 = vadd.f32 0.0, %v5030
    %v5032 = vpop.f32.mrb[0].mxu0
    %v5033 = vpop.f32.mrb[0].mxu0
    %v5034 = vadd.f32 0.0, %v5033
    %v5035 = vpop.f32.mrb[0].mxu0
    %5036 = vmatprep.mubr.bf16.mxu0 0
    %5037 = vmatmul.mubr.bf16.gmra.mrb[0].mxu0 %v4822
    %v5038 = vpop.f32.mrb[0].mxu0
    %v5039 = vadd.f32 0.0, %v5038
    %v5040 = vpop.f32.mrb[0].mxu0
    %v5041 = vpop.f32.mrb[0].mxu0
    %v5042 = vadd.f32 0.0, %v5041
    %v5043 = vpop.f32.mrb[0].mxu0
    %5044 = vmatprep.mubr.bf16.mxu0 0
    %5045 = vmatmul.mubr.bf16.gmra.mrb[0].mxu0 %v4823
    %v5046 = vpop.f32.mrb[0].mxu0
    %v5047 = vadd.f32 0.0, %v5046
    %v5048 = vpop.f32.mrb[0].mxu0
    %v5049 = vpop.f32.mrb[0].mxu0
    %v5050 = vadd.f32 0.0, %v5049
    %v5051 = vpop.f32.mrb[0].mxu0
    %5052 = vmatprep.mubr.bf16.mxu0 0
    %5053 = vmatmul.mubr.bf16.gmra.mrb[0].mxu0 %v4824
    %v5054 = vpop.f32.mrb[0].mxu0
    %v5055 = vadd.f32 0.0, %v5054
    %v5056 = vpop.f32.mrb[0].mxu0
    %v5057 = vpop.f32.mrb[0].mxu0
    %v5058 = vadd.f32 0.0, %v5057
    %v5059 = vpop.f32.mrb[0].mxu0
    %5060 = vmatprep.mubr.bf16.mxu0 0
    %5061 = vmatmul.mubr.bf16.gmra.mrb[0].mxu0 %v4825
    %v5062 = vpop.f32.mrb[0].mxu0
    %v5063 = vadd.f32 0.0, %v5062
    %v5064 = vpop.f32.mrb[0].mxu0
    %v5065 = vpop.f32.mrb[0].mxu0
    %v5066 = vadd.f32 0.0, %v5065
    %v5067 = vpop.f32.mrb[0].mxu0
    %5068 = vmatprep.mubr.bf16.mxu0 0
    %5069 = vmatmul.mubr.bf16.gmra.mrb[0].mxu0 %v4826
    %v5070 = vpop.f32.mrb[0].mxu0
    %v5071 = vadd.f32 0.0, %v5070
    %v5072 = vpop.f32.mrb[0].mxu0
    %v5073 = vpop.f32.mrb[0].mxu0
    %v5074 = vadd.f32 0.0, %v5073
    %v5075 = vpop.f32.mrb[0].mxu0
    %5076 = vmatprep.mubr.bf16.mxu0 0
    %5077 = vmatmul.mubr.bf16.gmra.mrb[0].mxu0 %v4827
    %v5078 = vpop.f32.mrb[0].mxu0
    %v5079 = vadd.f32 0.0, %v5078
    %v5080 = vpop.f32.mrb[0].mxu0
    %v5081 = vpop.f32.mrb[0].mxu0
    %v5082 = vadd.f32 0.0, %v5081
    %v5083 = vpop.f32.mrb[0].mxu0
    %5084 = vmatprep.mubr.bf16.mxu0 0
    %5085 = vmatmul.mubr.bf16.gmra.mrb[0].mxu0 %v4828
    %v5086 = vpop.f32.mrb[0].mxu0
    %v5087 = vadd.f32 0.0, %v5086
    %v5088 = vpop.f32.mrb[0].mxu0
    %v5089 = vpop.f32.mrb[0].mxu0
    %v5090 = vadd.f32 0.0, %v5089
    %v5091 = vpop.f32.mrb[0].mxu0
    %5092 = vmatprep.mubr.bf16.mxu0 0
    %5093 = vmatmul.mubr.bf16.gmra.mrb[0].mxu0 %v4829
    %v5094 = vpop.f32.mrb[0].mxu0
    %v5095 = vadd.f32 0.0, %v5094
    %v5096 = vpop.f32.mrb[0].mxu0
    %v5097 = vpop.f32.mrb[0].mxu0
    %v5098 = vadd.f32 0.0, %v5097
    %v5099 = vpop.f32.mrb[0].mxu0
    %5100 = vmatprep.mubr.bf16.mxu0 0
    %5101 = vmatmul.mubr.bf16.gmra.mrb[0].mxu0 %v4830
    %v5102 = vpop.f32.mrb[0].mxu0
    %v5103 = vadd.f32 0.0, %v5102
    %v5104 = vpop.f32.mrb[0].mxu0
    %v5105 = vpop.f32.mrb[0].mxu0
    %v5106 = vadd.f32 0.0, %v5105
    %v5107 = vpop.f32.mrb[0].mxu0
    %5108 = vmatprep.mubr.bf16.mxu0 0
    %5109 = vmatmul.mubr.bf16.gmra.mrb[0].mxu0 %v4831
    %v5110 = vpop.f32.mrb[0].mxu0
    %v5111 = vadd.f32 0.0, %v5110
    %v5112 = vpop.f32.mrb[0].mxu0
    %v5113 = vpop.f32.mrb[0].mxu0
    %v5114 = vadd.f32 0.0, %v5113
    %v5115 = vpop.f32.mrb[0].mxu0
    %5116 = vmatprep.mubr.bf16.mxu0 0
    %5117 = vmatmul.mubr.bf16.gmra.mrb[0].mxu0 %v4832
    %v5118 = vpop.f32.mrb[0].mxu0
    %v5119 = vadd.f32 0.0, %v5118
    %v5120 = vpop.f32.mrb[0].mxu0
    %v5121 = vpop.f32.mrb[0].mxu0
    %v5122 = vadd.f32 0.0, %v5121
    %v5123 = vpop.f32.mrb[0].mxu0
    %5124 = vmatprep.mubr.bf16.mxu0 0
    %5125 = vmatmul.mubr.bf16.gmra.mrb[0].mxu0 %v4833
    %v5126 = vpop.f32.mrb[0].mxu0
    %v5127 = vadd.f32 0.0, %v5126
    %v5128 = vpop.f32.mrb[0].mxu0
    %v5129 = vpop.f32.mrb[0].mxu0
    %v5130 = vadd.f32 0.0, %v5129
    %v5131 = vpop.f32.mrb[0].mxu0
    %5132 = vmatprep.mubr.bf16.mxu0 0
    %5133 = vmatmul.mubr.bf16.gmra.mrb[0].mxu0 %v4834
    %v5134 = vpop.f32.mrb[0].mxu0
    %v5135 = vadd.f32 0.0, %v5134
    %v5136 = vpop.f32.mrb[0].mxu0
    %v5137 = vpop.f32.mrb[0].mxu0
    %v5138 = vadd.f32 0.0, %v5137
    %v5139 = vpop.f32.mrb[0].mxu0
    %5140 = vmatprep.mubr.bf16.mxu0 0
    %5141 = vmatmul.mubr.bf16.gmra.mrb[0].mxu0 %v4835
    %v5142 = vpop.f32.mrb[0].mxu0
    %v5143 = vadd.f32 0.0, %v5142
    %v5144 = vpop.f32.mrb[0].mxu0
    %v5145 = vpop.f32.mrb[0].mxu0
    %v5146 = vadd.f32 0.0, %v5145
    %v5147 = vpop.f32.mrb[0].mxu0
    %5148 = vmatprep.mubr.bf16.mxu0 0
    %5149 = vmatmul.mubr.bf16.gmra.mrb[0].mxu0 %v4836
    %v5150 = vpop.f32.mrb[0].mxu0
    %v5151 = vadd.f32 0.0, %v5150
    %v5152 = vpop.f32.mrb[0].mxu0
    %v5153 = vpop.f32.mrb[0].mxu0
    %v5154 = vadd.f32 0.0, %v5153
    %v5155 = vpop.f32.mrb[0].mxu0
    %5156 = vmatprep.mubr.bf16.mxu0 0
    %5157 = vmatmul.mubr.bf16.gmra.mrb[0].mxu0 %v4837
    %v5158 = vpop.f32.mrb[0].mxu0
    %v5159 = vadd.f32 0.0, %v5158
    %v5160 = vpop.f32.mrb[0].mxu0
    %v5161 = vpop.f32.mrb[0].mxu0
    %v5162 = vadd.f32 0.0, %v5161
    %v5163 = vpop.f32.mrb[0].mxu0
    %5164 = vmatprep.mubr.bf16.mxu0 0
    %5165 = vmatmul.mubr.bf16.gmra.mrb[0].mxu0 %v4838
    %v5166 = vpop.f32.mrb[0].mxu0
    %v5167 = vadd.f32 0.0, %v5166
    %v5168 = vpop.f32.mrb[0].mxu0
    %v5169 = vpop.f32.mrb[0].mxu0
    %v5170 = vadd.f32 0.0, %v5169
    %v5171 = vpop.f32.mrb[0].mxu0
    %5172 = vmatprep.mubr.bf16.mxu0 0
    %5173 = vmatmul.mubr.bf16.gmra.mrb[0].mxu0 %v4839
    %v5174 = vpop.f32.mrb[0].mxu0
    %v5175 = vadd.f32 0.0, %v5174
    %v5176 = vpop.f32.mrb[0].mxu0
    %v5177 = vpop.f32.mrb[0].mxu0
    %v5178 = vadd.f32 0.0, %v5177
    %v5179 = vpop.f32.mrb[0].mxu0
    %5180 = vmatprep.mubr.bf16.mxu0 0
    %5181 = vmatmul.mubr.bf16.gmra.mrb[0].mxu0 %v4840
    %v5182 = vpop.f32.mrb[0].mxu0
    %v5183 = vadd.f32 0.0, %v5182
    %v5184 = vpop.f32.mrb[0].mxu0
    %v5185 = vpop.f32.mrb[0].mxu0
    %v5186 = vadd.f32 0.0, %v5185
    %v5187 = vpop.f32.mrb[0].mxu0
    %5188 = vmatprep.mubr.bf16.mxu0 0
    %5189 = vmatmul.mubr.bf16.gmra.mrb[0].mxu0 %v4841
    %v5190 = vpop.f32.mrb[0].mxu0
    %v5191 = vadd.f32 0.0, %v5190
    %v5192 = vpop.f32.mrb[0].mxu0
    %v5193 = vpop.f32.mrb[0].mxu0
    %v5194 = vadd.f32 0.0, %v5193
    %v5195 = vpop.f32.mrb[0].mxu0
    %5196 = vmatprep.mubr.bf16.mxu0 0
    %5197 = vmatmul.mubr.bf16.gmra.mrb[0].mxu0 %v4842
    %v5198 = vpop.f32.mrb[0].mxu0
    %v5199 = vadd.f32 0.0, %v5198
    %v5200 = vpop.f32.mrb[0].mxu0
    %v5201 = vpop.f32.mrb[0].mxu0
    %v5202 = vadd.f32 0.0, %v5201
    %v5203 = vpop.f32.mrb[0].mxu0
    %5204 = vmatprep.mubr.bf16.mxu0 0
    %5205 = vmatmul.mubr.bf16.gmra.mrb[0].mxu0 %v4843
    %v5206 = vpop.f32.mrb[0].mxu0
    %v5207 = vadd.f32 0.0, %v5206
    %v5208 = vpop.f32.mrb[0].mxu0
    %v5209 = vpop.f32.mrb[0].mxu0
    %v5210 = vadd.f32 0.0, %v5209
    %v5211 = vpop.f32.mrb[0].mxu0
    %5212 = vdwg.mxu0
    %v5213 = vadd.f32 %v4603, %v4959
    %v5214 = vadd.f32 %v4604, %v4962
    %v5215 = vadd.f32 %v4605, %v4967
    %v5216 = vadd.f32 %v4606, %v4970
    %v5217 = vadd.f32 %v4607, %v4975
    %v5218 = vadd.f32 %v4608, %v4978
    %v5219 = vadd.f32 %v4609, %v4983
    %v5220 = vadd.f32 %v4610, %v4986
    %v5221 = vadd.f32 %v4611, %v4991
    %v5222 = vadd.f32 %v4612, %v4994
    %v5223 = vadd.f32 %v4613, %v4999
    %v5224 = vadd.f32 %v4614, %v5002
    %v5225 = vadd.f32 %v4615, %v5007
    %v5226 = vadd.f32 %v4616, %v5010
    %v5227 = vadd.f32 %v4617, %v5015
    %v5228 = vadd.f32 %v4618, %v5018
    %v5229 = vadd.f32 %v4619, %v5023
    %v5230 = vadd.f32 %v4620, %v5026
    %v5231 = vadd.f32 %v4621, %v5031
    %v5232 = vadd.f32 %v4622, %v5034
    %v5233 = vadd.f32 %v4623, %v5039
    %v5234 = vadd.f32 %v4624, %v5042
    %v5235 = vadd.f32 %v4625, %v5047
    %v5236 = vadd.f32 %v4626, %v5050
    %v5237 = vadd.f32 %v4627, %v5055
    %v5238 = vadd.f32 %v4628, %v5058
    %v5239 = vadd.f32 %v4629, %v5063
    %v5240 = vadd.f32 %v4630, %v5066
    %v5241 = vadd.f32 %v4631, %v5071
    %v5242 = vadd.f32 %v4632, %v5074
    %v5243 = vadd.f32 %v4633, %v5079
    %v5244 = vadd.f32 %v4634, %v5082
    %v5245 = vadd.f32 %v4635, %v5087
    %v5246 = vadd.f32 %v4636, %v5090
    %v5247 = vadd.f32 %v4637, %v5095
    %v5248 = vadd.f32 %v4638, %v5098
    %v5249 = vadd.f32 %v4639, %v5103
    %v5250 = vadd.f32 %v4640, %v5106
    %v5251 = vadd.f32 %v4641, %v5111
    %v5252 = vadd.f32 %v4642, %v5114
    %v5253 = vadd.f32 %v4643, %v5119
    %v5254 = vadd.f32 %v4644, %v5122
    %v5255 = vadd.f32 %v4645, %v5127
    %v5256 = vadd.f32 %v4646, %v5130
    %v5257 = vadd.f32 %v4647, %v5135
    %v5258 = vadd.f32 %v4648, %v5138
    %v5259 = vadd.f32 %v4649, %v5143
    %v5260 = vadd.f32 %v4650, %v5146
    %v5261 = vadd.f32 %v4651, %v5151
    %v5262 = vadd.f32 %v4652, %v5154
    %v5263 = vadd.f32 %v4653, %v5159
    %v5264 = vadd.f32 %v4654, %v5162
    %v5265 = vadd.f32 %v4655, %v5167
    %v5266 = vadd.f32 %v4656, %v5170
    %v5267 = vadd.f32 %v4657, %v5175
    %v5268 = vadd.f32 %v4658, %v5178
    %v5269 = vadd.f32 %v4659, %v5183
    %v5270 = vadd.f32 %v4660, %v5186
    %v5271 = vadd.f32 %v4661, %v5191
    %v5272 = vadd.f32 %v4662, %v5194
    %v5273 = vadd.f32 %v4663, %v5199
    %v5274 = vadd.f32 %v4664, %v5202
    %v5275 = vadd.f32 %v4665, %v5207
    %v5276 = vadd.f32 %v4666, %v5210
    %v5277 = vld [vmem:[%s1003] sm:$0xe]
    %v5278 = vld [vmem:[%s1003 + $0x4] sm:$0xf]
    %v5279 = vld [vmem:[%s1003 + $0x8] sm:$0x1]
    %v5280 = vld [vmem:[%s1003 + $0xc] sm:$0xe]
    %v5281 = vld [vmem:[%s1003 + $0x10] sm:$0xf]
    %v5282 = vld [vmem:[%s1003 + $0x14] sm:$0x1]
    %v5283 = vld [vmem:[%s1003 + $0x18] sm:$0xe]
    %v5284 = vld [vmem:[%s1003 + $0x1c] sm:$0xf]
    %v5285 = vld [vmem:[%s1003 + $0x20] sm:$0x1]
    %v5286 = vld [vmem:[%s1003 + $0x24] sm:$0xe]
    %v5287 = vld [vmem:[%s1003 + $0x28] sm:$0xf]
    %v5288 = vld [vmem:[%s1003 + $0x2c] sm:$0x1]
    %v5289 = vld [vmem:[%s1003 + $0x30] sm:$0xe]
    %v5290 = vld [vmem:[%s1003 + $0x34] sm:$0xf]
    %v5291 = vld [vmem:[%s1003 + $0x38] sm:$0x1]
    %v5292 = vld [vmem:[%s1003 + $0x3c] sm:$0xe]
    %v5293 = vld [vmem:[%s1003 + $0x40] sm:$0xf]
    %v5294 = vld [vmem:[%s1003 + $0x44] sm:$0x1]
    %v5295 = vld [vmem:[%s1003 + $0x48] sm:$0xe]
    %v5296 = vld [vmem:[%s1003 + $0x4c] sm:$0xf]
    %v5297 = vld [vmem:[%s1003 + $0x50] sm:$0x1]
    %v5298 = vld [vmem:[%s1003 + $0x54] sm:$0xe]
    %v5299 = vld [vmem:[%s1003 + $0x58] sm:$0xf]
    %v5300 = vld [vmem:[%s1003 + $0x5c] sm:$0x1]
    %v5301 = vld [vmem:[%s1003 + $0x60] sm:$0xe]
    %v5302 = vld [vmem:[%s1003 + $0x64] sm:$0xf]
    %v5303 = vld [vmem:[%s1003 + $0x68] sm:$0x1]
    %v5304 = vld [vmem:[%s1003 + $0x6c] sm:$0xe]
    %v5305 = vld [vmem:[%s1003 + $0x70] sm:$0xf]
    %v5306 = vld [vmem:[%s1003 + $0x74] sm:$0x1]
    %v5307 = vld [vmem:[%s1003 + $0x78] sm:$0xe]
    %v5308 = vld [vmem:[%s1003 + $0x7c] sm:$0xf]
    %v5309 = vld [vmem:[%s1003 + $0x80] sm:$0x1]
    %v5310 = vld [vmem:[%s1003 + $0x84] sm:$0xe]
    %v5311 = vld [vmem:[%s1003 + $0x88] sm:$0xf]
    %v5312 = vld [vmem:[%s1003 + $0x8c] sm:$0x1]
    %v5313 = vld [vmem:[%s1003 + $0x90] sm:$0xe]
    %v5314 = vld [vmem:[%s1003 + $0x94] sm:$0xf]
    %v5315 = vld [vmem:[%s1003 + $0x98] sm:$0x1]
    %v5316 = vld [vmem:[%s1003 + $0x9c] sm:$0xe]
    %v5317 = vld [vmem:[%s1003 + $0xa0] sm:$0xf]
    %v5318 = vld [vmem:[%s1003 + $0xa4] sm:$0x1]
    %v5319 = vld [vmem:[%s1003 + $0xa8] sm:$0xe]
    %v5320 = vld [vmem:[%s1003 + $0xac] sm:$0xf]
    %v5321 = vld [vmem:[%s1003 + $0xb0] sm:$0x1]
    %v5322 = vld [vmem:[%s1003 + $0xb4] sm:$0xe]
    %v5323 = vld [vmem:[%s1003 + $0xb8] sm:$0xf]
    %v5324 = vld [vmem:[%s1003 + $0xbc] sm:$0x1]
    %v5325 = vld [vmem:[%s1003 + $0xd8] sm:$0xe]
    %v5326 = vld [vmem:[%s1003 + $0xdc] sm:$0xf]
    %v5327 = vld [vmem:[%s1003 + $0xe0] sm:$0x1]
    %v5328 = vld [vmem:[%s1003 + $0xe4] sm:$0xe]
    %v5329 = vld [vmem:[%s1003 + $0xe8] sm:$0xf]
    %v5330 = vld [vmem:[%s1003 + $0xec] sm:$0x1]
    %v5331 = vld [vmem:[%s1003 + $0xf0] sm:$0xe]
    %v5332 = vld [vmem:[%s1003 + $0xf4] sm:$0xf]
    %v5333 = vld [vmem:[%s1003 + $0xf8] sm:$0x1]
    %v5334 = vld [vmem:[%s1003 + $0xfc] sm:$0xe]
    %v5335 = vld [vmem:[%s1003 + $0x100] sm:$0xf]
    %v5336 = vld [vmem:[%s1003 + $0x104] sm:$0x1]
    %v5337 = vld [vmem:[%s1003 + $0x108] sm:$0xe]
    %v5338 = vld [vmem:[%s1003 + $0x10c] sm:$0xf]
    %v5339 = vld [vmem:[%s1003 + $0x110] sm:$0x1]
    %v5340 = vld [vmem:[%s1003 + $0x114] sm:$0xe]
    %v5341 = vld [vmem:[%s1003 + $0x118] sm:$0xf]
    %v5342 = vld [vmem:[%s1003 + $0x11c] sm:$0x1]
    %v5343 = vld [vmem:[%s1003 + $0x120] sm:$0xe]
    %v5344 = vld [vmem:[%s1003 + $0x124] sm:$0xf]
    %v5345 = vld [vmem:[%s1003 + $0x128] sm:$0x1]
    %v5346 = vld [vmem:[%s1003 + $0x12c] sm:$0xe]
    %v5347 = vld [vmem:[%s1003 + $0x130] sm:$0xf]
    %v5348 = vld [vmem:[%s1003 + $0x134] sm:$0x1]
    %v5349 = vld [vmem:[%s1003 + $0x138] sm:$0xe]
    %v5350 = vld [vmem:[%s1003 + $0x13c] sm:$0xf]
    %v5351 = vld [vmem:[%s1003 + $0x140] sm:$0x1]
    %v5352 = vld [vmem:[%s1003 + $0x144] sm:$0xe]
    %v5353 = vld [vmem:[%s1003 + $0x148] sm:$0xf]
    %v5354 = vld [vmem:[%s1003 + $0x14c] sm:$0x1]
    %v5355 = vld [vmem:[%s1003 + $0x150] sm:$0xe]
    %v5356 = vld [vmem:[%s1003 + $0x154] sm:$0xf]
    %v5357 = vld [vmem:[%s1003 + $0x158] sm:$0x1]
    %v5358 = vld [vmem:[%s1003 + $0x15c] sm:$0xe]
    %v5359 = vld [vmem:[%s1003 + $0x160] sm:$0xf]
    %v5360 = vld [vmem:[%s1003 + $0x164] sm:$0x1]
    %v5361 = vld [vmem:[%s1003 + $0x168] sm:$0xe]
    %v5362 = vld [vmem:[%s1003 + $0x16c] sm:$0xf]
    %v5363 = vld [vmem:[%s1003 + $0x170] sm:$0x1]
    %v5364 = vld [vmem:[%s1003 + $0x174] sm:$0xe]
    %v5365 = vld [vmem:[%s1003 + $0x178] sm:$0xf]
    %v5366 = vld [vmem:[%s1003 + $0x17c] sm:$0x1]
    %v5367 = vld [vmem:[%s1003 + $0x180] sm:$0xe]
    %v5368 = vld [vmem:[%s1003 + $0x184] sm:$0xf]
    %v5369 = vld [vmem:[%s1003 + $0x188] sm:$0x1]
    %v5370 = vld [vmem:[%s1003 + $0x18c] sm:$0xe]
    %v5371 = vld [vmem:[%s1003 + $0x190] sm:$0xf]
    %v5372 = vld [vmem:[%s1003 + $0x194] sm:$0x1]
    %v5469 = vrot.slane %v5277, 5
    %v5470 = vrot.slane %v5469, 4
    %v5471 = vrot.slane %v5278, 5
    %v5472 = vsel %vm3222, %v5470, %v5471
    %v5473 = vrot.slane %v5471, 4
    %v5474 = vrot.slane %v5279, 5
    %v5475 = vsel %vm3222, %v5473, %v5474
    %v5476 = vrot.slane %v5280, 5
    %v5477 = vrot.slane %v5476, 4
    %v5478 = vrot.slane %v5281, 5
    %v5479 = vsel %vm3222, %v5477, %v5478
    %v5480 = vrot.slane %v5478, 4
    %v5481 = vrot.slane %v5282, 5
    %v5482 = vsel %vm3222, %v5480, %v5481
    %v5483 = vrot.slane %v5283, 5
    %v5484 = vrot.slane %v5483, 4
    %v5485 = vrot.slane %v5284, 5
    %v5486 = vsel %vm3222, %v5484, %v5485
    %v5487 = vrot.slane %v5485, 4
    %v5488 = vrot.slane %v5285, 5
    %v5489 = vsel %vm3222, %v5487, %v5488
    %v5490 = vrot.slane %v5286, 5
    %v5491 = vrot.slane %v5490, 4
    %v5492 = vrot.slane %v5287, 5
    %v5493 = vsel %vm3222, %v5491, %v5492
    %v5494 = vrot.slane %v5492, 4
    %v5495 = vrot.slane %v5288, 5
    %v5496 = vsel %vm3222, %v5494, %v5495
    %v5497 = vrot.slane %v5289, 5
    %v5498 = vrot.slane %v5497, 4
    %v5499 = vrot.slane %v5290, 5
    %v5500 = vsel %vm3222, %v5498, %v5499
    %v5501 = vrot.slane %v5499, 4
    %v5502 = vrot.slane %v5291, 5
    %v5503 = vsel %vm3222, %v5501, %v5502
    %v5504 = vrot.slane %v5292, 5
    %v5505 = vrot.slane %v5504, 4
    %v5506 = vrot.slane %v5293, 5
    %v5507 = vsel %vm3222, %v5505, %v5506
    %v5508 = vrot.slane %v5506, 4
    %v5509 = vrot.slane %v5294, 5
    %v5510 = vsel %vm3222, %v5508, %v5509
    %v5511 = vrot.slane %v5295, 5
    %v5512 = vrot.slane %v5511, 4
    %v5513 = vrot.slane %v5296, 5
    %v5514 = vsel %vm3222, %v5512, %v5513
    %v5515 = vrot.slane %v5513, 4
    %v5516 = vrot.slane %v5297, 5
    %v5517 = vsel %vm3222, %v5515, %v5516
    %v5518 = vrot.slane %v5298, 5
    %v5519 = vrot.slane %v5518, 4
    %v5520 = vrot.slane %v5299, 5
    %v5521 = vsel %vm3222, %v5519, %v5520
    %v5522 = vrot.slane %v5520, 4
    %v5523 = vrot.slane %v5300, 5
    %v5524 = vsel %vm3222, %v5522, %v5523
    %v5525 = vrot.slane %v5301, 5
    %v5526 = vrot.slane %v5525, 4
    %v5527 = vrot.slane %v5302, 5
    %v5528 = vsel %vm3222, %v5526, %v5527
    %v5529 = vrot.slane %v5527, 4
    %v5530 = vrot.slane %v5303, 5
    %v5531 = vsel %vm3222, %v5529, %v5530
    %v5532 = vrot.slane %v5304, 5
    %v5533 = vrot.slane %v5532, 4
    %v5534 = vrot.slane %v5305, 5
    %v5535 = vsel %vm3222, %v5533, %v5534
    %v5536 = vrot.slane %v5534, 4
    %v5537 = vrot.slane %v5306, 5
    %v5538 = vsel %vm3222, %v5536, %v5537
    %v5539 = vrot.slane %v5307, 5
    %v5540 = vrot.slane %v5539, 4
    %v5541 = vrot.slane %v5308, 5
    %v5542 = vsel %vm3222, %v5540, %v5541
    %v5543 = vrot.slane %v5541, 4
    %v5544 = vrot.slane %v5309, 5
    %v5545 = vsel %vm3222, %v5543, %v5544
    %v5546 = vrot.slane %v5310, 5
    %v5547 = vrot.slane %v5546, 4
    %v5548 = vrot.slane %v5311, 5
    %v5549 = vsel %vm3222, %v5547, %v5548
    %v5550 = vrot.slane %v5548, 4
    %v5551 = vrot.slane %v5312, 5
    %v5552 = vsel %vm3222, %v5550, %v5551
    %v5553 = vrot.slane %v5313, 5
    %v5554 = vrot.slane %v5553, 4
    %v5555 = vrot.slane %v5314, 5
    %v5556 = vsel %vm3222, %v5554, %v5555
    %v5557 = vrot.slane %v5555, 4
    %v5558 = vrot.slane %v5315, 5
    %v5559 = vsel %vm3222, %v5557, %v5558
    %v5560 = vrot.slane %v5316, 5
    %v5561 = vrot.slane %v5560, 4
    %v5562 = vrot.slane %v5317, 5
    %v5563 = vsel %vm3222, %v5561, %v5562
    %v5564 = vrot.slane %v5562, 4
    %v5565 = vrot.slane %v5318, 5
    %v5566 = vsel %vm3222, %v5564, %v5565
    %v5567 = vrot.slane %v5319, 5
    %v5568 = vrot.slane %v5567, 4
    %v5569 = vrot.slane %v5320, 5
    %v5570 = vsel %vm3222, %v5568, %v5569
    %v5571 = vrot.slane %v5569, 4
    %v5572 = vrot.slane %v5321, 5
    %v5573 = vsel %vm3222, %v5571, %v5572
    %v5574 = vrot.slane %v5322, 5
    %v5575 = vrot.slane %v5574, 4
    %v5576 = vrot.slane %v5323, 5
    %v5577 = vsel %vm3222, %v5575, %v5576
    %v5578 = vrot.slane %v5576, 4
    %v5579 = vrot.slane %v5324, 5
    %v5580 = vsel %vm3222, %v5578, %v5579
    %v5581 = vrot.slane %v5325, 5
    %v5582 = vrot.slane %v5581, 4
    %v5583 = vrot.slane %v5326, 5
    %v5584 = vsel %vm3222, %v5582, %v5583
    %v5585 = vrot.slane %v5583, 4
    %v5586 = vrot.slane %v5327, 5
    %v5587 = vsel %vm3222, %v5585, %v5586
    %v5588 = vrot.slane %v5328, 5
    %v5589 = vrot.slane %v5588, 4
    %v5590 = vrot.slane %v5329, 5
    %v5591 = vsel %vm3222, %v5589, %v5590
    %v5592 = vrot.slane %v5590, 4
    %v5593 = vrot.slane %v5330, 5
    %v5594 = vsel %vm3222, %v5592, %v5593
    %v5595 = vrot.slane %v5331, 5
    %v5596 = vrot.slane %v5595, 4
    %v5597 = vrot.slane %v5332, 5
    %v5598 = vsel %vm3222, %v5596, %v5597
    %v5599 = vrot.slane %v5597, 4
    %v5600 = vrot.slane %v5333, 5
    %v5601 = vsel %vm3222, %v5599, %v5600
    %v5602 = vrot.slane %v5334, 5
    %v5603 = vrot.slane %v5602, 4
    %v5604 = vrot.slane %v5335, 5
    %v5605 = vsel %vm3222, %v5603, %v5604
    %v5606 = vrot.slane %v5604, 4
    %v5607 = vrot.slane %v5336, 5
    %v5608 = vsel %vm3222, %v5606, %v5607
    %v5609 = vrot.slane %v5337, 5
    %v5610 = vrot.slane %v5609, 4
    %v5611 = vrot.slane %v5338, 5
    %v5612 = vsel %vm3222, %v5610, %v5611
    %v5613 = vrot.slane %v5611, 4
    %v5614 = vrot.slane %v5339, 5
    %v5615 = vsel %vm3222, %v5613, %v5614
    %v5616 = vrot.slane %v5340, 5
    %v5617 = vrot.slane %v5616, 4
    %v5618 = vrot.slane %v5341, 5
    %v5619 = vsel %vm3222, %v5617, %v5618
    %v5620 = vrot.slane %v5618, 4
    %v5621 = vrot.slane %v5342, 5
    %v5622 = vsel %vm3222, %v5620, %v5621
    %v5623 = vrot.slane %v5343, 5
    %v5624 = vrot.slane %v5623, 4
    %v5625 = vrot.slane %v5344, 5
    %v5626 = vsel %vm3222, %v5624, %v5625
    %v5627 = vrot.slane %v5625, 4
    %v5628 = vrot.slane %v5345, 5
    %v5629 = vsel %vm3222, %v5627, %v5628
    %v5630 = vrot.slane %v5346, 5
    %v5631 = vrot.slane %v5630, 4
    %v5632 = vrot.slane %v5347, 5
    %v5633 = vsel %vm3222, %v5631, %v5632
    %v5634 = vrot.slane %v5632, 4
    %v5635 = vrot.slane %v5348, 5
    %v5636 = vsel %vm3222, %v5634, %v5635
    %v5637 = vrot.slane %v5349, 5
    %v5638 = vrot.slane %v5637, 4
    %v5639 = vrot.slane %v5350, 5
    %v5640 = vsel %vm3222, %v5638, %v5639
    %v5641 = vrot.slane %v5639, 4
    %v5642 = vrot.slane %v5351, 5
    %v5643 = vsel %vm3222, %v5641, %v5642
    %v5644 = vrot.slane %v5352, 5
    %v5645 = vrot.slane %v5644, 4
    %v5646 = vrot.slane %v5353, 5
    %v5647 = vsel %vm3222, %v5645, %v5646
    %v5648 = vrot.slane %v5646, 4
    %v5649 = vrot.slane %v5354, 5
    %v5650 = vsel %vm3222, %v5648, %v5649
    %v5651 = vrot.slane %v5355, 5
    %v5652 = vrot.slane %v5651, 4
    %v5653 = vrot.slane %v5356, 5
    %v5654 = vsel %vm3222, %v5652, %v5653
    %v5655 = vrot.slane %v5653, 4
    %v5656 = vrot.slane %v5357, 5
    %v5657 = vsel %vm3222, %v5655, %v5656
    %v5658 = vrot.slane %v5358, 5
    %v5659 = vrot.slane %v5658, 4
    %v5660 = vrot.slane %v5359, 5
    %v5661 = vsel %vm3222, %v5659, %v5660
    %v5662 = vrot.slane %v5660, 4
    %v5663 = vrot.slane %v5360, 5
    %v5664 = vsel %vm3222, %v5662, %v5663
    %v5665 = vrot.slane %v5361, 5
    %v5666 = vrot.slane %v5665, 4
    %v5667 = vrot.slane %v5362, 5
    %v5668 = vsel %vm3222, %v5666, %v5667
    %v5669 = vrot.slane %v5667, 4
    %v5670 = vrot.slane %v5363, 5
    %v5671 = vsel %vm3222, %v5669, %v5670
    %v5672 = vrot.slane %v5364, 5
    %v5673 = vrot.slane %v5672, 4
    %v5674 = vrot.slane %v5365, 5
    %v5675 = vsel %vm3222, %v5673, %v5674
    %v5676 = vrot.slane %v5674, 4
    %v5677 = vrot.slane %v5366, 5
    %v5678 = vsel %vm3222, %v5676, %v5677
    %v5679 = vrot.slane %v5367, 5
    %v5680 = vrot.slane %v5679, 4
    %v5681 = vrot.slane %v5368, 5
    %v5682 = vsel %vm3222, %v5680, %v5681
    %v5683 = vrot.slane %v5681, 4
    %v5684 = vrot.slane %v5369, 5
    %v5685 = vsel %vm3222, %v5683, %v5684
    %v5686 = vrot.slane %v5370, 5
    %v5687 = vrot.slane %v5686, 4
    %v5688 = vrot.slane %v5371, 5
    %v5689 = vsel %vm3222, %v5687, %v5688
    %v5690 = vrot.slane %v5688, 4
    %v5691 = vrot.slane %v5372, 5
    %v5692 = vsel %vm3222, %v5690, %v5691
    %s5693 = scalar_lea.vmem [#allocation6], 320
    %v5694 = vld [vmem:[%s5693] sm:$0xf]
    %v5695 = vld [vmem:[%s5693 + $0x4] sm:$0xf]
    %v5696 = vld [vmem:[%s5693 + $0x8] sm:$0xf]
    %v5697 = vld [vmem:[%s5693 + $0xc] sm:$0xf]
    %v5698 = vld [vmem:[%s5693 + $0x10] sm:$0xf]
    %v5699 = vld [vmem:[%s5693 + $0x14] sm:$0xf]
    %v5700 = vld [vmem:[%s5693 + $0x18] sm:$0xf]
    %v5701 = vld [vmem:[%s5693 + $0x1c] sm:$0xf]
    %v5702 = vld [vmem:[%s5693 + $0x20] sm:$0xf]
    %v5703 = vld [vmem:[%s5693 + $0x24] sm:$0xf]
    %v5704 = vld [vmem:[%s5693 + $0x28] sm:$0xf]
    %v5705 = vld [vmem:[%s5693 + $0x2c] sm:$0xf]
    %v5706 = vld [vmem:[%s5693 + $0x30] sm:$0xf]
    %v5707 = vld [vmem:[%s5693 + $0x34] sm:$0xf]
    %v5708 = vld [vmem:[%s5693 + $0x38] sm:$0xf]
    %v5709 = vld [vmem:[%s5693 + $0x3c] sm:$0xf]
    %v5710 = vunpack.c.l.b16 %v5472
    %v5711 = vunpack.c.l.b16 %v5475
    %v5712 = vunpack.c.l.b16 %v5479
    %v5713 = vunpack.c.l.b16 %v5482
    %v5714 = vunpack.c.l.b16 %v5486
    %v5715 = vunpack.c.l.b16 %v5489
    %v5716 = vunpack.c.l.b16 %v5493
    %v5717 = vunpack.c.l.b16 %v5496
    %v5718 = vunpack.c.l.b16 %v5500
    %v5719 = vunpack.c.l.b16 %v5503
    %v5720 = vunpack.c.l.b16 %v5507
    %v5721 = vunpack.c.l.b16 %v5510
    %v5722 = vunpack.c.l.b16 %v5514
    %v5723 = vunpack.c.l.b16 %v5517
    %v5724 = vunpack.c.l.b16 %v5521
    %v5725 = vunpack.c.l.b16 %v5524
    %v5726 = vunpack.c.l.b16 %v5528
    %v5727 = vunpack.c.l.b16 %v5531
    %v5728 = vunpack.c.l.b16 %v5535
    %v5729 = vunpack.c.l.b16 %v5538
    %v5730 = vunpack.c.l.b16 %v5542
    %v5731 = vunpack.c.l.b16 %v5545
    %v5732 = vunpack.c.l.b16 %v5549
    %v5733 = vunpack.c.l.b16 %v5552
    %v5734 = vunpack.c.l.b16 %v5556
    %v5735 = vunpack.c.l.b16 %v5559
    %v5736 = vunpack.c.l.b16 %v5563
    %v5737 = vunpack.c.l.b16 %v5566
    %v5738 = vunpack.c.l.b16 %v5570
    %v5739 = vunpack.c.l.b16 %v5573
    %v5740 = vunpack.c.l.b16 %v5577
    %v5741 = vunpack.c.l.b16 %v5580
    %v5742 = vunpack.c.l.b16 %v5584
    %v5743 = vunpack.c.l.b16 %v5587
    %v5744 = vunpack.c.l.b16 %v5591
    %v5745 = vunpack.c.l.b16 %v5594
    %v5746 = vunpack.c.l.b16 %v5598
    %v5747 = vunpack.c.l.b16 %v5601
    %v5748 = vunpack.c.l.b16 %v5605
    %v5749 = vunpack.c.l.b16 %v5608
    %v5750 = vunpack.c.l.b16 %v5612
    %v5751 = vunpack.c.l.b16 %v5615
    %v5752 = vunpack.c.l.b16 %v5619
    %v5753 = vunpack.c.l.b16 %v5622
    %v5754 = vunpack.c.l.b16 %v5626
    %v5755 = vunpack.c.l.b16 %v5629
    %v5756 = vunpack.c.l.b16 %v5633
    %v5757 = vunpack.c.l.b16 %v5636
    %v5758 = vunpack.c.l.b16 %v5640
    %v5759 = vunpack.c.l.b16 %v5643
    %v5760 = vunpack.c.l.b16 %v5647
    %v5761 = vunpack.c.l.b16 %v5650
    %v5762 = vunpack.c.l.b16 %v5654
    %v5763 = vunpack.c.l.b16 %v5657
    %v5764 = vunpack.c.l.b16 %v5661
    %v5765 = vunpack.c.l.b16 %v5664
    %v5766 = vunpack.c.l.b16 %v5668
    %v5767 = vunpack.c.l.b16 %v5671
    %v5768 = vunpack.c.l.b16 %v5675
    %v5769 = vunpack.c.l.b16 %v5678
    %v5770 = vunpack.c.l.b16 %v5682
    %v5771 = vunpack.c.l.b16 %v5685
    %v5772 = vunpack.c.l.b16 %v5689
    %v5773 = vunpack.c.l.b16 %v5692
    %v5774 = vpack.c.b16 %v5711, %v5710
    %v5775 = vpack.c.b16 %v5713, %v5712
    %v5776 = vpack.c.b16 %v5715, %v5714
    %v5777 = vpack.c.b16 %v5717, %v5716
    %v5778 = vpack.c.b16 %v5719, %v5718
    %v5779 = vpack.c.b16 %v5721, %v5720
    %v5780 = vpack.c.b16 %v5723, %v5722
    %v5781 = vpack.c.b16 %v5725, %v5724
    %v5782 = vpack.c.b16 %v5727, %v5726
    %v5783 = vpack.c.b16 %v5729, %v5728
    %v5784 = vpack.c.b16 %v5731, %v5730
    %v5785 = vpack.c.b16 %v5733, %v5732
    %v5786 = vpack.c.b16 %v5735, %v5734
    %v5787 = vpack.c.b16 %v5737, %v5736
    %v5788 = vpack.c.b16 %v5739, %v5738
    %v5789 = vpack.c.b16 %v5741, %v5740
    %v5790 = vpack.c.b16 %v5743, %v5742
    %v5791 = vpack.c.b16 %v5745, %v5744
    %v5792 = vpack.c.b16 %v5747, %v5746
    %v5793 = vpack.c.b16 %v5749, %v5748
    %v5794 = vpack.c.b16 %v5751, %v5750
    %v5795 = vpack.c.b16 %v5753, %v5752
    %v5796 = vpack.c.b16 %v5755, %v5754
    %v5797 = vpack.c.b16 %v5757, %v5756
    %v5798 = vpack.c.b16 %v5759, %v5758
    %v5799 = vpack.c.b16 %v5761, %v5760
    %v5800 = vpack.c.b16 %v5763, %v5762
    %v5801 = vpack.c.b16 %v5765, %v5764
    %v5802 = vpack.c.b16 %v5767, %v5766
    %v5803 = vpack.c.b16 %v5769, %v5768
    %v5804 = vpack.c.b16 %v5771, %v5770
    %v5805 = vpack.c.b16 %v5773, %v5772
    %v5854 = vunpack.c.l.b16 %v5694
    %v5855 = vunpack.c.l.b16 %v5695
    %v5856 = vunpack.c.l.b16 %v5696
    %v5857 = vunpack.c.l.b16 %v5697
    %v5858 = vunpack.c.l.b16 %v5698
    %v5859 = vunpack.c.l.b16 %v5699
    %v5860 = vunpack.c.l.b16 %v5700
    %v5861 = vunpack.c.l.b16 %v5701
    %v5862 = vunpack.c.l.b16 %v5702
    %v5863 = vunpack.c.l.b16 %v5703
    %v5864 = vunpack.c.l.b16 %v5704
    %v5865 = vunpack.c.l.b16 %v5705
    %v5866 = vunpack.c.l.b16 %v5706
    %v5867 = vunpack.c.l.b16 %v5707
    %v5868 = vunpack.c.l.b16 %v5708
    %v5869 = vunpack.c.l.b16 %v5709
    %v5870 = vpack.c.b16 %v5855, %v5854
    %v5871 = vpack.c.b16 %v5857, %v5856
    %v5872 = vpack.c.b16 %v5859, %v5858
    %v5873 = vpack.c.b16 %v5861, %v5860
    %v5874 = vpack.c.b16 %v5863, %v5862
    %v5875 = vpack.c.b16 %v5865, %v5864
    %v5876 = vpack.c.b16 %v5867, %v5866
    %v5877 = vpack.c.b16 %v5869, %v5868
    %5886 = vmatprep.subr.bf16.mxu0 0
    %5887 = vmatpush1.bf16.msra.mxu0 %v5870
    %5888 = vmatprep.subr.bf16.mxu0 0
    %5889 = vmatpush1.bf16.msra.mxu0 %v5871
    %5890 = vmatprep.subr.bf16.mxu0 0
    %5891 = vmatpush1.bf16.msra.mxu0 %v5872
    %5892 = vmatprep.subr.bf16.mxu0 0
    %5893 = vmatpush1.bf16.msra.mxu0 %v5873
    %5894 = vmatprep.subr.bf16.mxu0 0
    %5895 = vmatpush1.bf16.msra.mxu0 %v5874
    %5896 = vmatprep.subr.bf16.mxu0 0
    %5897 = vmatpush1.bf16.msra.mxu0 %v5875
    %5898 = vmatprep.subr.bf16.mxu0 0
    %5899 = vmatpush1.bf16.msra.mxu0 %v5876
    %5900 = vmatprep.subr.bf16.mxu0 0
    %5901 = vmatpush1.bf16.msra.mxu0 %v5877
    %5902 = vmatprep.subr.bf16.mxu0 0
    %5903 = vmatpush1.bf16.msra.mxu0 0
    %5904 = vmatprep.subr.bf16.mxu0 0
    %5905 = vmatpush1.bf16.msra.mxu0 0
    %5906 = vmatprep.subr.bf16.mxu0 0
    %5907 = vmatpush1.bf16.msra.mxu0 0
    %5908 = vmatprep.subr.bf16.mxu0 0
    %5909 = vmatpush1.bf16.msra.mxu0 0
    %5910 = vmatprep.subr.bf16.mxu0 0
    %5911 = vmatpush1.bf16.msra.mxu0 0
    %5912 = vmatprep.subr.bf16.mxu0 0
    %5913 = vmatpush1.bf16.msra.mxu0 0
    %5914 = vmatprep.subr.bf16.mxu0 0
    %5915 = vmatpush1.bf16.msra.mxu0 0
    %5916 = vmatprep.subr.bf16.mxu0 0
    %5917 = vmatpush1.bf16.msra.mxu0 0
    %5918 = vmatprep.mubr.bf16.mxu0 0
    %5919 = vmatmul.mubr.bf16.gmra.mrb[0].mxu0 %v5774
    %v5920 = vpop.f32.mrb[0].mxu0
    %v5921 = vadd.f32 0.0, %v5920
    %v5922 = vpop.f32.mrb[0].mxu0
    %v5923 = vpop.f32.mrb[0].mxu0
    %v5924 = vadd.f32 0.0, %v5923
    %v5925 = vpop.f32.mrb[0].mxu0
    %5926 = vmatprep.mubr.bf16.mxu0 0
    %5927 = vmatmul.mubr.bf16.gmra.mrb[0].mxu0 %v5775
    %v5928 = vpop.f32.mrb[0].mxu0
    %v5929 = vadd.f32 0.0, %v5928
    %v5930 = vpop.f32.mrb[0].mxu0
    %v5931 = vpop.f32.mrb[0].mxu0
    %v5932 = vadd.f32 0.0, %v5931
    %v5933 = vpop.f32.mrb[0].mxu0
    %5934 = vmatprep.mubr.bf16.mxu0 0
    %5935 = vmatmul.mubr.bf16.gmra.mrb[0].mxu0 %v5776
    %v5936 = vpop.f32.mrb[0].mxu0
    %v5937 = vadd.f32 0.0, %v5936
    %v5938 = vpop.f32.mrb[0].mxu0
    %v5939 = vpop.f32.mrb[0].mxu0
    %v5940 = vadd.f32 0.0, %v5939
    %v5941 = vpop.f32.mrb[0].mxu0
    %5942 = vmatprep.mubr.bf16.mxu0 0
    %5943 = vmatmul.mubr.bf16.gmra.mrb[0].mxu0 %v5777
    %v5944 = vpop.f32.mrb[0].mxu0
    %v5945 = vadd.f32 0.0, %v5944
    %v5946 = vpop.f32.mrb[0].mxu0
    %v5947 = vpop.f32.mrb[0].mxu0
    %v5948 = vadd.f32 0.0, %v5947
    %v5949 = vpop.f32.mrb[0].mxu0
    %5950 = vmatprep.mubr.bf16.mxu0 0
    %5951 = vmatmul.mubr.bf16.gmra.mrb[0].mxu0 %v5778
    %v5952 = vpop.f32.mrb[0].mxu0
    %v5953 = vadd.f32 0.0, %v5952
    %v5954 = vpop.f32.mrb[0].mxu0
    %v5955 = vpop.f32.mrb[0].mxu0
    %v5956 = vadd.f32 0.0, %v5955
    %v5957 = vpop.f32.mrb[0].mxu0
    %5958 = vmatprep.mubr.bf16.mxu0 0
    %5959 = vmatmul.mubr.bf16.gmra.mrb[0].mxu0 %v5779
    %v5960 = vpop.f32.mrb[0].mxu0
    %v5961 = vadd.f32 0.0, %v5960
    %v5962 = vpop.f32.mrb[0].mxu0
    %v5963 = vpop.f32.mrb[0].mxu0
    %v5964 = vadd.f32 0.0, %v5963
    %v5965 = vpop.f32.mrb[0].mxu0
    %5966 = vmatprep.mubr.bf16.mxu0 0
    %5967 = vmatmul.mubr.bf16.gmra.mrb[0].mxu0 %v5780
    %v5968 = vpop.f32.mrb[0].mxu0
    %v5969 = vadd.f32 0.0, %v5968
    %v5970 = vpop.f32.mrb[0].mxu0
    %v5971 = vpop.f32.mrb[0].mxu0
    %v5972 = vadd.f32 0.0, %v5971
    %v5973 = vpop.f32.mrb[0].mxu0
    %5974 = vmatprep.mubr.bf16.mxu0 0
    %5975 = vmatmul.mubr.bf16.gmra.mrb[0].mxu0 %v5781
    %v5976 = vpop.f32.mrb[0].mxu0
    %v5977 = vadd.f32 0.0, %v5976
    %v5978 = vpop.f32.mrb[0].mxu0
    %v5979 = vpop.f32.mrb[0].mxu0
    %v5980 = vadd.f32 0.0, %v5979
    %v5981 = vpop.f32.mrb[0].mxu0
    %5982 = vmatprep.mubr.bf16.mxu0 0
    %5983 = vmatmul.mubr.bf16.gmra.mrb[0].mxu0 %v5782
    %v5984 = vpop.f32.mrb[0].mxu0
    %v5985 = vadd.f32 0.0, %v5984
    %v5986 = vpop.f32.mrb[0].mxu0
    %v5987 = vpop.f32.mrb[0].mxu0
    %v5988 = vadd.f32 0.0, %v5987
    %v5989 = vpop.f32.mrb[0].mxu0
    %5990 = vmatprep.mubr.bf16.mxu0 0
    %5991 = vmatmul.mubr.bf16.gmra.mrb[0].mxu0 %v5783
    %v5992 = vpop.f32.mrb[0].mxu0
    %v5993 = vadd.f32 0.0, %v5992
    %v5994 = vpop.f32.mrb[0].mxu0
    %v5995 = vpop.f32.mrb[0].mxu0
    %v5996 = vadd.f32 0.0, %v5995
    %v5997 = vpop.f32.mrb[0].mxu0
    %5998 = vmatprep.mubr.bf16.mxu0 0
    %5999 = vmatmul.mubr.bf16.gmra.mrb[0].mxu0 %v5784
    %v6000 = vpop.f32.mrb[0].mxu0
    %v6001 = vadd.f32 0.0, %v6000
    %v6002 = vpop.f32.mrb[0].mxu0
    %v6003 = vpop.f32.mrb[0].mxu0
    %v6004 = vadd.f32 0.0, %v6003
    %v6005 = vpop.f32.mrb[0].mxu0
    %6006 = vmatprep.mubr.bf16.mxu0 0
    %6007 = vmatmul.mubr.bf16.gmra.mrb[0].mxu0 %v5785
    %v6008 = vpop.f32.mrb[0].mxu0
    %v6009 = vadd.f32 0.0, %v6008
    %v6010 = vpop.f32.mrb[0].mxu0
    %v6011 = vpop.f32.mrb[0].mxu0
    %v6012 = vadd.f32 0.0, %v6011
    %v6013 = vpop.f32.mrb[0].mxu0
    %6014 = vmatprep.mubr.bf16.mxu0 0
    %6015 = vmatmul.mubr.bf16.gmra.mrb[0].mxu0 %v5786
    %v6016 = vpop.f32.mrb[0].mxu0
    %v6017 = vadd.f32 0.0, %v6016
    %v6018 = vpop.f32.mrb[0].mxu0
    %v6019 = vpop.f32.mrb[0].mxu0
    %v6020 = vadd.f32 0.0, %v6019
    %v6021 = vpop.f32.mrb[0].mxu0
    %6022 = vmatprep.mubr.bf16.mxu0 0
    %6023 = vmatmul.mubr.bf16.gmra.mrb[0].mxu0 %v5787
    %v6024 = vpop.f32.mrb[0].mxu0
    %v6025 = vadd.f32 0.0, %v6024
    %v6026 = vpop.f32.mrb[0].mxu0
    %v6027 = vpop.f32.mrb[0].mxu0
    %v6028 = vadd.f32 0.0, %v6027
    %v6029 = vpop.f32.mrb[0].mxu0
    %6030 = vmatprep.mubr.bf16.mxu0 0
    %6031 = vmatmul.mubr.bf16.gmra.mrb[0].mxu0 %v5788
    %v6032 = vpop.f32.mrb[0].mxu0
    %v6033 = vadd.f32 0.0, %v6032
    %v6034 = vpop.f32.mrb[0].mxu0
    %v6035 = vpop.f32.mrb[0].mxu0
    %v6036 = vadd.f32 0.0, %v6035
    %v6037 = vpop.f32.mrb[0].mxu0
    %6038 = vmatprep.mubr.bf16.mxu0 0
    %6039 = vmatmul.mubr.bf16.gmra.mrb[0].mxu0 %v5789
    %v6040 = vpop.f32.mrb[0].mxu0
    %v6041 = vadd.f32 0.0, %v6040
    %v6042 = vpop.f32.mrb[0].mxu0
    %v6043 = vpop.f32.mrb[0].mxu0
    %v6044 = vadd.f32 0.0, %v6043
    %v6045 = vpop.f32.mrb[0].mxu0
    %6046 = vmatprep.mubr.bf16.mxu0 0
    %6047 = vmatmul.mubr.bf16.gmra.mrb[0].mxu0 %v5790
    %v6048 = vpop.f32.mrb[0].mxu0
    %v6049 = vadd.f32 0.0, %v6048
    %v6050 = vpop.f32.mrb[0].mxu0
    %v6051 = vpop.f32.mrb[0].mxu0
    %v6052 = vadd.f32 0.0, %v6051
    %v6053 = vpop.f32.mrb[0].mxu0
    %6054 = vmatprep.mubr.bf16.mxu0 0
    %6055 = vmatmul.mubr.bf16.gmra.mrb[0].mxu0 %v5791
    %v6056 = vpop.f32.mrb[0].mxu0
    %v6057 = vadd.f32 0.0, %v6056
    %v6058 = vpop.f32.mrb[0].mxu0
    %v6059 = vpop.f32.mrb[0].mxu0
    %v6060 = vadd.f32 0.0, %v6059
    %v6061 = vpop.f32.mrb[0].mxu0
    %6062 = vmatprep.mubr.bf16.mxu0 0
    %6063 = vmatmul.mubr.bf16.gmra.mrb[0].mxu0 %v5792
    %v6064 = vpop.f32.mrb[0].mxu0
    %v6065 = vadd.f32 0.0, %v6064
    %v6066 = vpop.f32.mrb[0].mxu0
    %v6067 = vpop.f32.mrb[0].mxu0
    %v6068 = vadd.f32 0.0, %v6067
    %v6069 = vpop.f32.mrb[0].mxu0
    %6070 = vmatprep.mubr.bf16.mxu0 0
    %6071 = vmatmul.mubr.bf16.gmra.mrb[0].mxu0 %v5793
    %v6072 = vpop.f32.mrb[0].mxu0
    %v6073 = vadd.f32 0.0, %v6072
    %v6074 = vpop.f32.mrb[0].mxu0
    %v6075 = vpop.f32.mrb[0].mxu0
    %v6076 = vadd.f32 0.0, %v6075
    %v6077 = vpop.f32.mrb[0].mxu0
    %6078 = vmatprep.mubr.bf16.mxu0 0
    %6079 = vmatmul.mubr.bf16.gmra.mrb[0].mxu0 %v5794
    %v6080 = vpop.f32.mrb[0].mxu0
    %v6081 = vadd.f32 0.0, %v6080
    %v6082 = vpop.f32.mrb[0].mxu0
    %v6083 = vpop.f32.mrb[0].mxu0
    %v6084 = vadd.f32 0.0, %v6083
    %v6085 = vpop.f32.mrb[0].mxu0
    %6086 = vmatprep.mubr.bf16.mxu0 0
    %6087 = vmatmul.mubr.bf16.gmra.mrb[0].mxu0 %v5795
    %v6088 = vpop.f32.mrb[0].mxu0
    %v6089 = vadd.f32 0.0, %v6088
    %v6090 = vpop.f32.mrb[0].mxu0
    %v6091 = vpop.f32.mrb[0].mxu0
    %v6092 = vadd.f32 0.0, %v6091
    %v6093 = vpop.f32.mrb[0].mxu0
    %6094 = vmatprep.mubr.bf16.mxu0 0
    %6095 = vmatmul.mubr.bf16.gmra.mrb[0].mxu0 %v5796
    %v6096 = vpop.f32.mrb[0].mxu0
    %v6097 = vadd.f32 0.0, %v6096
    %v6098 = vpop.f32.mrb[0].mxu0
    %v6099 = vpop.f32.mrb[0].mxu0
    %v6100 = vadd.f32 0.0, %v6099
    %v6101 = vpop.f32.mrb[0].mxu0
    %6102 = vmatprep.mubr.bf16.mxu0 0
    %6103 = vmatmul.mubr.bf16.gmra.mrb[0].mxu0 %v5797
    %v6104 = vpop.f32.mrb[0].mxu0
    %v6105 = vadd.f32 0.0, %v6104
    %v6106 = vpop.f32.mrb[0].mxu0
    %v6107 = vpop.f32.mrb[0].mxu0
    %v6108 = vadd.f32 0.0, %v6107
    %v6109 = vpop.f32.mrb[0].mxu0
    %6110 = vmatprep.mubr.bf16.mxu0 0
    %6111 = vmatmul.mubr.bf16.gmra.mrb[0].mxu0 %v5798
    %v6112 = vpop.f32.mrb[0].mxu0
    %v6113 = vadd.f32 0.0, %v6112
    %v6114 = vpop.f32.mrb[0].mxu0
    %v6115 = vpop.f32.mrb[0].mxu0
    %v6116 = vadd.f32 0.0, %v6115
    %v6117 = vpop.f32.mrb[0].mxu0
    %6118 = vmatprep.mubr.bf16.mxu0 0
    %6119 = vmatmul.mubr.bf16.gmra.mrb[0].mxu0 %v5799
    %v6120 = vpop.f32.mrb[0].mxu0
    %v6121 = vadd.f32 0.0, %v6120
    %v6122 = vpop.f32.mrb[0].mxu0
    %v6123 = vpop.f32.mrb[0].mxu0
    %v6124 = vadd.f32 0.0, %v6123
    %v6125 = vpop.f32.mrb[0].mxu0
    %6126 = vmatprep.mubr.bf16.mxu0 0
    %6127 = vmatmul.mubr.bf16.gmra.mrb[0].mxu0 %v5800
    %v6128 = vpop.f32.mrb[0].mxu0
    %v6129 = vadd.f32 0.0, %v6128
    %v6130 = vpop.f32.mrb[0].mxu0
    %v6131 = vpop.f32.mrb[0].mxu0
    %v6132 = vadd.f32 0.0, %v6131
    %v6133 = vpop.f32.mrb[0].mxu0
    %6134 = vmatprep.mubr.bf16.mxu0 0
    %6135 = vmatmul.mubr.bf16.gmra.mrb[0].mxu0 %v5801
    %v6136 = vpop.f32.mrb[0].mxu0
    %v6137 = vadd.f32 0.0, %v6136
    %v6138 = vpop.f32.mrb[0].mxu0
    %v6139 = vpop.f32.mrb[0].mxu0
    %v6140 = vadd.f32 0.0, %v6139
    %v6141 = vpop.f32.mrb[0].mxu0
    %6142 = vmatprep.mubr.bf16.mxu0 0
    %6143 = vmatmul.mubr.bf16.gmra.mrb[0].mxu0 %v5802
    %v6144 = vpop.f32.mrb[0].mxu0
    %v6145 = vadd.f32 0.0, %v6144
    %v6146 = vpop.f32.mrb[0].mxu0
    %v6147 = vpop.f32.mrb[0].mxu0
    %v6148 = vadd.f32 0.0, %v6147
    %v6149 = vpop.f32.mrb[0].mxu0
    %6150 = vmatprep.mubr.bf16.mxu0 0
    %6151 = vmatmul.mubr.bf16.gmra.mrb[0].mxu0 %v5803
    %v6152 = vpop.f32.mrb[0].mxu0
    %v6153 = vadd.f32 0.0, %v6152
    %v6154 = vpop.f32.mrb[0].mxu0
    %v6155 = vpop.f32.mrb[0].mxu0
    %v6156 = vadd.f32 0.0, %v6155
    %v6157 = vpop.f32.mrb[0].mxu0
    %6158 = vmatprep.mubr.bf16.mxu0 0
    %6159 = vmatmul.mubr.bf16.gmra.mrb[0].mxu0 %v5804
    %v6160 = vpop.f32.mrb[0].mxu0
    %v6161 = vadd.f32 0.0, %v6160
    %v6162 = vpop.f32.mrb[0].mxu0
    %v6163 = vpop.f32.mrb[0].mxu0
    %v6164 = vadd.f32 0.0, %v6163
    %v6165 = vpop.f32.mrb[0].mxu0
    %6166 = vmatprep.mubr.bf16.mxu0 0
    %6167 = vmatmul.mubr.bf16.gmra.mrb[0].mxu0 %v5805
    %v6168 = vpop.f32.mrb[0].mxu0
    %v6169 = vadd.f32 0.0, %v6168
    %v6170 = vpop.f32.mrb[0].mxu0
    %v6171 = vpop.f32.mrb[0].mxu0
    %v6172 = vadd.f32 0.0, %v6171
    %v6173 = vpop.f32.mrb[0].mxu0
    %6174 = vdwg.mxu0
    %v6175 = vadd.f32 %v5213, %v5921
    %v6176 = vadd.f32 %v5214, %v5924
    %v6177 = vadd.f32 %v5215, %v5929
    %v6178 = vadd.f32 %v5216, %v5932
    %v6179 = vadd.f32 %v5217, %v5937
    %v6180 = vadd.f32 %v5218, %v5940
    %v6181 = vadd.f32 %v5219, %v5945
    %v6182 = vadd.f32 %v5220, %v5948
    %v6183 = vadd.f32 %v5221, %v5953
    %v6184 = vadd.f32 %v5222, %v5956
    %v6185 = vadd.f32 %v5223, %v5961
    %v6186 = vadd.f32 %v5224, %v5964
    %v6187 = vadd.f32 %v5225, %v5969
    %v6188 = vadd.f32 %v5226, %v5972
    %v6189 = vadd.f32 %v5227, %v5977
    %v6190 = vadd.f32 %v5228, %v5980
    %v6191 = vadd.f32 %v5229, %v5985
    %v6192 = vadd.f32 %v5230, %v5988
    %v6193 = vadd.f32 %v5231, %v5993
    %v6194 = vadd.f32 %v5232, %v5996
    %v6195 = vadd.f32 %v5233, %v6001
    %v6196 = vadd.f32 %v5234, %v6004
    %v6197 = vadd.f32 %v5235, %v6009
    %v6198 = vadd.f32 %v5236, %v6012
    %v6199 = vadd.f32 %v5237, %v6017
    %v6200 = vadd.f32 %v5238, %v6020
    %v6201 = vadd.f32 %v5239, %v6025
    %v6202 = vadd.f32 %v5240, %v6028
    %v6203 = vadd.f32 %v5241, %v6033
    %v6204 = vadd.f32 %v5242, %v6036
    %v6205 = vadd.f32 %v5243, %v6041
    %v6206 = vadd.f32 %v5244, %v6044
    %v6207 = vadd.f32 %v5245, %v6049
    %v6208 = vadd.f32 %v5246, %v6052
    %v6209 = vadd.f32 %v5247, %v6057
    %v6210 = vadd.f32 %v5248, %v6060
    %v6211 = vadd.f32 %v5249, %v6065
    %v6212 = vadd.f32 %v5250, %v6068
    %v6213 = vadd.f32 %v5251, %v6073
    %v6214 = vadd.f32 %v5252, %v6076
    %v6215 = vadd.f32 %v5253, %v6081
    %v6216 = vadd.f32 %v5254, %v6084
    %v6217 = vadd.f32 %v5255, %v6089
    %v6218 = vadd.f32 %v5256, %v6092
    %v6219 = vadd.f32 %v5257, %v6097
    %v6220 = vadd.f32 %v5258, %v6100
    %v6221 = vadd.f32 %v5259, %v6105
    %v6222 = vadd.f32 %v5260, %v6108
    %v6223 = vadd.f32 %v5261, %v6113
    %v6224 = vadd.f32 %v5262, %v6116
    %v6225 = vadd.f32 %v5263, %v6121
    %v6226 = vadd.f32 %v5264, %v6124
    %v6227 = vadd.f32 %v5265, %v6129
    %v6228 = vadd.f32 %v5266, %v6132
    %v6229 = vadd.f32 %v5267, %v6137
    %v6230 = vadd.f32 %v5268, %v6140
    %v6231 = vadd.f32 %v5269, %v6145
    %v6232 = vadd.f32 %v5270, %v6148
    %v6233 = vadd.f32 %v5271, %v6153
    %v6234 = vadd.f32 %v5272, %v6156
    %v6235 = vadd.f32 %v5273, %v6161
    %v6236 = vadd.f32 %v5274, %v6164
    %v6237 = vadd.f32 %v5275, %v6169
    %v6238 = vadd.f32 %v5276, %v6172
    %s6239 = scalar_lea.vmem [#allocation2], 24
    %v6240 = vld [vmem:[%s6239] sm:$0xf]
    %v6241 = vld [vmem:[%s6239 + $0x4] sm:$0xf]
    %v6242 = vld [vmem:[%s6239 + $0xc] sm:$0xf]
    %v6243 = vld [vmem:[%s6239 + $0x10] sm:$0xf]
    %v6244 = vld [vmem:[%s6239 + $0x18] sm:$0xf]
    %v6245 = vld [vmem:[%s6239 + $0x1c] sm:$0xf]
    %v6246 = vld [vmem:[%s6239 + $0x24] sm:$0xf]
    %v6247 = vld [vmem:[%s6239 + $0x28] sm:$0xf]
    %v6248 = vld [vmem:[%s6239 + $0x30] sm:$0xf]
    %v6249 = vld [vmem:[%s6239 + $0x34] sm:$0xf]
    %v6250 = vld [vmem:[%s6239 + $0x3c] sm:$0xf]
    %v6251 = vld [vmem:[%s6239 + $0x40] sm:$0xf]
    %v6252 = vld [vmem:[%s6239 + $0x48] sm:$0xf]
    %v6253 = vld [vmem:[%s6239 + $0x4c] sm:$0xf]
    %v6254 = vld [vmem:[%s6239 + $0x54] sm:$0xf]
    %v6255 = vld [vmem:[%s6239 + $0x58] sm:$0xf]
    %v6256 = vld [vmem:[%s6239 + $0x60] sm:$0xf]
    %v6257 = vld [vmem:[%s6239 + $0x64] sm:$0xf]
    %v6258 = vld [vmem:[%s6239 + $0x6c] sm:$0xf]
    %v6259 = vld [vmem:[%s6239 + $0x70] sm:$0xf]
    %v6260 = vld [vmem:[%s6239 + $0x78] sm:$0xf]
    %v6261 = vld [vmem:[%s6239 + $0x7c] sm:$0xf]
    %v6262 = vld [vmem:[%s6239 + $0x84] sm:$0xf]
    %v6263 = vld [vmem:[%s6239 + $0x88] sm:$0xf]
    %v6264 = vld [vmem:[%s6239 + $0x90] sm:$0xf]
    %v6265 = vld [vmem:[%s6239 + $0x94] sm:$0xf]
    %v6266 = vld [vmem:[%s6239 + $0x9c] sm:$0xf]
    %v6267 = vld [vmem:[%s6239 + $0xa0] sm:$0xf]
    %v6268 = vld [vmem:[%s6239 + $0xa8] sm:$0xf]
    %v6269 = vld [vmem:[%s6239 + $0xac] sm:$0xf]
    %v6270 = vld [vmem:[%s6239 + $0xb4] sm:$0xf]
    %v6271 = vld [vmem:[%s6239 + $0xb8] sm:$0xf]
    %v6272 = vld [vmem:[%s6239 + $0xd8] sm:$0xf]
    %v6273 = vld [vmem:[%s6239 + $0xdc] sm:$0xf]
    %v6274 = vld [vmem:[%s6239 + $0xe4] sm:$0xf]
    %v6275 = vld [vmem:[%s6239 + $0xe8] sm:$0xf]
    %v6276 = vld [vmem:[%s6239 + $0xf0] sm:$0xf]
    %v6277 = vld [vmem:[%s6239 + $0xf4] sm:$0xf]
    %v6278 = vld [vmem:[%s6239 + $0xfc] sm:$0xf]
    %v6279 = vld [vmem:[%s6239 + $0x100] sm:$0xf]
    %v6280 = vld [vmem:[%s6239 + $0x108] sm:$0xf]
    %v6281 = vld [vmem:[%s6239 + $0x10c] sm:$0xf]
    %v6282 = vld [vmem:[%s6239 + $0x114] sm:$0xf]
    %v6283 = vld [vmem:[%s6239 + $0x118] sm:$0xf]
    %v6284 = vld [vmem:[%s6239 + $0x120] sm:$0xf]
    %v6285 = vld [vmem:[%s6239 + $0x124] sm:$0xf]
    %v6286 = vld [vmem:[%s6239 + $0x12c] sm:$0xf]
    %v6287 = vld [vmem:[%s6239 + $0x130] sm:$0xf]
    %v6288 = vld [vmem:[%s6239 + $0x138] sm:$0xf]
    %v6289 = vld [vmem:[%s6239 + $0x13c] sm:$0xf]
    %v6290 = vld [vmem:[%s6239 + $0x144] sm:$0xf]
    %v6291 = vld [vmem:[%s6239 + $0x148] sm:$0xf]
    %v6292 = vld [vmem:[%s6239 + $0x150] sm:$0xf]
    %v6293 = vld [vmem:[%s6239 + $0x154] sm:$0xf]
    %v6294 = vld [vmem:[%s6239 + $0x15c] sm:$0xf]
    %v6295 = vld [vmem:[%s6239 + $0x160] sm:$0xf]
    %v6296 = vld [vmem:[%s6239 + $0x168] sm:$0xf]
    %v6297 = vld [vmem:[%s6239 + $0x16c] sm:$0xf]
    %v6298 = vld [vmem:[%s6239 + $0x174] sm:$0xf]
    %v6299 = vld [vmem:[%s6239 + $0x178] sm:$0xf]
    %v6300 = vld [vmem:[%s6239 + $0x180] sm:$0xf]
    %v6301 = vld [vmem:[%s6239 + $0x184] sm:$0xf]
    %v6302 = vld [vmem:[%s6239 + $0x18c] sm:$0xf]
    %v6303 = vld [vmem:[%s6239 + $0x190] sm:$0xf]
    %s6304 = scalar_lea.vmem [#allocation6], 384
    %v6305 = vld [vmem:[%s6304] sm:$0xf]
    %v6306 = vld [vmem:[%s6304 + $0x4] sm:$0xf]
    %v6307 = vld [vmem:[%s6304 + $0x8] sm:$0xf]
    %v6308 = vld [vmem:[%s6304 + $0xc] sm:$0xf]
    %v6309 = vld [vmem:[%s6304 + $0x10] sm:$0xf]
    %v6310 = vld [vmem:[%s6304 + $0x14] sm:$0xf]
    %v6311 = vld [vmem:[%s6304 + $0x18] sm:$0xf]
    %v6312 = vld [vmem:[%s6304 + $0x1c] sm:$0xf]
    %v6313 = vld [vmem:[%s6304 + $0x20] sm:$0xf]
    %v6314 = vld [vmem:[%s6304 + $0x24] sm:$0xf]
    %v6315 = vld [vmem:[%s6304 + $0x28] sm:$0xf]
    %v6316 = vld [vmem:[%s6304 + $0x2c] sm:$0xf]
    %v6317 = vld [vmem:[%s6304 + $0x30] sm:$0xf]
    %v6318 = vld [vmem:[%s6304 + $0x34] sm:$0xf]
    %v6319 = vld [vmem:[%s6304 + $0x38] sm:$0xf]
    %v6320 = vld [vmem:[%s6304 + $0x3c] sm:$0xf]
    %v6385 = vunpack.c.l.b16 %v6240
    %v6386 = vunpack.c.l.b16 %v6241
    %v6387 = vunpack.c.l.b16 %v6242
    %v6388 = vunpack.c.l.b16 %v6243
    %v6389 = vunpack.c.l.b16 %v6244
    %v6390 = vunpack.c.l.b16 %v6245
    %v6391 = vunpack.c.l.b16 %v6246
    %v6392 = vunpack.c.l.b16 %v6247
    %v6393 = vunpack.c.l.b16 %v6248
    %v6394 = vunpack.c.l.b16 %v6249
    %v6395 = vunpack.c.l.b16 %v6250
    %v6396 = vunpack.c.l.b16 %v6251
    %v6397 = vunpack.c.l.b16 %v6252
    %v6398 = vunpack.c.l.b16 %v6253
    %v6399 = vunpack.c.l.b16 %v6254
    %v6400 = vunpack.c.l.b16 %v6255
    %v6401 = vunpack.c.l.b16 %v6256
    %v6402 = vunpack.c.l.b16 %v6257
    %v6403 = vunpack.c.l.b16 %v6258
    %v6404 = vunpack.c.l.b16 %v6259
    %v6405 = vunpack.c.l.b16 %v6260
    %v6406 = vunpack.c.l.b16 %v6261
    %v6407 = vunpack.c.l.b16 %v6262
    %v6408 = vunpack.c.l.b16 %v6263
    %v6409 = vunpack.c.l.b16 %v6264
    %v6410 = vunpack.c.l.b16 %v6265
    %v6411 = vunpack.c.l.b16 %v6266
    %v6412 = vunpack.c.l.b16 %v6267
    %v6413 = vunpack.c.l.b16 %v6268
    %v6414 = vunpack.c.l.b16 %v6269
    %v6415 = vunpack.c.l.b16 %v6270
    %v6416 = vunpack.c.l.b16 %v6271
    %v6417 = vunpack.c.l.b16 %v6272
    %v6418 = vunpack.c.l.b16 %v6273
    %v6419 = vunpack.c.l.b16 %v6274
    %v6420 = vunpack.c.l.b16 %v6275
    %v6421 = vunpack.c.l.b16 %v6276
    %v6422 = vunpack.c.l.b16 %v6277
    %v6423 = vunpack.c.l.b16 %v6278
    %v6424 = vunpack.c.l.b16 %v6279
    %v6425 = vunpack.c.l.b16 %v6280
    %v6426 = vunpack.c.l.b16 %v6281
    %v6427 = vunpack.c.l.b16 %v6282
    %v6428 = vunpack.c.l.b16 %v6283
    %v6429 = vunpack.c.l.b16 %v6284
    %v6430 = vunpack.c.l.b16 %v6285
    %v6431 = vunpack.c.l.b16 %v6286
    %v6432 = vunpack.c.l.b16 %v6287
    %v6433 = vunpack.c.l.b16 %v6288
    %v6434 = vunpack.c.l.b16 %v6289
    %v6435 = vunpack.c.l.b16 %v6290
    %v6436 = vunpack.c.l.b16 %v6291
    %v6437 = vunpack.c.l.b16 %v6292
    %v6438 = vunpack.c.l.b16 %v6293
    %v6439 = vunpack.c.l.b16 %v6294
    %v6440 = vunpack.c.l.b16 %v6295
    %v6441 = vunpack.c.l.b16 %v6296
    %v6442 = vunpack.c.l.b16 %v6297
    %v6443 = vunpack.c.l.b16 %v6298
    %v6444 = vunpack.c.l.b16 %v6299
    %v6445 = vunpack.c.l.b16 %v6300
    %v6446 = vunpack.c.l.b16 %v6301
    %v6447 = vunpack.c.l.b16 %v6302
    %v6448 = vunpack.c.l.b16 %v6303
    %v6449 = vpack.c.b16 %v6386, %v6385
    %v6450 = vpack.c.b16 %v6388, %v6387
    %v6451 = vpack.c.b16 %v6390, %v6389
    %v6452 = vpack.c.b16 %v6392, %v6391
    %v6453 = vpack.c.b16 %v6394, %v6393
    %v6454 = vpack.c.b16 %v6396, %v6395
    %v6455 = vpack.c.b16 %v6398, %v6397
    %v6456 = vpack.c.b16 %v6400, %v6399
    %v6457 = vpack.c.b16 %v6402, %v6401
    %v6458 = vpack.c.b16 %v6404, %v6403
    %v6459 = vpack.c.b16 %v6406, %v6405
    %v6460 = vpack.c.b16 %v6408, %v6407
    %v6461 = vpack.c.b16 %v6410, %v6409
    %v6462 = vpack.c.b16 %v6412, %v6411
    %v6463 = vpack.c.b16 %v6414, %v6413
    %v6464 = vpack.c.b16 %v6416, %v6415
    %v6465 = vpack.c.b16 %v6418, %v6417
    %v6466 = vpack.c.b16 %v6420, %v6419
    %v6467 = vpack.c.b16 %v6422, %v6421
    %v6468 = vpack.c.b16 %v6424, %v6423
    %v6469 = vpack.c.b16 %v6426, %v6425
    %v6470 = vpack.c.b16 %v6428, %v6427
    %v6471 = vpack.c.b16 %v6430, %v6429
    %v6472 = vpack.c.b16 %v6432, %v6431
    %v6473 = vpack.c.b16 %v6434, %v6433
    %v6474 = vpack.c.b16 %v6436, %v6435
    %v6475 = vpack.c.b16 %v6438, %v6437
    %v6476 = vpack.c.b16 %v6440, %v6439
    %v6477 = vpack.c.b16 %v6442, %v6441
    %v6478 = vpack.c.b16 %v6444, %v6443
    %v6479 = vpack.c.b16 %v6446, %v6445
    %v6480 = vpack.c.b16 %v6448, %v6447
    %v6529 = vunpack.c.l.b16 %v6305
    %v6530 = vunpack.c.l.b16 %v6306
    %v6531 = vunpack.c.l.b16 %v6307
    %v6532 = vunpack.c.l.b16 %v6308
    %v6533 = vunpack.c.l.b16 %v6309
    %v6534 = vunpack.c.l.b16 %v6310
    %v6535 = vunpack.c.l.b16 %v6311
    %v6536 = vunpack.c.l.b16 %v6312
    %v6537 = vunpack.c.l.b16 %v6313
    %v6538 = vunpack.c.l.b16 %v6314
    %v6539 = vunpack.c.l.b16 %v6315
    %v6540 = vunpack.c.l.b16 %v6316
    %v6541 = vunpack.c.l.b16 %v6317
    %v6542 = vunpack.c.l.b16 %v6318
    %v6543 = vunpack.c.l.b16 %v6319
    %v6544 = vunpack.c.l.b16 %v6320
    %v6545 = vpack.c.b16 %v6530, %v6529
    %v6546 = vpack.c.b16 %v6532, %v6531
    %v6547 = vpack.c.b16 %v6534, %v6533
    %v6548 = vpack.c.b16 %v6536, %v6535
    %v6549 = vpack.c.b16 %v6538, %v6537
    %v6550 = vpack.c.b16 %v6540, %v6539
    %v6551 = vpack.c.b16 %v6542, %v6541
    %v6552 = vpack.c.b16 %v6544, %v6543
    %6561 = vmatprep.subr.bf16.mxu0 0
    %6562 = vmatpush1.bf16.msra.mxu0 %v6545
    %6563 = vmatprep.subr.bf16.mxu0 0
    %6564 = vmatpush1.bf16.msra.mxu0 %v6546
    %6565 = vmatprep.subr.bf16.mxu0 0
    %6566 = vmatpush1.bf16.msra.mxu0 %v6547
    %6567 = vmatprep.subr.bf16.mxu0 0
    %6568 = vmatpush1.bf16.msra.mxu0 %v6548
    %6569 = vmatprep.subr.bf16.mxu0 0
    %6570 = vmatpush1.bf16.msra.mxu0 %v6549
    %6571 = vmatprep.subr.bf16.mxu0 0
    %6572 = vmatpush1.bf16.msra.mxu0 %v6550
    %6573 = vmatprep.subr.bf16.mxu0 0
    %6574 = vmatpush1.bf16.msra.mxu0 %v6551
    %6575 = vmatprep.subr.bf16.mxu0 0
    %6576 = vmatpush1.bf16.msra.mxu0 %v6552
    %6577 = vmatprep.subr.bf16.mxu0 0
    %6578 = vmatpush1.bf16.msra.mxu0 0
    %6579 = vmatprep.subr.bf16.mxu0 0
    %6580 = vmatpush1.bf16.msra.mxu0 0
    %6581 = vmatprep.subr.bf16.mxu0 0
    %6582 = vmatpush1.bf16.msra.mxu0 0
    %6583 = vmatprep.subr.bf16.mxu0 0
    %6584 = vmatpush1.bf16.msra.mxu0 0
    %6585 = vmatprep.subr.bf16.mxu0 0
    %6586 = vmatpush1.bf16.msra.mxu0 0
    %6587 = vmatprep.subr.bf16.mxu0 0
    %6588 = vmatpush1.bf16.msra.mxu0 0
    %6589 = vmatprep.subr.bf16.mxu0 0
    %6590 = vmatpush1.bf16.msra.mxu0 0
    %6591 = vmatprep.subr.bf16.mxu0 0
    %6592 = vmatpush1.bf16.msra.mxu0 0
    %6593 = vmatprep.mubr.bf16.mxu0 0
    %6594 = vmatmul.mubr.bf16.gmra.mrb[0].mxu0 %v6449
    %v6595 = vpop.f32.mrb[0].mxu0
    %v6596 = vadd.f32 0.0, %v6595
    %v6597 = vpop.f32.mrb[0].mxu0
    %v6598 = vpop.f32.mrb[0].mxu0
    %v6599 = vadd.f32 0.0, %v6598
    %v6600 = vpop.f32.mrb[0].mxu0
    %6601 = vmatprep.mubr.bf16.mxu0 0
    %6602 = vmatmul.mubr.bf16.gmra.mrb[0].mxu0 %v6450
    %v6603 = vpop.f32.mrb[0].mxu0
    %v6604 = vadd.f32 0.0, %v6603
    %v6605 = vpop.f32.mrb[0].mxu0
    %v6606 = vpop.f32.mrb[0].mxu0
    %v6607 = vadd.f32 0.0, %v6606
    %v6608 = vpop.f32.mrb[0].mxu0
    %6609 = vmatprep.mubr.bf16.mxu0 0
    %6610 = vmatmul.mubr.bf16.gmra.mrb[0].mxu0 %v6451
    %v6611 = vpop.f32.mrb[0].mxu0
    %v6612 = vadd.f32 0.0, %v6611
    %v6613 = vpop.f32.mrb[0].mxu0
    %v6614 = vpop.f32.mrb[0].mxu0
    %v6615 = vadd.f32 0.0, %v6614
    %v6616 = vpop.f32.mrb[0].mxu0
    %6617 = vmatprep.mubr.bf16.mxu0 0
    %6618 = vmatmul.mubr.bf16.gmra.mrb[0].mxu0 %v6452
    %v6619 = vpop.f32.mrb[0].mxu0
    %v6620 = vadd.f32 0.0, %v6619
    %v6621 = vpop.f32.mrb[0].mxu0
    %v6622 = vpop.f32.mrb[0].mxu0
    %v6623 = vadd.f32 0.0, %v6622
    %v6624 = vpop.f32.mrb[0].mxu0
    %6625 = vmatprep.mubr.bf16.mxu0 0
    %6626 = vmatmul.mubr.bf16.gmra.mrb[0].mxu0 %v6453
    %v6627 = vpop.f32.mrb[0].mxu0
    %v6628 = vadd.f32 0.0, %v6627
    %v6629 = vpop.f32.mrb[0].mxu0
    %v6630 = vpop.f32.mrb[0].mxu0
    %v6631 = vadd.f32 0.0, %v6630
    %v6632 = vpop.f32.mrb[0].mxu0
    %6633 = vmatprep.mubr.bf16.mxu0 0
    %6634 = vmatmul.mubr.bf16.gmra.mrb[0].mxu0 %v6454
    %v6635 = vpop.f32.mrb[0].mxu0
    %v6636 = vadd.f32 0.0, %v6635
    %v6637 = vpop.f32.mrb[0].mxu0
    %v6638 = vpop.f32.mrb[0].mxu0
    %v6639 = vadd.f32 0.0, %v6638
    %v6640 = vpop.f32.mrb[0].mxu0
    %6641 = vmatprep.mubr.bf16.mxu0 0
    %6642 = vmatmul.mubr.bf16.gmra.mrb[0].mxu0 %v6455
    %v6643 = vpop.f32.mrb[0].mxu0
    %v6644 = vadd.f32 0.0, %v6643
    %v6645 = vpop.f32.mrb[0].mxu0
    %v6646 = vpop.f32.mrb[0].mxu0
    %v6647 = vadd.f32 0.0, %v6646
    %v6648 = vpop.f32.mrb[0].mxu0
    %6649 = vmatprep.mubr.bf16.mxu0 0
    %6650 = vmatmul.mubr.bf16.gmra.mrb[0].mxu0 %v6456
    %v6651 = vpop.f32.mrb[0].mxu0
    %v6652 = vadd.f32 0.0, %v6651
    %v6653 = vpop.f32.mrb[0].mxu0
    %v6654 = vpop.f32.mrb[0].mxu0
    %v6655 = vadd.f32 0.0, %v6654
    %v6656 = vpop.f32.mrb[0].mxu0
    %6657 = vmatprep.mubr.bf16.mxu0 0
    %6658 = vmatmul.mubr.bf16.gmra.mrb[0].mxu0 %v6457
    %v6659 = vpop.f32.mrb[0].mxu0
    %v6660 = vadd.f32 0.0, %v6659
    %v6661 = vpop.f32.mrb[0].mxu0
    %v6662 = vpop.f32.mrb[0].mxu0
    %v6663 = vadd.f32 0.0, %v6662
    %v6664 = vpop.f32.mrb[0].mxu0
    %6665 = vmatprep.mubr.bf16.mxu0 0
    %6666 = vmatmul.mubr.bf16.gmra.mrb[0].mxu0 %v6458
    %v6667 = vpop.f32.mrb[0].mxu0
    %v6668 = vadd.f32 0.0, %v6667
    %v6669 = vpop.f32.mrb[0].mxu0
    %v6670 = vpop.f32.mrb[0].mxu0
    %v6671 = vadd.f32 0.0, %v6670
    %v6672 = vpop.f32.mrb[0].mxu0
    %6673 = vmatprep.mubr.bf16.mxu0 0
    %6674 = vmatmul.mubr.bf16.gmra.mrb[0].mxu0 %v6459
    %v6675 = vpop.f32.mrb[0].mxu0
    %v6676 = vadd.f32 0.0, %v6675
    %v6677 = vpop.f32.mrb[0].mxu0
    %v6678 = vpop.f32.mrb[0].mxu0
    %v6679 = vadd.f32 0.0, %v6678
    %v6680 = vpop.f32.mrb[0].mxu0
    %6681 = vmatprep.mubr.bf16.mxu0 0
    %6682 = vmatmul.mubr.bf16.gmra.mrb[0].mxu0 %v6460
    %v6683 = vpop.f32.mrb[0].mxu0
    %v6684 = vadd.f32 0.0, %v6683
    %v6685 = vpop.f32.mrb[0].mxu0
    %v6686 = vpop.f32.mrb[0].mxu0
    %v6687 = vadd.f32 0.0, %v6686
    %v6688 = vpop.f32.mrb[0].mxu0
    %6689 = vmatprep.mubr.bf16.mxu0 0
    %6690 = vmatmul.mubr.bf16.gmra.mrb[0].mxu0 %v6461
    %v6691 = vpop.f32.mrb[0].mxu0
    %v6692 = vadd.f32 0.0, %v6691
    %v6693 = vpop.f32.mrb[0].mxu0
    %v6694 = vpop.f32.mrb[0].mxu0
    %v6695 = vadd.f32 0.0, %v6694
    %v6696 = vpop.f32.mrb[0].mxu0
    %6697 = vmatprep.mubr.bf16.mxu0 0
    %6698 = vmatmul.mubr.bf16.gmra.mrb[0].mxu0 %v6462
    %v6699 = vpop.f32.mrb[0].mxu0
    %v6700 = vadd.f32 0.0, %v6699
    %v6701 = vpop.f32.mrb[0].mxu0
    %v6702 = vpop.f32.mrb[0].mxu0
    %v6703 = vadd.f32 0.0, %v6702
    %v6704 = vpop.f32.mrb[0].mxu0
    %6705 = vmatprep.mubr.bf16.mxu0 0
    %6706 = vmatmul.mubr.bf16.gmra.mrb[0].mxu0 %v6463
    %v6707 = vpop.f32.mrb[0].mxu0
    %v6708 = vadd.f32 0.0, %v6707
    %v6709 = vpop.f32.mrb[0].mxu0
    %v6710 = vpop.f32.mrb[0].mxu0
    %v6711 = vadd.f32 0.0, %v6710
    %v6712 = vpop.f32.mrb[0].mxu0
    %6713 = vmatprep.mubr.bf16.mxu0 0
    %6714 = vmatmul.mubr.bf16.gmra.mrb[0].mxu0 %v6464
    %v6715 = vpop.f32.mrb[0].mxu0
    %v6716 = vadd.f32 0.0, %v6715
    %v6717 = vpop.f32.mrb[0].mxu0
    %v6718 = vpop.f32.mrb[0].mxu0
    %v6719 = vadd.f32 0.0, %v6718
    %v6720 = vpop.f32.mrb[0].mxu0
    %6721 = vmatprep.mubr.bf16.mxu0 0
    %6722 = vmatmul.mubr.bf16.gmra.mrb[0].mxu0 %v6465
    %v6723 = vpop.f32.mrb[0].mxu0
    %v6724 = vadd.f32 0.0, %v6723
    %v6725 = vpop.f32.mrb[0].mxu0
    %v6726 = vpop.f32.mrb[0].mxu0
    %v6727 = vadd.f32 0.0, %v6726
    %v6728 = vpop.f32.mrb[0].mxu0
    %6729 = vmatprep.mubr.bf16.mxu0 0
    %6730 = vmatmul.mubr.bf16.gmra.mrb[0].mxu0 %v6466
    %v6731 = vpop.f32.mrb[0].mxu0
    %v6732 = vadd.f32 0.0, %v6731
    %v6733 = vpop.f32.mrb[0].mxu0
    %v6734 = vpop.f32.mrb[0].mxu0
    %v6735 = vadd.f32 0.0, %v6734
    %v6736 = vpop.f32.mrb[0].mxu0
    %6737 = vmatprep.mubr.bf16.mxu0 0
    %6738 = vmatmul.mubr.bf16.gmra.mrb[0].mxu0 %v6467
    %v6739 = vpop.f32.mrb[0].mxu0
    %v6740 = vadd.f32 0.0, %v6739
    %v6741 = vpop.f32.mrb[0].mxu0
    %v6742 = vpop.f32.mrb[0].mxu0
    %v6743 = vadd.f32 0.0, %v6742
    %v6744 = vpop.f32.mrb[0].mxu0
    %6745 = vmatprep.mubr.bf16.mxu0 0
    %6746 = vmatmul.mubr.bf16.gmra.mrb[0].mxu0 %v6468
    %v6747 = vpop.f32.mrb[0].mxu0
    %v6748 = vadd.f32 0.0, %v6747
    %v6749 = vpop.f32.mrb[0].mxu0
    %v6750 = vpop.f32.mrb[0].mxu0
    %v6751 = vadd.f32 0.0, %v6750
    %v6752 = vpop.f32.mrb[0].mxu0
    %6753 = vmatprep.mubr.bf16.mxu0 0
    %6754 = vmatmul.mubr.bf16.gmra.mrb[0].mxu0 %v6469
    %v6755 = vpop.f32.mrb[0].mxu0
    %v6756 = vadd.f32 0.0, %v6755
    %v6757 = vpop.f32.mrb[0].mxu0
    %v6758 = vpop.f32.mrb[0].mxu0
    %v6759 = vadd.f32 0.0, %v6758
    %v6760 = vpop.f32.mrb[0].mxu0
    %6761 = vmatprep.mubr.bf16.mxu0 0
    %6762 = vmatmul.mubr.bf16.gmra.mrb[0].mxu0 %v6470
    %v6763 = vpop.f32.mrb[0].mxu0
    %v6764 = vadd.f32 0.0, %v6763
    %v6765 = vpop.f32.mrb[0].mxu0
    %v6766 = vpop.f32.mrb[0].mxu0
    %v6767 = vadd.f32 0.0, %v6766
    %v6768 = vpop.f32.mrb[0].mxu0
    %6769 = vmatprep.mubr.bf16.mxu0 0
    %6770 = vmatmul.mubr.bf16.gmra.mrb[0].mxu0 %v6471
    %v6771 = vpop.f32.mrb[0].mxu0
    %v6772 = vadd.f32 0.0, %v6771
    %v6773 = vpop.f32.mrb[0].mxu0
    %v6774 = vpop.f32.mrb[0].mxu0
    %v6775 = vadd.f32 0.0, %v6774
    %v6776 = vpop.f32.mrb[0].mxu0
    %6777 = vmatprep.mubr.bf16.mxu0 0
    %6778 = vmatmul.mubr.bf16.gmra.mrb[0].mxu0 %v6472
    %v6779 = vpop.f32.mrb[0].mxu0
    %v6780 = vadd.f32 0.0, %v6779
    %v6781 = vpop.f32.mrb[0].mxu0
    %v6782 = vpop.f32.mrb[0].mxu0
    %v6783 = vadd.f32 0.0, %v6782
    %v6784 = vpop.f32.mrb[0].mxu0
    %6785 = vmatprep.mubr.bf16.mxu0 0
    %6786 = vmatmul.mubr.bf16.gmra.mrb[0].mxu0 %v6473
    %v6787 = vpop.f32.mrb[0].mxu0
    %v6788 = vadd.f32 0.0, %v6787
    %v6789 = vpop.f32.mrb[0].mxu0
    %v6790 = vpop.f32.mrb[0].mxu0
    %v6791 = vadd.f32 0.0, %v6790
    %v6792 = vpop.f32.mrb[0].mxu0
    %6793 = vmatprep.mubr.bf16.mxu0 0
    %6794 = vmatmul.mubr.bf16.gmra.mrb[0].mxu0 %v6474
    %v6795 = vpop.f32.mrb[0].mxu0
    %v6796 = vadd.f32 0.0, %v6795
    %v6797 = vpop.f32.mrb[0].mxu0
    %v6798 = vpop.f32.mrb[0].mxu0
    %v6799 = vadd.f32 0.0, %v6798
    %v6800 = vpop.f32.mrb[0].mxu0
    %6801 = vmatprep.mubr.bf16.mxu0 0
    %6802 = vmatmul.mubr.bf16.gmra.mrb[0].mxu0 %v6475
    %v6803 = vpop.f32.mrb[0].mxu0
    %v6804 = vadd.f32 0.0, %v6803
    %v6805 = vpop.f32.mrb[0].mxu0
    %v6806 = vpop.f32.mrb[0].mxu0
    %v6807 = vadd.f32 0.0, %v6806
    %v6808 = vpop.f32.mrb[0].mxu0
    %6809 = vmatprep.mubr.bf16.mxu0 0
    %6810 = vmatmul.mubr.bf16.gmra.mrb[0].mxu0 %v6476
    %v6811 = vpop.f32.mrb[0].mxu0
    %v6812 = vadd.f32 0.0, %v6811
    %v6813 = vpop.f32.mrb[0].mxu0
    %v6814 = vpop.f32.mrb[0].mxu0
    %v6815 = vadd.f32 0.0, %v6814
    %v6816 = vpop.f32.mrb[0].mxu0
    %6817 = vmatprep.mubr.bf16.mxu0 0
    %6818 = vmatmul.mubr.bf16.gmra.mrb[0].mxu0 %v6477
    %v6819 = vpop.f32.mrb[0].mxu0
    %v6820 = vadd.f32 0.0, %v6819
    %v6821 = vpop.f32.mrb[0].mxu0
    %v6822 = vpop.f32.mrb[0].mxu0
    %v6823 = vadd.f32 0.0, %v6822
    %v6824 = vpop.f32.mrb[0].mxu0
    %6825 = vmatprep.mubr.bf16.mxu0 0
    %6826 = vmatmul.mubr.bf16.gmra.mrb[0].mxu0 %v6478
    %v6827 = vpop.f32.mrb[0].mxu0
    %v6828 = vadd.f32 0.0, %v6827
    %v6829 = vpop.f32.mrb[0].mxu0
    %v6830 = vpop.f32.mrb[0].mxu0
    %v6831 = vadd.f32 0.0, %v6830
    %v6832 = vpop.f32.mrb[0].mxu0
    %6833 = vmatprep.mubr.bf16.mxu0 0
    %6834 = vmatmul.mubr.bf16.gmra.mrb[0].mxu0 %v6479
    %v6835 = vpop.f32.mrb[0].mxu0
    %v6836 = vadd.f32 0.0, %v6835
    %v6837 = vpop.f32.mrb[0].mxu0
    %v6838 = vpop.f32.mrb[0].mxu0
    %v6839 = vadd.f32 0.0, %v6838
    %v6840 = vpop.f32.mrb[0].mxu0
    %6841 = vmatprep.mubr.bf16.mxu0 0
    %6842 = vmatmul.mubr.bf16.gmra.mrb[0].mxu0 %v6480
    %v6843 = vpop.f32.mrb[0].mxu0
    %v6844 = vadd.f32 0.0, %v6843
    %v6845 = vpop.f32.mrb[0].mxu0
    %v6846 = vpop.f32.mrb[0].mxu0
    %v6847 = vadd.f32 0.0, %v6846
    %v6848 = vpop.f32.mrb[0].mxu0
    %6849 = vdwg.mxu0
    %v6850 = vadd.f32 %v6175, %v6596
    %v6851 = vadd.f32 %v6176, %v6599
    %v6852 = vadd.f32 %v6177, %v6604
    %v6853 = vadd.f32 %v6178, %v6607
    %v6854 = vadd.f32 %v6179, %v6612
    %v6855 = vadd.f32 %v6180, %v6615
    %v6856 = vadd.f32 %v6181, %v6620
    %v6857 = vadd.f32 %v6182, %v6623
    %v6858 = vadd.f32 %v6183, %v6628
    %v6859 = vadd.f32 %v6184, %v6631
    %v6860 = vadd.f32 %v6185, %v6636
    %v6861 = vadd.f32 %v6186, %v6639
    %v6862 = vadd.f32 %v6187, %v6644
    %v6863 = vadd.f32 %v6188, %v6647
    %v6864 = vadd.f32 %v6189, %v6652
    %v6865 = vadd.f32 %v6190, %v6655
    %v6866 = vadd.f32 %v6191, %v6660
    %v6867 = vadd.f32 %v6192, %v6663
    %v6868 = vadd.f32 %v6193, %v6668
    %v6869 = vadd.f32 %v6194, %v6671
    %v6870 = vadd.f32 %v6195, %v6676
    %v6871 = vadd.f32 %v6196, %v6679
    %v6872 = vadd.f32 %v6197, %v6684
    %v6873 = vadd.f32 %v6198, %v6687
    %v6874 = vadd.f32 %v6199, %v6692
    %v6875 = vadd.f32 %v6200, %v6695
    %v6876 = vadd.f32 %v6201, %v6700
    %v6877 = vadd.f32 %v6202, %v6703
    %v6878 = vadd.f32 %v6203, %v6708
    %v6879 = vadd.f32 %v6204, %v6711
    %v6880 = vadd.f32 %v6205, %v6716
    %v6881 = vadd.f32 %v6206, %v6719
    %v6882 = vadd.f32 %v6207, %v6724
    %v6883 = vadd.f32 %v6208, %v6727
    %v6884 = vadd.f32 %v6209, %v6732
    %v6885 = vadd.f32 %v6210, %v6735
    %v6886 = vadd.f32 %v6211, %v6740
    %v6887 = vadd.f32 %v6212, %v6743
    %v6888 = vadd.f32 %v6213, %v6748
    %v6889 = vadd.f32 %v6214, %v6751
    %v6890 = vadd.f32 %v6215, %v6756
    %v6891 = vadd.f32 %v6216, %v6759
    %v6892 = vadd.f32 %v6217, %v6764
    %v6893 = vadd.f32 %v6218, %v6767
    %v6894 = vadd.f32 %v6219, %v6772
    %v6895 = vadd.f32 %v6220, %v6775
    %v6896 = vadd.f32 %v6221, %v6780
    %v6897 = vadd.f32 %v6222, %v6783
    %v6898 = vadd.f32 %v6223, %v6788
    %v6899 = vadd.f32 %v6224, %v6791
    %v6900 = vadd.f32 %v6225, %v6796
    %v6901 = vadd.f32 %v6226, %v6799
    %v6902 = vadd.f32 %v6227, %v6804
    %v6903 = vadd.f32 %v6228, %v6807
    %v6904 = vadd.f32 %v6229, %v6812
    %v6905 = vadd.f32 %v6230, %v6815
    %v6906 = vadd.f32 %v6231, %v6820
    %v6907 = vadd.f32 %v6232, %v6823
    %v6908 = vadd.f32 %v6233, %v6828
    %v6909 = vadd.f32 %v6234, %v6831
    %v6910 = vadd.f32 %v6235, %v6836
    %v6911 = vadd.f32 %v6236, %v6839
    %v6912 = vadd.f32 %v6237, %v6844
    %v6913 = vadd.f32 %v6238, %v6847
    %v6914 = vld [vmem:[%s6239] sm:$0xf]
    %v6915 = vld [vmem:[%s6239 + $0x4] sm:$0xf]
    %v6916 = vld [vmem:[%s6239 + $0x8] sm:$0x1]
    %v6917 = vld [vmem:[%s6239 + $0xc] sm:$0xf]
    %v6918 = vld [vmem:[%s6239 + $0x10] sm:$0xf]
    %v6919 = vld [vmem:[%s6239 + $0x14] sm:$0x1]
    %v6920 = vld [vmem:[%s6239 + $0x18] sm:$0xf]
    %v6921 = vld [vmem:[%s6239 + $0x1c] sm:$0xf]
    %v6922 = vld [vmem:[%s6239 + $0x20] sm:$0x1]
    %v6923 = vld [vmem:[%s6239 + $0x24] sm:$0xf]
    %v6924 = vld [vmem:[%s6239 + $0x28] sm:$0xf]
    %v6925 = vld [vmem:[%s6239 + $0x2c] sm:$0x1]
    %v6926 = vld [vmem:[%s6239 + $0x30] sm:$0xf]
    %v6927 = vld [vmem:[%s6239 + $0x34] sm:$0xf]
    %v6928 = vld [vmem:[%s6239 + $0x38] sm:$0x1]
    %v6929 = vld [vmem:[%s6239 + $0x3c] sm:$0xf]
    %v6930 = vld [vmem:[%s6239 + $0x40] sm:$0xf]
    %v6931 = vld [vmem:[%s6239 + $0x44] sm:$0x1]
    %v6932 = vld [vmem:[%s6239 + $0x48] sm:$0xf]
    %v6933 = vld [vmem:[%s6239 + $0x4c] sm:$0xf]
    %v6934 = vld [vmem:[%s6239 + $0x50] sm:$0x1]
    %v6935 = vld [vmem:[%s6239 + $0x54] sm:$0xf]
    %v6936 = vld [vmem:[%s6239 + $0x58] sm:$0xf]
    %v6937 = vld [vmem:[%s6239 + $0x5c] sm:$0x1]
    %v6938 = vld [vmem:[%s6239 + $0x60] sm:$0xf]
    %v6939 = vld [vmem:[%s6239 + $0x64] sm:$0xf]
    %v6940 = vld [vmem:[%s6239 + $0x68] sm:$0x1]
    %v6941 = vld [vmem:[%s6239 + $0x6c] sm:$0xf]
    %v6942 = vld [vmem:[%s6239 + $0x70] sm:$0xf]
    %v6943 = vld [vmem:[%s6239 + $0x74] sm:$0x1]
    %v6944 = vld [vmem:[%s6239 + $0x78] sm:$0xf]
    %v6945 = vld [vmem:[%s6239 + $0x7c] sm:$0xf]
    %v6946 = vld [vmem:[%s6239 + $0x80] sm:$0x1]
    %v6947 = vld [vmem:[%s6239 + $0x84] sm:$0xf]
    %v6948 = vld [vmem:[%s6239 + $0x88] sm:$0xf]
    %v6949 = vld [vmem:[%s6239 + $0x8c] sm:$0x1]
    %v6950 = vld [vmem:[%s6239 + $0x90] sm:$0xf]
    %v6951 = vld [vmem:[%s6239 + $0x94] sm:$0xf]
    %v6952 = vld [vmem:[%s6239 + $0x98] sm:$0x1]
    %v6953 = vld [vmem:[%s6239 + $0x9c] sm:$0xf]
    %v6954 = vld [vmem:[%s6239 + $0xa0] sm:$0xf]
    %v6955 = vld [vmem:[%s6239 + $0xa4] sm:$0x1]
    %v6956 = vld [vmem:[%s6239 + $0xa8] sm:$0xf]
    %v6957 = vld [vmem:[%s6239 + $0xac] sm:$0xf]
    %v6958 = vld [vmem:[%s6239 + $0xb0] sm:$0x1]
    %v6959 = vld [vmem:[%s6239 + $0xb4] sm:$0xf]
    %v6960 = vld [vmem:[%s6239 + $0xb8] sm:$0xf]
    %v6961 = vld [vmem:[%s6239 + $0xbc] sm:$0x1]
    %v6962 = vld [vmem:[%s6239 + $0xd8] sm:$0xf]
    %v6963 = vld [vmem:[%s6239 + $0xdc] sm:$0xf]
    %v6964 = vld [vmem:[%s6239 + $0xe0] sm:$0x1]
    %v6965 = vld [vmem:[%s6239 + $0xe4] sm:$0xf]
    %v6966 = vld [vmem:[%s6239 + $0xe8] sm:$0xf]
    %v6967 = vld [vmem:[%s6239 + $0xec] sm:$0x1]
    %v6968 = vld [vmem:[%s6239 + $0xf0] sm:$0xf]
    %v6969 = vld [vmem:[%s6239 + $0xf4] sm:$0xf]
    %v6970 = vld [vmem:[%s6239 + $0xf8] sm:$0x1]
    %v6971 = vld [vmem:[%s6239 + $0xfc] sm:$0xf]
    %v6972 = vld [vmem:[%s6239 + $0x100] sm:$0xf]
    %v6973 = vld [vmem:[%s6239 + $0x104] sm:$0x1]
    %v6974 = vld [vmem:[%s6239 + $0x108] sm:$0xf]
    %v6975 = vld [vmem:[%s6239 + $0x10c] sm:$0xf]
    %v6976 = vld [vmem:[%s6239 + $0x110] sm:$0x1]
    %v6977 = vld [vmem:[%s6239 + $0x114] sm:$0xf]
    %v6978 = vld [vmem:[%s6239 + $0x118] sm:$0xf]
    %v6979 = vld [vmem:[%s6239 + $0x11c] sm:$0x1]
    %v6980 = vld [vmem:[%s6239 + $0x120] sm:$0xf]
    %v6981 = vld [vmem:[%s6239 + $0x124] sm:$0xf]
    %v6982 = vld [vmem:[%s6239 + $0x128] sm:$0x1]
    %v6983 = vld [vmem:[%s6239 + $0x12c] sm:$0xf]
    %v6984 = vld [vmem:[%s6239 + $0x130] sm:$0xf]
    %v6985 = vld [vmem:[%s6239 + $0x134] sm:$0x1]
    %v6986 = vld [vmem:[%s6239 + $0x138] sm:$0xf]
    %v6987 = vld [vmem:[%s6239 + $0x13c] sm:$0xf]
    %v6988 = vld [vmem:[%s6239 + $0x140] sm:$0x1]
    %v6989 = vld [vmem:[%s6239 + $0x144] sm:$0xf]
    %v6990 = vld [vmem:[%s6239 + $0x148] sm:$0xf]
    %v6991 = vld [vmem:[%s6239 + $0x14c] sm:$0x1]
    %v6992 = vld [vmem:[%s6239 + $0x150] sm:$0xf]
    %v6993 = vld [vmem:[%s6239 + $0x154] sm:$0xf]
    %v6994 = vld [vmem:[%s6239 + $0x158] sm:$0x1]
    %v6995 = vld [vmem:[%s6239 + $0x15c] sm:$0xf]
    %v6996 = vld [vmem:[%s6239 + $0x160] sm:$0xf]
    %v6997 = vld [vmem:[%s6239 + $0x164] sm:$0x1]
    %v6998 = vld [vmem:[%s6239 + $0x168] sm:$0xf]
    %v6999 = vld [vmem:[%s6239 + $0x16c] sm:$0xf]
    %v7000 = vld [vmem:[%s6239 + $0x170] sm:$0x1]
    %v7001 = vld [vmem:[%s6239 + $0x174] sm:$0xf]
    %v7002 = vld [vmem:[%s6239 + $0x178] sm:$0xf]
    %v7003 = vld [vmem:[%s6239 + $0x17c] sm:$0x1]
    %v7004 = vld [vmem:[%s6239 + $0x180] sm:$0xf]
    %v7005 = vld [vmem:[%s6239 + $0x184] sm:$0xf]
    %v7006 = vld [vmem:[%s6239 + $0x188] sm:$0x1]
    %v7007 = vld [vmem:[%s6239 + $0x18c] sm:$0xf]
    %v7008 = vld [vmem:[%s6239 + $0x190] sm:$0xf]
    %v7009 = vld [vmem:[%s6239 + $0x194] sm:$0x1]
    %v7011 = vshrl.u32 %v6914, 16
    %v7013 = vrot.slane %v7011, 4
    %v7014 = vshll.u32 %v6914, 16
    %v7016 = vrot.slane %v7014, 5
    %v7017 = vor.u32 %v7013, %v7016
    %v7018 = vrot.slane %v7017, 4
    %v7020 = vshll.u32 %v6915, 16
    %v7022 = vrot.slane %v7020, 5
    %v7023 = vsel %vm1344, %v7018, %v7022
    %v7024 = vshrl.u32 %v6915, 16
    %v7026 = vrot.slane %v7024, 4
    %v7027 = vor.u32 %v7026, %v7022
    %v7028 = vrot.slane %v7027, 4
    %v7030 = vshll.u32 %v6916, 16
    %v7032 = vrot.slane %v7030, 5
    %v7033 = vsel %vm1344, %v7028, %v7032
    %v7035 = vshrl.u32 %v6917, 16
    %v7037 = vrot.slane %v7035, 4
    %v7038 = vshll.u32 %v6917, 16
    %v7040 = vrot.slane %v7038, 5
    %v7041 = vor.u32 %v7037, %v7040
    %v7042 = vrot.slane %v7041, 4
    %v7044 = vshll.u32 %v6918, 16
    %v7046 = vrot.slane %v7044, 5
    %v7047 = vsel %vm1344, %v7042, %v7046
    %v7048 = vshrl.u32 %v6918, 16
    %v7050 = vrot.slane %v7048, 4
    %v7051 = vor.u32 %v7050, %v7046
    %v7052 = vrot.slane %v7051, 4
    %v7054 = vshll.u32 %v6919, 16
    %v7056 = vrot.slane %v7054, 5
    %v7057 = vsel %vm1344, %v7052, %v7056
    %v7059 = vshrl.u32 %v6920, 16
    %v7061 = vrot.slane %v7059, 4
    %v7062 = vshll.u32 %v6920, 16
    %v7064 = vrot.slane %v7062, 5
    %v7065 = vor.u32 %v7061, %v7064
    %v7066 = vrot.slane %v7065, 4
    %v7068 = vshll.u32 %v6921, 16
    %v7070 = vrot.slane %v7068, 5
    %v7071 = vsel %vm1344, %v7066, %v7070
    %v7072 = vshrl.u32 %v6921, 16
    %v7074 = vrot.slane %v7072, 4
    %v7075 = vor.u32 %v7074, %v7070
    %v7076 = vrot.slane %v7075, 4
    %v7078 = vshll.u32 %v6922, 16
    %v7080 = vrot.slane %v7078, 5
    %v7081 = vsel %vm1344, %v7076, %v7080
    %v7083 = vshrl.u32 %v6923, 16
    %v7085 = vrot.slane %v7083, 4
    %v7086 = vshll.u32 %v6923, 16
    %v7088 = vrot.slane %v7086, 5
    %v7089 = vor.u32 %v7085, %v7088
    %v7090 = vrot.slane %v7089, 4
    %v7092 = vshll.u32 %v6924, 16
    %v7094 = vrot.slane %v7092, 5
    %v7095 = vsel %vm1344, %v7090, %v7094
    %v7096 = vshrl.u32 %v6924, 16
    %v7098 = vrot.slane %v7096, 4
    %v7099 = vor.u32 %v7098, %v7094
    %v7100 = vrot.slane %v7099, 4
    %v7102 = vshll.u32 %v6925, 16
    %v7104 = vrot.slane %v7102, 5
    %v7105 = vsel %vm1344, %v7100, %v7104
    %v7107 = vshrl.u32 %v6926, 16
    %v7109 = vrot.slane %v7107, 4
    %v7110 = vshll.u32 %v6926, 16
    %v7112 = vrot.slane %v7110, 5
    %v7113 = vor.u32 %v7109, %v7112
    %v7114 = vrot.slane %v7113, 4
    %v7116 = vshll.u32 %v6927, 16
    %v7118 = vrot.slane %v7116, 5
    %v7119 = vsel %vm1344, %v7114, %v7118
    %v7120 = vshrl.u32 %v6927, 16
    %v7122 = vrot.slane %v7120, 4
    %v7123 = vor.u32 %v7122, %v7118
    %v7124 = vrot.slane %v7123, 4
    %v7126 = vshll.u32 %v6928, 16
    %v7128 = vrot.slane %v7126, 5
    %v7129 = vsel %vm1344, %v7124, %v7128
    %v7131 = vshrl.u32 %v6929, 16
    %v7133 = vrot.slane %v7131, 4
    %v7134 = vshll.u32 %v6929, 16
    %v7136 = vrot.slane %v7134, 5
    %v7137 = vor.u32 %v7133, %v7136
    %v7138 = vrot.slane %v7137, 4
    %v7140 = vshll.u32 %v6930, 16
    %v7142 = vrot.slane %v7140, 5
    %v7143 = vsel %vm1344, %v7138, %v7142
    %v7144 = vshrl.u32 %v6930, 16
    %v7146 = vrot.slane %v7144, 4
    %v7147 = vor.u32 %v7146, %v7142
    %v7148 = vrot.slane %v7147, 4
    %v7150 = vshll.u32 %v6931, 16
    %v7152 = vrot.slane %v7150, 5
    %v7153 = vsel %vm1344, %v7148, %v7152
    %v7155 = vshrl.u32 %v6932, 16
    %v7157 = vrot.slane %v7155, 4
    %v7158 = vshll.u32 %v6932, 16
    %v7160 = vrot.slane %v7158, 5
    %v7161 = vor.u32 %v7157, %v7160
    %v7162 = vrot.slane %v7161, 4
    %v7164 = vshll.u32 %v6933, 16
    %v7166 = vrot.slane %v7164, 5
    %v7167 = vsel %vm1344, %v7162, %v7166
    %v7168 = vshrl.u32 %v6933, 16
    %v7170 = vrot.slane %v7168, 4
    %v7171 = vor.u32 %v7170, %v7166
    %v7172 = vrot.slane %v7171, 4
    %v7174 = vshll.u32 %v6934, 16
    %v7176 = vrot.slane %v7174, 5
    %v7177 = vsel %vm1344, %v7172, %v7176
    %v7179 = vshrl.u32 %v6935, 16
    %v7181 = vrot.slane %v7179, 4
    %v7182 = vshll.u32 %v6935, 16
    %v7184 = vrot.slane %v7182, 5
    %v7185 = vor.u32 %v7181, %v7184
    %v7186 = vrot.slane %v7185, 4
    %v7188 = vshll.u32 %v6936, 16
    %v7190 = vrot.slane %v7188, 5
    %v7191 = vsel %vm1344, %v7186, %v7190
    %v7192 = vshrl.u32 %v6936, 16
    %v7194 = vrot.slane %v7192, 4
    %v7195 = vor.u32 %v7194, %v7190
    %v7196 = vrot.slane %v7195, 4
    %v7198 = vshll.u32 %v6937, 16
    %v7200 = vrot.slane %v7198, 5
    %v7201 = vsel %vm1344, %v7196, %v7200
    %v7203 = vshrl.u32 %v6938, 16
    %v7205 = vrot.slane %v7203, 4
    %v7206 = vshll.u32 %v6938, 16
    %v7208 = vrot.slane %v7206, 5
    %v7209 = vor.u32 %v7205, %v7208
    %v7210 = vrot.slane %v7209, 4
    %v7212 = vshll.u32 %v6939, 16
    %v7214 = vrot.slane %v7212, 5
    %v7215 = vsel %vm1344, %v7210, %v7214
    %v7216 = vshrl.u32 %v6939, 16
    %v7218 = vrot.slane %v7216, 4
    %v7219 = vor.u32 %v7218, %v7214
    %v7220 = vrot.slane %v7219, 4
    %v7222 = vshll.u32 %v6940, 16
    %v7224 = vrot.slane %v7222, 5
    %v7225 = vsel %vm1344, %v7220, %v7224
    %v7227 = vshrl.u32 %v6941, 16
    %v7229 = vrot.slane %v7227, 4
    %v7230 = vshll.u32 %v6941, 16
    %v7232 = vrot.slane %v7230, 5
    %v7233 = vor.u32 %v7229, %v7232
    %v7234 = vrot.slane %v7233, 4
    %v7236 = vshll.u32 %v6942, 16
    %v7238 = vrot.slane %v7236, 5
    %v7239 = vsel %vm1344, %v7234, %v7238
    %v7240 = vshrl.u32 %v6942, 16
    %v7242 = vrot.slane %v7240, 4
    %v7243 = vor.u32 %v7242, %v7238
    %v7244 = vrot.slane %v7243, 4
    %v7246 = vshll.u32 %v6943, 16
    %v7248 = vrot.slane %v7246, 5
    %v7249 = vsel %vm1344, %v7244, %v7248
    %v7251 = vshrl.u32 %v6944, 16
    %v7253 = vrot.slane %v7251, 4
    %v7254 = vshll.u32 %v6944, 16
    %v7256 = vrot.slane %v7254, 5
    %v7257 = vor.u32 %v7253, %v7256
    %v7258 = vrot.slane %v7257, 4
    %v7260 = vshll.u32 %v6945, 16
    %v7262 = vrot.slane %v7260, 5
    %v7263 = vsel %vm1344, %v7258, %v7262
    %v7264 = vshrl.u32 %v6945, 16
    %v7266 = vrot.slane %v7264, 4
    %v7267 = vor.u32 %v7266, %v7262
    %v7268 = vrot.slane %v7267, 4
    %v7270 = vshll.u32 %v6946, 16
    %v7272 = vrot.slane %v7270, 5
    %v7273 = vsel %vm1344, %v7268, %v7272
    %v7275 = vshrl.u32 %v6947, 16
    %v7277 = vrot.slane %v7275, 4
    %v7278 = vshll.u32 %v6947, 16
    %v7280 = vrot.slane %v7278, 5
    %v7281 = vor.u32 %v7277, %v7280
    %v7282 = vrot.slane %v7281, 4
    %v7284 = vshll.u32 %v6948, 16
    %v7286 = vrot.slane %v7284, 5
    %v7287 = vsel %vm1344, %v7282, %v7286
    %v7288 = vshrl.u32 %v6948, 16
    %v7290 = vrot.slane %v7288, 4
    %v7291 = vor.u32 %v7290, %v7286
    %v7292 = vrot.slane %v7291, 4
    %v7294 = vshll.u32 %v6949, 16
    %v7296 = vrot.slane %v7294, 5
    %v7297 = vsel %vm1344, %v7292, %v7296
    %v7299 = vshrl.u32 %v6950, 16
    %v7301 = vrot.slane %v7299, 4
    %v7302 = vshll.u32 %v6950, 16
    %v7304 = vrot.slane %v7302, 5
    %v7305 = vor.u32 %v7301, %v7304
    %v7306 = vrot.slane %v7305, 4
    %v7308 = vshll.u32 %v6951, 16
    %v7310 = vrot.slane %v7308, 5
    %v7311 = vsel %vm1344, %v7306, %v7310
    %v7312 = vshrl.u32 %v6951, 16
    %v7314 = vrot.slane %v7312, 4
    %v7315 = vor.u32 %v7314, %v7310
    %v7316 = vrot.slane %v7315, 4
    %v7318 = vshll.u32 %v6952, 16
    %v7320 = vrot.slane %v7318, 5
    %v7321 = vsel %vm1344, %v7316, %v7320
    %v7323 = vshrl.u32 %v6953, 16
    %v7325 = vrot.slane %v7323, 4
    %v7326 = vshll.u32 %v6953, 16
    %v7328 = vrot.slane %v7326, 5
    %v7329 = vor.u32 %v7325, %v7328
    %v7330 = vrot.slane %v7329, 4
    %v7332 = vshll.u32 %v6954, 16
    %v7334 = vrot.slane %v7332, 5
    %v7335 = vsel %vm1344, %v7330, %v7334
    %v7336 = vshrl.u32 %v6954, 16
    %v7338 = vrot.slane %v7336, 4
    %v7339 = vor.u32 %v7338, %v7334
    %v7340 = vrot.slane %v7339, 4
    %v7342 = vshll.u32 %v6955, 16
    %v7344 = vrot.slane %v7342, 5
    %v7345 = vsel %vm1344, %v7340, %v7344
    %v7347 = vshrl.u32 %v6956, 16
    %v7349 = vrot.slane %v7347, 4
    %v7350 = vshll.u32 %v6956, 16
    %v7352 = vrot.slane %v7350, 5
    %v7353 = vor.u32 %v7349, %v7352
    %v7354 = vrot.slane %v7353, 4
    %v7356 = vshll.u32 %v6957, 16
    %v7358 = vrot.slane %v7356, 5
    %v7359 = vsel %vm1344, %v7354, %v7358
    %v7360 = vshrl.u32 %v6957, 16
    %v7362 = vrot.slane %v7360, 4
    %v7363 = vor.u32 %v7362, %v7358
    %v7364 = vrot.slane %v7363, 4
    %v7366 = vshll.u32 %v6958, 16
    %v7368 = vrot.slane %v7366, 5
    %v7369 = vsel %vm1344, %v7364, %v7368
    %v7371 = vshrl.u32 %v6959, 16
    %v7373 = vrot.slane %v7371, 4
    %v7374 = vshll.u32 %v6959, 16
    %v7376 = vrot.slane %v7374, 5
    %v7377 = vor.u32 %v7373, %v7376
    %v7378 = vrot.slane %v7377, 4
    %v7380 = vshll.u32 %v6960, 16
    %v7382 = vrot.slane %v7380, 5
    %v7383 = vsel %vm1344, %v7378, %v7382
    %v7384 = vshrl.u32 %v6960, 16
    %v7386 = vrot.slane %v7384, 4
    %v7387 = vor.u32 %v7386, %v7382
    %v7388 = vrot.slane %v7387, 4
    %v7390 = vshll.u32 %v6961, 16
    %v7392 = vrot.slane %v7390, 5
    %v7393 = vsel %vm1344, %v7388, %v7392
    %v7395 = vshrl.u32 %v6962, 16
    %v7397 = vrot.slane %v7395, 4
    %v7398 = vshll.u32 %v6962, 16
    %v7400 = vrot.slane %v7398, 5
    %v7401 = vor.u32 %v7397, %v7400
    %v7402 = vrot.slane %v7401, 4
    %v7404 = vshll.u32 %v6963, 16
    %v7406 = vrot.slane %v7404, 5
    %v7407 = vsel %vm1344, %v7402, %v7406
    %v7408 = vshrl.u32 %v6963, 16
    %v7410 = vrot.slane %v7408, 4
    %v7411 = vor.u32 %v7410, %v7406
    %v7412 = vrot.slane %v7411, 4
    %v7414 = vshll.u32 %v6964, 16
    %v7416 = vrot.slane %v7414, 5
    %v7417 = vsel %vm1344, %v7412, %v7416
    %v7419 = vshrl.u32 %v6965, 16
    %v7421 = vrot.slane %v7419, 4
    %v7422 = vshll.u32 %v6965, 16
    %v7424 = vrot.slane %v7422, 5
    %v7425 = vor.u32 %v7421, %v7424
    %v7426 = vrot.slane %v7425, 4
    %v7428 = vshll.u32 %v6966, 16
    %v7430 = vrot.slane %v7428, 5
    %v7431 = vsel %vm1344, %v7426, %v7430
    %v7432 = vshrl.u32 %v6966, 16
    %v7434 = vrot.slane %v7432, 4
    %v7435 = vor.u32 %v7434, %v7430
    %v7436 = vrot.slane %v7435, 4
    %v7438 = vshll.u32 %v6967, 16
    %v7440 = vrot.slane %v7438, 5
    %v7441 = vsel %vm1344, %v7436, %v7440
    %v7443 = vshrl.u32 %v6968, 16
    %v7445 = vrot.slane %v7443, 4
    %v7446 = vshll.u32 %v6968, 16
    %v7448 = vrot.slane %v7446, 5
    %v7449 = vor.u32 %v7445, %v7448
    %v7450 = vrot.slane %v7449, 4
    %v7452 = vshll.u32 %v6969, 16
    %v7454 = vrot.slane %v7452, 5
    %v7455 = vsel %vm1344, %v7450, %v7454
    %v7456 = vshrl.u32 %v6969, 16
    %v7458 = vrot.slane %v7456, 4
    %v7459 = vor.u32 %v7458, %v7454
    %v7460 = vrot.slane %v7459, 4
    %v7462 = vshll.u32 %v6970, 16
    %v7464 = vrot.slane %v7462, 5
    %v7465 = vsel %vm1344, %v7460, %v7464
    %v7467 = vshrl.u32 %v6971, 16
    %v7469 = vrot.slane %v7467, 4
    %v7470 = vshll.u32 %v6971, 16
    %v7472 = vrot.slane %v7470, 5
    %v7473 = vor.u32 %v7469, %v7472
    %v7474 = vrot.slane %v7473, 4
    %v7476 = vshll.u32 %v6972, 16
    %v7478 = vrot.slane %v7476, 5
    %v7479 = vsel %vm1344, %v7474, %v7478
    %v7480 = vshrl.u32 %v6972, 16
    %v7482 = vrot.slane %v7480, 4
    %v7483 = vor.u32 %v7482, %v7478
    %v7484 = vrot.slane %v7483, 4
    %v7486 = vshll.u32 %v6973, 16
    %v7488 = vrot.slane %v7486, 5
    %v7489 = vsel %vm1344, %v7484, %v7488
    %v7491 = vshrl.u32 %v6974, 16
    %v7493 = vrot.slane %v7491, 4
    %v7494 = vshll.u32 %v6974, 16
    %v7496 = vrot.slane %v7494, 5
    %v7497 = vor.u32 %v7493, %v7496
    %v7498 = vrot.slane %v7497, 4
    %v7500 = vshll.u32 %v6975, 16
    %v7502 = vrot.slane %v7500, 5
    %v7503 = vsel %vm1344, %v7498, %v7502
    %v7504 = vshrl.u32 %v6975, 16
    %v7506 = vrot.slane %v7504, 4
    %v7507 = vor.u32 %v7506, %v7502
    %v7508 = vrot.slane %v7507, 4
    %v7510 = vshll.u32 %v6976, 16
    %v7512 = vrot.slane %v7510, 5
    %v7513 = vsel %vm1344, %v7508, %v7512
    %v7515 = vshrl.u32 %v6977, 16
    %v7517 = vrot.slane %v7515, 4
    %v7518 = vshll.u32 %v6977, 16
    %v7520 = vrot.slane %v7518, 5
    %v7521 = vor.u32 %v7517, %v7520
    %v7522 = vrot.slane %v7521, 4
    %v7524 = vshll.u32 %v6978, 16
    %v7526 = vrot.slane %v7524, 5
    %v7527 = vsel %vm1344, %v7522, %v7526
    %v7528 = vshrl.u32 %v6978, 16
    %v7530 = vrot.slane %v7528, 4
    %v7531 = vor.u32 %v7530, %v7526
    %v7532 = vrot.slane %v7531, 4
    %v7534 = vshll.u32 %v6979, 16
    %v7536 = vrot.slane %v7534, 5
    %v7537 = vsel %vm1344, %v7532, %v7536
    %v7539 = vshrl.u32 %v6980, 16
    %v7541 = vrot.slane %v7539, 4
    %v7542 = vshll.u32 %v6980, 16
    %v7544 = vrot.slane %v7542, 5
    %v7545 = vor.u32 %v7541, %v7544
    %v7546 = vrot.slane %v7545, 4
    %v7548 = vshll.u32 %v6981, 16
    %v7550 = vrot.slane %v7548, 5
    %v7551 = vsel %vm1344, %v7546, %v7550
    %v7552 = vshrl.u32 %v6981, 16
    %v7554 = vrot.slane %v7552, 4
    %v7555 = vor.u32 %v7554, %v7550
    %v7556 = vrot.slane %v7555, 4
    %v7558 = vshll.u32 %v6982, 16
    %v7560 = vrot.slane %v7558, 5
    %v7561 = vsel %vm1344, %v7556, %v7560
    %v7563 = vshrl.u32 %v6983, 16
    %v7565 = vrot.slane %v7563, 4
    %v7566 = vshll.u32 %v6983, 16
    %v7568 = vrot.slane %v7566, 5
    %v7569 = vor.u32 %v7565, %v7568
    %v7570 = vrot.slane %v7569, 4
    %v7572 = vshll.u32 %v6984, 16
    %v7574 = vrot.slane %v7572, 5
    %v7575 = vsel %vm1344, %v7570, %v7574
    %v7576 = vshrl.u32 %v6984, 16
    %v7578 = vrot.slane %v7576, 4
    %v7579 = vor.u32 %v7578, %v7574
    %v7580 = vrot.slane %v7579, 4
    %v7582 = vshll.u32 %v6985, 16
    %v7584 = vrot.slane %v7582, 5
    %v7585 = vsel %vm1344, %v7580, %v7584
    %v7587 = vshrl.u32 %v6986, 16
    %v7589 = vrot.slane %v7587, 4
    %v7590 = vshll.u32 %v6986, 16
    %v7592 = vrot.slane %v7590, 5
    %v7593 = vor.u32 %v7589, %v7592
    %v7594 = vrot.slane %v7593, 4
    %v7596 = vshll.u32 %v6987, 16
    %v7598 = vrot.slane %v7596, 5
    %v7599 = vsel %vm1344, %v7594, %v7598
    %v7600 = vshrl.u32 %v6987, 16
    %v7602 = vrot.slane %v7600, 4
    %v7603 = vor.u32 %v7602, %v7598
    %v7604 = vrot.slane %v7603, 4
    %v7606 = vshll.u32 %v6988, 16
    %v7608 = vrot.slane %v7606, 5
    %v7609 = vsel %vm1344, %v7604, %v7608
    %v7611 = vshrl.u32 %v6989, 16
    %v7613 = vrot.slane %v7611, 4
    %v7614 = vshll.u32 %v6989, 16
    %v7616 = vrot.slane %v7614, 5
    %v7617 = vor.u32 %v7613, %v7616
    %v7618 = vrot.slane %v7617, 4
    %v7620 = vshll.u32 %v6990, 16
    %v7622 = vrot.slane %v7620, 5
    %v7623 = vsel %vm1344, %v7618, %v7622
    %v7624 = vshrl.u32 %v6990, 16
    %v7626 = vrot.slane %v7624, 4
    %v7627 = vor.u32 %v7626, %v7622
    %v7628 = vrot.slane %v7627, 4
    %v7630 = vshll.u32 %v6991, 16
    %v7632 = vrot.slane %v7630, 5
    %v7633 = vsel %vm1344, %v7628, %v7632
    %v7635 = vshrl.u32 %v6992, 16
    %v7637 = vrot.slane %v7635, 4
    %v7638 = vshll.u32 %v6992, 16
    %v7640 = vrot.slane %v7638, 5
    %v7641 = vor.u32 %v7637, %v7640
    %v7642 = vrot.slane %v7641, 4
    %v7644 = vshll.u32 %v6993, 16
    %v7646 = vrot.slane %v7644, 5
    %v7647 = vsel %vm1344, %v7642, %v7646
    %v7648 = vshrl.u32 %v6993, 16
    %v7650 = vrot.slane %v7648, 4
    %v7651 = vor.u32 %v7650, %v7646
    %v7652 = vrot.slane %v7651, 4
    %v7654 = vshll.u32 %v6994, 16
    %v7656 = vrot.slane %v7654, 5
    %v7657 = vsel %vm1344, %v7652, %v7656
    %v7659 = vshrl.u32 %v6995, 16
    %v7661 = vrot.slane %v7659, 4
    %v7662 = vshll.u32 %v6995, 16
    %v7664 = vrot.slane %v7662, 5
    %v7665 = vor.u32 %v7661, %v7664
    %v7666 = vrot.slane %v7665, 4
    %v7668 = vshll.u32 %v6996, 16
    %v7670 = vrot.slane %v7668, 5
    %v7671 = vsel %vm1344, %v7666, %v7670
    %v7672 = vshrl.u32 %v6996, 16
    %v7674 = vrot.slane %v7672, 4
    %v7675 = vor.u32 %v7674, %v7670
    %v7676 = vrot.slane %v7675, 4
    %v7678 = vshll.u32 %v6997, 16
    %v7680 = vrot.slane %v7678, 5
    %v7681 = vsel %vm1344, %v7676, %v7680
    %v7683 = vshrl.u32 %v6998, 16
    %v7685 = vrot.slane %v7683, 4
    %v7686 = vshll.u32 %v6998, 16
    %v7688 = vrot.slane %v7686, 5
    %v7689 = vor.u32 %v7685, %v7688
    %v7690 = vrot.slane %v7689, 4
    %v7692 = vshll.u32 %v6999, 16
    %v7694 = vrot.slane %v7692, 5
    %v7695 = vsel %vm1344, %v7690, %v7694
    %v7696 = vshrl.u32 %v6999, 16
    %v7698 = vrot.slane %v7696, 4
    %v7699 = vor.u32 %v7698, %v7694
    %v7700 = vrot.slane %v7699, 4
    %v7702 = vshll.u32 %v7000, 16
    %v7704 = vrot.slane %v7702, 5
    %v7705 = vsel %vm1344, %v7700, %v7704
    %v7707 = vshrl.u32 %v7001, 16
    %v7709 = vrot.slane %v7707, 4
    %v7710 = vshll.u32 %v7001, 16
    %v7712 = vrot.slane %v7710, 5
    %v7713 = vor.u32 %v7709, %v7712
    %v7714 = vrot.slane %v7713, 4
    %v7716 = vshll.u32 %v7002, 16
    %v7718 = vrot.slane %v7716, 5
    %v7719 = vsel %vm1344, %v7714, %v7718
    %v7720 = vshrl.u32 %v7002, 16
    %v7722 = vrot.slane %v7720, 4
    %v7723 = vor.u32 %v7722, %v7718
    %v7724 = vrot.slane %v7723, 4
    %v7726 = vshll.u32 %v7003, 16
    %v7728 = vrot.slane %v7726, 5
    %v7729 = vsel %vm1344, %v7724, %v7728
    %v7731 = vshrl.u32 %v7004, 16
    %v7733 = vrot.slane %v7731, 4
    %v7734 = vshll.u32 %v7004, 16
    %v7736 = vrot.slane %v7734, 5
    %v7737 = vor.u32 %v7733, %v7736
    %v7738 = vrot.slane %v7737, 4
    %v7740 = vshll.u32 %v7005, 16
    %v7742 = vrot.slane %v7740, 5
    %v7743 = vsel %vm1344, %v7738, %v7742
    %v7744 = vshrl.u32 %v7005, 16
    %v7746 = vrot.slane %v7744, 4
    %v7747 = vor.u32 %v7746, %v7742
    %v7748 = vrot.slane %v7747, 4
    %v7750 = vshll.u32 %v7006, 16
    %v7752 = vrot.slane %v7750, 5
    %v7753 = vsel %vm1344, %v7748, %v7752
    %v7755 = vshrl.u32 %v7007, 16
    %v7757 = vrot.slane %v7755, 4
    %v7758 = vshll.u32 %v7007, 16
    %v7760 = vrot.slane %v7758, 5
    %v7761 = vor.u32 %v7757, %v7760
    %v7762 = vrot.slane %v7761, 4
    %v7764 = vshll.u32 %v7008, 16
    %v7766 = vrot.slane %v7764, 5
    %v7767 = vsel %vm1344, %v7762, %v7766
    %v7768 = vshrl.u32 %v7008, 16
    %v7770 = vrot.slane %v7768, 4
    %v7771 = vor.u32 %v7770, %v7766
    %v7772 = vrot.slane %v7771, 4
    %v7774 = vshll.u32 %v7009, 16
    %v7776 = vrot.slane %v7774, 5
    %v7777 = vsel %vm1344, %v7772, %v7776
    %s7778 = scalar_lea.vmem [#allocation6], 448
    %v7779 = vld [vmem:[%s7778] sm:$0xf]
    %v7780 = vld [vmem:[%s7778 + $0x4] sm:$0xf]
    %v7781 = vld [vmem:[%s7778 + $0x8] sm:$0xf]
    %v7782 = vld [vmem:[%s7778 + $0xc] sm:$0xf]
    %v7783 = vld [vmem:[%s7778 + $0x10] sm:$0xf]
    %v7784 = vld [vmem:[%s7778 + $0x14] sm:$0xf]
    %v7785 = vld [vmem:[%s7778 + $0x18] sm:$0xf]
    %v7786 = vld [vmem:[%s7778 + $0x1c] sm:$0xf]
    %v7787 = vld [vmem:[%s7778 + $0x20] sm:$0xf]
    %v7788 = vld [vmem:[%s7778 + $0x24] sm:$0xf]
    %v7789 = vld [vmem:[%s7778 + $0x28] sm:$0xf]
    %v7790 = vld [vmem:[%s7778 + $0x2c] sm:$0xf]
    %v7791 = vld [vmem:[%s7778 + $0x30] sm:$0xf]
    %v7792 = vld [vmem:[%s7778 + $0x34] sm:$0xf]
    %v7793 = vld [vmem:[%s7778 + $0x38] sm:$0xf]
    %v7794 = vld [vmem:[%s7778 + $0x3c] sm:$0xf]
    %v7795 = vunpack.c.l.b16 %v7023
    %v7796 = vunpack.c.l.b16 %v7033
    %v7797 = vunpack.c.l.b16 %v7047
    %v7798 = vunpack.c.l.b16 %v7057
    %v7799 = vunpack.c.l.b16 %v7071
    %v7800 = vunpack.c.l.b16 %v7081
    %v7801 = vunpack.c.l.b16 %v7095
    %v7802 = vunpack.c.l.b16 %v7105
    %v7803 = vunpack.c.l.b16 %v7119
    %v7804 = vunpack.c.l.b16 %v7129
    %v7805 = vunpack.c.l.b16 %v7143
    %v7806 = vunpack.c.l.b16 %v7153
    %v7807 = vunpack.c.l.b16 %v7167
    %v7808 = vunpack.c.l.b16 %v7177
    %v7809 = vunpack.c.l.b16 %v7191
    %v7810 = vunpack.c.l.b16 %v7201
    %v7811 = vunpack.c.l.b16 %v7215
    %v7812 = vunpack.c.l.b16 %v7225
    %v7813 = vunpack.c.l.b16 %v7239
    %v7814 = vunpack.c.l.b16 %v7249
    %v7815 = vunpack.c.l.b16 %v7263
    %v7816 = vunpack.c.l.b16 %v7273
    %v7817 = vunpack.c.l.b16 %v7287
    %v7818 = vunpack.c.l.b16 %v7297
    %v7819 = vunpack.c.l.b16 %v7311
    %v7820 = vunpack.c.l.b16 %v7321
    %v7821 = vunpack.c.l.b16 %v7335
    %v7822 = vunpack.c.l.b16 %v7345
    %v7823 = vunpack.c.l.b16 %v7359
    %v7824 = vunpack.c.l.b16 %v7369
    %v7825 = vunpack.c.l.b16 %v7383
    %v7826 = vunpack.c.l.b16 %v7393
    %v7827 = vunpack.c.l.b16 %v7407
    %v7828 = vunpack.c.l.b16 %v7417
    %v7829 = vunpack.c.l.b16 %v7431
    %v7830 = vunpack.c.l.b16 %v7441
    %v7831 = vunpack.c.l.b16 %v7455
    %v7832 = vunpack.c.l.b16 %v7465
    %v7833 = vunpack.c.l.b16 %v7479
    %v7834 = vunpack.c.l.b16 %v7489
    %v7835 = vunpack.c.l.b16 %v7503
    %v7836 = vunpack.c.l.b16 %v7513
    %v7837 = vunpack.c.l.b16 %v7527
    %v7838 = vunpack.c.l.b16 %v7537
    %v7839 = vunpack.c.l.b16 %v7551
    %v7840 = vunpack.c.l.b16 %v7561
    %v7841 = vunpack.c.l.b16 %v7575
    %v7842 = vunpack.c.l.b16 %v7585
    %v7843 = vunpack.c.l.b16 %v7599
    %v7844 = vunpack.c.l.b16 %v7609
    %v7845 = vunpack.c.l.b16 %v7623
    %v7846 = vunpack.c.l.b16 %v7633
    %v7847 = vunpack.c.l.b16 %v7647
    %v7848 = vunpack.c.l.b16 %v7657
    %v7849 = vunpack.c.l.b16 %v7671
    %v7850 = vunpack.c.l.b16 %v7681
    %v7851 = vunpack.c.l.b16 %v7695
    %v7852 = vunpack.c.l.b16 %v7705
    %v7853 = vunpack.c.l.b16 %v7719
    %v7854 = vunpack.c.l.b16 %v7729
    %v7855 = vunpack.c.l.b16 %v7743
    %v7856 = vunpack.c.l.b16 %v7753
    %v7857 = vunpack.c.l.b16 %v7767
    %v7858 = vunpack.c.l.b16 %v7777
    %v7859 = vpack.c.b16 %v7796, %v7795
    %v7860 = vpack.c.b16 %v7798, %v7797
    %v7861 = vpack.c.b16 %v7800, %v7799
    %v7862 = vpack.c.b16 %v7802, %v7801
    %v7863 = vpack.c.b16 %v7804, %v7803
    %v7864 = vpack.c.b16 %v7806, %v7805
    %v7865 = vpack.c.b16 %v7808, %v7807
    %v7866 = vpack.c.b16 %v7810, %v7809
    %v7867 = vpack.c.b16 %v7812, %v7811
    %v7868 = vpack.c.b16 %v7814, %v7813
    %v7869 = vpack.c.b16 %v7816, %v7815
    %v7870 = vpack.c.b16 %v7818, %v7817
    %v7871 = vpack.c.b16 %v7820, %v7819
    %v7872 = vpack.c.b16 %v7822, %v7821
    %v7873 = vpack.c.b16 %v7824, %v7823
    %v7874 = vpack.c.b16 %v7826, %v7825
    %v7875 = vpack.c.b16 %v7828, %v7827
    %v7876 = vpack.c.b16 %v7830, %v7829
    %v7877 = vpack.c.b16 %v7832, %v7831
    %v7878 = vpack.c.b16 %v7834, %v7833
    %v7879 = vpack.c.b16 %v7836, %v7835
    %v7880 = vpack.c.b16 %v7838, %v7837
    %v7881 = vpack.c.b16 %v7840, %v7839
    %v7882 = vpack.c.b16 %v7842, %v7841
    %v7883 = vpack.c.b16 %v7844, %v7843
    %v7884 = vpack.c.b16 %v7846, %v7845
    %v7885 = vpack.c.b16 %v7848, %v7847
    %v7886 = vpack.c.b16 %v7850, %v7849
    %v7887 = vpack.c.b16 %v7852, %v7851
    %v7888 = vpack.c.b16 %v7854, %v7853
    %v7889 = vpack.c.b16 %v7856, %v7855
    %v7890 = vpack.c.b16 %v7858, %v7857
    %v7939 = vunpack.c.l.b16 %v7779
    %v7940 = vunpack.c.l.b16 %v7780
    %v7941 = vunpack.c.l.b16 %v7781
    %v7942 = vunpack.c.l.b16 %v7782
    %v7943 = vunpack.c.l.b16 %v7783
    %v7944 = vunpack.c.l.b16 %v7784
    %v7945 = vunpack.c.l.b16 %v7785
    %v7946 = vunpack.c.l.b16 %v7786
    %v7947 = vunpack.c.l.b16 %v7787
    %v7948 = vunpack.c.l.b16 %v7788
    %v7949 = vunpack.c.l.b16 %v7789
    %v7950 = vunpack.c.l.b16 %v7790
    %v7951 = vunpack.c.l.b16 %v7791
    %v7952 = vunpack.c.l.b16 %v7792
    %v7953 = vunpack.c.l.b16 %v7793
    %v7954 = vunpack.c.l.b16 %v7794
    %v7955 = vpack.c.b16 %v7940, %v7939
    %v7956 = vpack.c.b16 %v7942, %v7941
    %v7957 = vpack.c.b16 %v7944, %v7943
    %v7958 = vpack.c.b16 %v7946, %v7945
    %v7959 = vpack.c.b16 %v7948, %v7947
    %v7960 = vpack.c.b16 %v7950, %v7949
    %v7961 = vpack.c.b16 %v7952, %v7951
    %v7962 = vpack.c.b16 %v7954, %v7953
    %7971 = vmatprep.subr.bf16.mxu0 0
    %7972 = vmatpush1.bf16.msra.mxu0 %v7955
    %7973 = vmatprep.subr.bf16.mxu0 0
    %7974 = vmatpush1.bf16.msra.mxu0 %v7956
    %7975 = vmatprep.subr.bf16.mxu0 0
    %7976 = vmatpush1.bf16.msra.mxu0 %v7957
    %7977 = vmatprep.subr.bf16.mxu0 0
    %7978 = vmatpush1.bf16.msra.mxu0 %v7958
    %7979 = vmatprep.subr.bf16.mxu0 0
    %7980 = vmatpush1.bf16.msra.mxu0 %v7959
    %7981 = vmatprep.subr.bf16.mxu0 0
    %7982 = vmatpush1.bf16.msra.mxu0 %v7960
    %7983 = vmatprep.subr.bf16.mxu0 0
    %7984 = vmatpush1.bf16.msra.mxu0 %v7961
    %7985 = vmatprep.subr.bf16.mxu0 0
    %7986 = vmatpush1.bf16.msra.mxu0 %v7962
    %7987 = vmatprep.subr.bf16.mxu0 0
    %7988 = vmatpush1.bf16.msra.mxu0 0
    %7989 = vmatprep.subr.bf16.mxu0 0
    %7990 = vmatpush1.bf16.msra.mxu0 0
    %7991 = vmatprep.subr.bf16.mxu0 0
    %7992 = vmatpush1.bf16.msra.mxu0 0
    %7993 = vmatprep.subr.bf16.mxu0 0
    %7994 = vmatpush1.bf16.msra.mxu0 0
    %7995 = vmatprep.subr.bf16.mxu0 0
    %7996 = vmatpush1.bf16.msra.mxu0 0
    %7997 = vmatprep.subr.bf16.mxu0 0
    %7998 = vmatpush1.bf16.msra.mxu0 0
    %7999 = vmatprep.subr.bf16.mxu0 0
    %8000 = vmatpush1.bf16.msra.mxu0 0
    %8001 = vmatprep.subr.bf16.mxu0 0
    %8002 = vmatpush1.bf16.msra.mxu0 0
    %8003 = vmatprep.mubr.bf16.mxu0 0
    %8004 = vmatmul.mubr.bf16.gmra.mrb[0].mxu0 %v7859
    %v8005 = vpop.f32.mrb[0].mxu0
    %v8006 = vadd.f32 0.0, %v8005
    %v8007 = vpop.f32.mrb[0].mxu0
    %v8008 = vpop.f32.mrb[0].mxu0
    %v8009 = vadd.f32 0.0, %v8008
    %v8010 = vpop.f32.mrb[0].mxu0
    %8011 = vmatprep.mubr.bf16.mxu0 0
    %8012 = vmatmul.mubr.bf16.gmra.mrb[0].mxu0 %v7860
    %v8013 = vpop.f32.mrb[0].mxu0
    %v8014 = vadd.f32 0.0, %v8013
    %v8015 = vpop.f32.mrb[0].mxu0
    %v8016 = vpop.f32.mrb[0].mxu0
    %v8017 = vadd.f32 0.0, %v8016
    %v8018 = vpop.f32.mrb[0].mxu0
    %8019 = vmatprep.mubr.bf16.mxu0 0
    %8020 = vmatmul.mubr.bf16.gmra.mrb[0].mxu0 %v7861
    %v8021 = vpop.f32.mrb[0].mxu0
    %v8022 = vadd.f32 0.0, %v8021
    %v8023 = vpop.f32.mrb[0].mxu0
    %v8024 = vpop.f32.mrb[0].mxu0
    %v8025 = vadd.f32 0.0, %v8024
    %v8026 = vpop.f32.mrb[0].mxu0
    %8027 = vmatprep.mubr.bf16.mxu0 0
    %8028 = vmatmul.mubr.bf16.gmra.mrb[0].mxu0 %v7862
    %v8029 = vpop.f32.mrb[0].mxu0
    %v8030 = vadd.f32 0.0, %v8029
    %v8031 = vpop.f32.mrb[0].mxu0
    %v8032 = vpop.f32.mrb[0].mxu0
    %v8033 = vadd.f32 0.0, %v8032
    %v8034 = vpop.f32.mrb[0].mxu0
    %8035 = vmatprep.mubr.bf16.mxu0 0
    %8036 = vmatmul.mubr.bf16.gmra.mrb[0].mxu0 %v7863
    %v8037 = vpop.f32.mrb[0].mxu0
    %v8038 = vadd.f32 0.0, %v8037
    %v8039 = vpop.f32.mrb[0].mxu0
    %v8040 = vpop.f32.mrb[0].mxu0
    %v8041 = vadd.f32 0.0, %v8040
    %v8042 = vpop.f32.mrb[0].mxu0
    %8043 = vmatprep.mubr.bf16.mxu0 0
    %8044 = vmatmul.mubr.bf16.gmra.mrb[0].mxu0 %v7864
    %v8045 = vpop.f32.mrb[0].mxu0
    %v8046 = vadd.f32 0.0, %v8045
    %v8047 = vpop.f32.mrb[0].mxu0
    %v8048 = vpop.f32.mrb[0].mxu0
    %v8049 = vadd.f32 0.0, %v8048
    %v8050 = vpop.f32.mrb[0].mxu0
    %8051 = vmatprep.mubr.bf16.mxu0 0
    %8052 = vmatmul.mubr.bf16.gmra.mrb[0].mxu0 %v7865
    %v8053 = vpop.f32.mrb[0].mxu0
    %v8054 = vadd.f32 0.0, %v8053
    %v8055 = vpop.f32.mrb[0].mxu0
    %v8056 = vpop.f32.mrb[0].mxu0
    %v8057 = vadd.f32 0.0, %v8056
    %v8058 = vpop.f32.mrb[0].mxu0
    %8059 = vmatprep.mubr.bf16.mxu0 0
    %8060 = vmatmul.mubr.bf16.gmra.mrb[0].mxu0 %v7866
    %v8061 = vpop.f32.mrb[0].mxu0
    %v8062 = vadd.f32 0.0, %v8061
    %v8063 = vpop.f32.mrb[0].mxu0
    %v8064 = vpop.f32.mrb[0].mxu0
    %v8065 = vadd.f32 0.0, %v8064
    %v8066 = vpop.f32.mrb[0].mxu0
    %8067 = vmatprep.mubr.bf16.mxu0 0
    %8068 = vmatmul.mubr.bf16.gmra.mrb[0].mxu0 %v7867
    %v8069 = vpop.f32.mrb[0].mxu0
    %v8070 = vadd.f32 0.0, %v8069
    %v8071 = vpop.f32.mrb[0].mxu0
    %v8072 = vpop.f32.mrb[0].mxu0
    %v8073 = vadd.f32 0.0, %v8072
    %v8074 = vpop.f32.mrb[0].mxu0
    %8075 = vmatprep.mubr.bf16.mxu0 0
    %8076 = vmatmul.mubr.bf16.gmra.mrb[0].mxu0 %v7868
    %v8077 = vpop.f32.mrb[0].mxu0
    %v8078 = vadd.f32 0.0, %v8077
    %v8079 = vpop.f32.mrb[0].mxu0
    %v8080 = vpop.f32.mrb[0].mxu0
    %v8081 = vadd.f32 0.0, %v8080
    %v8082 = vpop.f32.mrb[0].mxu0
    %8083 = vmatprep.mubr.bf16.mxu0 0
    %8084 = vmatmul.mubr.bf16.gmra.mrb[0].mxu0 %v7869
    %v8085 = vpop.f32.mrb[0].mxu0
    %v8086 = vadd.f32 0.0, %v8085
    %v8087 = vpop.f32.mrb[0].mxu0
    %v8088 = vpop.f32.mrb[0].mxu0
    %v8089 = vadd.f32 0.0, %v8088
    %v8090 = vpop.f32.mrb[0].mxu0
    %8091 = vmatprep.mubr.bf16.mxu0 0
    %8092 = vmatmul.mubr.bf16.gmra.mrb[0].mxu0 %v7870
    %v8093 = vpop.f32.mrb[0].mxu0
    %v8094 = vadd.f32 0.0, %v8093
    %v8095 = vpop.f32.mrb[0].mxu0
    %v8096 = vpop.f32.mrb[0].mxu0
    %v8097 = vadd.f32 0.0, %v8096
    %v8098 = vpop.f32.mrb[0].mxu0
    %8099 = vmatprep.mubr.bf16.mxu0 0
    %8100 = vmatmul.mubr.bf16.gmra.mrb[0].mxu0 %v7871
    %v8101 = vpop.f32.mrb[0].mxu0
    %v8102 = vadd.f32 0.0, %v8101
    %v8103 = vpop.f32.mrb[0].mxu0
    %v8104 = vpop.f32.mrb[0].mxu0
    %v8105 = vadd.f32 0.0, %v8104
    %v8106 = vpop.f32.mrb[0].mxu0
    %8107 = vmatprep.mubr.bf16.mxu0 0
    %8108 = vmatmul.mubr.bf16.gmra.mrb[0].mxu0 %v7872
    %v8109 = vpop.f32.mrb[0].mxu0
    %v8110 = vadd.f32 0.0, %v8109
    %v8111 = vpop.f32.mrb[0].mxu0
    %v8112 = vpop.f32.mrb[0].mxu0
    %v8113 = vadd.f32 0.0, %v8112
    %v8114 = vpop.f32.mrb[0].mxu0
    %8115 = vmatprep.mubr.bf16.mxu0 0
    %8116 = vmatmul.mubr.bf16.gmra.mrb[0].mxu0 %v7873
    %v8117 = vpop.f32.mrb[0].mxu0
    %v8118 = vadd.f32 0.0, %v8117
    %v8119 = vpop.f32.mrb[0].mxu0
    %v8120 = vpop.f32.mrb[0].mxu0
    %v8121 = vadd.f32 0.0, %v8120
    %v8122 = vpop.f32.mrb[0].mxu0
    %8123 = vmatprep.mubr.bf16.mxu0 0
    %8124 = vmatmul.mubr.bf16.gmra.mrb[0].mxu0 %v7874
    %v8125 = vpop.f32.mrb[0].mxu0
    %v8126 = vadd.f32 0.0, %v8125
    %v8127 = vpop.f32.mrb[0].mxu0
    %v8128 = vpop.f32.mrb[0].mxu0
    %v8129 = vadd.f32 0.0, %v8128
    %v8130 = vpop.f32.mrb[0].mxu0
    %8131 = vmatprep.mubr.bf16.mxu0 0
    %8132 = vmatmul.mubr.bf16.gmra.mrb[0].mxu0 %v7875
    %v8133 = vpop.f32.mrb[0].mxu0
    %v8134 = vadd.f32 0.0, %v8133
    %v8135 = vpop.f32.mrb[0].mxu0
    %v8136 = vpop.f32.mrb[0].mxu0
    %v8137 = vadd.f32 0.0, %v8136
    %v8138 = vpop.f32.mrb[0].mxu0
    %8139 = vmatprep.mubr.bf16.mxu0 0
    %8140 = vmatmul.mubr.bf16.gmra.mrb[0].mxu0 %v7876
    %v8141 = vpop.f32.mrb[0].mxu0
    %v8142 = vadd.f32 0.0, %v8141
    %v8143 = vpop.f32.mrb[0].mxu0
    %v8144 = vpop.f32.mrb[0].mxu0
    %v8145 = vadd.f32 0.0, %v8144
    %v8146 = vpop.f32.mrb[0].mxu0
    %8147 = vmatprep.mubr.bf16.mxu0 0
    %8148 = vmatmul.mubr.bf16.gmra.mrb[0].mxu0 %v7877
    %v8149 = vpop.f32.mrb[0].mxu0
    %v8150 = vadd.f32 0.0, %v8149
    %v8151 = vpop.f32.mrb[0].mxu0
    %v8152 = vpop.f32.mrb[0].mxu0
    %v8153 = vadd.f32 0.0, %v8152
    %v8154 = vpop.f32.mrb[0].mxu0
    %8155 = vmatprep.mubr.bf16.mxu0 0
    %8156 = vmatmul.mubr.bf16.gmra.mrb[0].mxu0 %v7878
    %v8157 = vpop.f32.mrb[0].mxu0
    %v8158 = vadd.f32 0.0, %v8157
    %v8159 = vpop.f32.mrb[0].mxu0
    %v8160 = vpop.f32.mrb[0].mxu0
    %v8161 = vadd.f32 0.0, %v8160
    %v8162 = vpop.f32.mrb[0].mxu0
    %8163 = vmatprep.mubr.bf16.mxu0 0
    %8164 = vmatmul.mubr.bf16.gmra.mrb[0].mxu0 %v7879
    %v8165 = vpop.f32.mrb[0].mxu0
    %v8166 = vadd.f32 0.0, %v8165
    %v8167 = vpop.f32.mrb[0].mxu0
    %v8168 = vpop.f32.mrb[0].mxu0
    %v8169 = vadd.f32 0.0, %v8168
    %v8170 = vpop.f32.mrb[0].mxu0
    %8171 = vmatprep.mubr.bf16.mxu0 0
    %8172 = vmatmul.mubr.bf16.gmra.mrb[0].mxu0 %v7880
    %v8173 = vpop.f32.mrb[0].mxu0
    %v8174 = vadd.f32 0.0, %v8173
    %v8175 = vpop.f32.mrb[0].mxu0
    %v8176 = vpop.f32.mrb[0].mxu0
    %v8177 = vadd.f32 0.0, %v8176
    %v8178 = vpop.f32.mrb[0].mxu0
    %8179 = vmatprep.mubr.bf16.mxu0 0
    %8180 = vmatmul.mubr.bf16.gmra.mrb[0].mxu0 %v7881
    %v8181 = vpop.f32.mrb[0].mxu0
    %v8182 = vadd.f32 0.0, %v8181
    %v8183 = vpop.f32.mrb[0].mxu0
    %v8184 = vpop.f32.mrb[0].mxu0
    %v8185 = vadd.f32 0.0, %v8184
    %v8186 = vpop.f32.mrb[0].mxu0
    %8187 = vmatprep.mubr.bf16.mxu0 0
    %8188 = vmatmul.mubr.bf16.gmra.mrb[0].mxu0 %v7882
    %v8189 = vpop.f32.mrb[0].mxu0
    %v8190 = vadd.f32 0.0, %v8189
    %v8191 = vpop.f32.mrb[0].mxu0
    %v8192 = vpop.f32.mrb[0].mxu0
    %v8193 = vadd.f32 0.0, %v8192
    %v8194 = vpop.f32.mrb[0].mxu0
    %8195 = vmatprep.mubr.bf16.mxu0 0
    %8196 = vmatmul.mubr.bf16.gmra.mrb[0].mxu0 %v7883
    %v8197 = vpop.f32.mrb[0].mxu0
    %v8198 = vadd.f32 0.0, %v8197
    %v8199 = vpop.f32.mrb[0].mxu0
    %v8200 = vpop.f32.mrb[0].mxu0
    %v8201 = vadd.f32 0.0, %v8200
    %v8202 = vpop.f32.mrb[0].mxu0
    %8203 = vmatprep.mubr.bf16.mxu0 0
    %8204 = vmatmul.mubr.bf16.gmra.mrb[0].mxu0 %v7884
    %v8205 = vpop.f32.mrb[0].mxu0
    %v8206 = vadd.f32 0.0, %v8205
    %v8207 = vpop.f32.mrb[0].mxu0
    %v8208 = vpop.f32.mrb[0].mxu0
    %v8209 = vadd.f32 0.0, %v8208
    %v8210 = vpop.f32.mrb[0].mxu0
    %8211 = vmatprep.mubr.bf16.mxu0 0
    %8212 = vmatmul.mubr.bf16.gmra.mrb[0].mxu0 %v7885
    %v8213 = vpop.f32.mrb[0].mxu0
    %v8214 = vadd.f32 0.0, %v8213
    %v8215 = vpop.f32.mrb[0].mxu0
    %v8216 = vpop.f32.mrb[0].mxu0
    %v8217 = vadd.f32 0.0, %v8216
    %v8218 = vpop.f32.mrb[0].mxu0
    %8219 = vmatprep.mubr.bf16.mxu0 0
    %8220 = vmatmul.mubr.bf16.gmra.mrb[0].mxu0 %v7886
    %v8221 = vpop.f32.mrb[0].mxu0
    %v8222 = vadd.f32 0.0, %v8221
    %v8223 = vpop.f32.mrb[0].mxu0
    %v8224 = vpop.f32.mrb[0].mxu0
    %v8225 = vadd.f32 0.0, %v8224
    %v8226 = vpop.f32.mrb[0].mxu0
    %8227 = vmatprep.mubr.bf16.mxu0 0
    %8228 = vmatmul.mubr.bf16.gmra.mrb[0].mxu0 %v7887
    %v8229 = vpop.f32.mrb[0].mxu0
    %v8230 = vadd.f32 0.0, %v8229
    %v8231 = vpop.f32.mrb[0].mxu0
    %v8232 = vpop.f32.mrb[0].mxu0
    %v8233 = vadd.f32 0.0, %v8232
    %v8234 = vpop.f32.mrb[0].mxu0
    %8235 = vmatprep.mubr.bf16.mxu0 0
    %8236 = vmatmul.mubr.bf16.gmra.mrb[0].mxu0 %v7888
    %v8237 = vpop.f32.mrb[0].mxu0
    %v8238 = vadd.f32 0.0, %v8237
    %v8239 = vpop.f32.mrb[0].mxu0
    %v8240 = vpop.f32.mrb[0].mxu0
    %v8241 = vadd.f32 0.0, %v8240
    %v8242 = vpop.f32.mrb[0].mxu0
    %8243 = vmatprep.mubr.bf16.mxu0 0
    %8244 = vmatmul.mubr.bf16.gmra.mrb[0].mxu0 %v7889
    %v8245 = vpop.f32.mrb[0].mxu0
    %v8246 = vadd.f32 0.0, %v8245
    %v8247 = vpop.f32.mrb[0].mxu0
    %v8248 = vpop.f32.mrb[0].mxu0
    %v8249 = vadd.f32 0.0, %v8248
    %v8250 = vpop.f32.mrb[0].mxu0
    %8251 = vmatprep.mubr.bf16.mxu0 0
    %8252 = vmatmul.mubr.bf16.gmra.mrb[0].mxu0 %v7890
    %v8253 = vpop.f32.mrb[0].mxu0
    %v8254 = vadd.f32 0.0, %v8253
    %v8255 = vpop.f32.mrb[0].mxu0
    %v8256 = vpop.f32.mrb[0].mxu0
    %v8257 = vadd.f32 0.0, %v8256
    %v8258 = vpop.f32.mrb[0].mxu0
    %8259 = vdwg.mxu0
    %v8260 = vadd.f32 %v6850, %v8006
    %v8261 = vadd.f32 %v6851, %v8009
    %v8262 = vadd.f32 %v6852, %v8014
    %v8263 = vadd.f32 %v6853, %v8017
    %v8264 = vadd.f32 %v6854, %v8022
    %v8265 = vadd.f32 %v6855, %v8025
    %v8266 = vadd.f32 %v6856, %v8030
    %v8267 = vadd.f32 %v6857, %v8033
    %v8268 = vadd.f32 %v6858, %v8038
    %v8269 = vadd.f32 %v6859, %v8041
    %v8270 = vadd.f32 %v6860, %v8046
    %v8271 = vadd.f32 %v6861, %v8049
    %v8272 = vadd.f32 %v6862, %v8054
    %v8273 = vadd.f32 %v6863, %v8057
    %v8274 = vadd.f32 %v6864, %v8062
    %v8275 = vadd.f32 %v6865, %v8065
    %v8276 = vadd.f32 %v6866, %v8070
    %v8277 = vadd.f32 %v6867, %v8073
    %v8278 = vadd.f32 %v6868, %v8078
    %v8279 = vadd.f32 %v6869, %v8081
    %v8280 = vadd.f32 %v6870, %v8086
    %v8281 = vadd.f32 %v6871, %v8089
    %v8282 = vadd.f32 %v6872, %v8094
    %v8283 = vadd.f32 %v6873, %v8097
    %v8284 = vadd.f32 %v6874, %v8102
    %v8285 = vadd.f32 %v6875, %v8105
    %v8286 = vadd.f32 %v6876, %v8110
    %v8287 = vadd.f32 %v6877, %v8113
    %v8288 = vadd.f32 %v6878, %v8118
    %v8289 = vadd.f32 %v6879, %v8121
    %v8290 = vadd.f32 %v6880, %v8126
    %v8291 = vadd.f32 %v6881, %v8129
    %v8292 = vadd.f32 %v6882, %v8134
    %v8293 = vadd.f32 %v6883, %v8137
    %v8294 = vadd.f32 %v6884, %v8142
    %v8295 = vadd.f32 %v6885, %v8145
    %v8296 = vadd.f32 %v6886, %v8150
    %v8297 = vadd.f32 %v6887, %v8153
    %v8298 = vadd.f32 %v6888, %v8158
    %v8299 = vadd.f32 %v6889, %v8161
    %v8300 = vadd.f32 %v6890, %v8166
    %v8301 = vadd.f32 %v6891, %v8169
    %v8302 = vadd.f32 %v6892, %v8174
    %v8303 = vadd.f32 %v6893, %v8177
    %v8304 = vadd.f32 %v6894, %v8182
    %v8305 = vadd.f32 %v6895, %v8185
    %v8306 = vadd.f32 %v6896, %v8190
    %v8307 = vadd.f32 %v6897, %v8193
    %v8308 = vadd.f32 %v6898, %v8198
    %v8309 = vadd.f32 %v6899, %v8201
    %v8310 = vadd.f32 %v6900, %v8206
    %v8311 = vadd.f32 %v6901, %v8209
    %v8312 = vadd.f32 %v6902, %v8214
    %v8313 = vadd.f32 %v6903, %v8217
    %v8314 = vadd.f32 %v6904, %v8222
    %v8315 = vadd.f32 %v6905, %v8225
    %v8316 = vadd.f32 %v6906, %v8230
    %v8317 = vadd.f32 %v6907, %v8233
    %v8318 = vadd.f32 %v6908, %v8238
    %v8319 = vadd.f32 %v6909, %v8241
    %v8320 = vadd.f32 %v6910, %v8246
    %v8321 = vadd.f32 %v6911, %v8249
    %v8322 = vadd.f32 %v6912, %v8254
    %v8323 = vadd.f32 %v6913, %v8257
    %v8324 = vld [vmem:[%s6239] sm:$0xe]
    %v8325 = vld [vmem:[%s6239 + $0xc] sm:$0xe]
    %v8326 = vld [vmem:[%s6239 + $0x18] sm:$0xe]
    %v8327 = vld [vmem:[%s6239 + $0x24] sm:$0xe]
    %v8328 = vld [vmem:[%s6239 + $0x30] sm:$0xe]
    %v8329 = vld [vmem:[%s6239 + $0x3c] sm:$0xe]
    %v8330 = vld [vmem:[%s6239 + $0x48] sm:$0xe]
    %v8331 = vld [vmem:[%s6239 + $0x54] sm:$0xe]
    %v8332 = vld [vmem:[%s6239 + $0x60] sm:$0xe]
    %v8333 = vld [vmem:[%s6239 + $0x6c] sm:$0xe]
    %v8334 = vld [vmem:[%s6239 + $0x78] sm:$0xe]
    %v8335 = vld [vmem:[%s6239 + $0x84] sm:$0xe]
    %v8336 = vld [vmem:[%s6239 + $0x90] sm:$0xe]
    %v8337 = vld [vmem:[%s6239 + $0x9c] sm:$0xe]
    %v8338 = vld [vmem:[%s6239 + $0xa8] sm:$0xe]
    %v8339 = vld [vmem:[%s6239 + $0xb4] sm:$0xe]
    %v8340 = vld [vmem:[%s6239 + $0xd8] sm:$0xe]
    %v8341 = vld [vmem:[%s6239 + $0xe4] sm:$0xe]
    %v8342 = vld [vmem:[%s6239 + $0xf0] sm:$0xe]
    %v8343 = vld [vmem:[%s6239 + $0xfc] sm:$0xe]
    %v8344 = vld [vmem:[%s6239 + $0x108] sm:$0xe]
    %v8345 = vld [vmem:[%s6239 + $0x114] sm:$0xe]
    %v8346 = vld [vmem:[%s6239 + $0x120] sm:$0xe]
    %v8347 = vld [vmem:[%s6239 + $0x12c] sm:$0xe]
    %v8348 = vld [vmem:[%s6239 + $0x138] sm:$0xe]
    %v8349 = vld [vmem:[%s6239 + $0x144] sm:$0xe]
    %v8350 = vld [vmem:[%s6239 + $0x150] sm:$0xe]
    %v8351 = vld [vmem:[%s6239 + $0x15c] sm:$0xe]
    %v8352 = vld [vmem:[%s6239 + $0x168] sm:$0xe]
    %v8353 = vld [vmem:[%s6239 + $0x174] sm:$0xe]
    %v8354 = vld [vmem:[%s6239 + $0x180] sm:$0xe]
    %v8355 = vld [vmem:[%s6239 + $0x18c] sm:$0xe]
    %v8452 = vrot.slane %v8324, 5
    %v8453 = vrot.slane %v8452, 4
    %v8454 = vrot.slane %v6915, 5
    %v8455 = vsel %vm3222, %v8453, %v8454
    %v8456 = vrot.slane %v8454, 4
    %v8457 = vrot.slane %v6916, 5
    %v8458 = vsel %vm3222, %v8456, %v8457
    %v8459 = vrot.slane %v8325, 5
    %v8460 = vrot.slane %v8459, 4
    %v8461 = vrot.slane %v6918, 5
    %v8462 = vsel %vm3222, %v8460, %v8461
    %v8463 = vrot.slane %v8461, 4
    %v8464 = vrot.slane %v6919, 5
    %v8465 = vsel %vm3222, %v8463, %v8464
    %v8466 = vrot.slane %v8326, 5
    %v8467 = vrot.slane %v8466, 4
    %v8468 = vrot.slane %v6921, 5
    %v8469 = vsel %vm3222, %v8467, %v8468
    %v8470 = vrot.slane %v8468, 4
    %v8471 = vrot.slane %v6922, 5
    %v8472 = vsel %vm3222, %v8470, %v8471
    %v8473 = vrot.slane %v8327, 5
    %v8474 = vrot.slane %v8473, 4
    %v8475 = vrot.slane %v6924, 5
    %v8476 = vsel %vm3222, %v8474, %v8475
    %v8477 = vrot.slane %v8475, 4
    %v8478 = vrot.slane %v6925, 5
    %v8479 = vsel %vm3222, %v8477, %v8478
    %v8480 = vrot.slane %v8328, 5
    %v8481 = vrot.slane %v8480, 4
    %v8482 = vrot.slane %v6927, 5
    %v8483 = vsel %vm3222, %v8481, %v8482
    %v8484 = vrot.slane %v8482, 4
    %v8485 = vrot.slane %v6928, 5
    %v8486 = vsel %vm3222, %v8484, %v8485
    %v8487 = vrot.slane %v8329, 5
    %v8488 = vrot.slane %v8487, 4
    %v8489 = vrot.slane %v6930, 5
    %v8490 = vsel %vm3222, %v8488, %v8489
    %v8491 = vrot.slane %v8489, 4
    %v8492 = vrot.slane %v6931, 5
    %v8493 = vsel %vm3222, %v8491, %v8492
    %v8494 = vrot.slane %v8330, 5
    %v8495 = vrot.slane %v8494, 4
    %v8496 = vrot.slane %v6933, 5
    %v8497 = vsel %vm3222, %v8495, %v8496
    %v8498 = vrot.slane %v8496, 4
    %v8499 = vrot.slane %v6934, 5
    %v8500 = vsel %vm3222, %v8498, %v8499
    %v8501 = vrot.slane %v8331, 5
    %v8502 = vrot.slane %v8501, 4
    %v8503 = vrot.slane %v6936, 5
    %v8504 = vsel %vm3222, %v8502, %v8503
    %v8505 = vrot.slane %v8503, 4
    %v8506 = vrot.slane %v6937, 5
    %v8507 = vsel %vm3222, %v8505, %v8506
    %v8508 = vrot.slane %v8332, 5
    %v8509 = vrot.slane %v8508, 4
    %v8510 = vrot.slane %v6939, 5
    %v8511 = vsel %vm3222, %v8509, %v8510
    %v8512 = vrot.slane %v8510, 4
    %v8513 = vrot.slane %v6940, 5
    %v8514 = vsel %vm3222, %v8512, %v8513
    %v8515 = vrot.slane %v8333, 5
    %v8516 = vrot.slane %v8515, 4
    %v8517 = vrot.slane %v6942, 5
    %v8518 = vsel %vm3222, %v8516, %v8517
    %v8519 = vrot.slane %v8517, 4
    %v8520 = vrot.slane %v6943, 5
    %v8521 = vsel %vm3222, %v8519, %v8520
    %v8522 = vrot.slane %v8334, 5
    %v8523 = vrot.slane %v8522, 4
    %v8524 = vrot.slane %v6945, 5
    %v8525 = vsel %vm3222, %v8523, %v8524
    %v8526 = vrot.slane %v8524, 4
    %v8527 = vrot.slane %v6946, 5
    %v8528 = vsel %vm3222, %v8526, %v8527
    %v8529 = vrot.slane %v8335, 5
    %v8530 = vrot.slane %v8529, 4
    %v8531 = vrot.slane %v6948, 5
    %v8532 = vsel %vm3222, %v8530, %v8531
    %v8533 = vrot.slane %v8531, 4
    %v8534 = vrot.slane %v6949, 5
    %v8535 = vsel %vm3222, %v8533, %v8534
    %v8536 = vrot.slane %v8336, 5
    %v8537 = vrot.slane %v8536, 4
    %v8538 = vrot.slane %v6951, 5
    %v8539 = vsel %vm3222, %v8537, %v8538
    %v8540 = vrot.slane %v8538, 4
    %v8541 = vrot.slane %v6952, 5
    %v8542 = vsel %vm3222, %v8540, %v8541
    %v8543 = vrot.slane %v8337, 5
    %v8544 = vrot.slane %v8543, 4
    %v8545 = vrot.slane %v6954, 5
    %v8546 = vsel %vm3222, %v8544, %v8545
    %v8547 = vrot.slane %v8545, 4
    %v8548 = vrot.slane %v6955, 5
    %v8549 = vsel %vm3222, %v8547, %v8548
    %v8550 = vrot.slane %v8338, 5
    %v8551 = vrot.slane %v8550, 4
    %v8552 = vrot.slane %v6957, 5
    %v8553 = vsel %vm3222, %v8551, %v8552
    %v8554 = vrot.slane %v8552, 4
    %v8555 = vrot.slane %v6958, 5
    %v8556 = vsel %vm3222, %v8554, %v8555
    %v8557 = vrot.slane %v8339, 5
    %v8558 = vrot.slane %v8557, 4
    %v8559 = vrot.slane %v6960, 5
    %v8560 = vsel %vm3222, %v8558, %v8559
    %v8561 = vrot.slane %v8559, 4
    %v8562 = vrot.slane %v6961, 5
    %v8563 = vsel %vm3222, %v8561, %v8562
    %v8564 = vrot.slane %v8340, 5
    %v8565 = vrot.slane %v8564, 4
    %v8566 = vrot.slane %v6963, 5
    %v8567 = vsel %vm3222, %v8565, %v8566
    %v8568 = vrot.slane %v8566, 4
    %v8569 = vrot.slane %v6964, 5
    %v8570 = vsel %vm3222, %v8568, %v8569
    %v8571 = vrot.slane %v8341, 5
    %v8572 = vrot.slane %v8571, 4
    %v8573 = vrot.slane %v6966, 5
    %v8574 = vsel %vm3222, %v8572, %v8573
    %v8575 = vrot.slane %v8573, 4
    %v8576 = vrot.slane %v6967, 5
    %v8577 = vsel %vm3222, %v8575, %v8576
    %v8578 = vrot.slane %v8342, 5
    %v8579 = vrot.slane %v8578, 4
    %v8580 = vrot.slane %v6969, 5
    %v8581 = vsel %vm3222, %v8579, %v8580
    %v8582 = vrot.slane %v8580, 4
    %v8583 = vrot.slane %v6970, 5
    %v8584 = vsel %vm3222, %v8582, %v8583
    %v8585 = vrot.slane %v8343, 5
    %v8586 = vrot.slane %v8585, 4
    %v8587 = vrot.slane %v6972, 5
    %v8588 = vsel %vm3222, %v8586, %v8587
    %v8589 = vrot.slane %v8587, 4
    %v8590 = vrot.slane %v6973, 5
    %v8591 = vsel %vm3222, %v8589, %v8590
    %v8592 = vrot.slane %v8344, 5
    %v8593 = vrot.slane %v8592, 4
    %v8594 = vrot.slane %v6975, 5
    %v8595 = vsel %vm3222, %v8593, %v8594
    %v8596 = vrot.slane %v8594, 4
    %v8597 = vrot.slane %v6976, 5
    %v8598 = vsel %vm3222, %v8596, %v8597
    %v8599 = vrot.slane %v8345, 5
    %v8600 = vrot.slane %v8599, 4
    %v8601 = vrot.slane %v6978, 5
    %v8602 = vsel %vm3222, %v8600, %v8601
    %v8603 = vrot.slane %v8601, 4
    %v8604 = vrot.slane %v6979, 5
    %v8605 = vsel %vm3222, %v8603, %v8604
    %v8606 = vrot.slane %v8346, 5
    %v8607 = vrot.slane %v8606, 4
    %v8608 = vrot.slane %v6981, 5
    %v8609 = vsel %vm3222, %v8607, %v8608
    %v8610 = vrot.slane %v8608, 4
    %v8611 = vrot.slane %v6982, 5
    %v8612 = vsel %vm3222, %v8610, %v8611
    %v8613 = vrot.slane %v8347, 5
    %v8614 = vrot.slane %v8613, 4
    %v8615 = vrot.slane %v6984, 5
    %v8616 = vsel %vm3222, %v8614, %v8615
    %v8617 = vrot.slane %v8615, 4
    %v8618 = vrot.slane %v6985, 5
    %v8619 = vsel %vm3222, %v8617, %v8618
    %v8620 = vrot.slane %v8348, 5
    %v8621 = vrot.slane %v8620, 4
    %v8622 = vrot.slane %v6987, 5
    %v8623 = vsel %vm3222, %v8621, %v8622
    %v8624 = vrot.slane %v8622, 4
    %v8625 = vrot.slane %v6988, 5
    %v8626 = vsel %vm3222, %v8624, %v8625
    %v8627 = vrot.slane %v8349, 5
    %v8628 = vrot.slane %v8627, 4
    %v8629 = vrot.slane %v6990, 5
    %v8630 = vsel %vm3222, %v8628, %v8629
    %v8631 = vrot.slane %v8629, 4
    %v8632 = vrot.slane %v6991, 5
    %v8633 = vsel %vm3222, %v8631, %v8632
    %v8634 = vrot.slane %v8350, 5
    %v8635 = vrot.slane %v8634, 4
    %v8636 = vrot.slane %v6993, 5
    %v8637 = vsel %vm3222, %v8635, %v8636
    %v8638 = vrot.slane %v8636, 4
    %v8639 = vrot.slane %v6994, 5
    %v8640 = vsel %vm3222, %v8638, %v8639
    %v8641 = vrot.slane %v8351, 5
    %v8642 = vrot.slane %v8641, 4
    %v8643 = vrot.slane %v6996, 5
    %v8644 = vsel %vm3222, %v8642, %v8643
    %v8645 = vrot.slane %v8643, 4
    %v8646 = vrot.slane %v6997, 5
    %v8647 = vsel %vm3222, %v8645, %v8646
    %v8648 = vrot.slane %v8352, 5
    %v8649 = vrot.slane %v8648, 4
    %v8650 = vrot.slane %v6999, 5
    %v8651 = vsel %vm3222, %v8649, %v8650
    %v8652 = vrot.slane %v8650, 4
    %v8653 = vrot.slane %v7000, 5
    %v8654 = vsel %vm3222, %v8652, %v8653
    %v8655 = vrot.slane %v8353, 5
    %v8656 = vrot.slane %v8655, 4
    %v8657 = vrot.slane %v7002, 5
    %v8658 = vsel %vm3222, %v8656, %v8657
    %v8659 = vrot.slane %v8657, 4
    %v8660 = vrot.slane %v7003, 5
    %v8661 = vsel %vm3222, %v8659, %v8660
    %v8662 = vrot.slane %v8354, 5
    %v8663 = vrot.slane %v8662, 4
    %v8664 = vrot.slane %v7005, 5
    %v8665 = vsel %vm3222, %v8663, %v8664
    %v8666 = vrot.slane %v8664, 4
    %v8667 = vrot.slane %v7006, 5
    %v8668 = vsel %vm3222, %v8666, %v8667
    %v8669 = vrot.slane %v8355, 5
    %v8670 = vrot.slane %v8669, 4
    %v8671 = vrot.slane %v7008, 5
    %v8672 = vsel %vm3222, %v8670, %v8671
    %v8673 = vrot.slane %v8671, 4
    %v8674 = vrot.slane %v7009, 5
    %v8675 = vsel %vm3222, %v8673, %v8674
    %s8676 = scalar_lea.vmem [#allocation6], 512
    %v8677 = vld [vmem:[%s8676] sm:$0xf]
    %v8678 = vld [vmem:[%s8676 + $0x4] sm:$0xf]
    %v8679 = vld [vmem:[%s8676 + $0x8] sm:$0xf]
    %v8680 = vld [vmem:[%s8676 + $0xc] sm:$0xf]
    %v8681 = vld [vmem:[%s8676 + $0x10] sm:$0xf]
    %v8682 = vld [vmem:[%s8676 + $0x14] sm:$0xf]
    %v8683 = vld [vmem:[%s8676 + $0x18] sm:$0xf]
    %v8684 = vld [vmem:[%s8676 + $0x1c] sm:$0xf]
    %v8685 = vld [vmem:[%s8676 + $0x20] sm:$0xf]
    %v8686 = vld [vmem:[%s8676 + $0x24] sm:$0xf]
    %v8687 = vld [vmem:[%s8676 + $0x28] sm:$0xf]
    %v8688 = vld [vmem:[%s8676 + $0x2c] sm:$0xf]
    %v8689 = vld [vmem:[%s8676 + $0x30] sm:$0xf]
    %v8690 = vld [vmem:[%s8676 + $0x34] sm:$0xf]
    %v8691 = vld [vmem:[%s8676 + $0x38] sm:$0xf]
    %v8692 = vld [vmem:[%s8676 + $0x3c] sm:$0xf]
    %v8693 = vunpack.c.l.b16 %v8455
    %v8694 = vunpack.c.l.b16 %v8458
    %v8695 = vunpack.c.l.b16 %v8462
    %v8696 = vunpack.c.l.b16 %v8465
    %v8697 = vunpack.c.l.b16 %v8469
    %v8698 = vunpack.c.l.b16 %v8472
    %v8699 = vunpack.c.l.b16 %v8476
    %v8700 = vunpack.c.l.b16 %v8479
    %v8701 = vunpack.c.l.b16 %v8483
    %v8702 = vunpack.c.l.b16 %v8486
    %v8703 = vunpack.c.l.b16 %v8490
    %v8704 = vunpack.c.l.b16 %v8493
    %v8705 = vunpack.c.l.b16 %v8497
    %v8706 = vunpack.c.l.b16 %v8500
    %v8707 = vunpack.c.l.b16 %v8504
    %v8708 = vunpack.c.l.b16 %v8507
    %v8709 = vunpack.c.l.b16 %v8511
    %v8710 = vunpack.c.l.b16 %v8514
    %v8711 = vunpack.c.l.b16 %v8518
    %v8712 = vunpack.c.l.b16 %v8521
    %v8713 = vunpack.c.l.b16 %v8525
    %v8714 = vunpack.c.l.b16 %v8528
    %v8715 = vunpack.c.l.b16 %v8532
    %v8716 = vunpack.c.l.b16 %v8535
    %v8717 = vunpack.c.l.b16 %v8539
    %v8718 = vunpack.c.l.b16 %v8542
    %v8719 = vunpack.c.l.b16 %v8546
    %v8720 = vunpack.c.l.b16 %v8549
    %v8721 = vunpack.c.l.b16 %v8553
    %v8722 = vunpack.c.l.b16 %v8556
    %v8723 = vunpack.c.l.b16 %v8560
    %v8724 = vunpack.c.l.b16 %v8563
    %v8725 = vunpack.c.l.b16 %v8567
    %v8726 = vunpack.c.l.b16 %v8570
    %v8727 = vunpack.c.l.b16 %v8574
    %v8728 = vunpack.c.l.b16 %v8577
    %v8729 = vunpack.c.l.b16 %v8581
    %v8730 = vunpack.c.l.b16 %v8584
    %v8731 = vunpack.c.l.b16 %v8588
    %v8732 = vunpack.c.l.b16 %v8591
    %v8733 = vunpack.c.l.b16 %v8595
    %v8734 = vunpack.c.l.b16 %v8598
    %v8735 = vunpack.c.l.b16 %v8602
    %v8736 = vunpack.c.l.b16 %v8605
    %v8737 = vunpack.c.l.b16 %v8609
    %v8738 = vunpack.c.l.b16 %v8612
    %v8739 = vunpack.c.l.b16 %v8616
    %v8740 = vunpack.c.l.b16 %v8619
    %v8741 = vunpack.c.l.b16 %v8623
    %v8742 = vunpack.c.l.b16 %v8626
    %v8743 = vunpack.c.l.b16 %v8630
    %v8744 = vunpack.c.l.b16 %v8633
    %v8745 = vunpack.c.l.b16 %v8637
    %v8746 = vunpack.c.l.b16 %v8640
    %v8747 = vunpack.c.l.b16 %v8644
    %v8748 = vunpack.c.l.b16 %v8647
    %v8749 = vunpack.c.l.b16 %v8651
    %v8750 = vunpack.c.l.b16 %v8654
    %v8751 = vunpack.c.l.b16 %v8658
    %v8752 = vunpack.c.l.b16 %v8661
    %v8753 = vunpack.c.l.b16 %v8665
    %v8754 = vunpack.c.l.b16 %v8668
    %v8755 = vunpack.c.l.b16 %v8672
    %v8756 = vunpack.c.l.b16 %v8675
    %v8757 = vpack.c.b16 %v8694, %v8693
    %v8758 = vpack.c.b16 %v8696, %v8695
    %v8759 = vpack.c.b16 %v8698, %v8697
    %v8760 = vpack.c.b16 %v8700, %v8699
    %v8761 = vpack.c.b16 %v8702, %v8701
    %v8762 = vpack.c.b16 %v8704, %v8703
    %v8763 = vpack.c.b16 %v8706, %v8705
    %v8764 = vpack.c.b16 %v8708, %v8707
    %v8765 = vpack.c.b16 %v8710, %v8709
    %v8766 = vpack.c.b16 %v8712, %v8711
    %v8767 = vpack.c.b16 %v8714, %v8713
    %v8768 = vpack.c.b16 %v8716, %v8715
    %v8769 = vpack.c.b16 %v8718, %v8717
    %v8770 = vpack.c.b16 %v8720, %v8719
    %v8771 = vpack.c.b16 %v8722, %v8721
    %v8772 = vpack.c.b16 %v8724, %v8723
    %v8773 = vpack.c.b16 %v8726, %v8725
    %v8774 = vpack.c.b16 %v8728, %v8727
    %v8775 = vpack.c.b16 %v8730, %v8729
    %v8776 = vpack.c.b16 %v8732, %v8731
    %v8777 = vpack.c.b16 %v8734, %v8733
    %v8778 = vpack.c.b16 %v8736, %v8735
    %v8779 = vpack.c.b16 %v8738, %v8737
    %v8780 = vpack.c.b16 %v8740, %v8739
    %v8781 = vpack.c.b16 %v8742, %v8741
    %v8782 = vpack.c.b16 %v8744, %v8743
    %v8783 = vpack.c.b16 %v8746, %v8745
    %v8784 = vpack.c.b16 %v8748, %v8747
    %v8785 = vpack.c.b16 %v8750, %v8749
    %v8786 = vpack.c.b16 %v8752, %v8751
    %v8787 = vpack.c.b16 %v8754, %v8753
    %v8788 = vpack.c.b16 %v8756, %v8755
    %v8837 = vunpack.c.l.b16 %v8677
    %v8838 = vunpack.c.l.b16 %v8678
    %v8839 = vunpack.c.l.b16 %v8679
    %v8840 = vunpack.c.l.b16 %v8680
    %v8841 = vunpack.c.l.b16 %v8681
    %v8842 = vunpack.c.l.b16 %v8682
    %v8843 = vunpack.c.l.b16 %v8683
    %v8844 = vunpack.c.l.b16 %v8684
    %v8845 = vunpack.c.l.b16 %v8685
    %v8846 = vunpack.c.l.b16 %v8686
    %v8847 = vunpack.c.l.b16 %v8687
    %v8848 = vunpack.c.l.b16 %v8688
    %v8849 = vunpack.c.l.b16 %v8689
    %v8850 = vunpack.c.l.b16 %v8690
    %v8851 = vunpack.c.l.b16 %v8691
    %v8852 = vunpack.c.l.b16 %v8692
    %v8853 = vpack.c.b16 %v8838, %v8837
    %v8854 = vpack.c.b16 %v8840, %v8839
    %v8855 = vpack.c.b16 %v8842, %v8841
    %v8856 = vpack.c.b16 %v8844, %v8843
    %v8857 = vpack.c.b16 %v8846, %v8845
    %v8858 = vpack.c.b16 %v8848, %v8847
    %v8859 = vpack.c.b16 %v8850, %v8849
    %v8860 = vpack.c.b16 %v8852, %v8851
    %8869 = vmatprep.subr.bf16.mxu0 0
    %8870 = vmatpush1.bf16.msra.mxu0 %v8853
    %8871 = vmatprep.subr.bf16.mxu0 0
    %8872 = vmatpush1.bf16.msra.mxu0 %v8854
    %8873 = vmatprep.subr.bf16.mxu0 0
    %8874 = vmatpush1.bf16.msra.mxu0 %v8855
    %8875 = vmatprep.subr.bf16.mxu0 0
    %8876 = vmatpush1.bf16.msra.mxu0 %v8856
    %8877 = vmatprep.subr.bf16.mxu0 0
    %8878 = vmatpush1.bf16.msra.mxu0 %v8857
    %8879 = vmatprep.subr.bf16.mxu0 0
    %8880 = vmatpush1.bf16.msra.mxu0 %v8858
    %8881 = vmatprep.subr.bf16.mxu0 0
    %8882 = vmatpush1.bf16.msra.mxu0 %v8859
    %8883 = vmatprep.subr.bf16.mxu0 0
    %8884 = vmatpush1.bf16.msra.mxu0 %v8860
    %8885 = vmatprep.subr.bf16.mxu0 0
    %8886 = vmatpush1.bf16.msra.mxu0 0
    %8887 = vmatprep.subr.bf16.mxu0 0
    %8888 = vmatpush1.bf16.msra.mxu0 0
    %8889 = vmatprep.subr.bf16.mxu0 0
    %8890 = vmatpush1.bf16.msra.mxu0 0
    %8891 = vmatprep.subr.bf16.mxu0 0
    %8892 = vmatpush1.bf16.msra.mxu0 0
    %8893 = vmatprep.subr.bf16.mxu0 0
    %8894 = vmatpush1.bf16.msra.mxu0 0
    %8895 = vmatprep.subr.bf16.mxu0 0
    %8896 = vmatpush1.bf16.msra.mxu0 0
    %8897 = vmatprep.subr.bf16.mxu0 0
    %8898 = vmatpush1.bf16.msra.mxu0 0
    %8899 = vmatprep.subr.bf16.mxu0 0
    %8900 = vmatpush1.bf16.msra.mxu0 0
    %8901 = vmatprep.mubr.bf16.mxu0 0
    %8902 = vmatmul.mubr.bf16.gmra.mrb[0].mxu0 %v8757
    %v8903 = vpop.f32.mrb[0].mxu0
    %v8904 = vadd.f32 0.0, %v8903
    %v8905 = vpop.f32.mrb[0].mxu0
    %v8906 = vpop.f32.mrb[0].mxu0
    %v8907 = vadd.f32 0.0, %v8906
    %v8908 = vpop.f32.mrb[0].mxu0
    %8909 = vmatprep.mubr.bf16.mxu0 0
    %8910 = vmatmul.mubr.bf16.gmra.mrb[0].mxu0 %v8758
    %v8911 = vpop.f32.mrb[0].mxu0
    %v8912 = vadd.f32 0.0, %v8911
    %v8913 = vpop.f32.mrb[0].mxu0
    %v8914 = vpop.f32.mrb[0].mxu0
    %v8915 = vadd.f32 0.0, %v8914
    %v8916 = vpop.f32.mrb[0].mxu0
    %8917 = vmatprep.mubr.bf16.mxu0 0
    %8918 = vmatmul.mubr.bf16.gmra.mrb[0].mxu0 %v8759
    %v8919 = vpop.f32.mrb[0].mxu0
    %v8920 = vadd.f32 0.0, %v8919
    %v8921 = vpop.f32.mrb[0].mxu0
    %v8922 = vpop.f32.mrb[0].mxu0
    %v8923 = vadd.f32 0.0, %v8922
    %v8924 = vpop.f32.mrb[0].mxu0
    %8925 = vmatprep.mubr.bf16.mxu0 0
    %8926 = vmatmul.mubr.bf16.gmra.mrb[0].mxu0 %v8760
    %v8927 = vpop.f32.mrb[0].mxu0
    %v8928 = vadd.f32 0.0, %v8927
    %v8929 = vpop.f32.mrb[0].mxu0
    %v8930 = vpop.f32.mrb[0].mxu0
    %v8931 = vadd.f32 0.0, %v8930
    %v8932 = vpop.f32.mrb[0].mxu0
    %8933 = vmatprep.mubr.bf16.mxu0 0
    %8934 = vmatmul.mubr.bf16.gmra.mrb[0].mxu0 %v8761
    %v8935 = vpop.f32.mrb[0].mxu0
    %v8936 = vadd.f32 0.0, %v8935
    %v8937 = vpop.f32.mrb[0].mxu0
    %v8938 = vpop.f32.mrb[0].mxu0
    %v8939 = vadd.f32 0.0, %v8938
    %v8940 = vpop.f32.mrb[0].mxu0
    %8941 = vmatprep.mubr.bf16.mxu0 0
    %8942 = vmatmul.mubr.bf16.gmra.mrb[0].mxu0 %v8762
    %v8943 = vpop.f32.mrb[0].mxu0
    %v8944 = vadd.f32 0.0, %v8943
    %v8945 = vpop.f32.mrb[0].mxu0
    %v8946 = vpop.f32.mrb[0].mxu0
    %v8947 = vadd.f32 0.0, %v8946
    %v8948 = vpop.f32.mrb[0].mxu0
    %8949 = vmatprep.mubr.bf16.mxu0 0
    %8950 = vmatmul.mubr.bf16.gmra.mrb[0].mxu0 %v8763
    %v8951 = vpop.f32.mrb[0].mxu0
    %v8952 = vadd.f32 0.0, %v8951
    %v8953 = vpop.f32.mrb[0].mxu0
    %v8954 = vpop.f32.mrb[0].mxu0
    %v8955 = vadd.f32 0.0, %v8954
    %v8956 = vpop.f32.mrb[0].mxu0
    %8957 = vmatprep.mubr.bf16.mxu0 0
    %8958 = vmatmul.mubr.bf16.gmra.mrb[0].mxu0 %v8764
    %v8959 = vpop.f32.mrb[0].mxu0
    %v8960 = vadd.f32 0.0, %v8959
    %v8961 = vpop.f32.mrb[0].mxu0
    %v8962 = vpop.f32.mrb[0].mxu0
    %v8963 = vadd.f32 0.0, %v8962
    %v8964 = vpop.f32.mrb[0].mxu0
    %8965 = vmatprep.mubr.bf16.mxu0 0
    %8966 = vmatmul.mubr.bf16.gmra.mrb[0].mxu0 %v8765
    %v8967 = vpop.f32.mrb[0].mxu0
    %v8968 = vadd.f32 0.0, %v8967
    %v8969 = vpop.f32.mrb[0].mxu0
    %v8970 = vpop.f32.mrb[0].mxu0
    %v8971 = vadd.f32 0.0, %v8970
    %v8972 = vpop.f32.mrb[0].mxu0
    %8973 = vmatprep.mubr.bf16.mxu0 0
    %8974 = vmatmul.mubr.bf16.gmra.mrb[0].mxu0 %v8766
    %v8975 = vpop.f32.mrb[0].mxu0
    %v8976 = vadd.f32 0.0, %v8975
    %v8977 = vpop.f32.mrb[0].mxu0
    %v8978 = vpop.f32.mrb[0].mxu0
    %v8979 = vadd.f32 0.0, %v8978
    %v8980 = vpop.f32.mrb[0].mxu0
    %8981 = vmatprep.mubr.bf16.mxu0 0
    %8982 = vmatmul.mubr.bf16.gmra.mrb[0].mxu0 %v8767
    %v8983 = vpop.f32.mrb[0].mxu0
    %v8984 = vadd.f32 0.0, %v8983
    %v8985 = vpop.f32.mrb[0].mxu0
    %v8986 = vpop.f32.mrb[0].mxu0
    %v8987 = vadd.f32 0.0, %v8986
    %v8988 = vpop.f32.mrb[0].mxu0
    %8989 = vmatprep.mubr.bf16.mxu0 0
    %8990 = vmatmul.mubr.bf16.gmra.mrb[0].mxu0 %v8768
    %v8991 = vpop.f32.mrb[0].mxu0
    %v8992 = vadd.f32 0.0, %v8991
    %v8993 = vpop.f32.mrb[0].mxu0
    %v8994 = vpop.f32.mrb[0].mxu0
    %v8995 = vadd.f32 0.0, %v8994
    %v8996 = vpop.f32.mrb[0].mxu0
    %8997 = vmatprep.mubr.bf16.mxu0 0
    %8998 = vmatmul.mubr.bf16.gmra.mrb[0].mxu0 %v8769
    %v8999 = vpop.f32.mrb[0].mxu0
    %v9000 = vadd.f32 0.0, %v8999
    %v9001 = vpop.f32.mrb[0].mxu0
    %v9002 = vpop.f32.mrb[0].mxu0
    %v9003 = vadd.f32 0.0, %v9002
    %v9004 = vpop.f32.mrb[0].mxu0
    %9005 = vmatprep.mubr.bf16.mxu0 0
    %9006 = vmatmul.mubr.bf16.gmra.mrb[0].mxu0 %v8770
    %v9007 = vpop.f32.mrb[0].mxu0
    %v9008 = vadd.f32 0.0, %v9007
    %v9009 = vpop.f32.mrb[0].mxu0
    %v9010 = vpop.f32.mrb[0].mxu0
    %v9011 = vadd.f32 0.0, %v9010
    %v9012 = vpop.f32.mrb[0].mxu0
    %9013 = vmatprep.mubr.bf16.mxu0 0
    %9014 = vmatmul.mubr.bf16.gmra.mrb[0].mxu0 %v8771
    %v9015 = vpop.f32.mrb[0].mxu0
    %v9016 = vadd.f32 0.0, %v9015
    %v9017 = vpop.f32.mrb[0].mxu0
    %v9018 = vpop.f32.mrb[0].mxu0
    %v9019 = vadd.f32 0.0, %v9018
    %v9020 = vpop.f32.mrb[0].mxu0
    %9021 = vmatprep.mubr.bf16.mxu0 0
    %9022 = vmatmul.mubr.bf16.gmra.mrb[0].mxu0 %v8772
    %v9023 = vpop.f32.mrb[0].mxu0
    %v9024 = vadd.f32 0.0, %v9023
    %v9025 = vpop.f32.mrb[0].mxu0
    %v9026 = vpop.f32.mrb[0].mxu0
    %v9027 = vadd.f32 0.0, %v9026
    %v9028 = vpop.f32.mrb[0].mxu0
    %9029 = vmatprep.mubr.bf16.mxu0 0
    %9030 = vmatmul.mubr.bf16.gmra.mrb[0].mxu0 %v8773
    %v9031 = vpop.f32.mrb[0].mxu0
    %v9032 = vadd.f32 0.0, %v9031
    %v9033 = vpop.f32.mrb[0].mxu0
    %v9034 = vpop.f32.mrb[0].mxu0
    %v9035 = vadd.f32 0.0, %v9034
    %v9036 = vpop.f32.mrb[0].mxu0
    %9037 = vmatprep.mubr.bf16.mxu0 0
    %9038 = vmatmul.mubr.bf16.gmra.mrb[0].mxu0 %v8774
    %v9039 = vpop.f32.mrb[0].mxu0
    %v9040 = vadd.f32 0.0, %v9039
    %v9041 = vpop.f32.mrb[0].mxu0
    %v9042 = vpop.f32.mrb[0].mxu0
    %v9043 = vadd.f32 0.0, %v9042
    %v9044 = vpop.f32.mrb[0].mxu0
    %9045 = vmatprep.mubr.bf16.mxu0 0
    %9046 = vmatmul.mubr.bf16.gmra.mrb[0].mxu0 %v8775
    %v9047 = vpop.f32.mrb[0].mxu0
    %v9048 = vadd.f32 0.0, %v9047
    %v9049 = vpop.f32.mrb[0].mxu0
    %v9050 = vpop.f32.mrb[0].mxu0
    %v9051 = vadd.f32 0.0, %v9050
    %v9052 = vpop.f32.mrb[0].mxu0
    %9053 = vmatprep.mubr.bf16.mxu0 0
    %9054 = vmatmul.mubr.bf16.gmra.mrb[0].mxu0 %v8776
    %v9055 = vpop.f32.mrb[0].mxu0
    %v9056 = vadd.f32 0.0, %v9055
    %v9057 = vpop.f32.mrb[0].mxu0
    %v9058 = vpop.f32.mrb[0].mxu0
    %v9059 = vadd.f32 0.0, %v9058
    %v9060 = vpop.f32.mrb[0].mxu0
    %9061 = vmatprep.mubr.bf16.mxu0 0
    %9062 = vmatmul.mubr.bf16.gmra.mrb[0].mxu0 %v8777
    %v9063 = vpop.f32.mrb[0].mxu0
    %v9064 = vadd.f32 0.0, %v9063
    %v9065 = vpop.f32.mrb[0].mxu0
    %v9066 = vpop.f32.mrb[0].mxu0
    %v9067 = vadd.f32 0.0, %v9066
    %v9068 = vpop.f32.mrb[0].mxu0
    %9069 = vmatprep.mubr.bf16.mxu0 0
    %9070 = vmatmul.mubr.bf16.gmra.mrb[0].mxu0 %v8778
    %v9071 = vpop.f32.mrb[0].mxu0
    %v9072 = vadd.f32 0.0, %v9071
    %v9073 = vpop.f32.mrb[0].mxu0
    %v9074 = vpop.f32.mrb[0].mxu0
    %v9075 = vadd.f32 0.0, %v9074
    %v9076 = vpop.f32.mrb[0].mxu0
    %9077 = vmatprep.mubr.bf16.mxu0 0
    %9078 = vmatmul.mubr.bf16.gmra.mrb[0].mxu0 %v8779
    %v9079 = vpop.f32.mrb[0].mxu0
    %v9080 = vadd.f32 0.0, %v9079
    %v9081 = vpop.f32.mrb[0].mxu0
    %v9082 = vpop.f32.mrb[0].mxu0
    %v9083 = vadd.f32 0.0, %v9082
    %v9084 = vpop.f32.mrb[0].mxu0
    %9085 = vmatprep.mubr.bf16.mxu0 0
    %9086 = vmatmul.mubr.bf16.gmra.mrb[0].mxu0 %v8780
    %v9087 = vpop.f32.mrb[0].mxu0
    %v9088 = vadd.f32 0.0, %v9087
    %v9089 = vpop.f32.mrb[0].mxu0
    %v9090 = vpop.f32.mrb[0].mxu0
    %v9091 = vadd.f32 0.0, %v9090
    %v9092 = vpop.f32.mrb[0].mxu0
    %9093 = vmatprep.mubr.bf16.mxu0 0
    %9094 = vmatmul.mubr.bf16.gmra.mrb[0].mxu0 %v8781
    %v9095 = vpop.f32.mrb[0].mxu0
    %v9096 = vadd.f32 0.0, %v9095
    %v9097 = vpop.f32.mrb[0].mxu0
    %v9098 = vpop.f32.mrb[0].mxu0
    %v9099 = vadd.f32 0.0, %v9098
    %v9100 = vpop.f32.mrb[0].mxu0
    %9101 = vmatprep.mubr.bf16.mxu0 0
    %9102 = vmatmul.mubr.bf16.gmra.mrb[0].mxu0 %v8782
    %v9103 = vpop.f32.mrb[0].mxu0
    %v9104 = vadd.f32 0.0, %v9103
    %v9105 = vpop.f32.mrb[0].mxu0
    %v9106 = vpop.f32.mrb[0].mxu0
    %v9107 = vadd.f32 0.0, %v9106
    %v9108 = vpop.f32.mrb[0].mxu0
    %9109 = vmatprep.mubr.bf16.mxu0 0
    %9110 = vmatmul.mubr.bf16.gmra.mrb[0].mxu0 %v8783
    %v9111 = vpop.f32.mrb[0].mxu0
    %v9112 = vadd.f32 0.0, %v9111
    %v9113 = vpop.f32.mrb[0].mxu0
    %v9114 = vpop.f32.mrb[0].mxu0
    %v9115 = vadd.f32 0.0, %v9114
    %v9116 = vpop.f32.mrb[0].mxu0
    %9117 = vmatprep.mubr.bf16.mxu0 0
    %9118 = vmatmul.mubr.bf16.gmra.mrb[0].mxu0 %v8784
    %v9119 = vpop.f32.mrb[0].mxu0
    %v9120 = vadd.f32 0.0, %v9119
    %v9121 = vpop.f32.mrb[0].mxu0
    %v9122 = vpop.f32.mrb[0].mxu0
    %v9123 = vadd.f32 0.0, %v9122
    %v9124 = vpop.f32.mrb[0].mxu0
    %9125 = vmatprep.mubr.bf16.mxu0 0
    %9126 = vmatmul.mubr.bf16.gmra.mrb[0].mxu0 %v8785
    %v9127 = vpop.f32.mrb[0].mxu0
    %v9128 = vadd.f32 0.0, %v9127
    %v9129 = vpop.f32.mrb[0].mxu0
    %v9130 = vpop.f32.mrb[0].mxu0
    %v9131 = vadd.f32 0.0, %v9130
    %v9132 = vpop.f32.mrb[0].mxu0
    %9133 = vmatprep.mubr.bf16.mxu0 0
    %9134 = vmatmul.mubr.bf16.gmra.mrb[0].mxu0 %v8786
    %v9135 = vpop.f32.mrb[0].mxu0
    %v9136 = vadd.f32 0.0, %v9135
    %v9137 = vpop.f32.mrb[0].mxu0
    %v9138 = vpop.f32.mrb[0].mxu0
    %v9139 = vadd.f32 0.0, %v9138
    %v9140 = vpop.f32.mrb[0].mxu0
    %9141 = vmatprep.mubr.bf16.mxu0 0
    %9142 = vmatmul.mubr.bf16.gmra.mrb[0].mxu0 %v8787
    %v9143 = vpop.f32.mrb[0].mxu0
    %v9144 = vadd.f32 0.0, %v9143
    %v9145 = vpop.f32.mrb[0].mxu0
    %v9146 = vpop.f32.mrb[0].mxu0
    %v9147 = vadd.f32 0.0, %v9146
    %v9148 = vpop.f32.mrb[0].mxu0
    %9149 = vmatprep.mubr.bf16.mxu0 0
    %9150 = vmatmul.mubr.bf16.gmra.mrb[0].mxu0 %v8788
    %v9151 = vpop.f32.mrb[0].mxu0
    %v9152 = vadd.f32 0.0, %v9151
    %v9153 = vpop.f32.mrb[0].mxu0
    %v9154 = vpop.f32.mrb[0].mxu0
    %v9155 = vadd.f32 0.0, %v9154
    %v9156 = vpop.f32.mrb[0].mxu0
    %9157 = vdwg.mxu0
    %v9158 = vadd.f32 %v8260, %v8904
    %v9159 = vadd.f32 %v8261, %v8907
    %v9160 = vadd.f32 %v8262, %v8912
    %v9161 = vadd.f32 %v8263, %v8915
    %v9162 = vadd.f32 %v8264, %v8920
    %v9163 = vadd.f32 %v8265, %v8923
    %v9164 = vadd.f32 %v8266, %v8928
    %v9165 = vadd.f32 %v8267, %v8931
    %v9166 = vadd.f32 %v8268, %v8936
    %v9167 = vadd.f32 %v8269, %v8939
    %v9168 = vadd.f32 %v8270, %v8944
    %v9169 = vadd.f32 %v8271, %v8947
    %v9170 = vadd.f32 %v8272, %v8952
    %v9171 = vadd.f32 %v8273, %v8955
    %v9172 = vadd.f32 %v8274, %v8960
    %v9173 = vadd.f32 %v8275, %v8963
    %v9174 = vadd.f32 %v8276, %v8968
    %v9175 = vadd.f32 %v8277, %v8971
    %v9176 = vadd.f32 %v8278, %v8976
    %v9177 = vadd.f32 %v8279, %v8979
    %v9178 = vadd.f32 %v8280, %v8984
    %v9179 = vadd.f32 %v8281, %v8987
    %v9180 = vadd.f32 %v8282, %v8992
    %v9181 = vadd.f32 %v8283, %v8995
    %v9182 = vadd.f32 %v8284, %v9000
    %v9183 = vadd.f32 %v8285, %v9003
    %v9184 = vadd.f32 %v8286, %v9008
    %v9185 = vadd.f32 %v8287, %v9011
    %v9186 = vadd.f32 %v8288, %v9016
    %v9187 = vadd.f32 %v8289, %v9019
    %v9188 = vadd.f32 %v8290, %v9024
    %v9189 = vadd.f32 %v8291, %v9027
    %v9190 = vadd.f32 %v8292, %v9032
    %v9191 = vadd.f32 %v8293, %v9035
    %v9192 = vadd.f32 %v8294, %v9040
    %v9193 = vadd.f32 %v8295, %v9043
    %v9194 = vadd.f32 %v8296, %v9048
    %v9195 = vadd.f32 %v8297, %v9051
    %v9196 = vadd.f32 %v8298, %v9056
    %v9197 = vadd.f32 %v8299, %v9059
    %v9198 = vadd.f32 %v8300, %v9064
    %v9199 = vadd.f32 %v8301, %v9067
    %v9200 = vadd.f32 %v8302, %v9072
    %v9201 = vadd.f32 %v8303, %v9075
    %v9202 = vadd.f32 %v8304, %v9080
    %v9203 = vadd.f32 %v8305, %v9083
    %v9204 = vadd.f32 %v8306, %v9088
    %v9205 = vadd.f32 %v8307, %v9091
    %v9206 = vadd.f32 %v8308, %v9096
    %v9207 = vadd.f32 %v8309, %v9099
    %v9208 = vadd.f32 %v8310, %v9104
    %v9209 = vadd.f32 %v8311, %v9107
    %v9210 = vadd.f32 %v8312, %v9112
    %v9211 = vadd.f32 %v8313, %v9115
    %v9212 = vadd.f32 %v8314, %v9120
    %v9213 = vadd.f32 %v8315, %v9123
    %v9214 = vadd.f32 %v8316, %v9128
    %v9215 = vadd.f32 %v8317, %v9131
    %v9216 = vadd.f32 %v8318, %v9136
    %v9217 = vadd.f32 %v8319, %v9139
    %v9218 = vadd.f32 %v8320, %v9144
    %v9219 = vadd.f32 %v8321, %v9147
    %v9220 = vadd.f32 %v8322, %v9152
    %v9221 = vadd.f32 %v8323, %v9155
    %v9222 = vpack.c.bf16 %v9159, %v9158
    %v9223 = vpack.c.bf16 %v9161, %v9160
    %v9224 = vpack.c.bf16 %v9163, %v9162
    %v9225 = vpack.c.bf16 %v9165, %v9164
    %v9226 = vpack.c.bf16 %v9167, %v9166
    %v9227 = vpack.c.bf16 %v9169, %v9168
    %v9228 = vpack.c.bf16 %v9171, %v9170
    %v9229 = vpack.c.bf16 %v9173, %v9172
    %v9230 = vpack.c.bf16 %v9175, %v9174
    %v9231 = vpack.c.bf16 %v9177, %v9176
    %v9232 = vpack.c.bf16 %v9179, %v9178
    %v9233 = vpack.c.bf16 %v9181, %v9180
    %v9234 = vpack.c.bf16 %v9183, %v9182
    %v9235 = vpack.c.bf16 %v9185, %v9184
    %v9236 = vpack.c.bf16 %v9187, %v9186
    %v9237 = vpack.c.bf16 %v9189, %v9188
    %v9238 = vpack.c.bf16 %v9191, %v9190
    %v9239 = vpack.c.bf16 %v9193, %v9192
    %v9240 = vpack.c.bf16 %v9195, %v9194
    %v9241 = vpack.c.bf16 %v9197, %v9196
    %v9242 = vpack.c.bf16 %v9199, %v9198
    %v9243 = vpack.c.bf16 %v9201, %v9200
    %v9244 = vpack.c.bf16 %v9203, %v9202
    %v9245 = vpack.c.bf16 %v9205, %v9204
    %v9246 = vpack.c.bf16 %v9207, %v9206
    %v9247 = vpack.c.bf16 %v9209, %v9208
    %v9248 = vpack.c.bf16 %v9211, %v9210
    %v9249 = vpack.c.bf16 %v9213, %v9212
    %v9250 = vpack.c.bf16 %v9215, %v9214
    %v9251 = vpack.c.bf16 %v9217, %v9216
    %v9252 = vpack.c.bf16 %v9219, %v9218
    %v9253 = vpack.c.bf16 %v9221, %v9220
    %v9286 = vunpack.c.l.b16 %v9222
    %v9287 = vunpack.c.h.b16 %v9222
    %v9288 = vunpack.c.l.b16 %v9223
    %v9289 = vunpack.c.h.b16 %v9223
    %v9290 = vunpack.c.l.b16 %v9224
    %v9291 = vunpack.c.h.b16 %v9224
    %v9292 = vunpack.c.l.b16 %v9225
    %v9293 = vunpack.c.h.b16 %v9225
    %v9294 = vunpack.c.l.b16 %v9226
    %v9295 = vunpack.c.h.b16 %v9226
    %v9296 = vunpack.c.l.b16 %v9227
    %v9297 = vunpack.c.h.b16 %v9227
    %v9298 = vunpack.c.l.b16 %v9228
    %v9299 = vunpack.c.h.b16 %v9228
    %v9300 = vunpack.c.l.b16 %v9229
    %v9301 = vunpack.c.h.b16 %v9229
    %v9302 = vunpack.c.l.b16 %v9230
    %v9303 = vunpack.c.h.b16 %v9230
    %v9304 = vunpack.c.l.b16 %v9231
    %v9305 = vunpack.c.h.b16 %v9231
    %v9306 = vunpack.c.l.b16 %v9232
    %v9307 = vunpack.c.h.b16 %v9232
    %v9308 = vunpack.c.l.b16 %v9233
    %v9309 = vunpack.c.h.b16 %v9233
    %v9310 = vunpack.c.l.b16 %v9234
    %v9311 = vunpack.c.h.b16 %v9234
    %v9312 = vunpack.c.l.b16 %v9235
    %v9313 = vunpack.c.h.b16 %v9235
    %v9314 = vunpack.c.l.b16 %v9236
    %v9315 = vunpack.c.h.b16 %v9236
    %v9316 = vunpack.c.l.b16 %v9237
    %v9317 = vunpack.c.h.b16 %v9237
    %v9318 = vunpack.c.l.b16 %v9238
    %v9319 = vunpack.c.h.b16 %v9238
    %v9320 = vunpack.c.l.b16 %v9239
    %v9321 = vunpack.c.h.b16 %v9239
    %v9322 = vunpack.c.l.b16 %v9240
    %v9323 = vunpack.c.h.b16 %v9240
    %v9324 = vunpack.c.l.b16 %v9241
    %v9325 = vunpack.c.h.b16 %v9241
    %v9326 = vunpack.c.l.b16 %v9242
    %v9327 = vunpack.c.h.b16 %v9242
    %v9328 = vunpack.c.l.b16 %v9243
    %v9329 = vunpack.c.h.b16 %v9243
    %v9330 = vunpack.c.l.b16 %v9244
    %v9331 = vunpack.c.h.b16 %v9244
    %v9332 = vunpack.c.l.b16 %v9245
    %v9333 = vunpack.c.h.b16 %v9245
    %v9334 = vunpack.c.l.b16 %v9246
    %v9335 = vunpack.c.h.b16 %v9246
    %v9336 = vunpack.c.l.b16 %v9247
    %v9337 = vunpack.c.h.b16 %v9247
    %v9338 = vunpack.c.l.b16 %v9248
    %v9339 = vunpack.c.h.b16 %v9248
    %v9340 = vunpack.c.l.b16 %v9249
    %v9341 = vunpack.c.h.b16 %v9249
    %v9342 = vunpack.c.l.b16 %v9250
    %v9343 = vunpack.c.h.b16 %v9250
    %v9344 = vunpack.c.l.b16 %v9251
    %v9345 = vunpack.c.h.b16 %v9251
    %v9346 = vunpack.c.l.b16 %v9252
    %v9347 = vunpack.c.h.b16 %v9252
    %v9348 = vunpack.c.l.b16 %v9253
    %v9349 = vunpack.c.h.b16 %v9253
    %v9350 = vpack.c.b16 %v9286, %v9286
    %v9351 = vpack.c.b16 %v9287, %v9287
    %v9352 = vpack.c.b16 %v9288, %v9288
    %v9353 = vpack.c.b16 %v9289, %v9289
    %v9354 = vpack.c.b16 %v9290, %v9290
    %v9355 = vpack.c.b16 %v9291, %v9291
    %v9356 = vpack.c.b16 %v9292, %v9292
    %v9357 = vpack.c.b16 %v9293, %v9293
    %v9358 = vpack.c.b16 %v9294, %v9294
    %v9359 = vpack.c.b16 %v9295, %v9295
    %v9360 = vpack.c.b16 %v9296, %v9296
    %v9361 = vpack.c.b16 %v9297, %v9297
    %v9362 = vpack.c.b16 %v9298, %v9298
    %v9363 = vpack.c.b16 %v9299, %v9299
    %v9364 = vpack.c.b16 %v9300, %v9300
    %v9365 = vpack.c.b16 %v9301, %v9301
    %v9366 = vpack.c.b16 %v9302, %v9302
    %v9367 = vpack.c.b16 %v9303, %v9303
    %v9368 = vpack.c.b16 %v9304, %v9304
    %v9369 = vpack.c.b16 %v9305, %v9305
    %v9370 = vpack.c.b16 %v9306, %v9306
    %v9371 = vpack.c.b16 %v9307, %v9307
    %v9372 = vpack.c.b16 %v9308, %v9308
    %v9373 = vpack.c.b16 %v9309, %v9309
    %v9374 = vpack.c.b16 %v9310, %v9310
    %v9375 = vpack.c.b16 %v9311, %v9311
    %v9376 = vpack.c.b16 %v9312, %v9312
    %v9377 = vpack.c.b16 %v9313, %v9313
    %v9378 = vpack.c.b16 %v9314, %v9314
    %v9379 = vpack.c.b16 %v9315, %v9315
    %v9380 = vpack.c.b16 %v9316, %v9316
    %v9381 = vpack.c.b16 %v9317, %v9317
    %v9382 = vpack.c.b16 %v9318, %v9318
    %v9383 = vpack.c.b16 %v9319, %v9319
    %v9384 = vpack.c.b16 %v9320, %v9320
    %v9385 = vpack.c.b16 %v9321, %v9321
    %v9386 = vpack.c.b16 %v9322, %v9322
    %v9387 = vpack.c.b16 %v9323, %v9323
    %v9388 = vpack.c.b16 %v9324, %v9324
    %v9389 = vpack.c.b16 %v9325, %v9325
    %v9390 = vpack.c.b16 %v9326, %v9326
    %v9391 = vpack.c.b16 %v9327, %v9327
    %v9392 = vpack.c.b16 %v9328, %v9328
    %v9393 = vpack.c.b16 %v9329, %v9329
    %v9394 = vpack.c.b16 %v9330, %v9330
    %v9395 = vpack.c.b16 %v9331, %v9331
    %v9396 = vpack.c.b16 %v9332, %v9332
    %v9397 = vpack.c.b16 %v9333, %v9333
    %v9398 = vpack.c.b16 %v9334, %v9334
    %v9399 = vpack.c.b16 %v9335, %v9335
    %v9400 = vpack.c.b16 %v9336, %v9336
    %v9401 = vpack.c.b16 %v9337, %v9337
    %v9402 = vpack.c.b16 %v9338, %v9338
    %v9403 = vpack.c.b16 %v9339, %v9339
    %v9404 = vpack.c.b16 %v9340, %v9340
    %v9405 = vpack.c.b16 %v9341, %v9341
    %v9406 = vpack.c.b16 %v9342, %v9342
    %v9407 = vpack.c.b16 %v9343, %v9343
    %v9408 = vpack.c.b16 %v9344, %v9344
    %v9409 = vpack.c.b16 %v9345, %v9345
    %v9410 = vpack.c.b16 %v9346, %v9346
    %v9411 = vpack.c.b16 %v9347, %v9347
    %v9412 = vpack.c.b16 %v9348, %v9348
    %v9413 = vpack.c.b16 %v9349, %v9349
    %9478 = vst [vmem:[#allocation9] sm:$0xf] %v9350
    %9479 = vst [vmem:[#allocation9 + $0x4] sm:$0xf] %v9351
    %9480 = vst [vmem:[#allocation9 + $0x8] sm:$0xf] %v9352
    %9481 = vst [vmem:[#allocation9 + $0xc] sm:$0xf] %v9353
    %9482 = vst [vmem:[#allocation9 + $0x10] sm:$0xf] %v9354
    %9483 = vst [vmem:[#allocation9 + $0x14] sm:$0xf] %v9355
    %9484 = vst [vmem:[#allocation9 + $0x18] sm:$0xf] %v9356
    %9485 = vst [vmem:[#allocation9 + $0x1c] sm:$0xf] %v9357
    %9486 = vst [vmem:[#allocation9 + $0x20] sm:$0xf] %v9358
    %9487 = vst [vmem:[#allocation9 + $0x24] sm:$0xf] %v9359
    %9488 = vst [vmem:[#allocation9 + $0x28] sm:$0xf] %v9360
    %9489 = vst [vmem:[#allocation9 + $0x2c] sm:$0xf] %v9361
    %9490 = vst [vmem:[#allocation9 + $0x30] sm:$0xf] %v9362
    %9491 = vst [vmem:[#allocation9 + $0x34] sm:$0xf] %v9363
    %9492 = vst [vmem:[#allocation9 + $0x38] sm:$0xf] %v9364
    %9493 = vst [vmem:[#allocation9 + $0x3c] sm:$0xf] %v9365
    %9494 = vst [vmem:[#allocation9 + $0x40] sm:$0xf] %v9366
    %9495 = vst [vmem:[#allocation9 + $0x44] sm:$0xf] %v9367
    %9496 = vst [vmem:[#allocation9 + $0x48] sm:$0xf] %v9368
    %9497 = vst [vmem:[#allocation9 + $0x4c] sm:$0xf] %v9369
    %9498 = vst [vmem:[#allocation9 + $0x50] sm:$0xf] %v9370
    %9499 = vst [vmem:[#allocation9 + $0x54] sm:$0xf] %v9371
    %9500 = vst [vmem:[#allocation9 + $0x58] sm:$0xf] %v9372
    %9501 = vst [vmem:[#allocation9 + $0x5c] sm:$0xf] %v9373
    %9502 = vst [vmem:[#allocation9 + $0x60] sm:$0xf] %v9374
    %9503 = vst [vmem:[#allocation9 + $0x64] sm:$0xf] %v9375
    %9504 = vst [vmem:[#allocation9 + $0x68] sm:$0xf] %v9376
    %9505 = vst [vmem:[#allocation9 + $0x6c] sm:$0xf] %v9377
    %9506 = vst [vmem:[#allocation9 + $0x70] sm:$0xf] %v9378
    %9507 = vst [vmem:[#allocation9 + $0x74] sm:$0xf] %v9379
    %9508 = vst [vmem:[#allocation9 + $0x78] sm:$0xf] %v9380
    %9509 = vst [vmem:[#allocation9 + $0x7c] sm:$0xf] %v9381
    %9510 = vst [vmem:[#allocation9 + $0x80] sm:$0xf] %v9382
    %9511 = vst [vmem:[#allocation9 + $0x84] sm:$0xf] %v9383
    %9512 = vst [vmem:[#allocation9 + $0x88] sm:$0xf] %v9384
    %9513 = vst [vmem:[#allocation9 + $0x8c] sm:$0xf] %v9385
    %9514 = vst [vmem:[#allocation9 + $0x90] sm:$0xf] %v9386
    %9515 = vst [vmem:[#allocation9 + $0x94] sm:$0xf] %v9387
    %9516 = vst [vmem:[#allocation9 + $0x98] sm:$0xf] %v9388
    %9517 = vst [vmem:[#allocation9 + $0x9c] sm:$0xf] %v9389
    %9518 = vst [vmem:[#allocation9 + $0xa0] sm:$0xf] %v9390
    %9519 = vst [vmem:[#allocation9 + $0xa4] sm:$0xf] %v9391
    %9520 = vst [vmem:[#allocation9 + $0xa8] sm:$0xf] %v9392
    %9521 = vst [vmem:[#allocation9 + $0xac] sm:$0xf] %v9393
    %9522 = vst [vmem:[#allocation9 + $0xb0] sm:$0xf] %v9394
    %9523 = vst [vmem:[#allocation9 + $0xb4] sm:$0xf] %v9395
    %9524 = vst [vmem:[#allocation9 + $0xb8] sm:$0xf] %v9396
    %9525 = vst [vmem:[#allocation9 + $0xbc] sm:$0xf] %v9397
    %9526 = vst [vmem:[#allocation9 + $0xc0] sm:$0xf] %v9398
    %9527 = vst [vmem:[#allocation9 + $0xc4] sm:$0xf] %v9399
    %9528 = vst [vmem:[#allocation9 + $0xc8] sm:$0xf] %v9400
    %9529 = vst [vmem:[#allocation9 + $0xcc] sm:$0xf] %v9401
    %9530 = vst [vmem:[#allocation9 + $0xd0] sm:$0xf] %v9402
    %9531 = vst [vmem:[#allocation9 + $0xd4] sm:$0xf] %v9403
    %9532 = vst [vmem:[#allocation9 + $0xd8] sm:$0xf] %v9404
    %9533 = vst [vmem:[#allocation9 + $0xdc] sm:$0xf] %v9405
    %9534 = vst [vmem:[#allocation9 + $0xe0] sm:$0xf] %v9406
    %9535 = vst [vmem:[#allocation9 + $0xe4] sm:$0xf] %v9407
    %9536 = vst [vmem:[#allocation9 + $0xe8] sm:$0xf] %v9408
    %9537 = vst [vmem:[#allocation9 + $0xec] sm:$0xf] %v9409
    %9538 = vst [vmem:[#allocation9 + $0xf0] sm:$0xf] %v9410
    %9539 = vst [vmem:[#allocation9 + $0xf4] sm:$0xf] %v9411
    %9540 = vst [vmem:[#allocation9 + $0xf8] sm:$0xf] %v9412
    %9541 = vst [vmem:[#allocation9 + $0xfc] sm:$0xf] %v9413
    %v9542 = vadd.f32 %v9158, %v9159
    %v9543 = vadd.f32 %v9542, %v9160
    %v9544 = vadd.f32 %v9543, %v9161
    %v9545 = vadd.f32 %v9544, %v9162
    %v9546 = vadd.f32 %v9545, %v9163
    %v9547 = vadd.f32 %v9546, %v9164
    %v9548 = vadd.f32 %v9547, %v9165
    %v9549 = vadd.f32 %v9548, %v9166
    %v9550 = vadd.f32 %v9549, %v9167
    %v9551 = vadd.f32 %v9550, %v9168
    %v9552 = vadd.f32 %v9551, %v9169
    %v9553 = vadd.f32 %v9552, %v9170
    %v9554 = vadd.f32 %v9553, %v9171
    %v9555 = vadd.f32 %v9554, %v9172
    %v9556 = vadd.f32 %v9555, %v9173
    %v9557 = vadd.f32 %v9556, %v9174
    %v9558 = vadd.f32 %v9557, %v9175
    %v9559 = vadd.f32 %v9558, %v9176
    %v9560 = vadd.f32 %v9559, %v9177
    %v9561 = vadd.f32 %v9560, %v9178
    %v9562 = vadd.f32 %v9561, %v9179
    %v9563 = vadd.f32 %v9562, %v9180
    %v9564 = vadd.f32 %v9563, %v9181
    %v9565 = vadd.f32 %v9564, %v9182
    %v9566 = vadd.f32 %v9565, %v9183
    %v9567 = vadd.f32 %v9566, %v9184
    %v9568 = vadd.f32 %v9567, %v9185
    %v9569 = vadd.f32 %v9568, %v9186
    %v9570 = vadd.f32 %v9569, %v9187
    %v9571 = vadd.f32 %v9570, %v9188
    %v9572 = vadd.f32 %v9571, %v9189
    %v9573 = vadd.f32 %v9572, %v9190
    %v9574 = vadd.f32 %v9573, %v9191
    %v9575 = vadd.f32 %v9574, %v9192
    %v9576 = vadd.f32 %v9575, %v9193
    %v9577 = vadd.f32 %v9576, %v9194
    %v9578 = vadd.f32 %v9577, %v9195
    %v9579 = vadd.f32 %v9578, %v9196
    %v9580 = vadd.f32 %v9579, %v9197
    %v9581 = vadd.f32 %v9580, %v9198
    %v9582 = vadd.f32 %v9581, %v9199
    %v9583 = vadd.f32 %v9582, %v9200
    %v9584 = vadd.f32 %v9583, %v9201
    %v9585 = vadd.f32 %v9584, %v9202
    %v9586 = vadd.f32 %v9585, %v9203
    %v9587 = vadd.f32 %v9586, %v9204
    %v9588 = vadd.f32 %v9587, %v9205
    %v9589 = vadd.f32 %v9588, %v9206
    %v9590 = vadd.f32 %v9589, %v9207
    %v9591 = vadd.f32 %v9590, %v9208
    %v9592 = vadd.f32 %v9591, %v9209
    %v9593 = vadd.f32 %v9592, %v9210
    %v9594 = vadd.f32 %v9593, %v9211
    %v9595 = vadd.f32 %v9594, %v9212
    %v9596 = vadd.f32 %v9595, %v9213
    %v9597 = vadd.f32 %v9596, %v9214
    %v9598 = vadd.f32 %v9597, %v9215
    %v9599 = vadd.f32 %v9598, %v9216
    %v9600 = vadd.f32 %v9599, %v9217
    %v9601 = vadd.f32 %v9600, %v9218
    %v9602 = vadd.f32 %v9601, %v9219
    %v9603 = vadd.f32 %v9602, %v9220
    %v9604 = vadd.f32 %v9603, %v9221
    %v9605 = vrot.slane %v9604, 4
    %v9606 = vadd.f32 %v9604, %v9605
    %v9607 = vrot.slane %v9606, 2
    %v9608 = vadd.f32 %v9606, %v9607
    %v9609 = vrot.slane %v9608, 1
    %v9610 = vadd.f32 %v9608, %v9609
    %v9611 = vmul.f32 %v9158, %v9158
    %v9612 = vmul.f32 %v9159, %v9159
    %v9613 = vmul.f32 %v9160, %v9160
    %v9614 = vmul.f32 %v9161, %v9161
    %v9615 = vmul.f32 %v9162, %v9162
    %v9616 = vmul.f32 %v9163, %v9163
    %v9617 = vmul.f32 %v9164, %v9164
    %v9618 = vmul.f32 %v9165, %v9165
    %v9619 = vmul.f32 %v9166, %v9166
    %v9620 = vmul.f32 %v9167, %v9167
    %v9621 = vmul.f32 %v9168, %v9168
    %v9622 = vmul.f32 %v9169, %v9169
    %v9623 = vmul.f32 %v9170, %v9170
    %v9624 = vmul.f32 %v9171, %v9171
    %v9625 = vmul.f32 %v9172, %v9172
    %v9626 = vmul.f32 %v9173, %v9173
    %v9627 = vmul.f32 %v9174, %v9174
    %v9628 = vmul.f32 %v9175, %v9175
    %v9629 = vmul.f32 %v9176, %v9176
    %v9630 = vmul.f32 %v9177, %v9177
    %v9631 = vmul.f32 %v9178, %v9178
    %v9632 = vmul.f32 %v9179, %v9179
    %v9633 = vmul.f32 %v9180, %v9180
    %v9634 = vmul.f32 %v9181, %v9181
    %v9635 = vmul.f32 %v9182, %v9182
    %v9636 = vmul.f32 %v9183, %v9183
    %v9637 = vmul.f32 %v9184, %v9184
    %v9638 = vmul.f32 %v9185, %v9185
    %v9639 = vmul.f32 %v9186, %v9186
    %v9640 = vmul.f32 %v9187, %v9187
    %v9641 = vmul.f32 %v9188, %v9188
    %v9642 = vmul.f32 %v9189, %v9189
    %v9643 = vmul.f32 %v9190, %v9190
    %v9644 = vmul.f32 %v9191, %v9191
    %v9645 = vmul.f32 %v9192, %v9192
    %v9646 = vmul.f32 %v9193, %v9193
    %v9647 = vmul.f32 %v9194, %v9194
    %v9648 = vmul.f32 %v9195, %v9195
    %v9649 = vmul.f32 %v9196, %v9196
    %v9650 = vmul.f32 %v9197, %v9197
    %v9651 = vmul.f32 %v9198, %v9198
    %v9652 = vmul.f32 %v9199, %v9199
    %v9653 = vmul.f32 %v9200, %v9200
    %v9654 = vmul.f32 %v9201, %v9201
    %v9655 = vmul.f32 %v9202, %v9202
    %v9656 = vmul.f32 %v9203, %v9203
    %v9657 = vmul.f32 %v9204, %v9204
    %v9658 = vmul.f32 %v9205, %v9205
    %v9659 = vmul.f32 %v9206, %v9206
    %v9660 = vmul.f32 %v9207, %v9207
    %v9661 = vmul.f32 %v9208, %v9208
    %v9662 = vmul.f32 %v9209, %v9209
    %v9663 = vmul.f32 %v9210, %v9210
    %v9664 = vmul.f32 %v9211, %v9211
    %v9665 = vmul.f32 %v9212, %v9212
    %v9666 = vmul.f32 %v9213, %v9213
    %v9667 = vmul.f32 %v9214, %v9214
    %v9668 = vmul.f32 %v9215, %v9215
    %v9669 = vmul.f32 %v9216, %v9216
    %v9670 = vmul.f32 %v9217, %v9217
    %v9671 = vmul.f32 %v9218, %v9218
    %v9672 = vmul.f32 %v9219, %v9219
    %v9673 = vmul.f32 %v9220, %v9220
    %v9674 = vmul.f32 %v9221, %v9221
    %v9675 = vadd.f32 %v9611, %v9612
    %v9676 = vadd.f32 %v9675, %v9613
    %v9677 = vadd.f32 %v9676, %v9614
    %v9678 = vadd.f32 %v9677, %v9615
    %v9679 = vadd.f32 %v9678, %v9616
    %v9680 = vadd.f32 %v9679, %v9617
    %v9681 = vadd.f32 %v9680, %v9618
    %v9682 = vadd.f32 %v9681, %v9619
    %v9683 = vadd.f32 %v9682, %v9620
    %v9684 = vadd.f32 %v9683, %v9621
    %v9685 = vadd.f32 %v9684, %v9622
    %v9686 = vadd.f32 %v9685, %v9623
    %v9687 = vadd.f32 %v9686, %v9624
    %v9688 = vadd.f32 %v9687, %v9625
    %v9689 = vadd.f32 %v9688, %v9626
    %v9690 = vadd.f32 %v9689, %v9627
    %v9691 = vadd.f32 %v9690, %v9628
    %v9692 = vadd.f32 %v9691, %v9629
    %v9693 = vadd.f32 %v9692, %v9630
    %v9694 = vadd.f32 %v9693, %v9631
    %v9695 = vadd.f32 %v9694, %v9632
    %v9696 = vadd.f32 %v9695, %v9633
    %v9697 = vadd.f32 %v9696, %v9634
    %v9698 = vadd.f32 %v9697, %v9635
    %v9699 = vadd.f32 %v9698, %v9636
    %v9700 = vadd.f32 %v9699, %v9637
    %v9701 = vadd.f32 %v9700, %v9638
    %v9702 = vadd.f32 %v9701, %v9639
    %v9703 = vadd.f32 %v9702, %v9640
    %v9704 = vadd.f32 %v9703, %v9641
    %v9705 = vadd.f32 %v9704, %v9642
    %v9706 = vadd.f32 %v9705, %v9643
    %v9707 = vadd.f32 %v9706, %v9644
    %v9708 = vadd.f32 %v9707, %v9645
    %v9709 = vadd.f32 %v9708, %v9646
    %v9710 = vadd.f32 %v9709, %v9647
    %v9711 = vadd.f32 %v9710, %v9648
    %v9712 = vadd.f32 %v9711, %v9649
    %v9713 = vadd.f32 %v9712, %v9650
    %v9714 = vadd.f32 %v9713, %v9651
    %v9715 = vadd.f32 %v9714, %v9652
    %v9716 = vadd.f32 %v9715, %v9653
    %v9717 = vadd.f32 %v9716, %v9654
    %v9718 = vadd.f32 %v9717, %v9655
    %v9719 = vadd.f32 %v9718, %v9656
    %v9720 = vadd.f32 %v9719, %v9657
    %v9721 = vadd.f32 %v9720, %v9658
    %v9722 = vadd.f32 %v9721, %v9659
    %v9723 = vadd.f32 %v9722, %v9660
    %v9724 = vadd.f32 %v9723, %v9661
    %v9725 = vadd.f32 %v9724, %v9662
    %v9726 = vadd.f32 %v9725, %v9663
    %v9727 = vadd.f32 %v9726, %v9664
    %v9728 = vadd.f32 %v9727, %v9665
    %v9729 = vadd.f32 %v9728, %v9666
    %v9730 = vadd.f32 %v9729, %v9667
    %v9731 = vadd.f32 %v9730, %v9668
    %v9732 = vadd.f32 %v9731, %v9669
    %v9733 = vadd.f32 %v9732, %v9670
    %v9734 = vadd.f32 %v9733, %v9671
    %v9735 = vadd.f32 %v9734, %v9672
    %v9736 = vadd.f32 %v9735, %v9673
    %v9737 = vadd.f32 %v9736, %v9674
    %v9738 = vrot.slane %v9737, 4
    %v9739 = vadd.f32 %v9737, %v9738
    %v9740 = vrot.slane %v9739, 2
    %v9741 = vadd.f32 %v9739, %v9740
    %v9742 = vrot.slane %v9741, 1
    %v9743 = vadd.f32 %v9741, %v9742
    %vm9744 = vcmask 1040384
    %v9745 = vsel %vm9744, %v9610, %v9743
    %9746 = vst [vmem:[#allocation10] sm:$0x3] %v9745
    %v9747 = vld [vmem:[#allocation8] sm:$0xf]
    %v9748 = vld [vmem:[#allocation8 + $0x4] sm:$0xf]
    %v9749 = vld [vmem:[#allocation8 + $0x8] sm:$0xf]
    %v9750 = vld [vmem:[#allocation8 + $0xc] sm:$0xf]
    %v9751 = vld [vmem:[#allocation8 + $0x10] sm:$0xf]
    %v9752 = vld [vmem:[#allocation8 + $0x14] sm:$0xf]
    %v9753 = vld [vmem:[#allocation8 + $0x18] sm:$0xf]
    %v9754 = vld [vmem:[#allocation8 + $0x1c] sm:$0xf]
    %v9755 = vld [vmem:[#allocation8 + $0x20] sm:$0xf]
    %v9756 = vld [vmem:[#allocation8 + $0x24] sm:$0xf]
    %v9757 = vld [vmem:[#allocation8 + $0x28] sm:$0xf]
    %v9758 = vld [vmem:[#allocation8 + $0x2c] sm:$0xf]
    %v9759 = vld [vmem:[#allocation8 + $0x30] sm:$0xf]
    %v9760 = vld [vmem:[#allocation8 + $0x34] sm:$0xf]
    %v9761 = vld [vmem:[#allocation8 + $0x38] sm:$0xf]
    %v9762 = vld [vmem:[#allocation8 + $0x3c] sm:$0xf]
    %v9779 = vunpack.c.l.b16 %v9747
    %v9780 = vunpack.c.l.b16 %v9748
    %v9781 = vunpack.c.l.b16 %v9749
    %v9782 = vunpack.c.l.b16 %v9750
    %v9783 = vunpack.c.l.b16 %v9751
    %v9784 = vunpack.c.l.b16 %v9752
    %v9785 = vunpack.c.l.b16 %v9753
    %v9786 = vunpack.c.l.b16 %v9754
    %v9787 = vunpack.c.l.b16 %v9755
    %v9788 = vunpack.c.l.b16 %v9756
    %v9789 = vunpack.c.l.b16 %v9757
    %v9790 = vunpack.c.l.b16 %v9758
    %v9791 = vunpack.c.l.b16 %v9759
    %v9792 = vunpack.c.l.b16 %v9760
    %v9793 = vunpack.c.l.b16 %v9761
    %v9794 = vunpack.c.l.b16 %v9762
    %v9795 = vpack.c.b16 %v9780, %v9779
    %v9796 = vpack.c.b16 %v9782, %v9781
    %v9797 = vpack.c.b16 %v9784, %v9783
    %v9798 = vpack.c.b16 %v9786, %v9785
    %v9799 = vpack.c.b16 %v9788, %v9787
    %v9800 = vpack.c.b16 %v9790, %v9789
    %v9801 = vpack.c.b16 %v9792, %v9791
    %v9802 = vpack.c.b16 %v9794, %v9793
    %9811 = vmatprep.subr.bf16.mxu0 0
    %9812 = vmatpush1.bf16.msra.mxu0 %v9795
    %9813 = vmatprep.subr.bf16.mxu0 0
    %9814 = vmatpush1.bf16.msra.mxu0 %v9796
    %9815 = vmatprep.subr.bf16.mxu0 0
    %9816 = vmatpush1.bf16.msra.mxu0 %v9797
    %9817 = vmatprep.subr.bf16.mxu0 0
    %9818 = vmatpush1.bf16.msra.mxu0 %v9798
    %9819 = vmatprep.subr.bf16.mxu0 0
    %9820 = vmatpush1.bf16.msra.mxu0 %v9799
    %9821 = vmatprep.subr.bf16.mxu0 0
    %9822 = vmatpush1.bf16.msra.mxu0 %v9800
    %9823 = vmatprep.subr.bf16.mxu0 0
    %9824 = vmatpush1.bf16.msra.mxu0 %v9801
    %9825 = vmatprep.subr.bf16.mxu0 0
    %9826 = vmatpush1.bf16.msra.mxu0 %v9802
    %9827 = vmatprep.subr.bf16.mxu0 0
    %9828 = vmatpush1.bf16.msra.mxu0 0
    %9829 = vmatprep.subr.bf16.mxu0 0
    %9830 = vmatpush1.bf16.msra.mxu0 0
    %9831 = vmatprep.subr.bf16.mxu0 0
    %9832 = vmatpush1.bf16.msra.mxu0 0
    %9833 = vmatprep.subr.bf16.mxu0 0
    %9834 = vmatpush1.bf16.msra.mxu0 0
    %9835 = vmatprep.subr.bf16.mxu0 0
    %9836 = vmatpush1.bf16.msra.mxu0 0
    %9837 = vmatprep.subr.bf16.mxu0 0
    %9838 = vmatpush1.bf16.msra.mxu0 0
    %9839 = vmatprep.subr.bf16.mxu0 0
    %9840 = vmatpush1.bf16.msra.mxu0 0
    %9841 = vmatprep.subr.bf16.mxu0 0
    %9842 = vmatpush1.bf16.msra.mxu0 0
    %9843 = vmatprep.mubr.bf16.mxu0 0
    %9844 = vmatmul.mubr.bf16.gmra.mrb[0].mxu0 %v4812
    %v9845 = vpop.f32.mrb[0].mxu0
    %v9846 = vadd.f32 0.0, %v9845
    %v9847 = vpop.f32.mrb[0].mxu0
    %v9848 = vpop.f32.mrb[0].mxu0
    %v9849 = vadd.f32 0.0, %v9848
    %v9850 = vpop.f32.mrb[0].mxu0
    %9851 = vmatprep.mubr.bf16.mxu0 0
    %9852 = vmatmul.mubr.bf16.gmra.mrb[0].mxu0 %v4813
    %v9853 = vpop.f32.mrb[0].mxu0
    %v9854 = vadd.f32 0.0, %v9853
    %v9855 = vpop.f32.mrb[0].mxu0
    %v9856 = vpop.f32.mrb[0].mxu0
    %v9857 = vadd.f32 0.0, %v9856
    %v9858 = vpop.f32.mrb[0].mxu0
    %9859 = vmatprep.mubr.bf16.mxu0 0
    %9860 = vmatmul.mubr.bf16.gmra.mrb[0].mxu0 %v4814
    %v9861 = vpop.f32.mrb[0].mxu0
    %v9862 = vadd.f32 0.0, %v9861
    %v9863 = vpop.f32.mrb[0].mxu0
    %v9864 = vpop.f32.mrb[0].mxu0
    %v9865 = vadd.f32 0.0, %v9864
    %v9866 = vpop.f32.mrb[0].mxu0
    %9867 = vmatprep.mubr.bf16.mxu0 0
    %9868 = vmatmul.mubr.bf16.gmra.mrb[0].mxu0 %v4815
    %v9869 = vpop.f32.mrb[0].mxu0
    %v9870 = vadd.f32 0.0, %v9869
    %v9871 = vpop.f32.mrb[0].mxu0
    %v9872 = vpop.f32.mrb[0].mxu0
    %v9873 = vadd.f32 0.0, %v9872
    %v9874 = vpop.f32.mrb[0].mxu0
    %9875 = vmatprep.mubr.bf16.mxu0 0
    %9876 = vmatmul.mubr.bf16.gmra.mrb[0].mxu0 %v4816
    %v9877 = vpop.f32.mrb[0].mxu0
    %v9878 = vadd.f32 0.0, %v9877
    %v9879 = vpop.f32.mrb[0].mxu0
    %v9880 = vpop.f32.mrb[0].mxu0
    %v9881 = vadd.f32 0.0, %v9880
    %v9882 = vpop.f32.mrb[0].mxu0
    %9883 = vmatprep.mubr.bf16.mxu0 0
    %9884 = vmatmul.mubr.bf16.gmra.mrb[0].mxu0 %v4817
    %v9885 = vpop.f32.mrb[0].mxu0
    %v9886 = vadd.f32 0.0, %v9885
    %v9887 = vpop.f32.mrb[0].mxu0
    %v9888 = vpop.f32.mrb[0].mxu0
    %v9889 = vadd.f32 0.0, %v9888
    %v9890 = vpop.f32.mrb[0].mxu0
    %9891 = vmatprep.mubr.bf16.mxu0 0
    %9892 = vmatmul.mubr.bf16.gmra.mrb[0].mxu0 %v4818
    %v9893 = vpop.f32.mrb[0].mxu0
    %v9894 = vadd.f32 0.0, %v9893
    %v9895 = vpop.f32.mrb[0].mxu0
    %v9896 = vpop.f32.mrb[0].mxu0
    %v9897 = vadd.f32 0.0, %v9896
    %v9898 = vpop.f32.mrb[0].mxu0
    %9899 = vmatprep.mubr.bf16.mxu0 0
    %9900 = vmatmul.mubr.bf16.gmra.mrb[0].mxu0 %v4819
    %v9901 = vpop.f32.mrb[0].mxu0
    %v9902 = vadd.f32 0.0, %v9901
    %v9903 = vpop.f32.mrb[0].mxu0
    %v9904 = vpop.f32.mrb[0].mxu0
    %v9905 = vadd.f32 0.0, %v9904
    %v9906 = vpop.f32.mrb[0].mxu0
    %9907 = vmatprep.mubr.bf16.mxu0 0
    %9908 = vmatmul.mubr.bf16.gmra.mrb[0].mxu0 %v4820
    %v9909 = vpop.f32.mrb[0].mxu0
    %v9910 = vadd.f32 0.0, %v9909
    %v9911 = vpop.f32.mrb[0].mxu0
    %v9912 = vpop.f32.mrb[0].mxu0
    %v9913 = vadd.f32 0.0, %v9912
    %v9914 = vpop.f32.mrb[0].mxu0
    %9915 = vmatprep.mubr.bf16.mxu0 0
    %9916 = vmatmul.mubr.bf16.gmra.mrb[0].mxu0 %v4821
    %v9917 = vpop.f32.mrb[0].mxu0
    %v9918 = vadd.f32 0.0, %v9917
    %v9919 = vpop.f32.mrb[0].mxu0
    %v9920 = vpop.f32.mrb[0].mxu0
    %v9921 = vadd.f32 0.0, %v9920
    %v9922 = vpop.f32.mrb[0].mxu0
    %9923 = vmatprep.mubr.bf16.mxu0 0
    %9924 = vmatmul.mubr.bf16.gmra.mrb[0].mxu0 %v4822
    %v9925 = vpop.f32.mrb[0].mxu0
    %v9926 = vadd.f32 0.0, %v9925
    %v9927 = vpop.f32.mrb[0].mxu0
    %v9928 = vpop.f32.mrb[0].mxu0
    %v9929 = vadd.f32 0.0, %v9928
    %v9930 = vpop.f32.mrb[0].mxu0
    %9931 = vmatprep.mubr.bf16.mxu0 0
    %9932 = vmatmul.mubr.bf16.gmra.mrb[0].mxu0 %v4823
    %v9933 = vpop.f32.mrb[0].mxu0
    %v9934 = vadd.f32 0.0, %v9933
    %v9935 = vpop.f32.mrb[0].mxu0
    %v9936 = vpop.f32.mrb[0].mxu0
    %v9937 = vadd.f32 0.0, %v9936
    %v9938 = vpop.f32.mrb[0].mxu0
    %9939 = vmatprep.mubr.bf16.mxu0 0
    %9940 = vmatmul.mubr.bf16.gmra.mrb[0].mxu0 %v4824
    %v9941 = vpop.f32.mrb[0].mxu0
    %v9942 = vadd.f32 0.0, %v9941
    %v9943 = vpop.f32.mrb[0].mxu0
    %v9944 = vpop.f32.mrb[0].mxu0
    %v9945 = vadd.f32 0.0, %v9944
    %v9946 = vpop.f32.mrb[0].mxu0
    %9947 = vmatprep.mubr.bf16.mxu0 0
    %9948 = vmatmul.mubr.bf16.gmra.mrb[0].mxu0 %v4825
    %v9949 = vpop.f32.mrb[0].mxu0
    %v9950 = vadd.f32 0.0, %v9949
    %v9951 = vpop.f32.mrb[0].mxu0
    %v9952 = vpop.f32.mrb[0].mxu0
    %v9953 = vadd.f32 0.0, %v9952
    %v9954 = vpop.f32.mrb[0].mxu0
    %9955 = vmatprep.mubr.bf16.mxu0 0
    %9956 = vmatmul.mubr.bf16.gmra.mrb[0].mxu0 %v4826
    %v9957 = vpop.f32.mrb[0].mxu0
    %v9958 = vadd.f32 0.0, %v9957
    %v9959 = vpop.f32.mrb[0].mxu0
    %v9960 = vpop.f32.mrb[0].mxu0
    %v9961 = vadd.f32 0.0, %v9960
    %v9962 = vpop.f32.mrb[0].mxu0
    %9963 = vmatprep.mubr.bf16.mxu0 0
    %9964 = vmatmul.mubr.bf16.gmra.mrb[0].mxu0 %v4827
    %v9965 = vpop.f32.mrb[0].mxu0
    %v9966 = vadd.f32 0.0, %v9965
    %v9967 = vpop.f32.mrb[0].mxu0
    %v9968 = vpop.f32.mrb[0].mxu0
    %v9969 = vadd.f32 0.0, %v9968
    %v9970 = vpop.f32.mrb[0].mxu0
    %9971 = vmatprep.mubr.bf16.mxu0 0
    %9972 = vmatmul.mubr.bf16.gmra.mrb[0].mxu0 %v4828
    %v9973 = vpop.f32.mrb[0].mxu0
    %v9974 = vadd.f32 0.0, %v9973
    %v9975 = vpop.f32.mrb[0].mxu0
    %v9976 = vpop.f32.mrb[0].mxu0
    %v9977 = vadd.f32 0.0, %v9976
    %v9978 = vpop.f32.mrb[0].mxu0
    %9979 = vmatprep.mubr.bf16.mxu0 0
    %9980 = vmatmul.mubr.bf16.gmra.mrb[0].mxu0 %v4829
    %v9981 = vpop.f32.mrb[0].mxu0
    %v9982 = vadd.f32 0.0, %v9981
    %v9983 = vpop.f32.mrb[0].mxu0
    %v9984 = vpop.f32.mrb[0].mxu0
    %v9985 = vadd.f32 0.0, %v9984
    %v9986 = vpop.f32.mrb[0].mxu0
    %9987 = vmatprep.mubr.bf16.mxu0 0
    %9988 = vmatmul.mubr.bf16.gmra.mrb[0].mxu0 %v4830
    %v9989 = vpop.f32.mrb[0].mxu0
    %v9990 = vadd.f32 0.0, %v9989
    %v9991 = vpop.f32.mrb[0].mxu0
    %v9992 = vpop.f32.mrb[0].mxu0
    %v9993 = vadd.f32 0.0, %v9992
    %v9994 = vpop.f32.mrb[0].mxu0
    %9995 = vmatprep.mubr.bf16.mxu0 0
    %9996 = vmatmul.mubr.bf16.gmra.mrb[0].mxu0 %v4831
    %v9997 = vpop.f32.mrb[0].mxu0
    %v9998 = vadd.f32 0.0, %v9997
    %v9999 = vpop.f32.mrb[0].mxu0
    %v10000 = vpop.f32.mrb[0].mxu0
    %v10001 = vadd.f32 0.0, %v10000
    %v10002 = vpop.f32.mrb[0].mxu0
    %10003 = vmatprep.mubr.bf16.mxu0 0
    %10004 = vmatmul.mubr.bf16.gmra.mrb[0].mxu0 %v4832
    %v10005 = vpop.f32.mrb[0].mxu0
    %v10006 = vadd.f32 0.0, %v10005
    %v10007 = vpop.f32.mrb[0].mxu0
    %v10008 = vpop.f32.mrb[0].mxu0
    %v10009 = vadd.f32 0.0, %v10008
    %v10010 = vpop.f32.mrb[0].mxu0
    %10011 = vmatprep.mubr.bf16.mxu0 0
    %10012 = vmatmul.mubr.bf16.gmra.mrb[0].mxu0 %v4833
    %v10013 = vpop.f32.mrb[0].mxu0
    %v10014 = vadd.f32 0.0, %v10013
    %v10015 = vpop.f32.mrb[0].mxu0
    %v10016 = vpop.f32.mrb[0].mxu0
    %v10017 = vadd.f32 0.0, %v10016
    %v10018 = vpop.f32.mrb[0].mxu0
    %10019 = vmatprep.mubr.bf16.mxu0 0
    %10020 = vmatmul.mubr.bf16.gmra.mrb[0].mxu0 %v4834
    %v10021 = vpop.f32.mrb[0].mxu0
    %v10022 = vadd.f32 0.0, %v10021
    %v10023 = vpop.f32.mrb[0].mxu0
    %v10024 = vpop.f32.mrb[0].mxu0
    %v10025 = vadd.f32 0.0, %v10024
    %v10026 = vpop.f32.mrb[0].mxu0
    %10027 = vmatprep.mubr.bf16.mxu0 0
    %10028 = vmatmul.mubr.bf16.gmra.mrb[0].mxu0 %v4835
    %v10029 = vpop.f32.mrb[0].mxu0
    %v10030 = vadd.f32 0.0, %v10029
    %v10031 = vpop.f32.mrb[0].mxu0
    %v10032 = vpop.f32.mrb[0].mxu0
    %v10033 = vadd.f32 0.0, %v10032
    %v10034 = vpop.f32.mrb[0].mxu0
    %10035 = vmatprep.mubr.bf16.mxu0 0
    %10036 = vmatmul.mubr.bf16.gmra.mrb[0].mxu0 %v4836
    %v10037 = vpop.f32.mrb[0].mxu0
    %v10038 = vadd.f32 0.0, %v10037
    %v10039 = vpop.f32.mrb[0].mxu0
    %v10040 = vpop.f32.mrb[0].mxu0
    %v10041 = vadd.f32 0.0, %v10040
    %v10042 = vpop.f32.mrb[0].mxu0
    %10043 = vmatprep.mubr.bf16.mxu0 0
    %10044 = vmatmul.mubr.bf16.gmra.mrb[0].mxu0 %v4837
    %v10045 = vpop.f32.mrb[0].mxu0
    %v10046 = vadd.f32 0.0, %v10045
    %v10047 = vpop.f32.mrb[0].mxu0
    %v10048 = vpop.f32.mrb[0].mxu0
    %v10049 = vadd.f32 0.0, %v10048
    %v10050 = vpop.f32.mrb[0].mxu0
    %10051 = vmatprep.mubr.bf16.mxu0 0
    %10052 = vmatmul.mubr.bf16.gmra.mrb[0].mxu0 %v4838
    %v10053 = vpop.f32.mrb[0].mxu0
    %v10054 = vadd.f32 0.0, %v10053
    %v10055 = vpop.f32.mrb[0].mxu0
    %v10056 = vpop.f32.mrb[0].mxu0
    %v10057 = vadd.f32 0.0, %v10056
    %v10058 = vpop.f32.mrb[0].mxu0
    %10059 = vmatprep.mubr.bf16.mxu0 0
    %10060 = vmatmul.mubr.bf16.gmra.mrb[0].mxu0 %v4839
    %v10061 = vpop.f32.mrb[0].mxu0
    %v10062 = vadd.f32 0.0, %v10061
    %v10063 = vpop.f32.mrb[0].mxu0
    %v10064 = vpop.f32.mrb[0].mxu0
    %v10065 = vadd.f32 0.0, %v10064
    %v10066 = vpop.f32.mrb[0].mxu0
    %10067 = vmatprep.mubr.bf16.mxu0 0
    %10068 = vmatmul.mubr.bf16.gmra.mrb[0].mxu0 %v4840
    %v10069 = vpop.f32.mrb[0].mxu0
    %v10070 = vadd.f32 0.0, %v10069
    %v10071 = vpop.f32.mrb[0].mxu0
    %v10072 = vpop.f32.mrb[0].mxu0
    %v10073 = vadd.f32 0.0, %v10072
    %v10074 = vpop.f32.mrb[0].mxu0
    %10075 = vmatprep.mubr.bf16.mxu0 0
    %10076 = vmatmul.mubr.bf16.gmra.mrb[0].mxu0 %v4841
    %v10077 = vpop.f32.mrb[0].mxu0
    %v10078 = vadd.f32 0.0, %v10077
    %v10079 = vpop.f32.mrb[0].mxu0
    %v10080 = vpop.f32.mrb[0].mxu0
    %v10081 = vadd.f32 0.0, %v10080
    %v10082 = vpop.f32.mrb[0].mxu0
    %10083 = vmatprep.mubr.bf16.mxu0 0
    %10084 = vmatmul.mubr.bf16.gmra.mrb[0].mxu0 %v4842
    %v10085 = vpop.f32.mrb[0].mxu0
    %v10086 = vadd.f32 0.0, %v10085
    %v10087 = vpop.f32.mrb[0].mxu0
    %v10088 = vpop.f32.mrb[0].mxu0
    %v10089 = vadd.f32 0.0, %v10088
    %v10090 = vpop.f32.mrb[0].mxu0
    %10091 = vmatprep.mubr.bf16.mxu0 0
    %10092 = vmatmul.mubr.bf16.gmra.mrb[0].mxu0 %v4843
    %v10093 = vpop.f32.mrb[0].mxu0
    %v10094 = vadd.f32 0.0, %v10093
    %v10095 = vpop.f32.mrb[0].mxu0
    %v10096 = vpop.f32.mrb[0].mxu0
    %v10097 = vadd.f32 0.0, %v10096
    %v10098 = vpop.f32.mrb[0].mxu0
    %10099 = vdwg.mxu0
    %v10100 = vpack.c.bf16 %v9849, %v9846
    %v10101 = vpack.c.bf16 %v9857, %v9854
    %v10102 = vpack.c.bf16 %v9865, %v9862
    %v10103 = vpack.c.bf16 %v9873, %v9870
    %v10104 = vpack.c.bf16 %v9881, %v9878
    %v10105 = vpack.c.bf16 %v9889, %v9886
    %v10106 = vpack.c.bf16 %v9897, %v9894
    %v10107 = vpack.c.bf16 %v9905, %v9902
    %v10108 = vpack.c.bf16 %v9913, %v9910
    %v10109 = vpack.c.bf16 %v9921, %v9918
    %v10110 = vpack.c.bf16 %v9929, %v9926
    %v10111 = vpack.c.bf16 %v9937, %v9934
    %v10112 = vpack.c.bf16 %v9945, %v9942
    %v10113 = vpack.c.bf16 %v9953, %v9950
    %v10114 = vpack.c.bf16 %v9961, %v9958
    %v10115 = vpack.c.bf16 %v9969, %v9966
    %v10116 = vpack.c.bf16 %v9977, %v9974
    %v10117 = vpack.c.bf16 %v9985, %v9982
    %v10118 = vpack.c.bf16 %v9993, %v9990
    %v10119 = vpack.c.bf16 %v10001, %v9998
    %v10120 = vpack.c.bf16 %v10009, %v10006
    %v10121 = vpack.c.bf16 %v10017, %v10014
    %v10122 = vpack.c.bf16 %v10025, %v10022
    %v10123 = vpack.c.bf16 %v10033, %v10030
    %v10124 = vpack.c.bf16 %v10041, %v10038
    %v10125 = vpack.c.bf16 %v10049, %v10046
    %v10126 = vpack.c.bf16 %v10057, %v10054
    %v10127 = vpack.c.bf16 %v10065, %v10062
    %v10128 = vpack.c.bf16 %v10073, %v10070
    %v10129 = vpack.c.bf16 %v10081, %v10078
    %v10130 = vpack.c.bf16 %v10089, %v10086
    %v10131 = vpack.c.bf16 %v10097, %v10094
    %v10164 = vunpack.c.l.b16 %v10100
    %v10165 = vunpack.c.h.b16 %v10100
    %v10166 = vunpack.c.l.b16 %v10101
    %v10167 = vunpack.c.h.b16 %v10101
    %v10168 = vunpack.c.l.b16 %v10102
    %v10169 = vunpack.c.h.b16 %v10102
    %v10170 = vunpack.c.l.b16 %v10103
    %v10171 = vunpack.c.h.b16 %v10103
    %v10172 = vunpack.c.l.b16 %v10104
    %v10173 = vunpack.c.h.b16 %v10104
    %v10174 = vunpack.c.l.b16 %v10105
    %v10175 = vunpack.c.h.b16 %v10105
    %v10176 = vunpack.c.l.b16 %v10106
    %v10177 = vunpack.c.h.b16 %v10106
    %v10178 = vunpack.c.l.b16 %v10107
    %v10179 = vunpack.c.h.b16 %v10107
    %v10180 = vunpack.c.l.b16 %v10108
    %v10181 = vunpack.c.h.b16 %v10108
    %v10182 = vunpack.c.l.b16 %v10109
    %v10183 = vunpack.c.h.b16 %v10109
    %v10184 = vunpack.c.l.b16 %v10110
    %v10185 = vunpack.c.h.b16 %v10110
    %v10186 = vunpack.c.l.b16 %v10111
    %v10187 = vunpack.c.h.b16 %v10111
    %v10188 = vunpack.c.l.b16 %v10112
    %v10189 = vunpack.c.h.b16 %v10112
    %v10190 = vunpack.c.l.b16 %v10113
    %v10191 = vunpack.c.h.b16 %v10113
    %v10192 = vunpack.c.l.b16 %v10114
    %v10193 = vunpack.c.h.b16 %v10114
    %v10194 = vunpack.c.l.b16 %v10115
    %v10195 = vunpack.c.h.b16 %v10115
    %v10196 = vunpack.c.l.b16 %v10116
    %v10197 = vunpack.c.h.b16 %v10116
    %v10198 = vunpack.c.l.b16 %v10117
    %v10199 = vunpack.c.h.b16 %v10117
    %v10200 = vunpack.c.l.b16 %v10118
    %v10201 = vunpack.c.h.b16 %v10118
    %v10202 = vunpack.c.l.b16 %v10119
    %v10203 = vunpack.c.h.b16 %v10119
    %v10204 = vunpack.c.l.b16 %v10120
    %v10205 = vunpack.c.h.b16 %v10120
    %v10206 = vunpack.c.l.b16 %v10121
    %v10207 = vunpack.c.h.b16 %v10121
    %v10208 = vunpack.c.l.b16 %v10122
    %v10209 = vunpack.c.h.b16 %v10122
    %v10210 = vunpack.c.l.b16 %v10123
    %v10211 = vunpack.c.h.b16 %v10123
    %v10212 = vunpack.c.l.b16 %v10124
    %v10213 = vunpack.c.h.b16 %v10124
    %v10214 = vunpack.c.l.b16 %v10125
    %v10215 = vunpack.c.h.b16 %v10125
    %v10216 = vunpack.c.l.b16 %v10126
    %v10217 = vunpack.c.h.b16 %v10126
    %v10218 = vunpack.c.l.b16 %v10127
    %v10219 = vunpack.c.h.b16 %v10127
    %v10220 = vunpack.c.l.b16 %v10128
    %v10221 = vunpack.c.h.b16 %v10128
    %v10222 = vunpack.c.l.b16 %v10129
    %v10223 = vunpack.c.h.b16 %v10129
    %v10224 = vunpack.c.l.b16 %v10130
    %v10225 = vunpack.c.h.b16 %v10130
    %v10226 = vunpack.c.l.b16 %v10131
    %v10227 = vunpack.c.h.b16 %v10131
    %v10228 = vpack.c.b16 %v10164, %v10164
    %v10229 = vpack.c.b16 %v10165, %v10165
    %v10230 = vpack.c.b16 %v10166, %v10166
    %v10231 = vpack.c.b16 %v10167, %v10167
    %v10232 = vpack.c.b16 %v10168, %v10168
    %v10233 = vpack.c.b16 %v10169, %v10169
    %v10234 = vpack.c.b16 %v10170, %v10170
    %v10235 = vpack.c.b16 %v10171, %v10171
    %v10236 = vpack.c.b16 %v10172, %v10172
    %v10237 = vpack.c.b16 %v10173, %v10173
    %v10238 = vpack.c.b16 %v10174, %v10174
    %v10239 = vpack.c.b16 %v10175, %v10175
    %v10240 = vpack.c.b16 %v10176, %v10176
    %v10241 = vpack.c.b16 %v10177, %v10177
    %v10242 = vpack.c.b16 %v10178, %v10178
    %v10243 = vpack.c.b16 %v10179, %v10179
    %v10244 = vpack.c.b16 %v10180, %v10180
    %v10245 = vpack.c.b16 %v10181, %v10181
    %v10246 = vpack.c.b16 %v10182, %v10182
    %v10247 = vpack.c.b16 %v10183, %v10183
    %v10248 = vpack.c.b16 %v10184, %v10184
    %v10249 = vpack.c.b16 %v10185, %v10185
    %v10250 = vpack.c.b16 %v10186, %v10186
    %v10251 = vpack.c.b16 %v10187, %v10187
    %v10252 = vpack.c.b16 %v10188, %v10188
    %v10253 = vpack.c.b16 %v10189, %v10189
    %v10254 = vpack.c.b16 %v10190, %v10190
    %v10255 = vpack.c.b16 %v10191, %v10191
    %v10256 = vpack.c.b16 %v10192, %v10192
    %v10257 = vpack.c.b16 %v10193, %v10193
    %v10258 = vpack.c.b16 %v10194, %v10194
    %v10259 = vpack.c.b16 %v10195, %v10195
    %v10260 = vpack.c.b16 %v10196, %v10196
    %v10261 = vpack.c.b16 %v10197, %v10197
    %v10262 = vpack.c.b16 %v10198, %v10198
    %v10263 = vpack.c.b16 %v10199, %v10199
    %v10264 = vpack.c.b16 %v10200, %v10200
    %v10265 = vpack.c.b16 %v10201, %v10201
    %v10266 = vpack.c.b16 %v10202, %v10202
    %v10267 = vpack.c.b16 %v10203, %v10203
    %v10268 = vpack.c.b16 %v10204, %v10204
    %v10269 = vpack.c.b16 %v10205, %v10205
    %v10270 = vpack.c.b16 %v10206, %v10206
    %v10271 = vpack.c.b16 %v10207, %v10207
    %v10272 = vpack.c.b16 %v10208, %v10208
    %v10273 = vpack.c.b16 %v10209, %v10209
    %v10274 = vpack.c.b16 %v10210, %v10210
    %v10275 = vpack.c.b16 %v10211, %v10211
    %v10276 = vpack.c.b16 %v10212, %v10212
    %v10277 = vpack.c.b16 %v10213, %v10213
    %v10278 = vpack.c.b16 %v10214, %v10214
    %v10279 = vpack.c.b16 %v10215, %v10215
    %v10280 = vpack.c.b16 %v10216, %v10216
    %v10281 = vpack.c.b16 %v10217, %v10217
    %v10282 = vpack.c.b16 %v10218, %v10218
    %v10283 = vpack.c.b16 %v10219, %v10219
    %v10284 = vpack.c.b16 %v10220, %v10220
    %v10285 = vpack.c.b16 %v10221, %v10221
    %v10286 = vpack.c.b16 %v10222, %v10222
    %v10287 = vpack.c.b16 %v10223, %v10223
    %v10288 = vpack.c.b16 %v10224, %v10224
    %v10289 = vpack.c.b16 %v10225, %v10225
    %v10290 = vpack.c.b16 %v10226, %v10226
    %v10291 = vpack.c.b16 %v10227, %v10227
    %10356 = vst [vmem:[#allocation12] sm:$0xf] %v10228
    %10357 = vst [vmem:[#allocation12 + $0x4] sm:$0xf] %v10229
    %10358 = vst [vmem:[#allocation12 + $0x8] sm:$0xf] %v10230
    %10359 = vst [vmem:[#allocation12 + $0xc] sm:$0xf] %v10231
    %10360 = vst [vmem:[#allocation12 + $0x10] sm:$0xf] %v10232
    %10361 = vst [vmem:[#allocation12 + $0x14] sm:$0xf] %v10233
    %10362 = vst [vmem:[#allocation12 + $0x18] sm:$0xf] %v10234
    %10363 = vst [vmem:[#allocation12 + $0x1c] sm:$0xf] %v10235
    %10364 = vst [vmem:[#allocation12 + $0x20] sm:$0xf] %v10236
    %10365 = vst [vmem:[#allocation12 + $0x24] sm:$0xf] %v10237
    %10366 = vst [vmem:[#allocation12 + $0x28] sm:$0xf] %v10238
    %10367 = vst [vmem:[#allocation12 + $0x2c] sm:$0xf] %v10239
    %10368 = vst [vmem:[#allocation12 + $0x30] sm:$0xf] %v10240
    %10369 = vst [vmem:[#allocation12 + $0x34] sm:$0xf] %v10241
    %10370 = vst [vmem:[#allocation12 + $0x38] sm:$0xf] %v10242
    %10371 = vst [vmem:[#allocation12 + $0x3c] sm:$0xf] %v10243
    %10372 = vst [vmem:[#allocation12 + $0x40] sm:$0xf] %v10244
    %10373 = vst [vmem:[#allocation12 + $0x44] sm:$0xf] %v10245
    %10374 = vst [vmem:[#allocation12 + $0x48] sm:$0xf] %v10246
    %10375 = vst [vmem:[#allocation12 + $0x4c] sm:$0xf] %v10247
    %10376 = vst [vmem:[#allocation12 + $0x50] sm:$0xf] %v10248
    %10377 = vst [vmem:[#allocation12 + $0x54] sm:$0xf] %v10249
    %10378 = vst [vmem:[#allocation12 + $0x58] sm:$0xf] %v10250
    %10379 = vst [vmem:[#allocation12 + $0x5c] sm:$0xf] %v10251
    %10380 = vst [vmem:[#allocation12 + $0x60] sm:$0xf] %v10252
    %10381 = vst [vmem:[#allocation12 + $0x64] sm:$0xf] %v10253
    %10382 = vst [vmem:[#allocation12 + $0x68] sm:$0xf] %v10254
    %10383 = vst [vmem:[#allocation12 + $0x6c] sm:$0xf] %v10255
    %10384 = vst [vmem:[#allocation12 + $0x70] sm:$0xf] %v10256
    %10385 = vst [vmem:[#allocation12 + $0x74] sm:$0xf] %v10257
    %10386 = vst [vmem:[#allocation12 + $0x78] sm:$0xf] %v10258
    %10387 = vst [vmem:[#allocation12 + $0x7c] sm:$0xf] %v10259
    %10388 = vst [vmem:[#allocation12 + $0x80] sm:$0xf] %v10260
    %10389 = vst [vmem:[#allocation12 + $0x84] sm:$0xf] %v10261
    %10390 = vst [vmem:[#allocation12 + $0x88] sm:$0xf] %v10262
    %10391 = vst [vmem:[#allocation12 + $0x8c] sm:$0xf] %v10263
    %10392 = vst [vmem:[#allocation12 + $0x90] sm:$0xf] %v10264
    %10393 = vst [vmem:[#allocation12 + $0x94] sm:$0xf] %v10265
    %10394 = vst [vmem:[#allocation12 + $0x98] sm:$0xf] %v10266
    %10395 = vst [vmem:[#allocation12 + $0x9c] sm:$0xf] %v10267
    %10396 = vst [vmem:[#allocation12 + $0xa0] sm:$0xf] %v10268
    %10397 = vst [vmem:[#allocation12 + $0xa4] sm:$0xf] %v10269
    %10398 = vst [vmem:[#allocation12 + $0xa8] sm:$0xf] %v10270
    %10399 = vst [vmem:[#allocation12 + $0xac] sm:$0xf] %v10271
    %10400 = vst [vmem:[#allocation12 + $0xb0] sm:$0xf] %v10272
    %10401 = vst [vmem:[#allocation12 + $0xb4] sm:$0xf] %v10273
    %10402 = vst [vmem:[#allocation12 + $0xb8] sm:$0xf] %v10274
    %10403 = vst [vmem:[#allocation12 + $0xbc] sm:$0xf] %v10275
    %10404 = vst [vmem:[#allocation12 + $0xc0] sm:$0xf] %v10276
    %10405 = vst [vmem:[#allocation12 + $0xc4] sm:$0xf] %v10277
    %10406 = vst [vmem:[#allocation12 + $0xc8] sm:$0xf] %v10278
    %10407 = vst [vmem:[#allocation12 + $0xcc] sm:$0xf] %v10279
    %10408 = vst [vmem:[#allocation12 + $0xd0] sm:$0xf] %v10280
    %10409 = vst [vmem:[#allocation12 + $0xd4] sm:$0xf] %v10281
    %10410 = vst [vmem:[#allocation12 + $0xd8] sm:$0xf] %v10282
    %10411 = vst [vmem:[#allocation12 + $0xdc] sm:$0xf] %v10283
    %10412 = vst [vmem:[#allocation12 + $0xe0] sm:$0xf] %v10284
    %10413 = vst [vmem:[#allocation12 + $0xe4] sm:$0xf] %v10285
    %10414 = vst [vmem:[#allocation12 + $0xe8] sm:$0xf] %v10286
    %10415 = vst [vmem:[#allocation12 + $0xec] sm:$0xf] %v10287
    %10416 = vst [vmem:[#allocation12 + $0xf0] sm:$0xf] %v10288
    %10417 = vst [vmem:[#allocation12 + $0xf4] sm:$0xf] %v10289
    %10418 = vst [vmem:[#allocation12 + $0xf8] sm:$0xf] %v10290
    %10419 = vst [vmem:[#allocation12 + $0xfc] sm:$0xf] %v10291
    %v10420 = vadd.f32 %v9846, %v9849
    %v10421 = vadd.f32 %v10420, %v9854
    %v10422 = vadd.f32 %v10421, %v9857
    %v10423 = vadd.f32 %v10422, %v9862
    %v10424 = vadd.f32 %v10423, %v9865
    %v10425 = vadd.f32 %v10424, %v9870
    %v10426 = vadd.f32 %v10425, %v9873
    %v10427 = vadd.f32 %v10426, %v9878
    %v10428 = vadd.f32 %v10427, %v9881
    %v10429 = vadd.f32 %v10428, %v9886
    %v10430 = vadd.f32 %v10429, %v9889
    %v10431 = vadd.f32 %v10430, %v9894
    %v10432 = vadd.f32 %v10431, %v9897
    %v10433 = vadd.f32 %v10432, %v9902
    %v10434 = vadd.f32 %v10433, %v9905
    %v10435 = vadd.f32 %v10434, %v9910
    %v10436 = vadd.f32 %v10435, %v9913
    %v10437 = vadd.f32 %v10436, %v9918
    %v10438 = vadd.f32 %v10437, %v9921
    %v10439 = vadd.f32 %v10438, %v9926
    %v10440 = vadd.f32 %v10439, %v9929
    %v10441 = vadd.f32 %v10440, %v9934
    %v10442 = vadd.f32 %v10441, %v9937
    %v10443 = vadd.f32 %v10442, %v9942
    %v10444 = vadd.f32 %v10443, %v9945
    %v10445 = vadd.f32 %v10444, %v9950
    %v10446 = vadd.f32 %v10445, %v9953
    %v10447 = vadd.f32 %v10446, %v9958
    %v10448 = vadd.f32 %v10447, %v9961
    %v10449 = vadd.f32 %v10448, %v9966
    %v10450 = vadd.f32 %v10449, %v9969
    %v10451 = vadd.f32 %v10450, %v9974
    %v10452 = vadd.f32 %v10451, %v9977
    %v10453 = vadd.f32 %v10452, %v9982
    %v10454 = vadd.f32 %v10453, %v9985
    %v10455 = vadd.f32 %v10454, %v9990
    %v10456 = vadd.f32 %v10455, %v9993
    %v10457 = vadd.f32 %v10456, %v9998
    %v10458 = vadd.f32 %v10457, %v10001
    %v10459 = vadd.f32 %v10458, %v10006
    %v10460 = vadd.f32 %v10459, %v10009
    %v10461 = vadd.f32 %v10460, %v10014
    %v10462 = vadd.f32 %v10461, %v10017
    %v10463 = vadd.f32 %v10462, %v10022
    %v10464 = vadd.f32 %v10463, %v10025
    %v10465 = vadd.f32 %v10464, %v10030
    %v10466 = vadd.f32 %v10465, %v10033
    %v10467 = vadd.f32 %v10466, %v10038
    %v10468 = vadd.f32 %v10467, %v10041
    %v10469 = vadd.f32 %v10468, %v10046
    %v10470 = vadd.f32 %v10469, %v10049
    %v10471 = vadd.f32 %v10470, %v10054
    %v10472 = vadd.f32 %v10471, %v10057
    %v10473 = vadd.f32 %v10472, %v10062
    %v10474 = vadd.f32 %v10473, %v10065
    %v10475 = vadd.f32 %v10474, %v10070
    %v10476 = vadd.f32 %v10475, %v10073
    %v10477 = vadd.f32 %v10476, %v10078
    %v10478 = vadd.f32 %v10477, %v10081
    %v10479 = vadd.f32 %v10478, %v10086
    %v10480 = vadd.f32 %v10479, %v10089
    %v10481 = vadd.f32 %v10480, %v10094
    %v10482 = vadd.f32 %v10481, %v10097
    %v10483 = vrot.slane %v10482, 4
    %v10484 = vadd.f32 %v10482, %v10483
    %v10485 = vrot.slane %v10484, 2
    %v10486 = vadd.f32 %v10484, %v10485
    %v10487 = vrot.slane %v10486, 1
    %v10488 = vadd.f32 %v10486, %v10487
    %v10489 = vmul.f32 %v9846, %v9846
    %v10490 = vmul.f32 %v9849, %v9849
    %v10491 = vmul.f32 %v9854, %v9854
    %v10492 = vmul.f32 %v9857, %v9857
    %v10493 = vmul.f32 %v9862, %v9862
    %v10494 = vmul.f32 %v9865, %v9865
    %v10495 = vmul.f32 %v9870, %v9870
    %v10496 = vmul.f32 %v9873, %v9873
    %v10497 = vmul.f32 %v9878, %v9878
    %v10498 = vmul.f32 %v9881, %v9881
    %v10499 = vmul.f32 %v9886, %v9886
    %v10500 = vmul.f32 %v9889, %v9889
    %v10501 = vmul.f32 %v9894, %v9894
    %v10502 = vmul.f32 %v9897, %v9897
    %v10503 = vmul.f32 %v9902, %v9902
    %v10504 = vmul.f32 %v9905, %v9905
    %v10505 = vmul.f32 %v9910, %v9910
    %v10506 = vmul.f32 %v9913, %v9913
    %v10507 = vmul.f32 %v9918, %v9918
    %v10508 = vmul.f32 %v9921, %v9921
    %v10509 = vmul.f32 %v9926, %v9926
    %v10510 = vmul.f32 %v9929, %v9929
    %v10511 = vmul.f32 %v9934, %v9934
    %v10512 = vmul.f32 %v9937, %v9937
    %v10513 = vmul.f32 %v9942, %v9942
    %v10514 = vmul.f32 %v9945, %v9945
    %v10515 = vmul.f32 %v9950, %v9950
    %v10516 = vmul.f32 %v9953, %v9953
    %v10517 = vmul.f32 %v9958, %v9958
    %v10518 = vmul.f32 %v9961, %v9961
    %v10519 = vmul.f32 %v9966, %v9966
    %v10520 = vmul.f32 %v9969, %v9969
    %v10521 = vmul.f32 %v9974, %v9974
    %v10522 = vmul.f32 %v9977, %v9977
    %v10523 = vmul.f32 %v9982, %v9982
    %v10524 = vmul.f32 %v9985, %v9985
    %v10525 = vmul.f32 %v9990, %v9990
    %v10526 = vmul.f32 %v9993, %v9993
    %v10527 = vmul.f32 %v9998, %v9998
    %v10528 = vmul.f32 %v10001, %v10001
    %v10529 = vmul.f32 %v10006, %v10006
    %v10530 = vmul.f32 %v10009, %v10009
    %v10531 = vmul.f32 %v10014, %v10014
    %v10532 = vmul.f32 %v10017, %v10017
    %v10533 = vmul.f32 %v10022, %v10022
    %v10534 = vmul.f32 %v10025, %v10025
    %v10535 = vmul.f32 %v10030, %v10030
    %v10536 = vmul.f32 %v10033, %v10033
    %v10537 = vmul.f32 %v10038, %v10038
    %v10538 = vmul.f32 %v10041, %v10041
    %v10539 = vmul.f32 %v10046, %v10046
    %v10540 = vmul.f32 %v10049, %v10049
    %v10541 = vmul.f32 %v10054, %v10054
    %v10542 = vmul.f32 %v10057, %v10057
    %v10543 = vmul.f32 %v10062, %v10062
    %v10544 = vmul.f32 %v10065, %v10065
    %v10545 = vmul.f32 %v10070, %v10070
    %v10546 = vmul.f32 %v10073, %v10073
    %v10547 = vmul.f32 %v10078, %v10078
    %v10548 = vmul.f32 %v10081, %v10081
    %v10549 = vmul.f32 %v10086, %v10086
    %v10550 = vmul.f32 %v10089, %v10089
    %v10551 = vmul.f32 %v10094, %v10094
    %v10552 = vmul.f32 %v10097, %v10097
    %v10553 = vadd.f32 %v10489, %v10490
    %v10554 = vadd.f32 %v10553, %v10491
    %v10555 = vadd.f32 %v10554, %v10492
    %v10556 = vadd.f32 %v10555, %v10493
    %v10557 = vadd.f32 %v10556, %v10494
    %v10558 = vadd.f32 %v10557, %v10495
    %v10559 = vadd.f32 %v10558, %v10496
    %v10560 = vadd.f32 %v10559, %v10497
    %v10561 = vadd.f32 %v10560, %v10498
    %v10562 = vadd.f32 %v10561, %v10499
    %v10563 = vadd.f32 %v10562, %v10500
    %v10564 = vadd.f32 %v10563, %v10501
    %v10565 = vadd.f32 %v10564, %v10502
    %v10566 = vadd.f32 %v10565, %v10503
    %v10567 = vadd.f32 %v10566, %v10504
    %v10568 = vadd.f32 %v10567, %v10505
    %v10569 = vadd.f32 %v10568, %v10506
    %v10570 = vadd.f32 %v10569, %v10507
    %v10571 = vadd.f32 %v10570, %v10508
    %v10572 = vadd.f32 %v10571, %v10509
    %v10573 = vadd.f32 %v10572, %v10510
    %v10574 = vadd.f32 %v10573, %v10511
    %v10575 = vadd.f32 %v10574, %v10512
    %v10576 = vadd.f32 %v10575, %v10513
    %v10577 = vadd.f32 %v10576, %v10514
    %v10578 = vadd.f32 %v10577, %v10515
    %v10579 = vadd.f32 %v10578, %v10516
    %v10580 = vadd.f32 %v10579, %v10517
    %v10581 = vadd.f32 %v10580, %v10518
    %v10582 = vadd.f32 %v10581, %v10519
    %v10583 = vadd.f32 %v10582, %v10520
    %v10584 = vadd.f32 %v10583, %v10521
    %v10585 = vadd.f32 %v10584, %v10522
    %v10586 = vadd.f32 %v10585, %v10523
    %v10587 = vadd.f32 %v10586, %v10524
    %v10588 = vadd.f32 %v10587, %v10525
    %v10589 = vadd.f32 %v10588, %v10526
    %v10590 = vadd.f32 %v10589, %v10527
    %v10591 = vadd.f32 %v10590, %v10528
    %v10592 = vadd.f32 %v10591, %v10529
    %v10593 = vadd.f32 %v10592, %v10530
    %v10594 = vadd.f32 %v10593, %v10531
    %v10595 = vadd.f32 %v10594, %v10532
    %v10596 = vadd.f32 %v10595, %v10533
    %v10597 = vadd.f32 %v10596, %v10534
    %v10598 = vadd.f32 %v10597, %v10535
    %v10599 = vadd.f32 %v10598, %v10536
    %v10600 = vadd.f32 %v10599, %v10537
    %v10601 = vadd.f32 %v10600, %v10538
    %v10602 = vadd.f32 %v10601, %v10539
    %v10603 = vadd.f32 %v10602, %v10540
    %v10604 = vadd.f32 %v10603, %v10541
    %v10605 = vadd.f32 %v10604, %v10542
    %v10606 = vadd.f32 %v10605, %v10543
    %v10607 = vadd.f32 %v10606, %v10544
    %v10608 = vadd.f32 %v10607, %v10545
    %v10609 = vadd.f32 %v10608, %v10546
    %v10610 = vadd.f32 %v10609, %v10547
    %v10611 = vadd.f32 %v10610, %v10548
    %v10612 = vadd.f32 %v10611, %v10549
    %v10613 = vadd.f32 %v10612, %v10550
    %v10614 = vadd.f32 %v10613, %v10551
    %v10615 = vadd.f32 %v10614, %v10552
    %v10616 = vrot.slane %v10615, 4
    %v10617 = vadd.f32 %v10615, %v10616
    %v10618 = vrot.slane %v10617, 2
    %v10619 = vadd.f32 %v10617, %v10618
    %v10620 = vrot.slane %v10619, 1
    %v10621 = vadd.f32 %v10619, %v10620
    %v10622 = vsel %vm9744, %v10488, %v10621
    %10623 = vst [vmem:[#allocation13] sm:$0x3] %v10622
    // Predicated region
    $region26: #{tpu_custom_call.1} parent=1 // pred_check
      _
    $region27: #{tpu_custom_call.1} parent=1 // pred_check_branch
      %10625 = sbr.rel (0) target = $region29
    $region28: #{tpu_custom_call.1} parent=1 // pred_region
      %s10627 = ssub.s32 4096, 4096
      %10628 = vsyncadd [#allocation5], %s10627
      %s10629 = sshll.u32 [#allocation9], 4
      %s10630 = int_to_ptr.vmem [resolvable:$true] %s10629
      %10635 = dma.vmem_to_hbm [thread:$0]  %s10630, 4096, %s3, [#allocation5], 64, 64, 4
    $region29: #{tpu_custom_call.1} parent=1 // pred_fallthru
      _
    // Predicated region
    $region30: #{tpu_custom_call.1} parent=1 // pred_check
      _
    $region31: #{tpu_custom_call.1} parent=1 // pred_check_branch
      %10637 = sbr.rel (0) target = $region33
    $region32: #{tpu_custom_call.1} parent=1 // pred_region
      %s10639 = ssub.s32 32, 32
      %10640 = vsyncadd [#allocation11], %s10639
      %s10642 = sshll.u32 [#allocation10], 4
      %s10643 = int_to_ptr.vmem [resolvable:$true] %s10642
      %10645 = dma.vmem_to_hbm [thread:$0]  %s10643, 32, %s4, [#allocation11]
    $region33: #{tpu_custom_call.1} parent=1 // pred_fallthru
      _
    // Predicated region
    $region34: #{tpu_custom_call.1} parent=1 // pred_check
      _
    $region35: #{tpu_custom_call.1} parent=1 // pred_check_branch
      %10647 = sbr.rel (0) target = $region37
    $region36: #{tpu_custom_call.1} parent=1 // pred_region
      %s10649 = ssub.s32 4096, 4096
      %10650 = vsyncadd [#allocation11], %s10649
      %s10651 = sshll.u32 [#allocation12], 4
      %s10652 = int_to_ptr.vmem [resolvable:$true] %s10651
      %10657 = dma.vmem_to_hbm [thread:$0]  %s10652, 4096, %s5, [#allocation11], 64, 64, 4
    $region37: #{tpu_custom_call.1} parent=1 // pred_fallthru
      _
    // Predicated region
    $region38: #{tpu_custom_call.1} parent=1 // pred_check
      _
    $region39: #{tpu_custom_call.1} parent=1 // pred_check_branch
      %10659 = sbr.rel (0) target = $region41
    $region40: #{tpu_custom_call.1} parent=1 // pred_region
      %s10661 = ssub.s32 32, 32
      %10662 = vsyncadd [#allocation14], %s10661
      %s10664 = sshll.u32 [#allocation13], 4
      %s10665 = int_to_ptr.vmem [resolvable:$true] %s10664
      %10667 = dma.vmem_to_hbm [thread:$0]  %s10665, 32, %s6, [#allocation14]
    $region41: #{tpu_custom_call.1} parent=1 // pred_fallthru
      _
    // Predicated region
    $region42: #{tpu_custom_call.1} parent=1 // pred_check
      _
    $region43: #{tpu_custom_call.1} parent=1 // pred_check_branch
      %10669 = sbr.rel (0) target = $region45
    $region44: #{tpu_custom_call.1} parent=1 // pred_region
      %10670 = dma.done [#allocation5], 4096
    $region45: #{tpu_custom_call.1} parent=1 // pred_fallthru
      _
    // Predicated region
    $region46: #{tpu_custom_call.1} parent=1 // pred_check
      _
    $region47: #{tpu_custom_call.1} parent=1 // pred_check_branch
      %10672 = sbr.rel (0) target = $region49
    $region48: #{tpu_custom_call.1} parent=1 // pred_region
      %10673 = dma.done [#allocation11], 32
    $region49: #{tpu_custom_call.1} parent=1 // pred_fallthru
      _
    // Predicated region
    $region50: #{tpu_custom_call.1} parent=1 // pred_check
      _
    $region51: #{tpu_custom_call.1} parent=1 // pred_check_branch
      %10675 = sbr.rel (0) target = $region53
    $region52: #{tpu_custom_call.1} parent=1 // pred_region
      %10676 = dma.done [#allocation11], 4096
    $region53: #{tpu_custom_call.1} parent=1 // pred_fallthru
      _
    // Predicated region
    $region54: #{tpu_custom_call.1} parent=1 // pred_check
      _
    $region55: #{tpu_custom_call.1} parent=1 // pred_check_branch
      %10678 = sbr.rel (0) target = $region57
    $region56: #{tpu_custom_call.1} parent=1 // pred_region
      %10679 = dma.done [#allocation14], 32
    $region57: #{tpu_custom_call.1} parent=1 // pred_fallthru
      _
    %10680 = vsyncpa [#allocation4], 1
    %10681 = vsyncpa [#allocation7], 1
    %10682 = vsyncpa [#allocation5], 1
    %10683 = vsyncpa [#allocation11], 1
    %10684 = vsyncpa [#allocation14], 1

</llo_original>
